<compile_context>
chip_gen: v5e
topology: v5e:2x2
jax: 0.10.0
libtpu: 0.0.40
codegen_flags: <defaults>
</compile_context>

<pallas_src>
import functools

import numpy as np
import jax
import jax.numpy as jnp
from jax.experimental import pallas as pl
from jax.experimental.pallas import tpu as pltpu

FEAT = 64
GAMMA = 0.8
EPS = 1e-8

# Use the fused single-kernel 2-D DFT while the (HW x HW) real+imag basis
# stays under this budget; otherwise fall back to the separable formulation.
_FUSED_DFT_MAX_BASIS_BYTES = 16 * 1024 * 1024


# ---------------------------------------------------------------------------
# In-kernel math helpers
# ---------------------------------------------------------------------------
def _erf_approx(x):
    # Abramowitz & Stegun 7.1.26 (max abs err ~1.5e-7) -- matches nn.GELU()
    # (erf-based) well below the f32 noise floor of this block.
    p = 0.3275911
    a1, a2, a3, a4, a5 = (0.254829592, -0.284496736, 1.421413741,
                          -1.453152027, 1.061405429)
    ax = jnp.abs(x)
    t = 1.0 / (1.0 + p * ax)
    poly = ((((a5 * t + a4) * t + a3) * t + a2) * t + a1) * t
    y = 1.0 - poly * jnp.exp(-ax * ax)
    return jnp.where(x >= 0.0, y, -y)


def _apply_act(y, act):
    if act == "gelu":
        return 0.5 * y * (1.0 + _erf_approx(y * 0.7071067811865476))
    if act == "relu":
        return jnp.maximum(y, 0.0)
    return y


# ---------------------------------------------------------------------------
# Pallas kernel 1: fused 3x3 conv (+ bias + activation [+ global avg pool])
# ---------------------------------------------------------------------------
def _conv3x3_kernel(x_ref, w_ref, b_ref, o_ref, *, H, W, act, pool):
    # x_ref: (1, H+2, W+2, Cin) bf16   w_ref: (9, Cin, Cout) bf16
    # b_ref: (1, Cout) f32             o_ref: (1, H*W, Cout) or (1, 1, Cout)
    cin = x_ref.shape[3]
    cout = w_ref.shape[2]
    acc = jnp.zeros((H * W, cout), jnp.float32)
    for t in range(9):
        dy, dx = divmod(t, 3)
        xt = x_ref[0, dy:dy + H, dx:dx + W, :]            # (H, W, Cin)
        xt = xt.reshape(H * W, cin)
        acc = acc + jnp.dot(xt, w_ref[t],
                            preferred_element_type=jnp.float32)
    y = _apply_act(acc + b_ref[...], act)                  # (H*W, Cout) f32
    if pool:
        o_ref[0] = jnp.mean(y, axis=0, keepdims=True)      # (1, Cout)
    else:
        o_ref[0] = y


@functools.lru_cache(maxsize=None)
def _conv3x3_fn(B, H, W, Cin, Cout, act, pool):
    Hp, Wp = H + 2, W + 2
    if pool:
        out_shape = jax.ShapeDtypeStruct((B, 1, Cout), jnp.float32)
        out_block = (1, 1, Cout)
    else:
        out_shape = jax.ShapeDtypeStruct((B, H * W, Cout), jnp.float32)
        out_block = (1, H * W, Cout)
    return pl.pallas_call(
        functools.partial(_conv3x3_kernel, H=H, W=W, act=act, pool=pool),
        out_shape=out_shape,
        grid=(B,),
        in_specs=[
            pl.BlockSpec((1, Hp, Wp, Cin), lambda b: (b, 0, 0, 0)),
            pl.BlockSpec((9, Cin, Cout), lambda b: (0, 0, 0)),
            pl.BlockSpec((1, Cout), lambda b: (0, 0)),
        ],
        out_specs=pl.BlockSpec(out_block, lambda b: (b, 0, 0)),
        compiler_params=pltpu.CompilerParams(dimension_semantics=("parallel",)),
    )


def conv3x3(x, w, b, act, pool=False):
    """3x3 / stride 1 / pad 1 conv in NHWC (HWIO weights); optional fused
    global average pool over H, W."""
    B, H, W, Cin = x.shape
    Cout = w.shape[-1]
    xp = jnp.pad(x, ((0, 0), (1, 1), (1, 1), (0, 0))).astype(jnp.bfloat16)
    wq = w.reshape(9, Cin, Cout).astype(jnp.bfloat16)
    y = _conv3x3_fn(B, H, W, Cin, Cout, act, pool)(xp, wq, b.reshape(1, Cout))
    if pool:
        return y.reshape(B, Cout)
    return y.reshape(B, H, W, Cout)


# ---------------------------------------------------------------------------
# Pallas kernel 2: fused 2-D DFT spectrum (small maps)
#     fftshift2d(pow(|fft2(x)| + eps, gamma)), fftshift folded into the basis.
# ---------------------------------------------------------------------------
@functools.lru_cache(maxsize=None)
def _dft2_shift_basis(H, W):
    # Flat (HW x HW) DFT basis with the fftshift row permutation folded in:
    #   out[u', v'] = F[(u'+H//2)%H, (v'+W//2)%W]
    uu = (np.arange(H) + H // 2) % H
    vv = (np.arange(W) + W // 2) % W
    ah = 2.0 * np.pi * np.outer(uu, np.arange(H)) / H       # [u', h]
    aw = 2.0 * np.pi * np.outer(vv, np.arange(W)) / W       # [v', w]
    ang = (ah[:, None, :, None] + aw[None, :, None, :]).reshape(H * W, H * W)
    return (jnp.asarray(np.cos(ang), jnp.float32),
            jnp.asarray(-np.sin(ang), jnp.float32))


def _dft2_kernel(x_ref, cr_ref, ci_ref, o_ref, *, gamma, eps):
    x = x_ref[0]                                            # (HW, C) f32
    fr = jnp.dot(cr_ref[...], x, preferred_element_type=jnp.float32)
    fi = jnp.dot(ci_ref[...], x, preferred_element_type=jnp.float32)
    mag = jnp.sqrt(fr * fr + fi * fi) + eps
    o_ref[0] = jnp.exp(gamma * jnp.log(mag))                # (|FFT|+eps)**gamma


@functools.lru_cache(maxsize=None)
def _dft2_fn(B, HW, C, gamma, eps):
    return pl.pallas_call(
        functools.partial(_dft2_kernel, gamma=gamma, eps=eps),
        out_shape=jax.ShapeDtypeStruct((B, HW, C), jnp.float32),
        grid=(B,),
        in_specs=[pl.BlockSpec((1, HW, C), lambda b: (b, 0, 0)),
                  pl.BlockSpec((HW, HW), lambda b: (0, 0)),
                  pl.BlockSpec((HW, HW), lambda b: (0, 0))],
        out_specs=pl.BlockSpec((1, HW, C), lambda b: (b, 0, 0)),
        compiler_params=pltpu.CompilerParams(dimension_semantics=("parallel",)),
    )


# ---------------------------------------------------------------------------
# Pallas kernels 3+4: separable DFT spectrum (fallback for large maps)
# ---------------------------------------------------------------------------
@functools.lru_cache(maxsize=None)
def _dft_shift_mats(n):
    u = (np.arange(n) + n // 2) % n
    ang = 2.0 * np.pi * np.outer(u, np.arange(n)) / n
    return (jnp.asarray(np.cos(ang), jnp.float32),
            jnp.asarray(-np.sin(ang), jnp.float32))


def _dft_rows_kernel(x_ref, cr_ref, ci_ref, gr_ref, gi_ref):
    x = x_ref[0]                                            # (H, W*C) f32
    gr_ref[0] = jnp.dot(cr_ref[...], x, preferred_element_type=jnp.float32)
    gi_ref[0] = jnp.dot(ci_ref[...], x, preferred_element_type=jnp.float32)


@functools.lru_cache(maxsize=None)
def _dft_rows_fn(B, H, N):
    return pl.pallas_call(
        _dft_rows_kernel,
        out_shape=(jax.ShapeDtypeStruct((B, H, N), jnp.float32),
                   jax.ShapeDtypeStruct((B, H, N), jnp.float32)),
        grid=(B,),
        in_specs=[pl.BlockSpec((1, H, N), lambda b: (b, 0, 0)),
                  pl.BlockSpec((H, H), lambda b: (0, 0)),
                  pl.BlockSpec((H, H), lambda b: (0, 0))],
        out_specs=(pl.BlockSpec((1, H, N), lambda b: (b, 0, 0)),
                   pl.BlockSpec((1, H, N), lambda b: (b, 0, 0))),
        compiler_params=pltpu.CompilerParams(dimension_semantics=("parallel",)),
    )


def _dft_cols_kernel(gr_ref, gi_ref, cr_ref, ci_ref, o_ref, *, gamma, eps):
    gr, gi = gr_ref[0], gi_ref[0]                           # (W, H*C)
    cr, ci = cr_ref[...], ci_ref[...]                       # (W, W)
    fr = (jnp.dot(cr, gr, preferred_element_type=jnp.float32)
          - jnp.dot(ci, gi, preferred_element_type=jnp.float32))
    fi = (jnp.dot(cr, gi, preferred_element_type=jnp.float32)
          + jnp.dot(ci, gr, preferred_element_type=jnp.float32))
    mag = jnp.sqrt(fr * fr + fi * fi) + eps
    o_ref[0] = jnp.exp(gamma * jnp.log(mag))


@functools.lru_cache(maxsize=None)
def _dft_cols_fn(B, W, N, gamma, eps):
    return pl.pallas_call(
        functools.partial(_dft_cols_kernel, gamma=gamma, eps=eps),
        out_shape=jax.ShapeDtypeStruct((B, W, N), jnp.float32),
        grid=(B,),
        in_specs=[pl.BlockSpec((1, W, N), lambda b: (b, 0, 0)),
                  pl.BlockSpec((1, W, N), lambda b: (b, 0, 0)),
                  pl.BlockSpec((W, W), lambda b: (0, 0)),
                  pl.BlockSpec((W, W), lambda b: (0, 0))],
        out_specs=pl.BlockSpec((1, W, N), lambda b: (b, 0, 0)),
        compiler_params=pltpu.CompilerParams(dimension_semantics=("parallel",)),
    )


def _fca_spectrum_separable(x, gamma, eps):
    B, H, W, C = x.shape
    ahr, ahi = _dft_shift_mats(H)
    awr, awi = _dft_shift_mats(W)
    gr, gi = _dft_rows_fn(B, H, W * C)(x.reshape(B, H, W * C), ahr, ahi)
    grt = gr.reshape(B, H, W, C).transpose(0, 2, 1, 3).reshape(B, W, H * C)
    git = gi.reshape(B, H, W, C).transpose(0, 2, 1, 3).reshape(B, W, H * C)
    spec = _dft_cols_fn(B, W, H * C, float(gamma), float(eps))(grt, git, awr, awi)
    return spec.reshape(B, W, H, C).transpose(0, 2, 1, 3)   # (B, H, W, C)


def fca_spectrum(x, gamma=GAMMA, eps=EPS):
    """fftshift2d(pow(|fftn(x, axes=(1,2))| + eps, gamma)) on NHWC input."""
    B, H, W, C = x.shape
    basis_bytes = 2 * (H * W) * (H * W) * 4
    if basis_bytes <= _FUSED_DFT_MAX_BASIS_BYTES:
        cr, ci = _dft2_shift_basis(H, W)
        spec = _dft2_fn(B, H * W, C, float(gamma), float(eps))(
            x.reshape(B, H * W, C), cr, ci)
        return spec.reshape(B, H, W, C)
    return _fca_spectrum_separable(x, gamma, eps)


# ---------------------------------------------------------------------------
# RCAB forward (NCHW in / NCHW out, like the PyTorch module)
# ---------------------------------------------------------------------------
def rcab_forward(x_nchw, p, gamma=GAMMA):
    x = jnp.transpose(x_nchw, (0, 2, 3, 1))                 # NCHW -> NHWC
    x0 = x
    x = conv3x3(x, p["w1"], p["b1"], "gelu")
    x = conv3x3(x, p["w2"], p["b2"], "gelu")
    x1 = x
    spec = fca_spectrum(x, gamma)                            # Pallas DFT kernel
    pooled = conv3x3(spec, p["w3"], p["b3"], "relu", pool=True)   # (B, C)
    # Squeeze/excite 1x1 convs (64->4->64): tiny, plain JAX under the outer jit.
    a = jax.nn.relu(pooled @ p["w4"] + p["b4"])
    a = jax.nn.sigmoid(a @ p["w5"] + p["b5"])
    y = x0 + x1 * a[:, None, None, :]
    return jnp.transpose(y, (0, 3, 1, 2))                    # NHWC -> NCHW


def init_rcab_params(key, feat=FEAT):
    ks = jax.random.split(key, 10)

    def conv_w(k, cin, cout):
        return jax.random.normal(k, (3, 3, cin, cout), jnp.float32) / np.sqrt(9 * cin)

    def dense_w(k, cin, cout):
        return jax.random.normal(k, (cin, cout), jnp.float32) / np.sqrt(cin)

    def bias(k, c):
        return 0.01 * jax.random.normal(k, (c,), jnp.float32)

    return {"w1": conv_w(ks[0], feat, feat), "b1": bias(ks[1], feat),
            "w2": conv_w(ks[2], feat, feat), "b2": bias(ks[3], feat),
            "w3": conv_w(ks[4], feat, feat), "b3": bias(ks[5], feat),
            "w4": dense_w(ks[6], feat, feat // 16), "b4": bias(ks[7], feat // 16),
            "w5": dense_w(ks[8], feat // 16, feat), "b5": bias(ks[9], feat)}


# ---------------------------------------------------------------------------
# Pure-JAX reference (mirrors the PyTorch forward) for validation
# ---------------------------------------------------------------------------
def _conv3x3_ref(x, w, b):
    y = jax.lax.conv_general_dilated(
        x, w, window_strides=(1, 1), padding="SAME",
        dimension_numbers=("NHWC", "HWIO", "NHWC"),
        precision=jax.lax.Precision.HIGHEST)
    return y + b


def _rcab_reference(x_nchw, p, gamma=GAMMA):
    x = jnp.transpose(x_nchw, (0, 2, 3, 1))
    x0 = x
    x = jax.nn.gelu(_conv3x3_ref(x, p["w1"], p["b1"]), approximate=False)
    x = jax.nn.gelu(_conv3x3_ref(x, p["w2"], p["b2"]), approximate=False)
    x1 = x
    H, W = x.shape[1], x.shape[2]
    spec = jnp.fft.fftn(x, axes=(1, 2))
    spec = (jnp.abs(spec) + EPS) ** gamma
    spec = jnp.roll(spec, shift=(-(H // 2), -(W // 2)), axis=(1, 2))  # fftshift2d
    s = jax.nn.relu(_conv3x3_ref(spec, p["w3"], p["b3"]))
    pooled = jnp.mean(s, axis=(1, 2))
    a = jax.nn.relu(pooled @ p["w4"] + p["b4"])
    a = jax.nn.sigmoid(a @ p["w5"] + p["b5"])
    y = x0 + x1 * a[:, None, None, :]
    return jnp.transpose(y, (0, 3, 1, 2))


# ---------------------------------------------------------------------------
if __name__ == "__main__":
    # RCAB operates on 64-channel feature maps (fixed by the module's convs).
    x = jax.random.normal(jax.random.PRNGKey(0), (2, FEAT, 16, 16), jnp.float32)
    params = init_rcab_params(jax.random.PRNGKey(42))

    rcab = jax.jit(rcab_forward)
    out = jax.block_until_ready(rcab(x, params))
    assert out.shape == x.shape and out.dtype == jnp.float32

    ref = jax.block_until_ready(jax.jit(_rcab_reference)(x, params))
    # Tolerance covers bf16 conv matmul inputs (f32 accumulation) and the
    # polynomial-erf GELU vs the f32 HIGHEST-precision reference.
    np.testing.assert_allclose(np.asarray(out), np.asarray(ref),
                               rtol=2e-2, atol=2e-2)
    print("KERNEL_OK")
</pallas_src>

<mosaic_0001>
module attributes {stable_mosaic.version = 11 : i64} {
  func.func @_conv3x3_kernel(%arg0: i32, %arg1: memref<1x18x18x64xbf16, #tpu.memory_space<vmem>>, %arg2: memref<9x64x64xbf16, #tpu.memory_space<vmem>>, %arg3: memref<1x64xf32, #tpu.memory_space<vmem>>, %arg4: memref<1x256x64xf32, #tpu.memory_space<vmem>>) attributes {dimension_semantics = [#tpu.dimension_semantics<parallel>], iteration_bounds = array<i64: 2>, scalar_prefetch = 0 : i64, scratch_operands = 0 : i64, tpu.core_type = #tpu.core_type<tc>, window_params = [{transform_indices = @transform_0, window_bounds = array<i64: 1, 18, 18, 64>}, {pipeline_mode = #tpu.pipeline_mode<synchronous>, transform_indices = @transform_1, window_bounds = array<i64: 9, 64, 64>}, {pipeline_mode = #tpu.pipeline_mode<synchronous>, transform_indices = @transform_2, window_bounds = array<i64: 1, 64>}, {transform_indices = @transform_3, window_bounds = array<i64: 1, 256, 64>}]} {
    %cst = arith.constant 0.000000e+00 : f32
    %0 = vector.broadcast %cst : f32 to vector<256x64xf32>
    %c0 = arith.constant 0 : index
    %c0_0 = arith.constant 0 : index
    %c0_1 = arith.constant 0 : index
    %c0_2 = arith.constant 0 : index
    %1 = vector.load %arg1[%c0, %c0_0, %c0_1, %c0_2] : memref<1x18x18x64xbf16, #tpu.memory_space<vmem>>, vector<1x16x16x64xbf16>
    %2 = vector.shape_cast %1 : vector<1x16x16x64xbf16> to vector<16x16x64xbf16>
    %3 = vector.shape_cast %2 : vector<16x16x64xbf16> to vector<256x64xbf16>
    %c0_3 = arith.constant 0 : index
    %c0_4 = arith.constant 0 : index
    %c0_5 = arith.constant 0 : index
    %4 = vector.load %arg2[%c0_3, %c0_4, %c0_5] : memref<9x64x64xbf16, #tpu.memory_space<vmem>>, vector<1x64x64xbf16>
    %5 = vector.shape_cast %4 : vector<1x64x64xbf16> to vector<64x64xbf16>
    %cst_6 = arith.constant dense<0.000000e+00> : vector<256x64xf32>
    %6 = tpu.matmul %3, %5, %cst_6 {dimension_numbers = #tpu.dot_dimension_numbers<[1], [0], [0], [1], [0, 0, 1, 1], [], []>} : vector<256x64xbf16>, vector<64x64xbf16>, vector<256x64xf32> -> vector<256x64xf32>
    %7 = arith.addf %0, %6 : vector<256x64xf32>
    %c0_7 = arith.constant 0 : index
    %c0_8 = arith.constant 0 : index
    %c1 = arith.constant 1 : index
    %c0_9 = arith.constant 0 : index
    %8 = vector.load %arg1[%c0_7, %c0_8, %c1, %c0_9] : memref<1x18x18x64xbf16, #tpu.memory_space<vmem>>, vector<1x16x16x64xbf16>
    %9 = vector.shape_cast %8 : vector<1x16x16x64xbf16> to vector<16x16x64xbf16>
    %10 = vector.shape_cast %9 : vector<16x16x64xbf16> to vector<256x64xbf16>
    %c1_10 = arith.constant 1 : index
    %c0_11 = arith.constant 0 : index
    %c0_12 = arith.constant 0 : index
    %11 = vector.load %arg2[%c1_10, %c0_11, %c0_12] : memref<9x64x64xbf16, #tpu.memory_space<vmem>>, vector<1x64x64xbf16>
    %12 = vector.shape_cast %11 : vector<1x64x64xbf16> to vector<64x64xbf16>
    %cst_13 = arith.constant dense<0.000000e+00> : vector<256x64xf32>
    %13 = tpu.matmul %10, %12, %cst_13 {dimension_numbers = #tpu.dot_dimension_numbers<[1], [0], [0], [1], [0, 0, 1, 1], [], []>} : vector<256x64xbf16>, vector<64x64xbf16>, vector<256x64xf32> -> vector<256x64xf32>
    %14 = arith.addf %7, %13 : vector<256x64xf32>
    %c0_14 = arith.constant 0 : index
    %c0_15 = arith.constant 0 : index
    %c2 = arith.constant 2 : index
    %c0_16 = arith.constant 0 : index
    %15 = vector.load %arg1[%c0_14, %c0_15, %c2, %c0_16] : memref<1x18x18x64xbf16, #tpu.memory_space<vmem>>, vector<1x16x16x64xbf16>
    %16 = vector.shape_cast %15 : vector<1x16x16x64xbf16> to vector<16x16x64xbf16>
    %17 = vector.shape_cast %16 : vector<16x16x64xbf16> to vector<256x64xbf16>
    %c2_17 = arith.constant 2 : index
    %c0_18 = arith.constant 0 : index
    %c0_19 = arith.constant 0 : index
    %18 = vector.load %arg2[%c2_17, %c0_18, %c0_19] : memref<9x64x64xbf16, #tpu.memory_space<vmem>>, vector<1x64x64xbf16>
    %19 = vector.shape_cast %18 : vector<1x64x64xbf16> to vector<64x64xbf16>
    %cst_20 = arith.constant dense<0.000000e+00> : vector<256x64xf32>
    %20 = tpu.matmul %17, %19, %cst_20 {dimension_numbers = #tpu.dot_dimension_numbers<[1], [0], [0], [1], [0, 0, 1, 1], [], []>} : vector<256x64xbf16>, vector<64x64xbf16>, vector<256x64xf32> -> vector<256x64xf32>
    %21 = arith.addf %14, %20 : vector<256x64xf32>
    %c0_21 = arith.constant 0 : index
    %c1_22 = arith.constant 1 : index
    %c0_23 = arith.constant 0 : index
    %c0_24 = arith.constant 0 : index
    %22 = vector.load %arg1[%c0_21, %c1_22, %c0_23, %c0_24] : memref<1x18x18x64xbf16, #tpu.memory_space<vmem>>, vector<1x16x16x64xbf16>
    %23 = vector.shape_cast %22 : vector<1x16x16x64xbf16> to vector<16x16x64xbf16>
    %24 = vector.shape_cast %23 : vector<16x16x64xbf16> to vector<256x64xbf16>
    %c3 = arith.constant 3 : index
    %c0_25 = arith.constant 0 : index
    %c0_26 = arith.constant 0 : index
    %25 = vector.load %arg2[%c3, %c0_25, %c0_26] : memref<9x64x64xbf16, #tpu.memory_space<vmem>>, vector<1x64x64xbf16>
    %26 = vector.shape_cast %25 : vector<1x64x64xbf16> to vector<64x64xbf16>
    %cst_27 = arith.constant dense<0.000000e+00> : vector<256x64xf32>
    %27 = tpu.matmul %24, %26, %cst_27 {dimension_numbers = #tpu.dot_dimension_numbers<[1], [0], [0], [1], [0, 0, 1, 1], [], []>} : vector<256x64xbf16>, vector<64x64xbf16>, vector<256x64xf32> -> vector<256x64xf32>
    %28 = arith.addf %21, %27 : vector<256x64xf32>
    %c0_28 = arith.constant 0 : index
    %c1_29 = arith.constant 1 : index
    %c1_30 = arith.constant 1 : index
    %c0_31 = arith.constant 0 : index
    %29 = vector.load %arg1[%c0_28, %c1_29, %c1_30, %c0_31] : memref<1x18x18x64xbf16, #tpu.memory_space<vmem>>, vector<1x16x16x64xbf16>
    %30 = vector.shape_cast %29 : vector<1x16x16x64xbf16> to vector<16x16x64xbf16>
    %31 = vector.shape_cast %30 : vector<16x16x64xbf16> to vector<256x64xbf16>
    %c4 = arith.constant 4 : index
    %c0_32 = arith.constant 0 : index
    %c0_33 = arith.constant 0 : index
    %32 = vector.load %arg2[%c4, %c0_32, %c0_33] : memref<9x64x64xbf16, #tpu.memory_space<vmem>>, vector<1x64x64xbf16>
    %33 = vector.shape_cast %32 : vector<1x64x64xbf16> to vector<64x64xbf16>
    %cst_34 = arith.constant dense<0.000000e+00> : vector<256x64xf32>
    %34 = tpu.matmul %31, %33, %cst_34 {dimension_numbers = #tpu.dot_dimension_numbers<[1], [0], [0], [1], [0, 0, 1, 1], [], []>} : vector<256x64xbf16>, vector<64x64xbf16>, vector<256x64xf32> -> vector<256x64xf32>
    %35 = arith.addf %28, %34 : vector<256x64xf32>
    %c0_35 = arith.constant 0 : index
    %c1_36 = arith.constant 1 : index
    %c2_37 = arith.constant 2 : index
    %c0_38 = arith.constant 0 : index
    %36 = vector.load %arg1[%c0_35, %c1_36, %c2_37, %c0_38] : memref<1x18x18x64xbf16, #tpu.memory_space<vmem>>, vector<1x16x16x64xbf16>
    %37 = vector.shape_cast %36 : vector<1x16x16x64xbf16> to vector<16x16x64xbf16>
    %38 = vector.shape_cast %37 : vector<16x16x64xbf16> to vector<256x64xbf16>
    %c5 = arith.constant 5 : index
    %c0_39 = arith.constant 0 : index
    %c0_40 = arith.constant 0 : index
    %39 = vector.load %arg2[%c5, %c0_39, %c0_40] : memref<9x64x64xbf16, #tpu.memory_space<vmem>>, vector<1x64x64xbf16>
    %40 = vector.shape_cast %39 : vector<1x64x64xbf16> to vector<64x64xbf16>
    %cst_41 = arith.constant dense<0.000000e+00> : vector<256x64xf32>
    %41 = tpu.matmul %38, %40, %cst_41 {dimension_numbers = #tpu.dot_dimension_numbers<[1], [0], [0], [1], [0, 0, 1, 1], [], []>} : vector<256x64xbf16>, vector<64x64xbf16>, vector<256x64xf32> -> vector<256x64xf32>
    %42 = arith.addf %35, %41 : vector<256x64xf32>
    %c0_42 = arith.constant 0 : index
    %c2_43 = arith.constant 2 : index
    %c0_44 = arith.constant 0 : index
    %c0_45 = arith.constant 0 : index
    %43 = vector.load %arg1[%c0_42, %c2_43, %c0_44, %c0_45] : memref<1x18x18x64xbf16, #tpu.memory_space<vmem>>, vector<1x16x16x64xbf16>
    %44 = vector.shape_cast %43 : vector<1x16x16x64xbf16> to vector<16x16x64xbf16>
    %45 = vector.shape_cast %44 : vector<16x16x64xbf16> to vector<256x64xbf16>
    %c6 = arith.constant 6 : index
    %c0_46 = arith.constant 0 : index
    %c0_47 = arith.constant 0 : index
    %46 = vector.load %arg2[%c6, %c0_46, %c0_47] : memref<9x64x64xbf16, #tpu.memory_space<vmem>>, vector<1x64x64xbf16>
    %47 = vector.shape_cast %46 : vector<1x64x64xbf16> to vector<64x64xbf16>
    %cst_48 = arith.constant dense<0.000000e+00> : vector<256x64xf32>
    %48 = tpu.matmul %45, %47, %cst_48 {dimension_numbers = #tpu.dot_dimension_numbers<[1], [0], [0], [1], [0, 0, 1, 1], [], []>} : vector<256x64xbf16>, vector<64x64xbf16>, vector<256x64xf32> -> vector<256x64xf32>
    %49 = arith.addf %42, %48 : vector<256x64xf32>
    %c0_49 = arith.constant 0 : index
    %c2_50 = arith.constant 2 : index
    %c1_51 = arith.constant 1 : index
    %c0_52 = arith.constant 0 : index
    %50 = vector.load %arg1[%c0_49, %c2_50, %c1_51, %c0_52] : memref<1x18x18x64xbf16, #tpu.memory_space<vmem>>, vector<1x16x16x64xbf16>
    %51 = vector.shape_cast %50 : vector<1x16x16x64xbf16> to vector<16x16x64xbf16>
    %52 = vector.shape_cast %51 : vector<16x16x64xbf16> to vector<256x64xbf16>
    %c7 = arith.constant 7 : index
    %c0_53 = arith.constant 0 : index
    %c0_54 = arith.constant 0 : index
    %53 = vector.load %arg2[%c7, %c0_53, %c0_54] : memref<9x64x64xbf16, #tpu.memory_space<vmem>>, vector<1x64x64xbf16>
    %54 = vector.shape_cast %53 : vector<1x64x64xbf16> to vector<64x64xbf16>
    %cst_55 = arith.constant dense<0.000000e+00> : vector<256x64xf32>
    %55 = tpu.matmul %52, %54, %cst_55 {dimension_numbers = #tpu.dot_dimension_numbers<[1], [0], [0], [1], [0, 0, 1, 1], [], []>} : vector<256x64xbf16>, vector<64x64xbf16>, vector<256x64xf32> -> vector<256x64xf32>
    %56 = arith.addf %49, %55 : vector<256x64xf32>
    %c0_56 = arith.constant 0 : index
    %c2_57 = arith.constant 2 : index
    %c2_58 = arith.constant 2 : index
    %c0_59 = arith.constant 0 : index
    %57 = vector.load %arg1[%c0_56, %c2_57, %c2_58, %c0_59] : memref<1x18x18x64xbf16, #tpu.memory_space<vmem>>, vector<1x16x16x64xbf16>
    %58 = vector.shape_cast %57 : vector<1x16x16x64xbf16> to vector<16x16x64xbf16>
    %59 = vector.shape_cast %58 : vector<16x16x64xbf16> to vector<256x64xbf16>
    %c8 = arith.constant 8 : index
    %c0_60 = arith.constant 0 : index
    %c0_61 = arith.constant 0 : index
    %60 = vector.load %arg2[%c8, %c0_60, %c0_61] : memref<9x64x64xbf16, #tpu.memory_space<vmem>>, vector<1x64x64xbf16>
    %61 = vector.shape_cast %60 : vector<1x64x64xbf16> to vector<64x64xbf16>
    %cst_62 = arith.constant dense<0.000000e+00> : vector<256x64xf32>
    %62 = tpu.matmul %59, %61, %cst_62 {dimension_numbers = #tpu.dot_dimension_numbers<[1], [0], [0], [1], [0, 0, 1, 1], [], []>} : vector<256x64xbf16>, vector<64x64xbf16>, vector<256x64xf32> -> vector<256x64xf32>
    %63 = arith.addf %56, %62 : vector<256x64xf32>
    %c0_63 = arith.constant 0 : index
    %c0_64 = arith.constant 0 : index
    %64 = vector.load %arg3[%c0_63, %c0_64] : memref<1x64xf32, #tpu.memory_space<vmem>>, vector<1x64xf32>
    %65 = vector.broadcast %64 : vector<1x64xf32> to vector<256x64xf32>
    %66 = arith.addf %63, %65 : vector<256x64xf32>
    %cst_65 = arith.constant 5.000000e-01 : f32
    %67 = vector.broadcast %cst_65 : f32 to vector<256x64xf32>
    %68 = arith.mulf %67, %66 : vector<256x64xf32>
    %cst_66 = arith.constant 0.707106769 : f32
    %69 = vector.broadcast %cst_66 : f32 to vector<256x64xf32>
    %70 = arith.mulf %66, %69 : vector<256x64xf32>
    %71 = math.absf %70 : vector<256x64xf32>
    %cst_67 = arith.constant 0.327591091 : f32
    %72 = vector.broadcast %cst_67 : f32 to vector<256x64xf32>
    %73 = arith.mulf %72, %71 : vector<256x64xf32>
    %cst_68 = arith.constant 1.000000e+00 : f32
    %74 = vector.broadcast %cst_68 : f32 to vector<256x64xf32>
    %75 = arith.addf %74, %73 : vector<256x64xf32>
    %cst_69 = arith.constant 1.000000e+00 : f32
    %76 = vector.broadcast %cst_69 : f32 to vector<256x64xf32>
    %77 = arith.divf %76, %75 : vector<256x64xf32>
    %cst_70 = arith.constant 1.06140542 : f32
    %78 = vector.broadcast %cst_70 : f32 to vector<256x64xf32>
    %79 = arith.mulf %78, %77 : vector<256x64xf32>
    %cst_71 = arith.constant -1.45315206 : f32
    %80 = vector.broadcast %cst_71 : f32 to vector<256x64xf32>
    %81 = arith.addf %79, %80 : vector<256x64xf32>
    %82 = arith.mulf %81, %77 : vector<256x64xf32>
    %cst_72 = arith.constant 1.42141378 : f32
    %83 = vector.broadcast %cst_72 : f32 to vector<256x64xf32>
    %84 = arith.addf %82, %83 : vector<256x64xf32>
    %85 = arith.mulf %84, %77 : vector<256x64xf32>
    %cst_73 = arith.constant -0.284496725 : f32
    %86 = vector.broadcast %cst_73 : f32 to vector<256x64xf32>
    %87 = arith.addf %85, %86 : vector<256x64xf32>
    %88 = arith.mulf %87, %77 : vector<256x64xf32>
    %cst_74 = arith.constant 0.254829586 : f32
    %89 = vector.broadcast %cst_74 : f32 to vector<256x64xf32>
    %90 = arith.addf %88, %89 : vector<256x64xf32>
    %91 = arith.mulf %90, %77 : vector<256x64xf32>
    %cst_75 = arith.constant 0.000000e+00 : f32
    %92 = vector.broadcast %cst_75 : f32 to vector<256x64xf32>
    %93 = arith.subf %92, %71 : vector<256x64xf32>
    %94 = arith.mulf %93, %71 : vector<256x64xf32>
    %95 = math.exp %94 : vector<256x64xf32>
    %96 = arith.mulf %91, %95 : vector<256x64xf32>
    %cst_76 = arith.constant 1.000000e+00 : f32
    %97 = vector.broadcast %cst_76 : f32 to vector<256x64xf32>
    %98 = arith.subf %97, %96 : vector<256x64xf32>
    %cst_77 = arith.constant 0.000000e+00 : f32
    %99 = vector.broadcast %cst_77 : f32 to vector<256x64xf32>
    %100 = arith.cmpf oge, %70, %99 : vector<256x64xf32>
    %cst_78 = arith.constant 0.000000e+00 : f32
    %101 = vector.broadcast %cst_78 : f32 to vector<256x64xf32>
    %102 = arith.subf %101, %98 : vector<256x64xf32>
    %103 = arith.select %100, %98, %102 : vector<256x64xi1>, vector<256x64xf32>
    %cst_79 = arith.constant 1.000000e+00 : f32
    %104 = vector.broadcast %cst_79 : f32 to vector<256x64xf32>
    %105 = arith.addf %104, %103 : vector<256x64xf32>
    %106 = arith.mulf %68, %105 : vector<256x64xf32>
    %c0_80 = arith.constant 0 : index
    %c0_81 = arith.constant 0 : index
    %c0_82 = arith.constant 0 : index
    %107 = vector.load %arg4[%c0_80, %c0_81, %c0_82] : memref<1x256x64xf32, #tpu.memory_space<vmem>>, vector<1x256x64xf32>
    %108 = vector.shape_cast %107 : vector<1x256x64xf32> to vector<256x64xf32>
    %109 = vector.shape_cast %106 : vector<256x64xf32> to vector<1x256x64xf32>
    tpu.vector_store %arg4[%c0_80, %c0_81, %c0_82], %109 {strides = array<i32>} : memref<1x256x64xf32, #tpu.memory_space<vmem>>, vector<1x256x64xf32>,
    return
  }
  func.func @transform_0(%arg0: i32) -> (i32, i32, i32, i32) {
    %c0_i32 = arith.constant 0 : i32
    %c0_i32_0 = arith.constant 0 : i32
    %c0_i32_1 = arith.constant 0 : i32
    %c0_i32_2 = arith.constant 0 : i32
    return %arg0, %c0_i32, %c0_i32_0, %c0_i32_1 : i32, i32, i32, i32
  }
  func.func @transform_1(%arg0: i32) -> (i32, i32, i32) {
    %c0_i32 = arith.constant 0 : i32
    %c0_i32_0 = arith.constant 0 : i32
    %c0_i32_1 = arith.constant 0 : i32
    %c0_i32_2 = arith.constant 0 : i32
    return %c0_i32, %c0_i32_0, %c0_i32_1 : i32, i32, i32
  }
  func.func @transform_2(%arg0: i32) -> (i32, i32) {
    %c0_i32 = arith.constant 0 : i32
    %c0_i32_0 = arith.constant 0 : i32
    %c0_i32_1 = arith.constant 0 : i32
    return %c0_i32, %c0_i32_0 : i32, i32
  }
  func.func @transform_3(%arg0: i32) -> (i32, i32, i32) {
    %c0_i32 = arith.constant 0 : i32
    %c0_i32_0 = arith.constant 0 : i32
    %c0_i32_1 = arith.constant 0 : i32
    return %arg0, %c0_i32, %c0_i32_0 : i32, i32, i32
  }
}

module attributes {stable_mosaic.version = 11 : i64} {
  func.func @_dft2_kernel(%arg0: i32, %arg1: memref<1x256x64xf32, #tpu.memory_space<vmem>>, %arg2: memref<256x256xf32, #tpu.memory_space<vmem>>, %arg3: memref<256x256xf32, #tpu.memory_space<vmem>>, %arg4: memref<1x256x64xf32, #tpu.memory_space<vmem>>) attributes {dimension_semantics = [#tpu.dimension_semantics<parallel>], iteration_bounds = array<i64: 2>, scalar_prefetch = 0 : i64, scratch_operands = 0 : i64, tpu.core_type = #tpu.core_type<tc>, window_params = [{transform_indices = @transform_0, window_bounds = array<i64: 1, 256, 64>}, {pipeline_mode = #tpu.pipeline_mode<synchronous>, transform_indices = @transform_1, window_bounds = array<i64: 256, 256>}, {pipeline_mode = #tpu.pipeline_mode<synchronous>, transform_indices = @transform_2, window_bounds = array<i64: 256, 256>}, {transform_indices = @transform_3, window_bounds = array<i64: 1, 256, 64>}]} {
    %c0 = arith.constant 0 : index
    %c0_0 = arith.constant 0 : index
    %c0_1 = arith.constant 0 : index
    %0 = vector.load %arg1[%c0, %c0_0, %c0_1] : memref<1x256x64xf32, #tpu.memory_space<vmem>>, vector<1x256x64xf32>
    %1 = vector.shape_cast %0 : vector<1x256x64xf32> to vector<256x64xf32>
    %c0_2 = arith.constant 0 : index
    %c0_3 = arith.constant 0 : index
    %2 = vector.load %arg2[%c0_2, %c0_3] : memref<256x256xf32, #tpu.memory_space<vmem>>, vector<256x256xf32>
    %cst = arith.constant dense<0.000000e+00> : vector<256x64xf32>
    %3 = tpu.matmul %2, %1, %cst {dimension_numbers = #tpu.dot_dimension_numbers<[1], [0], [0], [1], [0, 0, 1, 1], [], []>} : vector<256x256xf32>, vector<256x64xf32>, vector<256x64xf32> -> vector<256x64xf32>
    %c0_4 = arith.constant 0 : index
    %c0_5 = arith.constant 0 : index
    %4 = vector.load %arg3[%c0_4, %c0_5] : memref<256x256xf32, #tpu.memory_space<vmem>>, vector<256x256xf32>
    %cst_6 = arith.constant dense<0.000000e+00> : vector<256x64xf32>
    %5 = tpu.matmul %4, %1, %cst_6 {dimension_numbers = #tpu.dot_dimension_numbers<[1], [0], [0], [1], [0, 0, 1, 1], [], []>} : vector<256x256xf32>, vector<256x64xf32>, vector<256x64xf32> -> vector<256x64xf32>
    %6 = arith.mulf %3, %3 : vector<256x64xf32>
    %7 = arith.mulf %5, %5 : vector<256x64xf32>
    %8 = arith.addf %6, %7 : vector<256x64xf32>
    %9 = math.sqrt %8 : vector<256x64xf32>
    %cst_7 = arith.constant 9.99999993E-9 : f32
    %10 = vector.broadcast %cst_7 : f32 to vector<256x64xf32>
    %11 = arith.addf %9, %10 : vector<256x64xf32>
    %12 = math.log %11 : vector<256x64xf32>
    %cst_8 = arith.constant 8.000000e-01 : f32
    %13 = vector.broadcast %cst_8 : f32 to vector<256x64xf32>
    %14 = arith.mulf %13, %12 : vector<256x64xf32>
    %15 = math.exp %14 : vector<256x64xf32>
    %c0_9 = arith.constant 0 : index
    %c0_10 = arith.constant 0 : index
    %c0_11 = arith.constant 0 : index
    %16 = vector.load %arg4[%c0_9, %c0_10, %c0_11] : memref<1x256x64xf32, #tpu.memory_space<vmem>>, vector<1x256x64xf32>
    %17 = vector.shape_cast %16 : vector<1x256x64xf32> to vector<256x64xf32>
    %18 = vector.shape_cast %15 : vector<256x64xf32> to vector<1x256x64xf32>
    tpu.vector_store %arg4[%c0_9, %c0_10, %c0_11], %18 {strides = array<i32>} : memref<1x256x64xf32, #tpu.memory_space<vmem>>, vector<1x256x64xf32>,
    return
  }
  func.func @transform_0(%arg0: i32) -> (i32, i32, i32) {
    %c0_i32 = arith.constant 0 : i32
    %c0_i32_0 = arith.constant 0 : i32
    %c0_i32_1 = arith.constant 0 : i32
    return %arg0, %c0_i32, %c0_i32_0 : i32, i32, i32
  }
  func.func @transform_1(%arg0: i32) -> (i32, i32) {
    %c0_i32 = arith.constant 0 : i32
    %c0_i32_0 = arith.constant 0 : i32
    %c0_i32_1 = arith.constant 0 : i32
    return %c0_i32, %c0_i32_0 : i32, i32
  }
  func.func @transform_2(%arg0: i32) -> (i32, i32) {
    %c0_i32 = arith.constant 0 : i32
    %c0_i32_0 = arith.constant 0 : i32
    %c0_i32_1 = arith.constant 0 : i32
    return %c0_i32, %c0_i32_0 : i32, i32
  }
  func.func @transform_3(%arg0: i32) -> (i32, i32, i32) {
    %c0_i32 = arith.constant 0 : i32
    %c0_i32_0 = arith.constant 0 : i32
    %c0_i32_1 = arith.constant 0 : i32
    return %arg0, %c0_i32, %c0_i32_0 : i32, i32, i32
  }
}

module attributes {stable_mosaic.version = 11 : i64} {
  func.func @_conv3x3_kernel(%arg0: i32, %arg1: memref<1x18x18x64xbf16, #tpu.memory_space<vmem>>, %arg2: memref<9x64x64xbf16, #tpu.memory_space<vmem>>, %arg3: memref<1x64xf32, #tpu.memory_space<vmem>>, %arg4: memref<1x1x64xf32, #tpu.memory_space<vmem>>) attributes {dimension_semantics = [#tpu.dimension_semantics<parallel>], iteration_bounds = array<i64: 2>, scalar_prefetch = 0 : i64, scratch_operands = 0 : i64, tpu.core_type = #tpu.core_type<tc>, window_params = [{transform_indices = @transform_0, window_bounds = array<i64: 1, 18, 18, 64>}, {pipeline_mode = #tpu.pipeline_mode<synchronous>, transform_indices = @transform_1, window_bounds = array<i64: 9, 64, 64>}, {pipeline_mode = #tpu.pipeline_mode<synchronous>, transform_indices = @transform_2, window_bounds = array<i64: 1, 64>}, {transform_indices = @transform_3, window_bounds = array<i64: 1, 1, 64>}]} {
    %cst = arith.constant 0.000000e+00 : f32
    %0 = vector.broadcast %cst : f32 to vector<256x64xf32>
    %c0 = arith.constant 0 : index
    %c0_0 = arith.constant 0 : index
    %c0_1 = arith.constant 0 : index
    %c0_2 = arith.constant 0 : index
    %1 = vector.load %arg1[%c0, %c0_0, %c0_1, %c0_2] : memref<1x18x18x64xbf16, #tpu.memory_space<vmem>>, vector<1x16x16x64xbf16>
    %2 = vector.shape_cast %1 : vector<1x16x16x64xbf16> to vector<16x16x64xbf16>
    %3 = vector.shape_cast %2 : vector<16x16x64xbf16> to vector<256x64xbf16>
    %c0_3 = arith.constant 0 : index
    %c0_4 = arith.constant 0 : index
    %c0_5 = arith.constant 0 : index
    %4 = vector.load %arg2[%c0_3, %c0_4, %c0_5] : memref<9x64x64xbf16, #tpu.memory_space<vmem>>, vector<1x64x64xbf16>
    %5 = vector.shape_cast %4 : vector<1x64x64xbf16> to vector<64x64xbf16>
    %cst_6 = arith.constant dense<0.000000e+00> : vector<256x64xf32>
    %6 = tpu.matmul %3, %5, %cst_6 {dimension_numbers = #tpu.dot_dimension_numbers<[1], [0], [0], [1], [0, 0, 1, 1], [], []>} : vector<256x64xbf16>, vector<64x64xbf16>, vector<256x64xf32> -> vector<256x64xf32>
    %7 = arith.addf %0, %6 : vector<256x64xf32>
    %c0_7 = arith.constant 0 : index
    %c0_8 = arith.constant 0 : index
    %c1 = arith.constant 1 : index
    %c0_9 = arith.constant 0 : index
    %8 = vector.load %arg1[%c0_7, %c0_8, %c1, %c0_9] : memref<1x18x18x64xbf16, #tpu.memory_space<vmem>>, vector<1x16x16x64xbf16>
    %9 = vector.shape_cast %8 : vector<1x16x16x64xbf16> to vector<16x16x64xbf16>
    %10 = vector.shape_cast %9 : vector<16x16x64xbf16> to vector<256x64xbf16>
    %c1_10 = arith.constant 1 : index
    %c0_11 = arith.constant 0 : index
    %c0_12 = arith.constant 0 : index
    %11 = vector.load %arg2[%c1_10, %c0_11, %c0_12] : memref<9x64x64xbf16, #tpu.memory_space<vmem>>, vector<1x64x64xbf16>
    %12 = vector.shape_cast %11 : vector<1x64x64xbf16> to vector<64x64xbf16>
    %cst_13 = arith.constant dense<0.000000e+00> : vector<256x64xf32>
    %13 = tpu.matmul %10, %12, %cst_13 {dimension_numbers = #tpu.dot_dimension_numbers<[1], [0], [0], [1], [0, 0, 1, 1], [], []>} : vector<256x64xbf16>, vector<64x64xbf16>, vector<256x64xf32> -> vector<256x64xf32>
    %14 = arith.addf %7, %13 : vector<256x64xf32>
    %c0_14 = arith.constant 0 : index
    %c0_15 = arith.constant 0 : index
    %c2 = arith.constant 2 : index
    %c0_16 = arith.constant 0 : index
    %15 = vector.load %arg1[%c0_14, %c0_15, %c2, %c0_16] : memref<1x18x18x64xbf16, #tpu.memory_space<vmem>>, vector<1x16x16x64xbf16>
    %16 = vector.shape_cast %15 : vector<1x16x16x64xbf16> to vector<16x16x64xbf16>
    %17 = vector.shape_cast %16 : vector<16x16x64xbf16> to vector<256x64xbf16>
    %c2_17 = arith.constant 2 : index
    %c0_18 = arith.constant 0 : index
    %c0_19 = arith.constant 0 : index
    %18 = vector.load %arg2[%c2_17, %c0_18, %c0_19] : memref<9x64x64xbf16, #tpu.memory_space<vmem>>, vector<1x64x64xbf16>
    %19 = vector.shape_cast %18 : vector<1x64x64xbf16> to vector<64x64xbf16>
    %cst_20 = arith.constant dense<0.000000e+00> : vector<256x64xf32>
    %20 = tpu.matmul %17, %19, %cst_20 {dimension_numbers = #tpu.dot_dimension_numbers<[1], [0], [0], [1], [0, 0, 1, 1], [], []>} : vector<256x64xbf16>, vector<64x64xbf16>, vector<256x64xf32> -> vector<256x64xf32>
    %21 = arith.addf %14, %20 : vector<256x64xf32>
    %c0_21 = arith.constant 0 : index
    %c1_22 = arith.constant 1 : index
    %c0_23 = arith.constant 0 : index
    %c0_24 = arith.constant 0 : index
    %22 = vector.load %arg1[%c0_21, %c1_22, %c0_23, %c0_24] : memref<1x18x18x64xbf16, #tpu.memory_space<vmem>>, vector<1x16x16x64xbf16>
    %23 = vector.shape_cast %22 : vector<1x16x16x64xbf16> to vector<16x16x64xbf16>
    %24 = vector.shape_cast %23 : vector<16x16x64xbf16> to vector<256x64xbf16>
    %c3 = arith.constant 3 : index
    %c0_25 = arith.constant 0 : index
    %c0_26 = arith.constant 0 : index
    %25 = vector.load %arg2[%c3, %c0_25, %c0_26] : memref<9x64x64xbf16, #tpu.memory_space<vmem>>, vector<1x64x64xbf16>
    %26 = vector.shape_cast %25 : vector<1x64x64xbf16> to vector<64x64xbf16>
    %cst_27 = arith.constant dense<0.000000e+00> : vector<256x64xf32>
    %27 = tpu.matmul %24, %26, %cst_27 {dimension_numbers = #tpu.dot_dimension_numbers<[1], [0], [0], [1], [0, 0, 1, 1], [], []>} : vector<256x64xbf16>, vector<64x64xbf16>, vector<256x64xf32> -> vector<256x64xf32>
    %28 = arith.addf %21, %27 : vector<256x64xf32>
    %c0_28 = arith.constant 0 : index
    %c1_29 = arith.constant 1 : index
    %c1_30 = arith.constant 1 : index
    %c0_31 = arith.constant 0 : index
    %29 = vector.load %arg1[%c0_28, %c1_29, %c1_30, %c0_31] : memref<1x18x18x64xbf16, #tpu.memory_space<vmem>>, vector<1x16x16x64xbf16>
    %30 = vector.shape_cast %29 : vector<1x16x16x64xbf16> to vector<16x16x64xbf16>
    %31 = vector.shape_cast %30 : vector<16x16x64xbf16> to vector<256x64xbf16>
    %c4 = arith.constant 4 : index
    %c0_32 = arith.constant 0 : index
    %c0_33 = arith.constant 0 : index
    %32 = vector.load %arg2[%c4, %c0_32, %c0_33] : memref<9x64x64xbf16, #tpu.memory_space<vmem>>, vector<1x64x64xbf16>
    %33 = vector.shape_cast %32 : vector<1x64x64xbf16> to vector<64x64xbf16>
    %cst_34 = arith.constant dense<0.000000e+00> : vector<256x64xf32>
    %34 = tpu.matmul %31, %33, %cst_34 {dimension_numbers = #tpu.dot_dimension_numbers<[1], [0], [0], [1], [0, 0, 1, 1], [], []>} : vector<256x64xbf16>, vector<64x64xbf16>, vector<256x64xf32> -> vector<256x64xf32>
    %35 = arith.addf %28, %34 : vector<256x64xf32>
    %c0_35 = arith.constant 0 : index
    %c1_36 = arith.constant 1 : index
    %c2_37 = arith.constant 2 : index
    %c0_38 = arith.constant 0 : index
    %36 = vector.load %arg1[%c0_35, %c1_36, %c2_37, %c0_38] : memref<1x18x18x64xbf16, #tpu.memory_space<vmem>>, vector<1x16x16x64xbf16>
    %37 = vector.shape_cast %36 : vector<1x16x16x64xbf16> to vector<16x16x64xbf16>
    %38 = vector.shape_cast %37 : vector<16x16x64xbf16> to vector<256x64xbf16>
    %c5 = arith.constant 5 : index
    %c0_39 = arith.constant 0 : index
    %c0_40 = arith.constant 0 : index
    %39 = vector.load %arg2[%c5, %c0_39, %c0_40] : memref<9x64x64xbf16, #tpu.memory_space<vmem>>, vector<1x64x64xbf16>
    %40 = vector.shape_cast %39 : vector<1x64x64xbf16> to vector<64x64xbf16>
    %cst_41 = arith.constant dense<0.000000e+00> : vector<256x64xf32>
    %41 = tpu.matmul %38, %40, %cst_41 {dimension_numbers = #tpu.dot_dimension_numbers<[1], [0], [0], [1], [0, 0, 1, 1], [], []>} : vector<256x64xbf16>, vector<64x64xbf16>, vector<256x64xf32> -> vector<256x64xf32>
    %42 = arith.addf %35, %41 : vector<256x64xf32>
    %c0_42 = arith.constant 0 : index
    %c2_43 = arith.constant 2 : index
    %c0_44 = arith.constant 0 : index
    %c0_45 = arith.constant 0 : index
    %43 = vector.load %arg1[%c0_42, %c2_43, %c0_44, %c0_45] : memref<1x18x18x64xbf16, #tpu.memory_space<vmem>>, vector<1x16x16x64xbf16>
    %44 = vector.shape_cast %43 : vector<1x16x16x64xbf16> to vector<16x16x64xbf16>
    %45 = vector.shape_cast %44 : vector<16x16x64xbf16> to vector<256x64xbf16>
    %c6 = arith.constant 6 : index
    %c0_46 = arith.constant 0 : index
    %c0_47 = arith.constant 0 : index
    %46 = vector.load %arg2[%c6, %c0_46, %c0_47] : memref<9x64x64xbf16, #tpu.memory_space<vmem>>, vector<1x64x64xbf16>
    %47 = vector.shape_cast %46 : vector<1x64x64xbf16> to vector<64x64xbf16>
    %cst_48 = arith.constant dense<0.000000e+00> : vector<256x64xf32>
    %48 = tpu.matmul %45, %47, %cst_48 {dimension_numbers = #tpu.dot_dimension_numbers<[1], [0], [0], [1], [0, 0, 1, 1], [], []>} : vector<256x64xbf16>, vector<64x64xbf16>, vector<256x64xf32> -> vector<256x64xf32>
    %49 = arith.addf %42, %48 : vector<256x64xf32>
    %c0_49 = arith.constant 0 : index
    %c2_50 = arith.constant 2 : index
    %c1_51 = arith.constant 1 : index
    %c0_52 = arith.constant 0 : index
    %50 = vector.load %arg1[%c0_49, %c2_50, %c1_51, %c0_52] : memref<1x18x18x64xbf16, #tpu.memory_space<vmem>>, vector<1x16x16x64xbf16>
    %51 = vector.shape_cast %50 : vector<1x16x16x64xbf16> to vector<16x16x64xbf16>
    %52 = vector.shape_cast %51 : vector<16x16x64xbf16> to vector<256x64xbf16>
    %c7 = arith.constant 7 : index
    %c0_53 = arith.constant 0 : index
    %c0_54 = arith.constant 0 : index
    %53 = vector.load %arg2[%c7, %c0_53, %c0_54] : memref<9x64x64xbf16, #tpu.memory_space<vmem>>, vector<1x64x64xbf16>
    %54 = vector.shape_cast %53 : vector<1x64x64xbf16> to vector<64x64xbf16>
    %cst_55 = arith.constant dense<0.000000e+00> : vector<256x64xf32>
    %55 = tpu.matmul %52, %54, %cst_55 {dimension_numbers = #tpu.dot_dimension_numbers<[1], [0], [0], [1], [0, 0, 1, 1], [], []>} : vector<256x64xbf16>, vector<64x64xbf16>, vector<256x64xf32> -> vector<256x64xf32>
    %56 = arith.addf %49, %55 : vector<256x64xf32>
    %c0_56 = arith.constant 0 : index
    %c2_57 = arith.constant 2 : index
    %c2_58 = arith.constant 2 : index
    %c0_59 = arith.constant 0 : index
    %57 = vector.load %arg1[%c0_56, %c2_57, %c2_58, %c0_59] : memref<1x18x18x64xbf16, #tpu.memory_space<vmem>>, vector<1x16x16x64xbf16>
    %58 = vector.shape_cast %57 : vector<1x16x16x64xbf16> to vector<16x16x64xbf16>
    %59 = vector.shape_cast %58 : vector<16x16x64xbf16> to vector<256x64xbf16>
    %c8 = arith.constant 8 : index
    %c0_60 = arith.constant 0 : index
    %c0_61 = arith.constant 0 : index
    %60 = vector.load %arg2[%c8, %c0_60, %c0_61] : memref<9x64x64xbf16, #tpu.memory_space<vmem>>, vector<1x64x64xbf16>
    %61 = vector.shape_cast %60 : vector<1x64x64xbf16> to vector<64x64xbf16>
    %cst_62 = arith.constant dense<0.000000e+00> : vector<256x64xf32>
    %62 = tpu.matmul %59, %61, %cst_62 {dimension_numbers = #tpu.dot_dimension_numbers<[1], [0], [0], [1], [0, 0, 1, 1], [], []>} : vector<256x64xbf16>, vector<64x64xbf16>, vector<256x64xf32> -> vector<256x64xf32>
    %63 = arith.addf %56, %62 : vector<256x64xf32>
    %c0_63 = arith.constant 0 : index
    %c0_64 = arith.constant 0 : index
    %64 = vector.load %arg3[%c0_63, %c0_64] : memref<1x64xf32, #tpu.memory_space<vmem>>, vector<1x64xf32>
    %65 = vector.broadcast %64 : vector<1x64xf32> to vector<256x64xf32>
    %66 = arith.addf %63, %65 : vector<256x64xf32>
    %cst_65 = arith.constant 0.000000e+00 : f32
    %67 = vector.broadcast %cst_65 : f32 to vector<256x64xf32>
    %68 = arith.maximumf %66, %67 : vector<256x64xf32>
    %cst_66 = arith.constant dense<0.000000e+00> : vector<64xf32>
    %69 = vector.multi_reduction <add>, %68, %cst_66 [0] : vector<256x64xf32> to vector<64xf32>
    %70 = vector.shape_cast %69 : vector<64xf32> to vector<1x64xf32>
    %cst_67 = arith.constant 2.560000e+02 : f32
    %71 = vector.broadcast %cst_67 : f32 to vector<1x64xf32>
    %72 = arith.divf %70, %71 : vector<1x64xf32>
    %c0_68 = arith.constant 0 : index
    %c0_69 = arith.constant 0 : index
    %c0_70 = arith.constant 0 : index
    %73 = vector.load %arg4[%c0_68, %c0_69, %c0_70] : memref<1x1x64xf32, #tpu.memory_space<vmem>>, vector<1x1x64xf32>
    %74 = vector.shape_cast %73 : vector<1x1x64xf32> to vector<1x64xf32>
    %75 = vector.shape_cast %72 : vector<1x64xf32> to vector<1x1x64xf32>
    tpu.vector_store %arg4[%c0_68, %c0_69, %c0_70], %75 {strides = array<i32>} : memref<1x1x64xf32, #tpu.memory_space<vmem>>, vector<1x1x64xf32>,
    return
  }
  func.func @transform_0(%arg0: i32) -> (i32, i32, i32, i32) {
    %c0_i32 = arith.constant 0 : i32
    %c0_i32_0 = arith.constant 0 : i32
    %c0_i32_1 = arith.constant 0 : i32
    %c0_i32_2 = arith.constant 0 : i32
    return %arg0, %c0_i32, %c0_i32_0, %c0_i32_1 : i32, i32, i32, i32
  }
  func.func @transform_1(%arg0: i32) -> (i32, i32, i32) {
    %c0_i32 = arith.constant 0 : i32
    %c0_i32_0 = arith.constant 0 : i32
    %c0_i32_1 = arith.constant 0 : i32
    %c0_i32_2 = arith.constant 0 : i32
    return %c0_i32, %c0_i32_0, %c0_i32_1 : i32, i32, i32
  }
  func.func @transform_2(%arg0: i32) -> (i32, i32) {
    %c0_i32 = arith.constant 0 : i32
    %c0_i32_0 = arith.constant 0 : i32
    %c0_i32_1 = arith.constant 0 : i32
    return %c0_i32, %c0_i32_0 : i32, i32
  }
  func.func @transform_3(%arg0: i32) -> (i32, i32, i32) {
    %c0_i32 = arith.constant 0 : i32
    %c0_i32_0 = arith.constant 0 : i32
    %c0_i32_1 = arith.constant 0 : i32
    return %arg0, %c0_i32, %c0_i32_0 : i32, i32, i32
  }
}

</mosaic_0001>

<llo_original>
// kernel: rcab_forward.6
$region0: #{rcab_forward.6}
  #allocation0 [shape = 'u32[]', space=smem, size = 0x4, offset = 0x4, fixed_abs, tag = 'smem constant byte address 0x4 - core index']
  #allocation1 [shape = 'u32[72,128]{1,0:T(1,128)}', space=vmem, size = 0x9000, scoped, tag = 'internal scratch']
  %s0 = inlined_call_operand.vmem [shape: f32[2,256,64], index: 0, kind: input, shape index: {}]
  %s1 = inlined_call_operand.vmem [shape: f32[256,256], index: 1, kind: input, shape index: {}]
  %s2 = inlined_call_operand.vmem [shape: f32[256,256], index: 2, kind: input, shape index: {}]
  %s3 = inlined_call_operand.vmem [shape: f32[2,256,64], index: 3, kind: output, shape index: {}]
  %s4 = sld [smem:[#allocation0]]
  $region45: #{rcab_forward.6} parent=0
    _
  %s6 = ssub.s32 1, %s4
  %s7 = scalar_select 0, %s6, %s4
  loop: start=0, step=1, limit=4
  $region2: #{rcab_forward.6} parent=0 // loop_pre_header
    _
  $region3: #{rcab_forward.6} parent=0 // loop_header
    %s9 = sphi 0, %s13
    %p10 = scmp.ge.s32.totalorder %s9, 4
    %s19 = sphi 0, %s21
    %s22 = sphi 0, %s19
    %s23 = sphi 0, %s22
    %s39 = sphi 0, %s23
    %s43 = sphi 0, %s43
    %s45 = sphi 0, %s43
    %s46 = sphi 0, %s45
    %s60 = sphi 0, %s46
    %s64 = sphi 0, %s64
    %s66 = sphi 0, %s64
    %s67 = sphi 0, %s66
    %s81 = sphi 0, %s67
    %s87 = sphi 0, %s89
    %s90 = sphi 0, %s87
    %s91 = sphi 0, %s90
    %s107 = sphi 0, %s91
  $region4: #{rcab_forward.6} parent=0 // loop_header_branch
    %12 = sbr.rel (%p10) target = $region8
  $region5: #{rcab_forward.6} parent=0 // loop_body
    %s14 = ssub.s32 %s9, 1
    %s15 = ssub.s32 %s9, 2
    %s16 = sadd.s32 %s9, 1
    %s17 = ssub.s32 %s9, %s16
    %p18 = scmp.eq.s32.totalorder %s17, 0
    %s20 = sadd.s32 %s19, 1
    %s21 = scalar_select %p18, %s19, %s20
    %p24 = pneg %p18
    %p25 = scmp.eq.s32.totalorder %s9, 1
    %p26 = por %p24, %p25
    %p27 = scmp.ne.s32.totalorder %s19, %s22
    %p28 = scmp.eq.s32.totalorder %s9, 0
    %p29 = por %p27, %p28
    %p30 = scmp.ne.s32.totalorder %s19, %s22
    %p31 = scmp.eq.s32.totalorder %s14, 1
    %p32 = por %p30, %p31
    %p33 = scmp.ne.s32.totalorder %s22, %s23
    %p34 = scmp.eq.s32.totalorder %s14, 0
    %p35 = por %p33, %p34
    %p36 = scmp.ne.s32.totalorder %s22, %s23
    %p37 = scmp.eq.s32.totalorder %s15, 1
    %p38 = por %p36, %p37
    %p40 = scmp.ne.s32.totalorder %s23, %s39
    %p41 = scmp.eq.s32.totalorder %s15, 0
    %p42 = por %p40, %p41
    %s44 = sadd.s32 %s43, 1
    %p47 = scmp.eq.s32.totalorder %s9, 1
    %p48 = scmp.ne.s32.totalorder %s43, %s45
    %p49 = scmp.eq.s32.totalorder %s9, 0
    %p50 = por %p48, %p49
    %p51 = scmp.ne.s32.totalorder %s43, %s45
    %p52 = scmp.eq.s32.totalorder %s14, 1
    %p53 = por %p51, %p52
    %p54 = scmp.ne.s32.totalorder %s45, %s46
    %p55 = scmp.eq.s32.totalorder %s14, 0
    %p56 = por %p54, %p55
    %p57 = scmp.ne.s32.totalorder %s45, %s46
    %p58 = scmp.eq.s32.totalorder %s15, 1
    %p59 = por %p57, %p58
    %p61 = scmp.ne.s32.totalorder %s46, %s60
    %p62 = scmp.eq.s32.totalorder %s15, 0
    %p63 = por %p61, %p62
    %s65 = sadd.s32 %s64, 1
    %p68 = scmp.eq.s32.totalorder %s9, 1
    %p69 = scmp.ne.s32.totalorder %s64, %s66
    %p70 = scmp.eq.s32.totalorder %s9, 0
    %p71 = por %p69, %p70
    %p72 = scmp.ne.s32.totalorder %s64, %s66
    %p73 = scmp.eq.s32.totalorder %s14, 1
    %p74 = por %p72, %p73
    %p75 = scmp.ne.s32.totalorder %s66, %s67
    %p76 = scmp.eq.s32.totalorder %s14, 0
    %p77 = por %p75, %p76
    %p78 = scmp.ne.s32.totalorder %s66, %s67
    %p79 = scmp.eq.s32.totalorder %s15, 1
    %p80 = por %p78, %p79
    %p82 = scmp.ne.s32.totalorder %s67, %s81
    %p83 = scmp.eq.s32.totalorder %s15, 0
    %p84 = por %p82, %p83
    %s85 = ssub.s32 %s9, %s16
    %p86 = scmp.eq.s32.totalorder %s85, 0
    %s88 = sadd.s32 %s87, 1
    %s89 = scalar_select %p86, %s87, %s88
    %p92 = pneg %p86
    %p93 = scmp.eq.s32.totalorder %s9, 1
    %p94 = por %p92, %p93
    %p95 = scmp.ne.s32.totalorder %s87, %s90
    %p96 = scmp.eq.s32.totalorder %s9, 0
    %p97 = por %p95, %p96
    %p98 = scmp.ne.s32.totalorder %s87, %s90
    %p99 = scmp.eq.s32.totalorder %s14, 1
    %p100 = por %p98, %p99
    %p101 = scmp.ne.s32.totalorder %s90, %s91
    %p102 = scmp.eq.s32.totalorder %s14, 0
    %p103 = por %p101, %p102
    %p104 = scmp.ne.s32.totalorder %s90, %s91
    %p105 = scmp.eq.s32.totalorder %s15, 1
    %p106 = por %p104, %p105
    %p108 = scmp.ne.s32.totalorder %s91, %s107
    %p109 = scmp.eq.s32.totalorder %s15, 0
    %p110 = por %p108, %p109
    %p111 = scmp.le.s32.totalorder 1, %s9
    %p112 = scmp.lt.s32.totalorder %s9, 3
    %p113 = pnand %p111, %p112
    %p114 = pneg %p113
    // Predicated region
    $region9: #{rcab_forward.6} parent=5 // pred_check
      _
    $region10: #{rcab_forward.6} parent=5 // pred_check_branch
      %116 = sbr.rel (%p113) target = $region12
    $region11: #{rcab_forward.6} parent=5 // pred_region
      %s117 = ssub.s32 %s9, 1
      // Predicated region
      $region13: #{rcab_forward.6} parent=11 // pred_check
        %p118 = pneg %p56
      $region14: #{rcab_forward.6} parent=11 // pred_check_branch
        %120 = sbr.rel (%p118) target = $region16
      $region15: #{rcab_forward.6} parent=11 // pred_region
        _
      $region16: #{rcab_forward.6} parent=11 // pred_fallthru
        _
      // Predicated region
      $region17: #{rcab_forward.6} parent=11 // pred_check
        %p121 = pneg %p77
      $region18: #{rcab_forward.6} parent=11 // pred_check_branch
        %123 = sbr.rel (%p121) target = $region20
      $region19: #{rcab_forward.6} parent=11 // pred_region
        _
      $region20: #{rcab_forward.6} parent=11 // pred_fallthru
        _
    $region12: #{rcab_forward.6} parent=5 // pred_fallthru
      _
    %p124 = scmp.lt.s32.totalorder %s9, 2
    // Predicated region
    $region21: #{rcab_forward.6} parent=5 // pred_check
      %p125 = pneg %p124
    $region22: #{rcab_forward.6} parent=5 // pred_check_branch
      %127 = sbr.rel (%p125) target = $region24
    $region23: #{rcab_forward.6} parent=5 // pred_region
      // Predicated region
      $region25: #{rcab_forward.6} parent=23 // pred_check
        %p128 = pneg %p29
      $region26: #{rcab_forward.6} parent=23 // pred_check_branch
        %130 = sbr.rel (%p128) target = $region28
      $region27: #{rcab_forward.6} parent=23 // pred_region
        %p131 = scmp.lt.s32.totalorder %s9, 1
        %s132 = scalar_select %p131, %s9, 1
        %s133 = smul.addr %s132, 32
        %s134 = smul.addr %s133, 8
        %s135 = scalar_lea.vmem %s0, %s134
      $region28: #{rcab_forward.6} parent=23 // pred_fallthru
        _
    $region24: #{rcab_forward.6} parent=5 // pred_fallthru
      _
    %p136 = scmp.le.s32.totalorder 1, %s9
    %p137 = scmp.lt.s32.totalorder %s9, 3
    %p138 = pnand %p136, %p137
    %p139 = pneg %p138
    // Predicated region
    $region29: #{rcab_forward.6} parent=5 // pred_check
      _
    $region30: #{rcab_forward.6} parent=5 // pred_check_branch
      %141 = sbr.rel (%p138) target = $region32
    $region31: #{rcab_forward.6} parent=5 // pred_region
      %s142 = ssub.s32 %s9, 1
      %p143 = scmp.lt.s32.totalorder %s14, 1
      %s144 = scalar_select %p143, %s14, 1
      %s145 = smul.addr %s144, 32
      %s146 = smul.addr %s145, 8
      %s147 = scalar_lea.vmem %s0, %s146
      %p148 = pneg %p35
      %p149 = pneg %p32
      %p150 = pneg %p56
      %p151 = pneg %p53
      %p152 = pneg %p77
      %p153 = pneg %p74
      %p154 = pneg %p103
      %p155 = pneg %p100
      %p156 = scmp.lt.s32.totalorder %s14, 1
      %s157 = scalar_select %p156, %s14, 1
      %s158 = smul.addr %s157, 32
      %s159 = smul.addr %s158, 8
      %s160 = scalar_lea.vmem %s3, %s159
      %p161 = scmp.lt.s32.totalorder %s14, 1
      %s162 = scalar_select %p161, %s14, 1
      %s163 = smul.addr %s162, 32
      %s164 = smul.addr %s163, 8
      %s165 = scalar_lea.vmem %s0, %s164
      %p166 = scmp.lt.s32.totalorder %s14, 1
      %s167 = scalar_select %p166, %s14, 1
      %s168 = smul.addr %s167, 32
      %s169 = smul.addr %s168, 8
      %s170 = scalar_lea.vmem %s3, %s169
      %v171 = vld [vmem:[%s165] sm:$0xff]
      %v172 = vld [vmem:[%s165 + $0x8] sm:$0xff]
      %v173 = vld [vmem:[%s165 + $0x10] sm:$0xff]
      %v174 = vld [vmem:[%s165 + $0x18] sm:$0xff]
      %v175 = vld [vmem:[%s165 + $0x20] sm:$0xff]
      %v176 = vld [vmem:[%s165 + $0x28] sm:$0xff]
      %v177 = vld [vmem:[%s165 + $0x30] sm:$0xff]
      %v178 = vld [vmem:[%s165 + $0x38] sm:$0xff]
      %v179 = vld [vmem:[%s165 + $0x40] sm:$0xff]
      %v180 = vld [vmem:[%s165 + $0x48] sm:$0xff]
      %v181 = vld [vmem:[%s165 + $0x50] sm:$0xff]
      %v182 = vld [vmem:[%s165 + $0x58] sm:$0xff]
      %v183 = vld [vmem:[%s165 + $0x60] sm:$0xff]
      %v184 = vld [vmem:[%s165 + $0x68] sm:$0xff]
      %v185 = vld [vmem:[%s165 + $0x70] sm:$0xff]
      %v186 = vld [vmem:[%s165 + $0x78] sm:$0xff]
      %v187 = vld [vmem:[%s165 + $0x80] sm:$0xff]
      %v188 = vld [vmem:[%s165 + $0x88] sm:$0xff]
      %v189 = vld [vmem:[%s165 + $0x90] sm:$0xff]
      %v190 = vld [vmem:[%s165 + $0x98] sm:$0xff]
      %v191 = vld [vmem:[%s165 + $0xa0] sm:$0xff]
      %v192 = vld [vmem:[%s165 + $0xa8] sm:$0xff]
      %v193 = vld [vmem:[%s165 + $0xb0] sm:$0xff]
      %v194 = vld [vmem:[%s165 + $0xb8] sm:$0xff]
      %v195 = vld [vmem:[%s165 + $0xc0] sm:$0xff]
      %v196 = vld [vmem:[%s165 + $0xc8] sm:$0xff]
      %v197 = vld [vmem:[%s165 + $0xd0] sm:$0xff]
      %v198 = vld [vmem:[%s165 + $0xd8] sm:$0xff]
      %v199 = vld [vmem:[%s165 + $0xe0] sm:$0xff]
      %v200 = vld [vmem:[%s165 + $0xe8] sm:$0xff]
      %v201 = vld [vmem:[%s165 + $0xf0] sm:$0xff]
      %v202 = vld [vmem:[%s165 + $0xf8] sm:$0xff]
      %v203 = vld [vmem:[%s1] sm:$0xff]
      %v204 = vld [vmem:[%s1 + $0x8] sm:$0xff]
      %v205 = vld [vmem:[%s1 + $0x10] sm:$0xff]
      %v206 = vld [vmem:[%s1 + $0x18] sm:$0xff]
      %v207 = vld [vmem:[%s1 + $0x20] sm:$0xff]
      %v208 = vld [vmem:[%s1 + $0x28] sm:$0xff]
      %v209 = vld [vmem:[%s1 + $0x30] sm:$0xff]
      %v210 = vld [vmem:[%s1 + $0x38] sm:$0xff]
      %v211 = vld [vmem:[%s1 + $0x40] sm:$0xff]
      %v212 = vld [vmem:[%s1 + $0x48] sm:$0xff]
      %v213 = vld [vmem:[%s1 + $0x50] sm:$0xff]
      %v214 = vld [vmem:[%s1 + $0x58] sm:$0xff]
      %v215 = vld [vmem:[%s1 + $0x60] sm:$0xff]
      %v216 = vld [vmem:[%s1 + $0x68] sm:$0xff]
      %v217 = vld [vmem:[%s1 + $0x70] sm:$0xff]
      %v218 = vld [vmem:[%s1 + $0x78] sm:$0xff]
      %v219 = vld [vmem:[%s1 + $0x80] sm:$0xff]
      %v220 = vld [vmem:[%s1 + $0x88] sm:$0xff]
      %v221 = vld [vmem:[%s1 + $0x90] sm:$0xff]
      %v222 = vld [vmem:[%s1 + $0x98] sm:$0xff]
      %v223 = vld [vmem:[%s1 + $0xa0] sm:$0xff]
      %v224 = vld [vmem:[%s1 + $0xa8] sm:$0xff]
      %v225 = vld [vmem:[%s1 + $0xb0] sm:$0xff]
      %v226 = vld [vmem:[%s1 + $0xb8] sm:$0xff]
      %v227 = vld [vmem:[%s1 + $0xc0] sm:$0xff]
      %v228 = vld [vmem:[%s1 + $0xc8] sm:$0xff]
      %v229 = vld [vmem:[%s1 + $0xd0] sm:$0xff]
      %v230 = vld [vmem:[%s1 + $0xd8] sm:$0xff]
      %v231 = vld [vmem:[%s1 + $0xe0] sm:$0xff]
      %v232 = vld [vmem:[%s1 + $0xe8] sm:$0xff]
      %v233 = vld [vmem:[%s1 + $0xf0] sm:$0xff]
      %v234 = vld [vmem:[%s1 + $0xf8] sm:$0xff]
      %v235 = vld [vmem:[%s1 + $0x100] sm:$0xff]
      %v236 = vld [vmem:[%s1 + $0x108] sm:$0xff]
      %v237 = vld [vmem:[%s1 + $0x110] sm:$0xff]
      %v238 = vld [vmem:[%s1 + $0x118] sm:$0xff]
      %v239 = vld [vmem:[%s1 + $0x120] sm:$0xff]
      %v240 = vld [vmem:[%s1 + $0x128] sm:$0xff]
      %v241 = vld [vmem:[%s1 + $0x130] sm:$0xff]
      %v242 = vld [vmem:[%s1 + $0x138] sm:$0xff]
      %v243 = vld [vmem:[%s1 + $0x140] sm:$0xff]
      %v244 = vld [vmem:[%s1 + $0x148] sm:$0xff]
      %v245 = vld [vmem:[%s1 + $0x150] sm:$0xff]
      %v246 = vld [vmem:[%s1 + $0x158] sm:$0xff]
      %v247 = vld [vmem:[%s1 + $0x160] sm:$0xff]
      %v248 = vld [vmem:[%s1 + $0x168] sm:$0xff]
      %v249 = vld [vmem:[%s1 + $0x170] sm:$0xff]
      %v250 = vld [vmem:[%s1 + $0x178] sm:$0xff]
      %v251 = vld [vmem:[%s1 + $0x180] sm:$0xff]
      %v252 = vld [vmem:[%s1 + $0x188] sm:$0xff]
      %v253 = vld [vmem:[%s1 + $0x190] sm:$0xff]
      %v254 = vld [vmem:[%s1 + $0x198] sm:$0xff]
      %v255 = vld [vmem:[%s1 + $0x1a0] sm:$0xff]
      %v256 = vld [vmem:[%s1 + $0x1a8] sm:$0xff]
      %v257 = vld [vmem:[%s1 + $0x1b0] sm:$0xff]
      %v258 = vld [vmem:[%s1 + $0x1b8] sm:$0xff]
      %v259 = vld [vmem:[%s1 + $0x1c0] sm:$0xff]
      %v260 = vld [vmem:[%s1 + $0x1c8] sm:$0xff]
      %v261 = vld [vmem:[%s1 + $0x1d0] sm:$0xff]
      %v262 = vld [vmem:[%s1 + $0x1d8] sm:$0xff]
      %v263 = vld [vmem:[%s1 + $0x1e0] sm:$0xff]
      %v264 = vld [vmem:[%s1 + $0x1e8] sm:$0xff]
      %v265 = vld [vmem:[%s1 + $0x1f0] sm:$0xff]
      %v266 = vld [vmem:[%s1 + $0x1f8] sm:$0xff]
      %267 = vmatpush.msra.mxu0 %v186
      %268 = vmatpush.msra.mxu0 %v185
      %269 = vmatpush.msra.mxu0 %v184
      %270 = vmatpush.msra.mxu0 %v183
      %271 = vmatpush.msra.mxu0 %v182
      %272 = vmatpush.msra.mxu0 %v181
      %273 = vmatpush.msra.mxu0 %v180
      %274 = vmatpush.msra.mxu0 %v179
      %275 = vmatpush.msra.mxu0 %v178
      %276 = vmatpush.msra.mxu0 %v177
      %277 = vmatpush.msra.mxu0 %v176
      %278 = vmatpush.msra.mxu0 %v175
      %279 = vmatpush.msra.mxu0 %v174
      %280 = vmatpush.msra.mxu0 %v173
      %281 = vmatpush.msra.mxu0 %v172
      %282 = vmatpush.msra.mxu0 %v171
      %283 = vmatmul.f32.gmra.mxu0 %v203
      %v284 = vpop.f32.mrf.mxu0
      %v285 = vadd.f32 0.0, %v284
      %286 = vmatmul.f32.gmra.mxu0 %v205
      %v287 = vpop.f32.mrf.mxu0
      %v288 = vadd.f32 0.0, %v287
      %289 = vmatmul.f32.gmra.mxu0 %v207
      %v290 = vpop.f32.mrf.mxu0
      %v291 = vadd.f32 0.0, %v290
      %292 = vmatmul.f32.gmra.mxu0 %v209
      %v293 = vpop.f32.mrf.mxu0
      %v294 = vadd.f32 0.0, %v293
      %295 = vmatmul.f32.gmra.mxu0 %v211
      %v296 = vpop.f32.mrf.mxu0
      %v297 = vadd.f32 0.0, %v296
      %298 = vmatmul.f32.gmra.mxu0 %v213
      %v299 = vpop.f32.mrf.mxu0
      %v300 = vadd.f32 0.0, %v299
      %301 = vmatmul.f32.gmra.mxu0 %v215
      %v302 = vpop.f32.mrf.mxu0
      %v303 = vadd.f32 0.0, %v302
      %304 = vmatmul.f32.gmra.mxu0 %v217
      %v305 = vpop.f32.mrf.mxu0
      %v306 = vadd.f32 0.0, %v305
      %307 = vmatmul.f32.gmra.mxu0 %v219
      %v308 = vpop.f32.mrf.mxu0
      %v309 = vadd.f32 0.0, %v308
      %310 = vmatmul.f32.gmra.mxu0 %v221
      %v311 = vpop.f32.mrf.mxu0
      %v312 = vadd.f32 0.0, %v311
      %313 = vmatmul.f32.gmra.mxu0 %v223
      %v314 = vpop.f32.mrf.mxu0
      %v315 = vadd.f32 0.0, %v314
      %316 = vmatmul.f32.gmra.mxu0 %v225
      %v317 = vpop.f32.mrf.mxu0
      %v318 = vadd.f32 0.0, %v317
      %319 = vmatmul.f32.gmra.mxu0 %v227
      %v320 = vpop.f32.mrf.mxu0
      %v321 = vadd.f32 0.0, %v320
      %322 = vmatmul.f32.gmra.mxu0 %v229
      %v323 = vpop.f32.mrf.mxu0
      %v324 = vadd.f32 0.0, %v323
      %325 = vmatmul.f32.gmra.mxu0 %v231
      %v326 = vpop.f32.mrf.mxu0
      %v327 = vadd.f32 0.0, %v326
      %328 = vmatmul.f32.gmra.mxu0 %v233
      %v329 = vpop.f32.mrf.mxu0
      %v330 = vadd.f32 0.0, %v329
      %331 = vmatmul.f32.gmra.mxu0 %v235
      %v332 = vpop.f32.mrf.mxu0
      %v333 = vadd.f32 0.0, %v332
      %334 = vmatmul.f32.gmra.mxu0 %v237
      %v335 = vpop.f32.mrf.mxu0
      %v336 = vadd.f32 0.0, %v335
      %337 = vmatmul.f32.gmra.mxu0 %v239
      %v338 = vpop.f32.mrf.mxu0
      %v339 = vadd.f32 0.0, %v338
      %340 = vmatmul.f32.gmra.mxu0 %v241
      %v341 = vpop.f32.mrf.mxu0
      %v342 = vadd.f32 0.0, %v341
      %343 = vmatmul.f32.gmra.mxu0 %v243
      %v344 = vpop.f32.mrf.mxu0
      %v345 = vadd.f32 0.0, %v344
      %346 = vmatmul.f32.gmra.mxu0 %v245
      %v347 = vpop.f32.mrf.mxu0
      %v348 = vadd.f32 0.0, %v347
      %349 = vmatmul.f32.gmra.mxu0 %v247
      %v350 = vpop.f32.mrf.mxu0
      %v351 = vadd.f32 0.0, %v350
      %352 = vmatmul.f32.gmra.mxu0 %v249
      %v353 = vpop.f32.mrf.mxu0
      %v354 = vadd.f32 0.0, %v353
      %355 = vmatmul.f32.gmra.mxu0 %v251
      %v356 = vpop.f32.mrf.mxu0
      %v357 = vadd.f32 0.0, %v356
      %358 = vmatmul.f32.gmra.mxu0 %v253
      %v359 = vpop.f32.mrf.mxu0
      %v360 = vadd.f32 0.0, %v359
      %361 = vmatmul.f32.gmra.mxu0 %v255
      %v362 = vpop.f32.mrf.mxu0
      %v363 = vadd.f32 0.0, %v362
      %364 = vmatmul.f32.gmra.mxu0 %v257
      %v365 = vpop.f32.mrf.mxu0
      %v366 = vadd.f32 0.0, %v365
      %367 = vmatmul.f32.gmra.mxu0 %v259
      %v368 = vpop.f32.mrf.mxu0
      %v369 = vadd.f32 0.0, %v368
      %370 = vmatmul.f32.gmra.mxu0 %v261
      %v371 = vpop.f32.mrf.mxu0
      %v372 = vadd.f32 0.0, %v371
      %373 = vmatmul.f32.gmra.mxu0 %v263
      %v374 = vpop.f32.mrf.mxu0
      %v375 = vadd.f32 0.0, %v374
      %376 = vmatmul.f32.gmra.mxu0 %v265
      %v377 = vpop.f32.mrf.mxu0
      %v378 = vadd.f32 0.0, %v377
      %379 = vdwg.mxu0
      %380 = vmatpush.msra.mxu0 %v202
      %381 = vmatpush.msra.mxu0 %v201
      %382 = vmatpush.msra.mxu0 %v200
      %383 = vmatpush.msra.mxu0 %v199
      %384 = vmatpush.msra.mxu0 %v198
      %385 = vmatpush.msra.mxu0 %v197
      %386 = vmatpush.msra.mxu0 %v196
      %387 = vmatpush.msra.mxu0 %v195
      %388 = vmatpush.msra.mxu0 %v194
      %389 = vmatpush.msra.mxu0 %v193
      %390 = vmatpush.msra.mxu0 %v192
      %391 = vmatpush.msra.mxu0 %v191
      %392 = vmatpush.msra.mxu0 %v190
      %393 = vmatpush.msra.mxu0 %v189
      %394 = vmatpush.msra.mxu0 %v188
      %395 = vmatpush.msra.mxu0 %v187
      %396 = vmatmul.f32.gmra.mxu0 %v204
      %v397 = vpop.f32.mrf.mxu0
      %v398 = vadd.f32 %v285, %v397
      %399 = vmatmul.f32.gmra.mxu0 %v206
      %v400 = vpop.f32.mrf.mxu0
      %v401 = vadd.f32 %v288, %v400
      %402 = vmatmul.f32.gmra.mxu0 %v208
      %v403 = vpop.f32.mrf.mxu0
      %v404 = vadd.f32 %v291, %v403
      %405 = vmatmul.f32.gmra.mxu0 %v210
      %v406 = vpop.f32.mrf.mxu0
      %v407 = vadd.f32 %v294, %v406
      %408 = vmatmul.f32.gmra.mxu0 %v212
      %v409 = vpop.f32.mrf.mxu0
      %v410 = vadd.f32 %v297, %v409
      %411 = vmatmul.f32.gmra.mxu0 %v214
      %v412 = vpop.f32.mrf.mxu0
      %v413 = vadd.f32 %v300, %v412
      %414 = vmatmul.f32.gmra.mxu0 %v216
      %v415 = vpop.f32.mrf.mxu0
      %v416 = vadd.f32 %v303, %v415
      %417 = vmatmul.f32.gmra.mxu0 %v218
      %v418 = vpop.f32.mrf.mxu0
      %v419 = vadd.f32 %v306, %v418
      %420 = vmatmul.f32.gmra.mxu0 %v220
      %v421 = vpop.f32.mrf.mxu0
      %v422 = vadd.f32 %v309, %v421
      %423 = vmatmul.f32.gmra.mxu0 %v222
      %v424 = vpop.f32.mrf.mxu0
      %v425 = vadd.f32 %v312, %v424
      %426 = vmatmul.f32.gmra.mxu0 %v224
      %v427 = vpop.f32.mrf.mxu0
      %v428 = vadd.f32 %v315, %v427
      %429 = vmatmul.f32.gmra.mxu0 %v226
      %v430 = vpop.f32.mrf.mxu0
      %v431 = vadd.f32 %v318, %v430
      %432 = vmatmul.f32.gmra.mxu0 %v228
      %v433 = vpop.f32.mrf.mxu0
      %v434 = vadd.f32 %v321, %v433
      %435 = vmatmul.f32.gmra.mxu0 %v230
      %v436 = vpop.f32.mrf.mxu0
      %v437 = vadd.f32 %v324, %v436
      %438 = vmatmul.f32.gmra.mxu0 %v232
      %v439 = vpop.f32.mrf.mxu0
      %v440 = vadd.f32 %v327, %v439
      %441 = vmatmul.f32.gmra.mxu0 %v234
      %v442 = vpop.f32.mrf.mxu0
      %v443 = vadd.f32 %v330, %v442
      %444 = vmatmul.f32.gmra.mxu0 %v236
      %v445 = vpop.f32.mrf.mxu0
      %v446 = vadd.f32 %v333, %v445
      %447 = vmatmul.f32.gmra.mxu0 %v238
      %v448 = vpop.f32.mrf.mxu0
      %v449 = vadd.f32 %v336, %v448
      %450 = vmatmul.f32.gmra.mxu0 %v240
      %v451 = vpop.f32.mrf.mxu0
      %v452 = vadd.f32 %v339, %v451
      %453 = vmatmul.f32.gmra.mxu0 %v242
      %v454 = vpop.f32.mrf.mxu0
      %v455 = vadd.f32 %v342, %v454
      %456 = vmatmul.f32.gmra.mxu0 %v244
      %v457 = vpop.f32.mrf.mxu0
      %v458 = vadd.f32 %v345, %v457
      %459 = vmatmul.f32.gmra.mxu0 %v246
      %v460 = vpop.f32.mrf.mxu0
      %v461 = vadd.f32 %v348, %v460
      %462 = vmatmul.f32.gmra.mxu0 %v248
      %v463 = vpop.f32.mrf.mxu0
      %v464 = vadd.f32 %v351, %v463
      %465 = vmatmul.f32.gmra.mxu0 %v250
      %v466 = vpop.f32.mrf.mxu0
      %v467 = vadd.f32 %v354, %v466
      %468 = vmatmul.f32.gmra.mxu0 %v252
      %v469 = vpop.f32.mrf.mxu0
      %v470 = vadd.f32 %v357, %v469
      %471 = vmatmul.f32.gmra.mxu0 %v254
      %v472 = vpop.f32.mrf.mxu0
      %v473 = vadd.f32 %v360, %v472
      %474 = vmatmul.f32.gmra.mxu0 %v256
      %v475 = vpop.f32.mrf.mxu0
      %v476 = vadd.f32 %v363, %v475
      %477 = vmatmul.f32.gmra.mxu0 %v258
      %v478 = vpop.f32.mrf.mxu0
      %v479 = vadd.f32 %v366, %v478
      %480 = vmatmul.f32.gmra.mxu0 %v260
      %v481 = vpop.f32.mrf.mxu0
      %v482 = vadd.f32 %v369, %v481
      %483 = vmatmul.f32.gmra.mxu0 %v262
      %v484 = vpop.f32.mrf.mxu0
      %v485 = vadd.f32 %v372, %v484
      %486 = vmatmul.f32.gmra.mxu0 %v264
      %v487 = vpop.f32.mrf.mxu0
      %v488 = vadd.f32 %v375, %v487
      %489 = vmatmul.f32.gmra.mxu0 %v266
      %v490 = vpop.f32.mrf.mxu0
      %v491 = vadd.f32 %v378, %v490
      %492 = vdwg.mxu0
      %v493 = vld [vmem:[%s2] sm:$0xff]
      %v494 = vld [vmem:[%s2 + $0x8] sm:$0xff]
      %v495 = vld [vmem:[%s2 + $0x10] sm:$0xff]
      %v496 = vld [vmem:[%s2 + $0x18] sm:$0xff]
      %v497 = vld [vmem:[%s2 + $0x20] sm:$0xff]
      %v498 = vld [vmem:[%s2 + $0x28] sm:$0xff]
      %v499 = vld [vmem:[%s2 + $0x30] sm:$0xff]
      %v500 = vld [vmem:[%s2 + $0x38] sm:$0xff]
      %v501 = vld [vmem:[%s2 + $0x40] sm:$0xff]
      %v502 = vld [vmem:[%s2 + $0x48] sm:$0xff]
      %v503 = vld [vmem:[%s2 + $0x50] sm:$0xff]
      %v504 = vld [vmem:[%s2 + $0x58] sm:$0xff]
      %v505 = vld [vmem:[%s2 + $0x60] sm:$0xff]
      %v506 = vld [vmem:[%s2 + $0x68] sm:$0xff]
      %v507 = vld [vmem:[%s2 + $0x70] sm:$0xff]
      %v508 = vld [vmem:[%s2 + $0x78] sm:$0xff]
      %v509 = vld [vmem:[%s2 + $0x80] sm:$0xff]
      %v510 = vld [vmem:[%s2 + $0x88] sm:$0xff]
      %v511 = vld [vmem:[%s2 + $0x90] sm:$0xff]
      %v512 = vld [vmem:[%s2 + $0x98] sm:$0xff]
      %v513 = vld [vmem:[%s2 + $0xa0] sm:$0xff]
      %v514 = vld [vmem:[%s2 + $0xa8] sm:$0xff]
      %v515 = vld [vmem:[%s2 + $0xb0] sm:$0xff]
      %v516 = vld [vmem:[%s2 + $0xb8] sm:$0xff]
      %v517 = vld [vmem:[%s2 + $0xc0] sm:$0xff]
      %v518 = vld [vmem:[%s2 + $0xc8] sm:$0xff]
      %v519 = vld [vmem:[%s2 + $0xd0] sm:$0xff]
      %v520 = vld [vmem:[%s2 + $0xd8] sm:$0xff]
      %v521 = vld [vmem:[%s2 + $0xe0] sm:$0xff]
      %v522 = vld [vmem:[%s2 + $0xe8] sm:$0xff]
      %v523 = vld [vmem:[%s2 + $0xf0] sm:$0xff]
      %v524 = vld [vmem:[%s2 + $0xf8] sm:$0xff]
      %v525 = vld [vmem:[%s2 + $0x100] sm:$0xff]
      %v526 = vld [vmem:[%s2 + $0x108] sm:$0xff]
      %v527 = vld [vmem:[%s2 + $0x110] sm:$0xff]
      %v528 = vld [vmem:[%s2 + $0x118] sm:$0xff]
      %v529 = vld [vmem:[%s2 + $0x120] sm:$0xff]
      %v530 = vld [vmem:[%s2 + $0x128] sm:$0xff]
      %v531 = vld [vmem:[%s2 + $0x130] sm:$0xff]
      %v532 = vld [vmem:[%s2 + $0x138] sm:$0xff]
      %v533 = vld [vmem:[%s2 + $0x140] sm:$0xff]
      %v534 = vld [vmem:[%s2 + $0x148] sm:$0xff]
      %v535 = vld [vmem:[%s2 + $0x150] sm:$0xff]
      %v536 = vld [vmem:[%s2 + $0x158] sm:$0xff]
      %v537 = vld [vmem:[%s2 + $0x160] sm:$0xff]
      %v538 = vld [vmem:[%s2 + $0x168] sm:$0xff]
      %v539 = vld [vmem:[%s2 + $0x170] sm:$0xff]
      %v540 = vld [vmem:[%s2 + $0x178] sm:$0xff]
      %v541 = vld [vmem:[%s2 + $0x180] sm:$0xff]
      %v542 = vld [vmem:[%s2 + $0x188] sm:$0xff]
      %v543 = vld [vmem:[%s2 + $0x190] sm:$0xff]
      %v544 = vld [vmem:[%s2 + $0x198] sm:$0xff]
      %v545 = vld [vmem:[%s2 + $0x1a0] sm:$0xff]
      %v546 = vld [vmem:[%s2 + $0x1a8] sm:$0xff]
      %v547 = vld [vmem:[%s2 + $0x1b0] sm:$0xff]
      %v548 = vld [vmem:[%s2 + $0x1b8] sm:$0xff]
      %v549 = vld [vmem:[%s2 + $0x1c0] sm:$0xff]
      %v550 = vld [vmem:[%s2 + $0x1c8] sm:$0xff]
      %v551 = vld [vmem:[%s2 + $0x1d0] sm:$0xff]
      %v552 = vld [vmem:[%s2 + $0x1d8] sm:$0xff]
      %v553 = vld [vmem:[%s2 + $0x1e0] sm:$0xff]
      %v554 = vld [vmem:[%s2 + $0x1e8] sm:$0xff]
      %v555 = vld [vmem:[%s2 + $0x1f0] sm:$0xff]
      %v556 = vld [vmem:[%s2 + $0x1f8] sm:$0xff]
      %557 = vmatpush.msra.mxu0 %v186
      %558 = vmatpush.msra.mxu0 %v185
      %559 = vmatpush.msra.mxu0 %v184
      %560 = vmatpush.msra.mxu0 %v183
      %561 = vmatpush.msra.mxu0 %v182
      %562 = vmatpush.msra.mxu0 %v181
      %563 = vmatpush.msra.mxu0 %v180
      %564 = vmatpush.msra.mxu0 %v179
      %565 = vmatpush.msra.mxu0 %v178
      %566 = vmatpush.msra.mxu0 %v177
      %567 = vmatpush.msra.mxu0 %v176
      %568 = vmatpush.msra.mxu0 %v175
      %569 = vmatpush.msra.mxu0 %v174
      %570 = vmatpush.msra.mxu0 %v173
      %571 = vmatpush.msra.mxu0 %v172
      %572 = vmatpush.msra.mxu0 %v171
      %573 = vmatmul.f32.gmra.mxu0 %v493
      %v574 = vpop.f32.mrf.mxu0
      %v575 = vadd.f32 0.0, %v574
      %576 = vmatmul.f32.gmra.mxu0 %v495
      %v577 = vpop.f32.mrf.mxu0
      %v578 = vadd.f32 0.0, %v577
      %579 = vmatmul.f32.gmra.mxu0 %v497
      %v580 = vpop.f32.mrf.mxu0
      %v581 = vadd.f32 0.0, %v580
      %582 = vmatmul.f32.gmra.mxu0 %v499
      %v583 = vpop.f32.mrf.mxu0
      %v584 = vadd.f32 0.0, %v583
      %585 = vmatmul.f32.gmra.mxu0 %v501
      %v586 = vpop.f32.mrf.mxu0
      %v587 = vadd.f32 0.0, %v586
      %588 = vmatmul.f32.gmra.mxu0 %v503
      %v589 = vpop.f32.mrf.mxu0
      %v590 = vadd.f32 0.0, %v589
      %591 = vmatmul.f32.gmra.mxu0 %v505
      %v592 = vpop.f32.mrf.mxu0
      %v593 = vadd.f32 0.0, %v592
      %594 = vmatmul.f32.gmra.mxu0 %v507
      %v595 = vpop.f32.mrf.mxu0
      %v596 = vadd.f32 0.0, %v595
      %597 = vmatmul.f32.gmra.mxu0 %v509
      %v598 = vpop.f32.mrf.mxu0
      %v599 = vadd.f32 0.0, %v598
      %600 = vmatmul.f32.gmra.mxu0 %v511
      %v601 = vpop.f32.mrf.mxu0
      %v602 = vadd.f32 0.0, %v601
      %603 = vmatmul.f32.gmra.mxu0 %v513
      %v604 = vpop.f32.mrf.mxu0
      %v605 = vadd.f32 0.0, %v604
      %606 = vmatmul.f32.gmra.mxu0 %v515
      %v607 = vpop.f32.mrf.mxu0
      %v608 = vadd.f32 0.0, %v607
      %609 = vmatmul.f32.gmra.mxu0 %v517
      %v610 = vpop.f32.mrf.mxu0
      %v611 = vadd.f32 0.0, %v610
      %612 = vmatmul.f32.gmra.mxu0 %v519
      %v613 = vpop.f32.mrf.mxu0
      %v614 = vadd.f32 0.0, %v613
      %615 = vmatmul.f32.gmra.mxu0 %v521
      %v616 = vpop.f32.mrf.mxu0
      %v617 = vadd.f32 0.0, %v616
      %618 = vmatmul.f32.gmra.mxu0 %v523
      %v619 = vpop.f32.mrf.mxu0
      %v620 = vadd.f32 0.0, %v619
      %621 = vmatmul.f32.gmra.mxu0 %v525
      %v622 = vpop.f32.mrf.mxu0
      %v623 = vadd.f32 0.0, %v622
      %624 = vmatmul.f32.gmra.mxu0 %v527
      %v625 = vpop.f32.mrf.mxu0
      %v626 = vadd.f32 0.0, %v625
      %627 = vmatmul.f32.gmra.mxu0 %v529
      %v628 = vpop.f32.mrf.mxu0
      %v629 = vadd.f32 0.0, %v628
      %630 = vmatmul.f32.gmra.mxu0 %v531
      %v631 = vpop.f32.mrf.mxu0
      %v632 = vadd.f32 0.0, %v631
      %633 = vmatmul.f32.gmra.mxu0 %v533
      %v634 = vpop.f32.mrf.mxu0
      %v635 = vadd.f32 0.0, %v634
      %636 = vmatmul.f32.gmra.mxu0 %v535
      %v637 = vpop.f32.mrf.mxu0
      %v638 = vadd.f32 0.0, %v637
      %639 = vmatmul.f32.gmra.mxu0 %v537
      %v640 = vpop.f32.mrf.mxu0
      %v641 = vadd.f32 0.0, %v640
      %642 = vmatmul.f32.gmra.mxu0 %v539
      %v643 = vpop.f32.mrf.mxu0
      %v644 = vadd.f32 0.0, %v643
      %645 = vmatmul.f32.gmra.mxu0 %v541
      %v646 = vpop.f32.mrf.mxu0
      %v647 = vadd.f32 0.0, %v646
      %648 = vmatmul.f32.gmra.mxu0 %v543
      %v649 = vpop.f32.mrf.mxu0
      %v650 = vadd.f32 0.0, %v649
      %651 = vmatmul.f32.gmra.mxu0 %v545
      %v652 = vpop.f32.mrf.mxu0
      %v653 = vadd.f32 0.0, %v652
      %654 = vmatmul.f32.gmra.mxu0 %v547
      %v655 = vpop.f32.mrf.mxu0
      %v656 = vadd.f32 0.0, %v655
      %657 = vmatmul.f32.gmra.mxu0 %v549
      %v658 = vpop.f32.mrf.mxu0
      %v659 = vadd.f32 0.0, %v658
      %660 = vmatmul.f32.gmra.mxu0 %v551
      %v661 = vpop.f32.mrf.mxu0
      %v662 = vadd.f32 0.0, %v661
      %663 = vmatmul.f32.gmra.mxu0 %v553
      %v664 = vpop.f32.mrf.mxu0
      %v665 = vadd.f32 0.0, %v664
      %666 = vmatmul.f32.gmra.mxu0 %v555
      %v667 = vpop.f32.mrf.mxu0
      %v668 = vadd.f32 0.0, %v667
      %669 = vdwg.mxu0
      %670 = vmatpush.msra.mxu0 %v202
      %671 = vmatpush.msra.mxu0 %v201
      %672 = vmatpush.msra.mxu0 %v200
      %673 = vmatpush.msra.mxu0 %v199
      %674 = vmatpush.msra.mxu0 %v198
      %675 = vmatpush.msra.mxu0 %v197
      %676 = vmatpush.msra.mxu0 %v196
      %677 = vmatpush.msra.mxu0 %v195
      %678 = vmatpush.msra.mxu0 %v194
      %679 = vmatpush.msra.mxu0 %v193
      %680 = vmatpush.msra.mxu0 %v192
      %681 = vmatpush.msra.mxu0 %v191
      %682 = vmatpush.msra.mxu0 %v190
      %683 = vmatpush.msra.mxu0 %v189
      %684 = vmatpush.msra.mxu0 %v188
      %685 = vmatpush.msra.mxu0 %v187
      %686 = vmatmul.f32.gmra.mxu0 %v494
      %v687 = vpop.f32.mrf.mxu0
      %v688 = vadd.f32 %v575, %v687
      %689 = vmatmul.f32.gmra.mxu0 %v496
      %v690 = vpop.f32.mrf.mxu0
      %v691 = vadd.f32 %v578, %v690
      %692 = vmatmul.f32.gmra.mxu0 %v498
      %v693 = vpop.f32.mrf.mxu0
      %v694 = vadd.f32 %v581, %v693
      %695 = vmatmul.f32.gmra.mxu0 %v500
      %v696 = vpop.f32.mrf.mxu0
      %v697 = vadd.f32 %v584, %v696
      %698 = vmatmul.f32.gmra.mxu0 %v502
      %v699 = vpop.f32.mrf.mxu0
      %v700 = vadd.f32 %v587, %v699
      %701 = vmatmul.f32.gmra.mxu0 %v504
      %v702 = vpop.f32.mrf.mxu0
      %v703 = vadd.f32 %v590, %v702
      %704 = vmatmul.f32.gmra.mxu0 %v506
      %v705 = vpop.f32.mrf.mxu0
      %v706 = vadd.f32 %v593, %v705
      %707 = vmatmul.f32.gmra.mxu0 %v508
      %v708 = vpop.f32.mrf.mxu0
      %v709 = vadd.f32 %v596, %v708
      %710 = vmatmul.f32.gmra.mxu0 %v510
      %v711 = vpop.f32.mrf.mxu0
      %v712 = vadd.f32 %v599, %v711
      %713 = vmatmul.f32.gmra.mxu0 %v512
      %v714 = vpop.f32.mrf.mxu0
      %v715 = vadd.f32 %v602, %v714
      %716 = vmatmul.f32.gmra.mxu0 %v514
      %v717 = vpop.f32.mrf.mxu0
      %v718 = vadd.f32 %v605, %v717
      %719 = vmatmul.f32.gmra.mxu0 %v516
      %v720 = vpop.f32.mrf.mxu0
      %v721 = vadd.f32 %v608, %v720
      %722 = vmatmul.f32.gmra.mxu0 %v518
      %v723 = vpop.f32.mrf.mxu0
      %v724 = vadd.f32 %v611, %v723
      %725 = vmatmul.f32.gmra.mxu0 %v520
      %v726 = vpop.f32.mrf.mxu0
      %v727 = vadd.f32 %v614, %v726
      %728 = vmatmul.f32.gmra.mxu0 %v522
      %v729 = vpop.f32.mrf.mxu0
      %v730 = vadd.f32 %v617, %v729
      %731 = vmatmul.f32.gmra.mxu0 %v524
      %v732 = vpop.f32.mrf.mxu0
      %v733 = vadd.f32 %v620, %v732
      %734 = vmatmul.f32.gmra.mxu0 %v526
      %v735 = vpop.f32.mrf.mxu0
      %v736 = vadd.f32 %v623, %v735
      %737 = vmatmul.f32.gmra.mxu0 %v528
      %v738 = vpop.f32.mrf.mxu0
      %v739 = vadd.f32 %v626, %v738
      %740 = vmatmul.f32.gmra.mxu0 %v530
      %v741 = vpop.f32.mrf.mxu0
      %v742 = vadd.f32 %v629, %v741
      %743 = vmatmul.f32.gmra.mxu0 %v532
      %v744 = vpop.f32.mrf.mxu0
      %v745 = vadd.f32 %v632, %v744
      %746 = vmatmul.f32.gmra.mxu0 %v534
      %v747 = vpop.f32.mrf.mxu0
      %v748 = vadd.f32 %v635, %v747
      %749 = vmatmul.f32.gmra.mxu0 %v536
      %v750 = vpop.f32.mrf.mxu0
      %v751 = vadd.f32 %v638, %v750
      %752 = vmatmul.f32.gmra.mxu0 %v538
      %v753 = vpop.f32.mrf.mxu0
      %v754 = vadd.f32 %v641, %v753
      %755 = vmatmul.f32.gmra.mxu0 %v540
      %v756 = vpop.f32.mrf.mxu0
      %v757 = vadd.f32 %v644, %v756
      %758 = vmatmul.f32.gmra.mxu0 %v542
      %v759 = vpop.f32.mrf.mxu0
      %v760 = vadd.f32 %v647, %v759
      %761 = vmatmul.f32.gmra.mxu0 %v544
      %v762 = vpop.f32.mrf.mxu0
      %v763 = vadd.f32 %v650, %v762
      %764 = vmatmul.f32.gmra.mxu0 %v546
      %v765 = vpop.f32.mrf.mxu0
      %v766 = vadd.f32 %v653, %v765
      %767 = vmatmul.f32.gmra.mxu0 %v548
      %v768 = vpop.f32.mrf.mxu0
      %v769 = vadd.f32 %v656, %v768
      %770 = vmatmul.f32.gmra.mxu0 %v550
      %v771 = vpop.f32.mrf.mxu0
      %v772 = vadd.f32 %v659, %v771
      %773 = vmatmul.f32.gmra.mxu0 %v552
      %v774 = vpop.f32.mrf.mxu0
      %v775 = vadd.f32 %v662, %v774
      %776 = vmatmul.f32.gmra.mxu0 %v554
      %v777 = vpop.f32.mrf.mxu0
      %v778 = vadd.f32 %v665, %v777
      %779 = vmatmul.f32.gmra.mxu0 %v556
      %v780 = vpop.f32.mrf.mxu0
      %v781 = vadd.f32 %v668, %v780
      %782 = vdwg.mxu0
      %v783 = vmul.f32 %v398, %v398
      %v784 = vmul.f32 %v401, %v401
      %v785 = vmul.f32 %v404, %v404
      %v786 = vmul.f32 %v407, %v407
      %v787 = vmul.f32 %v410, %v410
      %v788 = vmul.f32 %v413, %v413
      %v789 = vmul.f32 %v416, %v416
      %v790 = vmul.f32 %v419, %v419
      %v791 = vmul.f32 %v422, %v422
      %v792 = vmul.f32 %v425, %v425
      %v793 = vmul.f32 %v428, %v428
      %v794 = vmul.f32 %v431, %v431
      %v795 = vmul.f32 %v434, %v434
      %v796 = vmul.f32 %v437, %v437
      %v797 = vmul.f32 %v440, %v440
      %v798 = vmul.f32 %v443, %v443
      %v799 = vmul.f32 %v446, %v446
      %v800 = vmul.f32 %v449, %v449
      %v801 = vmul.f32 %v452, %v452
      %v802 = vmul.f32 %v455, %v455
      %v803 = vmul.f32 %v458, %v458
      %v804 = vmul.f32 %v461, %v461
      %v805 = vmul.f32 %v464, %v464
      %v806 = vmul.f32 %v467, %v467
      %v807 = vmul.f32 %v470, %v470
      %v808 = vmul.f32 %v473, %v473
      %v809 = vmul.f32 %v476, %v476
      %v810 = vmul.f32 %v479, %v479
      %v811 = vmul.f32 %v482, %v482
      %v812 = vmul.f32 %v485, %v485
      %v813 = vmul.f32 %v488, %v488
      %v814 = vmul.f32 %v491, %v491
      %v815 = vmul.f32 %v688, %v688
      %v816 = vmul.f32 %v691, %v691
      %v817 = vmul.f32 %v694, %v694
      %v818 = vmul.f32 %v697, %v697
      %v819 = vmul.f32 %v700, %v700
      %v820 = vmul.f32 %v703, %v703
      %v821 = vmul.f32 %v706, %v706
      %v822 = vmul.f32 %v709, %v709
      %v823 = vmul.f32 %v712, %v712
      %v824 = vmul.f32 %v715, %v715
      %v825 = vmul.f32 %v718, %v718
      %v826 = vmul.f32 %v721, %v721
      %v827 = vmul.f32 %v724, %v724
      %v828 = vmul.f32 %v727, %v727
      %v829 = vmul.f32 %v730, %v730
      %v830 = vmul.f32 %v733, %v733
      %v831 = vmul.f32 %v736, %v736
      %v832 = vmul.f32 %v739, %v739
      %v833 = vmul.f32 %v742, %v742
      %v834 = vmul.f32 %v745, %v745
      %v835 = vmul.f32 %v748, %v748
      %v836 = vmul.f32 %v751, %v751
      %v837 = vmul.f32 %v754, %v754
      %v838 = vmul.f32 %v757, %v757
      %v839 = vmul.f32 %v760, %v760
      %v840 = vmul.f32 %v763, %v763
      %v841 = vmul.f32 %v766, %v766
      %v842 = vmul.f32 %v769, %v769
      %v843 = vmul.f32 %v772, %v772
      %v844 = vmul.f32 %v775, %v775
      %v845 = vmul.f32 %v778, %v778
      %v846 = vmul.f32 %v781, %v781
      %v847 = vadd.f32 %v783, %v815
      %v848 = vadd.f32 %v784, %v816
      %v849 = vadd.f32 %v785, %v817
      %v850 = vadd.f32 %v786, %v818
      %v851 = vadd.f32 %v787, %v819
      %v852 = vadd.f32 %v788, %v820
      %v853 = vadd.f32 %v789, %v821
      %v854 = vadd.f32 %v790, %v822
      %v855 = vadd.f32 %v791, %v823
      %v856 = vadd.f32 %v792, %v824
      %v857 = vadd.f32 %v793, %v825
      %v858 = vadd.f32 %v794, %v826
      %v859 = vadd.f32 %v795, %v827
      %v860 = vadd.f32 %v796, %v828
      %v861 = vadd.f32 %v797, %v829
      %v862 = vadd.f32 %v798, %v830
      %v863 = vadd.f32 %v799, %v831
      %v864 = vadd.f32 %v800, %v832
      %v865 = vadd.f32 %v801, %v833
      %v866 = vadd.f32 %v802, %v834
      %v867 = vadd.f32 %v803, %v835
      %v868 = vadd.f32 %v804, %v836
      %v869 = vadd.f32 %v805, %v837
      %v870 = vadd.f32 %v806, %v838
      %v871 = vadd.f32 %v807, %v839
      %v872 = vadd.f32 %v808, %v840
      %v873 = vadd.f32 %v809, %v841
      %v874 = vadd.f32 %v810, %v842
      %v875 = vadd.f32 %v811, %v843
      %v876 = vadd.f32 %v812, %v844
      %v877 = vadd.f32 %v813, %v845
      %v878 = vadd.f32 %v814, %v846
      %v879 = vrsqrt.pop %v847
      %v880 = vmul.f32 %v879, %v847
      %v881 = vmul.f32 %v880, %v879
      %v882 = vmul.f32 0.5, %v881
      %v883 = vsub.f32 1.5, %v882
      %v884 = vmul.f32 %v879, %v883
      %v885 = vmul.f32 %v847, %v884
      %vm886 = vcmp.eq.f32.partialorder %v847, inf
      %v887 = vsel %vm886, %v847, %v885
      %vm888 = vcmp.eq.f32.partialorder %v847, 0.0
      %v889 = vand.u32 %v847, 2147483648
      %v890 = vsel %vm888, %v889, %v887
      %v891 = vrsqrt.pop %v848
      %v892 = vmul.f32 %v891, %v848
      %v893 = vmul.f32 %v892, %v891
      %v894 = vmul.f32 0.5, %v893
      %v895 = vsub.f32 1.5, %v894
      %v896 = vmul.f32 %v891, %v895
      %v897 = vmul.f32 %v848, %v896
      %vm898 = vcmp.eq.f32.partialorder %v848, inf
      %v899 = vsel %vm898, %v848, %v897
      %vm900 = vcmp.eq.f32.partialorder %v848, 0.0
      %v901 = vand.u32 %v848, 2147483648
      %v902 = vsel %vm900, %v901, %v899
      %v903 = vrsqrt.pop %v849
      %v904 = vmul.f32 %v903, %v849
      %v905 = vmul.f32 %v904, %v903
      %v906 = vmul.f32 0.5, %v905
      %v907 = vsub.f32 1.5, %v906
      %v908 = vmul.f32 %v903, %v907
      %v909 = vmul.f32 %v849, %v908
      %vm910 = vcmp.eq.f32.partialorder %v849, inf
      %v911 = vsel %vm910, %v849, %v909
      %vm912 = vcmp.eq.f32.partialorder %v849, 0.0
      %v913 = vand.u32 %v849, 2147483648
      %v914 = vsel %vm912, %v913, %v911
      %v915 = vrsqrt.pop %v850
      %v916 = vmul.f32 %v915, %v850
      %v917 = vmul.f32 %v916, %v915
      %v918 = vmul.f32 0.5, %v917
      %v919 = vsub.f32 1.5, %v918
      %v920 = vmul.f32 %v915, %v919
      %v921 = vmul.f32 %v850, %v920
      %vm922 = vcmp.eq.f32.partialorder %v850, inf
      %v923 = vsel %vm922, %v850, %v921
      %vm924 = vcmp.eq.f32.partialorder %v850, 0.0
      %v925 = vand.u32 %v850, 2147483648
      %v926 = vsel %vm924, %v925, %v923
      %v927 = vrsqrt.pop %v851
      %v928 = vmul.f32 %v927, %v851
      %v929 = vmul.f32 %v928, %v927
      %v930 = vmul.f32 0.5, %v929
      %v931 = vsub.f32 1.5, %v930
      %v932 = vmul.f32 %v927, %v931
      %v933 = vmul.f32 %v851, %v932
      %vm934 = vcmp.eq.f32.partialorder %v851, inf
      %v935 = vsel %vm934, %v851, %v933
      %vm936 = vcmp.eq.f32.partialorder %v851, 0.0
      %v937 = vand.u32 %v851, 2147483648
      %v938 = vsel %vm936, %v937, %v935
      %v939 = vrsqrt.pop %v852
      %v940 = vmul.f32 %v939, %v852
      %v941 = vmul.f32 %v940, %v939
      %v942 = vmul.f32 0.5, %v941
      %v943 = vsub.f32 1.5, %v942
      %v944 = vmul.f32 %v939, %v943
      %v945 = vmul.f32 %v852, %v944
      %vm946 = vcmp.eq.f32.partialorder %v852, inf
      %v947 = vsel %vm946, %v852, %v945
      %vm948 = vcmp.eq.f32.partialorder %v852, 0.0
      %v949 = vand.u32 %v852, 2147483648
      %v950 = vsel %vm948, %v949, %v947
      %v951 = vrsqrt.pop %v853
      %v952 = vmul.f32 %v951, %v853
      %v953 = vmul.f32 %v952, %v951
      %v954 = vmul.f32 0.5, %v953
      %v955 = vsub.f32 1.5, %v954
      %v956 = vmul.f32 %v951, %v955
      %v957 = vmul.f32 %v853, %v956
      %vm958 = vcmp.eq.f32.partialorder %v853, inf
      %v959 = vsel %vm958, %v853, %v957
      %vm960 = vcmp.eq.f32.partialorder %v853, 0.0
      %v961 = vand.u32 %v853, 2147483648
      %v962 = vsel %vm960, %v961, %v959
      %v963 = vrsqrt.pop %v854
      %v964 = vmul.f32 %v963, %v854
      %v965 = vmul.f32 %v964, %v963
      %v966 = vmul.f32 0.5, %v965
      %v967 = vsub.f32 1.5, %v966
      %v968 = vmul.f32 %v963, %v967
      %v969 = vmul.f32 %v854, %v968
      %vm970 = vcmp.eq.f32.partialorder %v854, inf
      %v971 = vsel %vm970, %v854, %v969
      %vm972 = vcmp.eq.f32.partialorder %v854, 0.0
      %v973 = vand.u32 %v854, 2147483648
      %v974 = vsel %vm972, %v973, %v971
      %v975 = vrsqrt.pop %v855
      %v976 = vmul.f32 %v975, %v855
      %v977 = vmul.f32 %v976, %v975
      %v978 = vmul.f32 0.5, %v977
      %v979 = vsub.f32 1.5, %v978
      %v980 = vmul.f32 %v975, %v979
      %v981 = vmul.f32 %v855, %v980
      %vm982 = vcmp.eq.f32.partialorder %v855, inf
      %v983 = vsel %vm982, %v855, %v981
      %vm984 = vcmp.eq.f32.partialorder %v855, 0.0
      %v985 = vand.u32 %v855, 2147483648
      %v986 = vsel %vm984, %v985, %v983
      %v987 = vrsqrt.pop %v856
      %v988 = vmul.f32 %v987, %v856
      %v989 = vmul.f32 %v988, %v987
      %v990 = vmul.f32 0.5, %v989
      %v991 = vsub.f32 1.5, %v990
      %v992 = vmul.f32 %v987, %v991
      %v993 = vmul.f32 %v856, %v992
      %vm994 = vcmp.eq.f32.partialorder %v856, inf
      %v995 = vsel %vm994, %v856, %v993
      %vm996 = vcmp.eq.f32.partialorder %v856, 0.0
      %v997 = vand.u32 %v856, 2147483648
      %v998 = vsel %vm996, %v997, %v995
      %v999 = vrsqrt.pop %v857
      %v1000 = vmul.f32 %v999, %v857
      %v1001 = vmul.f32 %v1000, %v999
      %v1002 = vmul.f32 0.5, %v1001
      %v1003 = vsub.f32 1.5, %v1002
      %v1004 = vmul.f32 %v999, %v1003
      %v1005 = vmul.f32 %v857, %v1004
      %vm1006 = vcmp.eq.f32.partialorder %v857, inf
      %v1007 = vsel %vm1006, %v857, %v1005
      %vm1008 = vcmp.eq.f32.partialorder %v857, 0.0
      %v1009 = vand.u32 %v857, 2147483648
      %v1010 = vsel %vm1008, %v1009, %v1007
      %v1011 = vrsqrt.pop %v858
      %v1012 = vmul.f32 %v1011, %v858
      %v1013 = vmul.f32 %v1012, %v1011
      %v1014 = vmul.f32 0.5, %v1013
      %v1015 = vsub.f32 1.5, %v1014
      %v1016 = vmul.f32 %v1011, %v1015
      %v1017 = vmul.f32 %v858, %v1016
      %vm1018 = vcmp.eq.f32.partialorder %v858, inf
      %v1019 = vsel %vm1018, %v858, %v1017
      %vm1020 = vcmp.eq.f32.partialorder %v858, 0.0
      %v1021 = vand.u32 %v858, 2147483648
      %v1022 = vsel %vm1020, %v1021, %v1019
      %v1023 = vrsqrt.pop %v859
      %v1024 = vmul.f32 %v1023, %v859
      %v1025 = vmul.f32 %v1024, %v1023
      %v1026 = vmul.f32 0.5, %v1025
      %v1027 = vsub.f32 1.5, %v1026
      %v1028 = vmul.f32 %v1023, %v1027
      %v1029 = vmul.f32 %v859, %v1028
      %vm1030 = vcmp.eq.f32.partialorder %v859, inf
      %v1031 = vsel %vm1030, %v859, %v1029
      %vm1032 = vcmp.eq.f32.partialorder %v859, 0.0
      %v1033 = vand.u32 %v859, 2147483648
      %v1034 = vsel %vm1032, %v1033, %v1031
      %v1035 = vrsqrt.pop %v860
      %v1036 = vmul.f32 %v1035, %v860
      %v1037 = vmul.f32 %v1036, %v1035
      %v1038 = vmul.f32 0.5, %v1037
      %v1039 = vsub.f32 1.5, %v1038
      %v1040 = vmul.f32 %v1035, %v1039
      %v1041 = vmul.f32 %v860, %v1040
      %vm1042 = vcmp.eq.f32.partialorder %v860, inf
      %v1043 = vsel %vm1042, %v860, %v1041
      %vm1044 = vcmp.eq.f32.partialorder %v860, 0.0
      %v1045 = vand.u32 %v860, 2147483648
      %v1046 = vsel %vm1044, %v1045, %v1043
      %v1047 = vrsqrt.pop %v861
      %v1048 = vmul.f32 %v1047, %v861
      %v1049 = vmul.f32 %v1048, %v1047
      %v1050 = vmul.f32 0.5, %v1049
      %v1051 = vsub.f32 1.5, %v1050
      %v1052 = vmul.f32 %v1047, %v1051
      %v1053 = vmul.f32 %v861, %v1052
      %vm1054 = vcmp.eq.f32.partialorder %v861, inf
      %v1055 = vsel %vm1054, %v861, %v1053
      %vm1056 = vcmp.eq.f32.partialorder %v861, 0.0
      %v1057 = vand.u32 %v861, 2147483648
      %v1058 = vsel %vm1056, %v1057, %v1055
      %v1059 = vrsqrt.pop %v862
      %v1060 = vmul.f32 %v1059, %v862
      %v1061 = vmul.f32 %v1060, %v1059
      %v1062 = vmul.f32 0.5, %v1061
      %v1063 = vsub.f32 1.5, %v1062
      %v1064 = vmul.f32 %v1059, %v1063
      %v1065 = vmul.f32 %v862, %v1064
      %vm1066 = vcmp.eq.f32.partialorder %v862, inf
      %v1067 = vsel %vm1066, %v862, %v1065
      %vm1068 = vcmp.eq.f32.partialorder %v862, 0.0
      %v1069 = vand.u32 %v862, 2147483648
      %v1070 = vsel %vm1068, %v1069, %v1067
      %v1071 = vrsqrt.pop %v863
      %v1072 = vmul.f32 %v1071, %v863
      %v1073 = vmul.f32 %v1072, %v1071
      %v1074 = vmul.f32 0.5, %v1073
      %v1075 = vsub.f32 1.5, %v1074
      %v1076 = vmul.f32 %v1071, %v1075
      %v1077 = vmul.f32 %v863, %v1076
      %vm1078 = vcmp.eq.f32.partialorder %v863, inf
      %v1079 = vsel %vm1078, %v863, %v1077
      %vm1080 = vcmp.eq.f32.partialorder %v863, 0.0
      %v1081 = vand.u32 %v863, 2147483648
      %v1082 = vsel %vm1080, %v1081, %v1079
      %v1083 = vrsqrt.pop %v864
      %v1084 = vmul.f32 %v1083, %v864
      %v1085 = vmul.f32 %v1084, %v1083
      %v1086 = vmul.f32 0.5, %v1085
      %v1087 = vsub.f32 1.5, %v1086
      %v1088 = vmul.f32 %v1083, %v1087
      %v1089 = vmul.f32 %v864, %v1088
      %vm1090 = vcmp.eq.f32.partialorder %v864, inf
      %v1091 = vsel %vm1090, %v864, %v1089
      %vm1092 = vcmp.eq.f32.partialorder %v864, 0.0
      %v1093 = vand.u32 %v864, 2147483648
      %v1094 = vsel %vm1092, %v1093, %v1091
      %v1095 = vrsqrt.pop %v865
      %v1096 = vmul.f32 %v1095, %v865
      %v1097 = vmul.f32 %v1096, %v1095
      %v1098 = vmul.f32 0.5, %v1097
      %v1099 = vsub.f32 1.5, %v1098
      %v1100 = vmul.f32 %v1095, %v1099
      %v1101 = vmul.f32 %v865, %v1100
      %vm1102 = vcmp.eq.f32.partialorder %v865, inf
      %v1103 = vsel %vm1102, %v865, %v1101
      %vm1104 = vcmp.eq.f32.partialorder %v865, 0.0
      %v1105 = vand.u32 %v865, 2147483648
      %v1106 = vsel %vm1104, %v1105, %v1103
      %v1107 = vrsqrt.pop %v866
      %v1108 = vmul.f32 %v1107, %v866
      %v1109 = vmul.f32 %v1108, %v1107
      %v1110 = vmul.f32 0.5, %v1109
      %v1111 = vsub.f32 1.5, %v1110
      %v1112 = vmul.f32 %v1107, %v1111
      %v1113 = vmul.f32 %v866, %v1112
      %vm1114 = vcmp.eq.f32.partialorder %v866, inf
      %v1115 = vsel %vm1114, %v866, %v1113
      %vm1116 = vcmp.eq.f32.partialorder %v866, 0.0
      %v1117 = vand.u32 %v866, 2147483648
      %v1118 = vsel %vm1116, %v1117, %v1115
      %v1119 = vrsqrt.pop %v867
      %v1120 = vmul.f32 %v1119, %v867
      %v1121 = vmul.f32 %v1120, %v1119
      %v1122 = vmul.f32 0.5, %v1121
      %v1123 = vsub.f32 1.5, %v1122
      %v1124 = vmul.f32 %v1119, %v1123
      %v1125 = vmul.f32 %v867, %v1124
      %vm1126 = vcmp.eq.f32.partialorder %v867, inf
      %v1127 = vsel %vm1126, %v867, %v1125
      %vm1128 = vcmp.eq.f32.partialorder %v867, 0.0
      %v1129 = vand.u32 %v867, 2147483648
      %v1130 = vsel %vm1128, %v1129, %v1127
      %v1131 = vrsqrt.pop %v868
      %v1132 = vmul.f32 %v1131, %v868
      %v1133 = vmul.f32 %v1132, %v1131
      %v1134 = vmul.f32 0.5, %v1133
      %v1135 = vsub.f32 1.5, %v1134
      %v1136 = vmul.f32 %v1131, %v1135
      %v1137 = vmul.f32 %v868, %v1136
      %vm1138 = vcmp.eq.f32.partialorder %v868, inf
      %v1139 = vsel %vm1138, %v868, %v1137
      %vm1140 = vcmp.eq.f32.partialorder %v868, 0.0
      %v1141 = vand.u32 %v868, 2147483648
      %v1142 = vsel %vm1140, %v1141, %v1139
      %v1143 = vrsqrt.pop %v869
      %v1144 = vmul.f32 %v1143, %v869
      %v1145 = vmul.f32 %v1144, %v1143
      %v1146 = vmul.f32 0.5, %v1145
      %v1147 = vsub.f32 1.5, %v1146
      %v1148 = vmul.f32 %v1143, %v1147
      %v1149 = vmul.f32 %v869, %v1148
      %vm1150 = vcmp.eq.f32.partialorder %v869, inf
      %v1151 = vsel %vm1150, %v869, %v1149
      %vm1152 = vcmp.eq.f32.partialorder %v869, 0.0
      %v1153 = vand.u32 %v869, 2147483648
      %v1154 = vsel %vm1152, %v1153, %v1151
      %v1155 = vrsqrt.pop %v870
      %v1156 = vmul.f32 %v1155, %v870
      %v1157 = vmul.f32 %v1156, %v1155
      %v1158 = vmul.f32 0.5, %v1157
      %v1159 = vsub.f32 1.5, %v1158
      %v1160 = vmul.f32 %v1155, %v1159
      %v1161 = vmul.f32 %v870, %v1160
      %vm1162 = vcmp.eq.f32.partialorder %v870, inf
      %v1163 = vsel %vm1162, %v870, %v1161
      %vm1164 = vcmp.eq.f32.partialorder %v870, 0.0
      %v1165 = vand.u32 %v870, 2147483648
      %v1166 = vsel %vm1164, %v1165, %v1163
      %v1167 = vrsqrt.pop %v871
      %v1168 = vmul.f32 %v1167, %v871
      %v1169 = vmul.f32 %v1168, %v1167
      %v1170 = vmul.f32 0.5, %v1169
      %v1171 = vsub.f32 1.5, %v1170
      %v1172 = vmul.f32 %v1167, %v1171
      %v1173 = vmul.f32 %v871, %v1172
      %vm1174 = vcmp.eq.f32.partialorder %v871, inf
      %v1175 = vsel %vm1174, %v871, %v1173
      %vm1176 = vcmp.eq.f32.partialorder %v871, 0.0
      %v1177 = vand.u32 %v871, 2147483648
      %v1178 = vsel %vm1176, %v1177, %v1175
      %v1179 = vrsqrt.pop %v872
      %v1180 = vmul.f32 %v1179, %v872
      %v1181 = vmul.f32 %v1180, %v1179
      %v1182 = vmul.f32 0.5, %v1181
      %v1183 = vsub.f32 1.5, %v1182
      %v1184 = vmul.f32 %v1179, %v1183
      %v1185 = vmul.f32 %v872, %v1184
      %vm1186 = vcmp.eq.f32.partialorder %v872, inf
      %v1187 = vsel %vm1186, %v872, %v1185
      %vm1188 = vcmp.eq.f32.partialorder %v872, 0.0
      %v1189 = vand.u32 %v872, 2147483648
      %v1190 = vsel %vm1188, %v1189, %v1187
      %v1191 = vrsqrt.pop %v873
      %v1192 = vmul.f32 %v1191, %v873
      %v1193 = vmul.f32 %v1192, %v1191
      %v1194 = vmul.f32 0.5, %v1193
      %v1195 = vsub.f32 1.5, %v1194
      %v1196 = vmul.f32 %v1191, %v1195
      %v1197 = vmul.f32 %v873, %v1196
      %vm1198 = vcmp.eq.f32.partialorder %v873, inf
      %v1199 = vsel %vm1198, %v873, %v1197
      %vm1200 = vcmp.eq.f32.partialorder %v873, 0.0
      %v1201 = vand.u32 %v873, 2147483648
      %v1202 = vsel %vm1200, %v1201, %v1199
      %v1203 = vrsqrt.pop %v874
      %v1204 = vmul.f32 %v1203, %v874
      %v1205 = vmul.f32 %v1204, %v1203
      %v1206 = vmul.f32 0.5, %v1205
      %v1207 = vsub.f32 1.5, %v1206
      %v1208 = vmul.f32 %v1203, %v1207
      %v1209 = vmul.f32 %v874, %v1208
      %vm1210 = vcmp.eq.f32.partialorder %v874, inf
      %v1211 = vsel %vm1210, %v874, %v1209
      %vm1212 = vcmp.eq.f32.partialorder %v874, 0.0
      %v1213 = vand.u32 %v874, 2147483648
      %v1214 = vsel %vm1212, %v1213, %v1211
      %v1215 = vrsqrt.pop %v875
      %v1216 = vmul.f32 %v1215, %v875
      %v1217 = vmul.f32 %v1216, %v1215
      %v1218 = vmul.f32 0.5, %v1217
      %v1219 = vsub.f32 1.5, %v1218
      %v1220 = vmul.f32 %v1215, %v1219
      %v1221 = vmul.f32 %v875, %v1220
      %vm1222 = vcmp.eq.f32.partialorder %v875, inf
      %v1223 = vsel %vm1222, %v875, %v1221
      %vm1224 = vcmp.eq.f32.partialorder %v875, 0.0
      %v1225 = vand.u32 %v875, 2147483648
      %v1226 = vsel %vm1224, %v1225, %v1223
      %v1227 = vrsqrt.pop %v876
      %v1228 = vmul.f32 %v1227, %v876
      %v1229 = vmul.f32 %v1228, %v1227
      %v1230 = vmul.f32 0.5, %v1229
      %v1231 = vsub.f32 1.5, %v1230
      %v1232 = vmul.f32 %v1227, %v1231
      %v1233 = vmul.f32 %v876, %v1232
      %vm1234 = vcmp.eq.f32.partialorder %v876, inf
      %v1235 = vsel %vm1234, %v876, %v1233
      %vm1236 = vcmp.eq.f32.partialorder %v876, 0.0
      %v1237 = vand.u32 %v876, 2147483648
      %v1238 = vsel %vm1236, %v1237, %v1235
      %v1239 = vrsqrt.pop %v877
      %v1240 = vmul.f32 %v1239, %v877
      %v1241 = vmul.f32 %v1240, %v1239
      %v1242 = vmul.f32 0.5, %v1241
      %v1243 = vsub.f32 1.5, %v1242
      %v1244 = vmul.f32 %v1239, %v1243
      %v1245 = vmul.f32 %v877, %v1244
      %vm1246 = vcmp.eq.f32.partialorder %v877, inf
      %v1247 = vsel %vm1246, %v877, %v1245
      %vm1248 = vcmp.eq.f32.partialorder %v877, 0.0
      %v1249 = vand.u32 %v877, 2147483648
      %v1250 = vsel %vm1248, %v1249, %v1247
      %v1251 = vrsqrt.pop %v878
      %v1252 = vmul.f32 %v1251, %v878
      %v1253 = vmul.f32 %v1252, %v1251
      %v1254 = vmul.f32 0.5, %v1253
      %v1255 = vsub.f32 1.5, %v1254
      %v1256 = vmul.f32 %v1251, %v1255
      %v1257 = vmul.f32 %v878, %v1256
      %vm1258 = vcmp.eq.f32.partialorder %v878, inf
      %v1259 = vsel %vm1258, %v878, %v1257
      %vm1260 = vcmp.eq.f32.partialorder %v878, 0.0
      %v1261 = vand.u32 %v878, 2147483648
      %v1262 = vsel %vm1260, %v1261, %v1259
      %v1263 = vadd.f32 %v890, 1e-08
      %v1264 = vadd.f32 %v902, 1e-08
      %v1265 = vadd.f32 %v914, 1e-08
      %v1266 = vadd.f32 %v926, 1e-08
      %v1267 = vadd.f32 %v938, 1e-08
      %v1268 = vadd.f32 %v950, 1e-08
      %v1269 = vadd.f32 %v962, 1e-08
      %v1270 = vadd.f32 %v974, 1e-08
      %v1271 = vadd.f32 %v986, 1e-08
      %v1272 = vadd.f32 %v998, 1e-08
      %v1273 = vadd.f32 %v1010, 1e-08
      %v1274 = vadd.f32 %v1022, 1e-08
      %v1275 = vadd.f32 %v1034, 1e-08
      %v1276 = vadd.f32 %v1046, 1e-08
      %v1277 = vadd.f32 %v1058, 1e-08
      %v1278 = vadd.f32 %v1070, 1e-08
      %v1279 = vadd.f32 %v1082, 1e-08
      %v1280 = vadd.f32 %v1094, 1e-08
      %v1281 = vadd.f32 %v1106, 1e-08
      %v1282 = vadd.f32 %v1118, 1e-08
      %v1283 = vadd.f32 %v1130, 1e-08
      %v1284 = vadd.f32 %v1142, 1e-08
      %v1285 = vadd.f32 %v1154, 1e-08
      %v1286 = vadd.f32 %v1166, 1e-08
      %v1287 = vadd.f32 %v1178, 1e-08
      %v1288 = vadd.f32 %v1190, 1e-08
      %v1289 = vadd.f32 %v1202, 1e-08
      %v1290 = vadd.f32 %v1214, 1e-08
      %v1291 = vadd.f32 %v1226, 1e-08
      %v1292 = vadd.f32 %v1238, 1e-08
      %v1293 = vadd.f32 %v1250, 1e-08
      %v1294 = vadd.f32 %v1262, 1e-08
      %v1295 = vlog2.pop %v1263
      %v1296 = vmul.f32 %v1295, 0.6931472
      %v1297 = vlog2.pop %v1264
      %v1298 = vmul.f32 %v1297, 0.6931472
      %v1299 = vlog2.pop %v1265
      %v1300 = vmul.f32 %v1299, 0.6931472
      %v1301 = vlog2.pop %v1266
      %v1302 = vmul.f32 %v1301, 0.6931472
      %v1303 = vlog2.pop %v1267
      %v1304 = vmul.f32 %v1303, 0.6931472
      %v1305 = vlog2.pop %v1268
      %v1306 = vmul.f32 %v1305, 0.6931472
      %v1307 = vlog2.pop %v1269
      %v1308 = vmul.f32 %v1307, 0.6931472
      %v1309 = vlog2.pop %v1270
      %v1310 = vmul.f32 %v1309, 0.6931472
      %v1311 = vlog2.pop %v1271
      %v1312 = vmul.f32 %v1311, 0.6931472
      %v1313 = vlog2.pop %v1272
      %v1314 = vmul.f32 %v1313, 0.6931472
      %v1315 = vlog2.pop %v1273
      %v1316 = vmul.f32 %v1315, 0.6931472
      %v1317 = vlog2.pop %v1274
      %v1318 = vmul.f32 %v1317, 0.6931472
      %v1319 = vlog2.pop %v1275
      %v1320 = vmul.f32 %v1319, 0.6931472
      %v1321 = vlog2.pop %v1276
      %v1322 = vmul.f32 %v1321, 0.6931472
      %v1323 = vlog2.pop %v1277
      %v1324 = vmul.f32 %v1323, 0.6931472
      %v1325 = vlog2.pop %v1278
      %v1326 = vmul.f32 %v1325, 0.6931472
      %v1327 = vlog2.pop %v1279
      %v1328 = vmul.f32 %v1327, 0.6931472
      %v1329 = vlog2.pop %v1280
      %v1330 = vmul.f32 %v1329, 0.6931472
      %v1331 = vlog2.pop %v1281
      %v1332 = vmul.f32 %v1331, 0.6931472
      %v1333 = vlog2.pop %v1282
      %v1334 = vmul.f32 %v1333, 0.6931472
      %v1335 = vlog2.pop %v1283
      %v1336 = vmul.f32 %v1335, 0.6931472
      %v1337 = vlog2.pop %v1284
      %v1338 = vmul.f32 %v1337, 0.6931472
      %v1339 = vlog2.pop %v1285
      %v1340 = vmul.f32 %v1339, 0.6931472
      %v1341 = vlog2.pop %v1286
      %v1342 = vmul.f32 %v1341, 0.6931472
      %v1343 = vlog2.pop %v1287
      %v1344 = vmul.f32 %v1343, 0.6931472
      %v1345 = vlog2.pop %v1288
      %v1346 = vmul.f32 %v1345, 0.6931472
      %v1347 = vlog2.pop %v1289
      %v1348 = vmul.f32 %v1347, 0.6931472
      %v1349 = vlog2.pop %v1290
      %v1350 = vmul.f32 %v1349, 0.6931472
      %v1351 = vlog2.pop %v1291
      %v1352 = vmul.f32 %v1351, 0.6931472
      %v1353 = vlog2.pop %v1292
      %v1354 = vmul.f32 %v1353, 0.6931472
      %v1355 = vlog2.pop %v1293
      %v1356 = vmul.f32 %v1355, 0.6931472
      %v1357 = vlog2.pop %v1294
      %v1358 = vmul.f32 %v1357, 0.6931472
      %v1359 = vmul.f32 %v1296, 0.8
      %v1360 = vmul.f32 %v1298, 0.8
      %v1361 = vmul.f32 %v1300, 0.8
      %v1362 = vmul.f32 %v1302, 0.8
      %v1363 = vmul.f32 %v1304, 0.8
      %v1364 = vmul.f32 %v1306, 0.8
      %v1365 = vmul.f32 %v1308, 0.8
      %v1366 = vmul.f32 %v1310, 0.8
      %v1367 = vmul.f32 %v1312, 0.8
      %v1368 = vmul.f32 %v1314, 0.8
      %v1369 = vmul.f32 %v1316, 0.8
      %v1370 = vmul.f32 %v1318, 0.8
      %v1371 = vmul.f32 %v1320, 0.8
      %v1372 = vmul.f32 %v1322, 0.8
      %v1373 = vmul.f32 %v1324, 0.8
      %v1374 = vmul.f32 %v1326, 0.8
      %v1375 = vmul.f32 %v1328, 0.8
      %v1376 = vmul.f32 %v1330, 0.8
      %v1377 = vmul.f32 %v1332, 0.8
      %v1378 = vmul.f32 %v1334, 0.8
      %v1379 = vmul.f32 %v1336, 0.8
      %v1380 = vmul.f32 %v1338, 0.8
      %v1381 = vmul.f32 %v1340, 0.8
      %v1382 = vmul.f32 %v1342, 0.8
      %v1383 = vmul.f32 %v1344, 0.8
      %v1384 = vmul.f32 %v1346, 0.8
      %v1385 = vmul.f32 %v1348, 0.8
      %v1386 = vmul.f32 %v1350, 0.8
      %v1387 = vmul.f32 %v1352, 0.8
      %v1388 = vmul.f32 %v1354, 0.8
      %v1389 = vmul.f32 %v1356, 0.8
      %v1390 = vmul.f32 %v1358, 0.8
      %v1391 = vmul.f32 %v1359, 1.442695
      %v1392 = vpow.pop %v1391
      %v1393 = vmul.f32 %v1360, 1.442695
      %v1394 = vpow.pop %v1393
      %v1395 = vmul.f32 %v1361, 1.442695
      %v1396 = vpow.pop %v1395
      %v1397 = vmul.f32 %v1362, 1.442695
      %v1398 = vpow.pop %v1397
      %v1399 = vmul.f32 %v1363, 1.442695
      %v1400 = vpow.pop %v1399
      %v1401 = vmul.f32 %v1364, 1.442695
      %v1402 = vpow.pop %v1401
      %v1403 = vmul.f32 %v1365, 1.442695
      %v1404 = vpow.pop %v1403
      %v1405 = vmul.f32 %v1366, 1.442695
      %v1406 = vpow.pop %v1405
      %v1407 = vmul.f32 %v1367, 1.442695
      %v1408 = vpow.pop %v1407
      %v1409 = vmul.f32 %v1368, 1.442695
      %v1410 = vpow.pop %v1409
      %v1411 = vmul.f32 %v1369, 1.442695
      %v1412 = vpow.pop %v1411
      %v1413 = vmul.f32 %v1370, 1.442695
      %v1414 = vpow.pop %v1413
      %v1415 = vmul.f32 %v1371, 1.442695
      %v1416 = vpow.pop %v1415
      %v1417 = vmul.f32 %v1372, 1.442695
      %v1418 = vpow.pop %v1417
      %v1419 = vmul.f32 %v1373, 1.442695
      %v1420 = vpow.pop %v1419
      %v1421 = vmul.f32 %v1374, 1.442695
      %v1422 = vpow.pop %v1421
      %v1423 = vmul.f32 %v1375, 1.442695
      %v1424 = vpow.pop %v1423
      %v1425 = vmul.f32 %v1376, 1.442695
      %v1426 = vpow.pop %v1425
      %v1427 = vmul.f32 %v1377, 1.442695
      %v1428 = vpow.pop %v1427
      %v1429 = vmul.f32 %v1378, 1.442695
      %v1430 = vpow.pop %v1429
      %v1431 = vmul.f32 %v1379, 1.442695
      %v1432 = vpow.pop %v1431
      %v1433 = vmul.f32 %v1380, 1.442695
      %v1434 = vpow.pop %v1433
      %v1435 = vmul.f32 %v1381, 1.442695
      %v1436 = vpow.pop %v1435
      %v1437 = vmul.f32 %v1382, 1.442695
      %v1438 = vpow.pop %v1437
      %v1439 = vmul.f32 %v1383, 1.442695
      %v1440 = vpow.pop %v1439
      %v1441 = vmul.f32 %v1384, 1.442695
      %v1442 = vpow.pop %v1441
      %v1443 = vmul.f32 %v1385, 1.442695
      %v1444 = vpow.pop %v1443
      %v1445 = vmul.f32 %v1386, 1.442695
      %v1446 = vpow.pop %v1445
      %v1447 = vmul.f32 %v1387, 1.442695
      %v1448 = vpow.pop %v1447
      %v1449 = vmul.f32 %v1388, 1.442695
      %v1450 = vpow.pop %v1449
      %v1451 = vmul.f32 %v1389, 1.442695
      %v1452 = vpow.pop %v1451
      %v1453 = vmul.f32 %v1390, 1.442695
      %v1454 = vpow.pop %v1453
      %vm1455 = vcmask 523264
      %1456 = vst.msk [vmem:[%s170] sm:$0xff] %vm1455, %v1392
      %1457 = vst.msk [vmem:[%s170 + $0x8] sm:$0xff] %vm1455, %v1394
      %1458 = vst.msk [vmem:[%s170 + $0x10] sm:$0xff] %vm1455, %v1396
      %1459 = vst.msk [vmem:[%s170 + $0x18] sm:$0xff] %vm1455, %v1398
      %1460 = vst.msk [vmem:[%s170 + $0x20] sm:$0xff] %vm1455, %v1400
      %1461 = vst.msk [vmem:[%s170 + $0x28] sm:$0xff] %vm1455, %v1402
      %1462 = vst.msk [vmem:[%s170 + $0x30] sm:$0xff] %vm1455, %v1404
      %1463 = vst.msk [vmem:[%s170 + $0x38] sm:$0xff] %vm1455, %v1406
      %1464 = vst.msk [vmem:[%s170 + $0x40] sm:$0xff] %vm1455, %v1408
      %1465 = vst.msk [vmem:[%s170 + $0x48] sm:$0xff] %vm1455, %v1410
      %1466 = vst.msk [vmem:[%s170 + $0x50] sm:$0xff] %vm1455, %v1412
      %1467 = vst.msk [vmem:[%s170 + $0x58] sm:$0xff] %vm1455, %v1414
      %1468 = vst.msk [vmem:[%s170 + $0x60] sm:$0xff] %vm1455, %v1416
      %1469 = vst.msk [vmem:[%s170 + $0x68] sm:$0xff] %vm1455, %v1418
      %1470 = vst.msk [vmem:[%s170 + $0x70] sm:$0xff] %vm1455, %v1420
      %1471 = vst.msk [vmem:[%s170 + $0x78] sm:$0xff] %vm1455, %v1422
      %1472 = vst.msk [vmem:[%s170 + $0x80] sm:$0xff] %vm1455, %v1424
      %1473 = vst.msk [vmem:[%s170 + $0x88] sm:$0xff] %vm1455, %v1426
      %1474 = vst.msk [vmem:[%s170 + $0x90] sm:$0xff] %vm1455, %v1428
      %1475 = vst.msk [vmem:[%s170 + $0x98] sm:$0xff] %vm1455, %v1430
      %1476 = vst.msk [vmem:[%s170 + $0xa0] sm:$0xff] %vm1455, %v1432
      %1477 = vst.msk [vmem:[%s170 + $0xa8] sm:$0xff] %vm1455, %v1434
      %1478 = vst.msk [vmem:[%s170 + $0xb0] sm:$0xff] %vm1455, %v1436
      %1479 = vst.msk [vmem:[%s170 + $0xb8] sm:$0xff] %vm1455, %v1438
      %1480 = vst.msk [vmem:[%s170 + $0xc0] sm:$0xff] %vm1455, %v1440
      %1481 = vst.msk [vmem:[%s170 + $0xc8] sm:$0xff] %vm1455, %v1442
      %1482 = vst.msk [vmem:[%s170 + $0xd0] sm:$0xff] %vm1455, %v1444
      %1483 = vst.msk [vmem:[%s170 + $0xd8] sm:$0xff] %vm1455, %v1446
      %1484 = vst.msk [vmem:[%s170 + $0xe0] sm:$0xff] %vm1455, %v1448
      %1485 = vst.msk [vmem:[%s170 + $0xe8] sm:$0xff] %vm1455, %v1450
      %1486 = vst.msk [vmem:[%s170 + $0xf0] sm:$0xff] %vm1455, %v1452
      %1487 = vst.msk [vmem:[%s170 + $0xf8] sm:$0xff] %vm1455, %v1454
      %p1488 = scmp.lt.s32.totalorder %s14, 1
      %s1489 = scalar_select %p1488, %s14, 1
      %s1490 = smul.addr %s1489, 32
      %s1491 = smul.addr %s1490, 8
      %s1492 = scalar_lea.vmem %s3, %s1491
      // Predicated region
      $region33: #{rcab_forward.6} parent=31 // pred_check
        %p1493 = pneg %p100
      $region34: #{rcab_forward.6} parent=31 // pred_check_branch
        %1495 = sbr.rel (%p1493) target = $region36
      $region35: #{rcab_forward.6} parent=31 // pred_region
        _
      $region36: #{rcab_forward.6} parent=31 // pred_fallthru
        _
    $region32: #{rcab_forward.6} parent=5 // pred_fallthru
      _
    %p1496 = scmp.le.s32.totalorder 2, %s9
    // Predicated region
    $region37: #{rcab_forward.6} parent=5 // pred_check
      %p1497 = pneg %p1496
    $region38: #{rcab_forward.6} parent=5 // pred_check_branch
      %1499 = sbr.rel (%p1497) target = $region40
    $region39: #{rcab_forward.6} parent=5 // pred_region
      %s1500 = ssub.s32 %s9, 2
      // Predicated region
      $region41: #{rcab_forward.6} parent=39 // pred_check
        %p1501 = pneg %p106
      $region42: #{rcab_forward.6} parent=39 // pred_check_branch
        %1503 = sbr.rel (%p1501) target = $region44
      $region43: #{rcab_forward.6} parent=39 // pred_region
        %p1504 = scmp.lt.s32.totalorder %s15, 1
        %s1505 = scalar_select %p1504, %s15, 1
        %s1506 = smul.addr %s1505, 32
        %s1507 = smul.addr %s1506, 8
        %s1508 = scalar_lea.vmem %s3, %s1507
      $region44: #{rcab_forward.6} parent=39 // pred_fallthru
        _
    $region40: #{rcab_forward.6} parent=5 // pred_fallthru
      _
  $region6: #{rcab_forward.6} parent=0 // loop_footer
    %s13 = sadd.s32 1, %s9
  $region7: #{rcab_forward.6} parent=0 // loop_footer_branch
    %8 = sbr.rel target = $region3
  $region8: #{rcab_forward.6} parent=0 // loop_exit
    _

// kernel: rcab_forward.4
$region0: #{rcab_forward.4}
  #allocation0 [shape = 'u32[]', space=smem, size = 0x4, offset = 0x4, fixed_abs, tag = 'smem constant byte address 0x4 - core index']
  #allocation1 [shape = 'u32[72,128]{1,0:T(1,128)}', space=vmem, size = 0x9000, scoped, tag = 'internal scratch']
  %s0 = inlined_call_operand.vmem [shape: bf16[2,18,18,64], index: 0, kind: input, shape index: {}]
  %s1 = inlined_call_operand.vmem [shape: bf16[9,64,64], index: 1, kind: input, shape index: {}]
  %s2 = inlined_call_operand.vmem [shape: f32[1,64], index: 2, kind: input, shape index: {}]
  %s3 = inlined_call_operand.vmem [shape: f32[2,256,64], index: 3, kind: output, shape index: {}]
  %s4 = sld [smem:[#allocation0]]
  $region45: #{rcab_forward.4} parent=0
    _
  %s6 = ssub.s32 1, %s4
  %s7 = scalar_select 0, %s6, %s4
  loop: start=0, step=1, limit=4
  $region2: #{rcab_forward.4} parent=0 // loop_pre_header
    _
  $region3: #{rcab_forward.4} parent=0 // loop_header
    %s9 = sphi 0, %s13
    %p10 = scmp.ge.s32.totalorder %s9, 4
    %s19 = sphi 0, %s21
    %s22 = sphi 0, %s19
    %s23 = sphi 0, %s22
    %s39 = sphi 0, %s23
    %s43 = sphi 0, %s43
    %s45 = sphi 0, %s43
    %s46 = sphi 0, %s45
    %s60 = sphi 0, %s46
    %s64 = sphi 0, %s64
    %s66 = sphi 0, %s64
    %s67 = sphi 0, %s66
    %s81 = sphi 0, %s67
    %s87 = sphi 0, %s89
    %s90 = sphi 0, %s87
    %s91 = sphi 0, %s90
    %s107 = sphi 0, %s91
  $region4: #{rcab_forward.4} parent=0 // loop_header_branch
    %12 = sbr.rel (%p10) target = $region8
  $region5: #{rcab_forward.4} parent=0 // loop_body
    %s14 = ssub.s32 %s9, 1
    %s15 = ssub.s32 %s9, 2
    %s16 = sadd.s32 %s9, 1
    %s17 = ssub.s32 %s9, %s16
    %p18 = scmp.eq.s32.totalorder %s17, 0
    %s20 = sadd.s32 %s19, 1
    %s21 = scalar_select %p18, %s19, %s20
    %p24 = pneg %p18
    %p25 = scmp.eq.s32.totalorder %s9, 1
    %p26 = por %p24, %p25
    %p27 = scmp.ne.s32.totalorder %s19, %s22
    %p28 = scmp.eq.s32.totalorder %s9, 0
    %p29 = por %p27, %p28
    %p30 = scmp.ne.s32.totalorder %s19, %s22
    %p31 = scmp.eq.s32.totalorder %s14, 1
    %p32 = por %p30, %p31
    %p33 = scmp.ne.s32.totalorder %s22, %s23
    %p34 = scmp.eq.s32.totalorder %s14, 0
    %p35 = por %p33, %p34
    %p36 = scmp.ne.s32.totalorder %s22, %s23
    %p37 = scmp.eq.s32.totalorder %s15, 1
    %p38 = por %p36, %p37
    %p40 = scmp.ne.s32.totalorder %s23, %s39
    %p41 = scmp.eq.s32.totalorder %s15, 0
    %p42 = por %p40, %p41
    %s44 = sadd.s32 %s43, 1
    %p47 = scmp.eq.s32.totalorder %s9, 1
    %p48 = scmp.ne.s32.totalorder %s43, %s45
    %p49 = scmp.eq.s32.totalorder %s9, 0
    %p50 = por %p48, %p49
    %p51 = scmp.ne.s32.totalorder %s43, %s45
    %p52 = scmp.eq.s32.totalorder %s14, 1
    %p53 = por %p51, %p52
    %p54 = scmp.ne.s32.totalorder %s45, %s46
    %p55 = scmp.eq.s32.totalorder %s14, 0
    %p56 = por %p54, %p55
    %p57 = scmp.ne.s32.totalorder %s45, %s46
    %p58 = scmp.eq.s32.totalorder %s15, 1
    %p59 = por %p57, %p58
    %p61 = scmp.ne.s32.totalorder %s46, %s60
    %p62 = scmp.eq.s32.totalorder %s15, 0
    %p63 = por %p61, %p62
    %s65 = sadd.s32 %s64, 1
    %p68 = scmp.eq.s32.totalorder %s9, 1
    %p69 = scmp.ne.s32.totalorder %s64, %s66
    %p70 = scmp.eq.s32.totalorder %s9, 0
    %p71 = por %p69, %p70
    %p72 = scmp.ne.s32.totalorder %s64, %s66
    %p73 = scmp.eq.s32.totalorder %s14, 1
    %p74 = por %p72, %p73
    %p75 = scmp.ne.s32.totalorder %s66, %s67
    %p76 = scmp.eq.s32.totalorder %s14, 0
    %p77 = por %p75, %p76
    %p78 = scmp.ne.s32.totalorder %s66, %s67
    %p79 = scmp.eq.s32.totalorder %s15, 1
    %p80 = por %p78, %p79
    %p82 = scmp.ne.s32.totalorder %s67, %s81
    %p83 = scmp.eq.s32.totalorder %s15, 0
    %p84 = por %p82, %p83
    %s85 = ssub.s32 %s9, %s16
    %p86 = scmp.eq.s32.totalorder %s85, 0
    %s88 = sadd.s32 %s87, 1
    %s89 = scalar_select %p86, %s87, %s88
    %p92 = pneg %p86
    %p93 = scmp.eq.s32.totalorder %s9, 1
    %p94 = por %p92, %p93
    %p95 = scmp.ne.s32.totalorder %s87, %s90
    %p96 = scmp.eq.s32.totalorder %s9, 0
    %p97 = por %p95, %p96
    %p98 = scmp.ne.s32.totalorder %s87, %s90
    %p99 = scmp.eq.s32.totalorder %s14, 1
    %p100 = por %p98, %p99
    %p101 = scmp.ne.s32.totalorder %s90, %s91
    %p102 = scmp.eq.s32.totalorder %s14, 0
    %p103 = por %p101, %p102
    %p104 = scmp.ne.s32.totalorder %s90, %s91
    %p105 = scmp.eq.s32.totalorder %s15, 1
    %p106 = por %p104, %p105
    %p108 = scmp.ne.s32.totalorder %s91, %s107
    %p109 = scmp.eq.s32.totalorder %s15, 0
    %p110 = por %p108, %p109
    %p111 = scmp.le.s32.totalorder 1, %s9
    %p112 = scmp.lt.s32.totalorder %s9, 3
    %p113 = pnand %p111, %p112
    %p114 = pneg %p113
    // Predicated region
    $region9: #{rcab_forward.4} parent=5 // pred_check
      _
    $region10: #{rcab_forward.4} parent=5 // pred_check_branch
      %116 = sbr.rel (%p113) target = $region12
    $region11: #{rcab_forward.4} parent=5 // pred_region
      %s117 = ssub.s32 %s9, 1
      // Predicated region
      $region13: #{rcab_forward.4} parent=11 // pred_check
        %p118 = pneg %p56
      $region14: #{rcab_forward.4} parent=11 // pred_check_branch
        %120 = sbr.rel (%p118) target = $region16
      $region15: #{rcab_forward.4} parent=11 // pred_region
        _
      $region16: #{rcab_forward.4} parent=11 // pred_fallthru
        _
      // Predicated region
      $region17: #{rcab_forward.4} parent=11 // pred_check
        %p121 = pneg %p77
      $region18: #{rcab_forward.4} parent=11 // pred_check_branch
        %123 = sbr.rel (%p121) target = $region20
      $region19: #{rcab_forward.4} parent=11 // pred_region
        _
      $region20: #{rcab_forward.4} parent=11 // pred_fallthru
        _
    $region12: #{rcab_forward.4} parent=5 // pred_fallthru
      _
    %p124 = scmp.lt.s32.totalorder %s9, 2
    // Predicated region
    $region21: #{rcab_forward.4} parent=5 // pred_check
      %p125 = pneg %p124
    $region22: #{rcab_forward.4} parent=5 // pred_check_branch
      %127 = sbr.rel (%p125) target = $region24
    $region23: #{rcab_forward.4} parent=5 // pred_region
      // Predicated region
      $region25: #{rcab_forward.4} parent=23 // pred_check
        %p128 = pneg %p29
      $region26: #{rcab_forward.4} parent=23 // pred_check_branch
        %130 = sbr.rel (%p128) target = $region28
      $region27: #{rcab_forward.4} parent=23 // pred_region
        %p131 = scmp.lt.s32.totalorder %s9, 1
        %s132 = scalar_select %p131, %s9, 1
        %s133 = smul.addr %s132, 54
        %s134 = smul.addr %s133, 4
        %s135 = scalar_lea.vmem %s0, %s134
      $region28: #{rcab_forward.4} parent=23 // pred_fallthru
        _
    $region24: #{rcab_forward.4} parent=5 // pred_fallthru
      _
    %p136 = scmp.le.s32.totalorder 1, %s9
    %p137 = scmp.lt.s32.totalorder %s9, 3
    %p138 = pnand %p136, %p137
    %p139 = pneg %p138
    // Predicated region
    $region29: #{rcab_forward.4} parent=5 // pred_check
      _
    $region30: #{rcab_forward.4} parent=5 // pred_check_branch
      %141 = sbr.rel (%p138) target = $region32
    $region31: #{rcab_forward.4} parent=5 // pred_region
      %s142 = ssub.s32 %s9, 1
      %p143 = scmp.lt.s32.totalorder %s14, 1
      %s144 = scalar_select %p143, %s14, 1
      %s145 = smul.addr %s144, 54
      %s146 = smul.addr %s145, 4
      %s147 = scalar_lea.vmem %s0, %s146
      %p148 = pneg %p35
      %p149 = pneg %p32
      %p150 = pneg %p56
      %p151 = pneg %p53
      %p152 = pneg %p77
      %p153 = pneg %p74
      %p154 = pneg %p103
      %p155 = pneg %p100
      %p156 = scmp.lt.s32.totalorder %s14, 1
      %s157 = scalar_select %p156, %s14, 1
      %s158 = smul.addr %s157, 32
      %s159 = smul.addr %s158, 8
      %s160 = scalar_lea.vmem %s3, %s159
      %p161 = scmp.lt.s32.totalorder %s14, 1
      %s162 = scalar_select %p161, %s14, 1
      %s163 = smul.addr %s162, 54
      %s164 = smul.addr %s163, 4
      %s165 = scalar_lea.vmem %s0, %s164
      %p166 = scmp.lt.s32.totalorder %s14, 1
      %s167 = scalar_select %p166, %s14, 1
      %s168 = smul.addr %s167, 32
      %s169 = smul.addr %s168, 8
      %s170 = scalar_lea.vmem %s3, %s169
      %v172 = vld [vmem:[%s165] sm:$0xf]
      %v173 = vld [vmem:[%s165 + $0x4] sm:$0xf]
      %v174 = vld [vmem:[%s165 + $0xc] sm:$0xf]
      %v175 = vld [vmem:[%s165 + $0x10] sm:$0xf]
      %v176 = vld [vmem:[%s165 + $0x18] sm:$0xf]
      %v177 = vld [vmem:[%s165 + $0x1c] sm:$0xf]
      %v178 = vld [vmem:[%s165 + $0x24] sm:$0xf]
      %v179 = vld [vmem:[%s165 + $0x28] sm:$0xf]
      %v180 = vld [vmem:[%s165 + $0x30] sm:$0xf]
      %v181 = vld [vmem:[%s165 + $0x34] sm:$0xf]
      %v182 = vld [vmem:[%s165 + $0x3c] sm:$0xf]
      %v183 = vld [vmem:[%s165 + $0x40] sm:$0xf]
      %v184 = vld [vmem:[%s165 + $0x48] sm:$0xf]
      %v185 = vld [vmem:[%s165 + $0x4c] sm:$0xf]
      %v186 = vld [vmem:[%s165 + $0x54] sm:$0xf]
      %v187 = vld [vmem:[%s165 + $0x58] sm:$0xf]
      %v188 = vld [vmem:[%s165 + $0x60] sm:$0xf]
      %v189 = vld [vmem:[%s165 + $0x64] sm:$0xf]
      %v190 = vld [vmem:[%s165 + $0x6c] sm:$0xf]
      %v191 = vld [vmem:[%s165 + $0x70] sm:$0xf]
      %v192 = vld [vmem:[%s165 + $0x78] sm:$0xf]
      %v193 = vld [vmem:[%s165 + $0x7c] sm:$0xf]
      %v194 = vld [vmem:[%s165 + $0x84] sm:$0xf]
      %v195 = vld [vmem:[%s165 + $0x88] sm:$0xf]
      %v196 = vld [vmem:[%s165 + $0x90] sm:$0xf]
      %v197 = vld [vmem:[%s165 + $0x94] sm:$0xf]
      %v198 = vld [vmem:[%s165 + $0x9c] sm:$0xf]
      %v199 = vld [vmem:[%s165 + $0xa0] sm:$0xf]
      %v200 = vld [vmem:[%s165 + $0xa8] sm:$0xf]
      %v201 = vld [vmem:[%s165 + $0xac] sm:$0xf]
      %v202 = vld [vmem:[%s165 + $0xb4] sm:$0xf]
      %v203 = vld [vmem:[%s165 + $0xb8] sm:$0xf]
      %v204 = vld [vmem:[%s1] sm:$0xf]
      %v205 = vld [vmem:[%s1 + $0x4] sm:$0xf]
      %v206 = vld [vmem:[%s1 + $0x8] sm:$0xf]
      %v207 = vld [vmem:[%s1 + $0xc] sm:$0xf]
      %v208 = vld [vmem:[%s1 + $0x10] sm:$0xf]
      %v209 = vld [vmem:[%s1 + $0x14] sm:$0xf]
      %v210 = vld [vmem:[%s1 + $0x18] sm:$0xf]
      %v211 = vld [vmem:[%s1 + $0x1c] sm:$0xf]
      %v212 = vld [vmem:[%s165 + $0x8] sm:$0x1]
      %v213 = vld [vmem:[%s165 + $0x14] sm:$0x1]
      %v214 = vld [vmem:[%s165 + $0x20] sm:$0x1]
      %v215 = vld [vmem:[%s165 + $0x2c] sm:$0x1]
      %v216 = vld [vmem:[%s165 + $0x38] sm:$0x1]
      %v217 = vld [vmem:[%s165 + $0x44] sm:$0x1]
      %v218 = vld [vmem:[%s165 + $0x50] sm:$0x1]
      %v219 = vld [vmem:[%s165 + $0x5c] sm:$0x1]
      %v220 = vld [vmem:[%s165 + $0x68] sm:$0x1]
      %v221 = vld [vmem:[%s165 + $0x74] sm:$0x1]
      %v222 = vld [vmem:[%s165 + $0x80] sm:$0x1]
      %v223 = vld [vmem:[%s165 + $0x8c] sm:$0x1]
      %v224 = vld [vmem:[%s165 + $0x98] sm:$0x1]
      %v225 = vld [vmem:[%s165 + $0xa4] sm:$0x1]
      %v226 = vld [vmem:[%s165 + $0xb0] sm:$0x1]
      %v227 = vld [vmem:[%s165 + $0xbc] sm:$0x1]
      %vm228 = vsmask.f32 3328
      %vm229 = vsmask.f32 7440
      %vm230 = vmor %vm228, %vm229
      %v232 = vshrl.u32 %v172, 16
      %v234 = vrot.slane %v232, 4
      %v235 = vshll.u32 %v172, 16
      %v237 = vrot.slane %v235, 5
      %v238 = vor.u32 %v234, %v237
      %v239 = vrot.slane %v238, 4
      %v241 = vshll.u32 %v173, 16
      %v243 = vrot.slane %v241, 5
      %v244 = vsel %vm230, %v239, %v243
      %v245 = vshrl.u32 %v173, 16
      %v247 = vrot.slane %v245, 4
      %v248 = vor.u32 %v247, %v243
      %v249 = vrot.slane %v248, 4
      %v251 = vshll.u32 %v212, 16
      %v253 = vrot.slane %v251, 5
      %v254 = vsel %vm230, %v249, %v253
      %v256 = vshrl.u32 %v174, 16
      %v258 = vrot.slane %v256, 4
      %v259 = vshll.u32 %v174, 16
      %v261 = vrot.slane %v259, 5
      %v262 = vor.u32 %v258, %v261
      %v263 = vrot.slane %v262, 4
      %v265 = vshll.u32 %v175, 16
      %v267 = vrot.slane %v265, 5
      %v268 = vsel %vm230, %v263, %v267
      %v269 = vshrl.u32 %v175, 16
      %v271 = vrot.slane %v269, 4
      %v272 = vor.u32 %v271, %v267
      %v273 = vrot.slane %v272, 4
      %v275 = vshll.u32 %v213, 16
      %v277 = vrot.slane %v275, 5
      %v278 = vsel %vm230, %v273, %v277
      %v280 = vshrl.u32 %v176, 16
      %v282 = vrot.slane %v280, 4
      %v283 = vshll.u32 %v176, 16
      %v285 = vrot.slane %v283, 5
      %v286 = vor.u32 %v282, %v285
      %v287 = vrot.slane %v286, 4
      %v289 = vshll.u32 %v177, 16
      %v291 = vrot.slane %v289, 5
      %v292 = vsel %vm230, %v287, %v291
      %v293 = vshrl.u32 %v177, 16
      %v295 = vrot.slane %v293, 4
      %v296 = vor.u32 %v295, %v291
      %v297 = vrot.slane %v296, 4
      %v299 = vshll.u32 %v214, 16
      %v301 = vrot.slane %v299, 5
      %v302 = vsel %vm230, %v297, %v301
      %v304 = vshrl.u32 %v178, 16
      %v306 = vrot.slane %v304, 4
      %v307 = vshll.u32 %v178, 16
      %v309 = vrot.slane %v307, 5
      %v310 = vor.u32 %v306, %v309
      %v311 = vrot.slane %v310, 4
      %v313 = vshll.u32 %v179, 16
      %v315 = vrot.slane %v313, 5
      %v316 = vsel %vm230, %v311, %v315
      %v317 = vshrl.u32 %v179, 16
      %v319 = vrot.slane %v317, 4
      %v320 = vor.u32 %v319, %v315
      %v321 = vrot.slane %v320, 4
      %v323 = vshll.u32 %v215, 16
      %v325 = vrot.slane %v323, 5
      %v326 = vsel %vm230, %v321, %v325
      %v328 = vshrl.u32 %v180, 16
      %v330 = vrot.slane %v328, 4
      %v331 = vshll.u32 %v180, 16
      %v333 = vrot.slane %v331, 5
      %v334 = vor.u32 %v330, %v333
      %v335 = vrot.slane %v334, 4
      %v337 = vshll.u32 %v181, 16
      %v339 = vrot.slane %v337, 5
      %v340 = vsel %vm230, %v335, %v339
      %v341 = vshrl.u32 %v181, 16
      %v343 = vrot.slane %v341, 4
      %v344 = vor.u32 %v343, %v339
      %v345 = vrot.slane %v344, 4
      %v347 = vshll.u32 %v216, 16
      %v349 = vrot.slane %v347, 5
      %v350 = vsel %vm230, %v345, %v349
      %v352 = vshrl.u32 %v182, 16
      %v354 = vrot.slane %v352, 4
      %v355 = vshll.u32 %v182, 16
      %v357 = vrot.slane %v355, 5
      %v358 = vor.u32 %v354, %v357
      %v359 = vrot.slane %v358, 4
      %v361 = vshll.u32 %v183, 16
      %v363 = vrot.slane %v361, 5
      %v364 = vsel %vm230, %v359, %v363
      %v365 = vshrl.u32 %v183, 16
      %v367 = vrot.slane %v365, 4
      %v368 = vor.u32 %v367, %v363
      %v369 = vrot.slane %v368, 4
      %v371 = vshll.u32 %v217, 16
      %v373 = vrot.slane %v371, 5
      %v374 = vsel %vm230, %v369, %v373
      %v376 = vshrl.u32 %v184, 16
      %v378 = vrot.slane %v376, 4
      %v379 = vshll.u32 %v184, 16
      %v381 = vrot.slane %v379, 5
      %v382 = vor.u32 %v378, %v381
      %v383 = vrot.slane %v382, 4
      %v385 = vshll.u32 %v185, 16
      %v387 = vrot.slane %v385, 5
      %v388 = vsel %vm230, %v383, %v387
      %v389 = vshrl.u32 %v185, 16
      %v391 = vrot.slane %v389, 4
      %v392 = vor.u32 %v391, %v387
      %v393 = vrot.slane %v392, 4
      %v395 = vshll.u32 %v218, 16
      %v397 = vrot.slane %v395, 5
      %v398 = vsel %vm230, %v393, %v397
      %v400 = vshrl.u32 %v186, 16
      %v402 = vrot.slane %v400, 4
      %v403 = vshll.u32 %v186, 16
      %v405 = vrot.slane %v403, 5
      %v406 = vor.u32 %v402, %v405
      %v407 = vrot.slane %v406, 4
      %v409 = vshll.u32 %v187, 16
      %v411 = vrot.slane %v409, 5
      %v412 = vsel %vm230, %v407, %v411
      %v413 = vshrl.u32 %v187, 16
      %v415 = vrot.slane %v413, 4
      %v416 = vor.u32 %v415, %v411
      %v417 = vrot.slane %v416, 4
      %v419 = vshll.u32 %v219, 16
      %v421 = vrot.slane %v419, 5
      %v422 = vsel %vm230, %v417, %v421
      %v424 = vshrl.u32 %v188, 16
      %v426 = vrot.slane %v424, 4
      %v427 = vshll.u32 %v188, 16
      %v429 = vrot.slane %v427, 5
      %v430 = vor.u32 %v426, %v429
      %v431 = vrot.slane %v430, 4
      %v433 = vshll.u32 %v189, 16
      %v435 = vrot.slane %v433, 5
      %v436 = vsel %vm230, %v431, %v435
      %v437 = vshrl.u32 %v189, 16
      %v439 = vrot.slane %v437, 4
      %v440 = vor.u32 %v439, %v435
      %v441 = vrot.slane %v440, 4
      %v443 = vshll.u32 %v220, 16
      %v445 = vrot.slane %v443, 5
      %v446 = vsel %vm230, %v441, %v445
      %v448 = vshrl.u32 %v190, 16
      %v450 = vrot.slane %v448, 4
      %v451 = vshll.u32 %v190, 16
      %v453 = vrot.slane %v451, 5
      %v454 = vor.u32 %v450, %v453
      %v455 = vrot.slane %v454, 4
      %v457 = vshll.u32 %v191, 16
      %v459 = vrot.slane %v457, 5
      %v460 = vsel %vm230, %v455, %v459
      %v461 = vshrl.u32 %v191, 16
      %v463 = vrot.slane %v461, 4
      %v464 = vor.u32 %v463, %v459
      %v465 = vrot.slane %v464, 4
      %v467 = vshll.u32 %v221, 16
      %v469 = vrot.slane %v467, 5
      %v470 = vsel %vm230, %v465, %v469
      %v472 = vshrl.u32 %v192, 16
      %v474 = vrot.slane %v472, 4
      %v475 = vshll.u32 %v192, 16
      %v477 = vrot.slane %v475, 5
      %v478 = vor.u32 %v474, %v477
      %v479 = vrot.slane %v478, 4
      %v481 = vshll.u32 %v193, 16
      %v483 = vrot.slane %v481, 5
      %v484 = vsel %vm230, %v479, %v483
      %v485 = vshrl.u32 %v193, 16
      %v487 = vrot.slane %v485, 4
      %v488 = vor.u32 %v487, %v483
      %v489 = vrot.slane %v488, 4
      %v491 = vshll.u32 %v222, 16
      %v493 = vrot.slane %v491, 5
      %v494 = vsel %vm230, %v489, %v493
      %v496 = vshrl.u32 %v194, 16
      %v498 = vrot.slane %v496, 4
      %v499 = vshll.u32 %v194, 16
      %v501 = vrot.slane %v499, 5
      %v502 = vor.u32 %v498, %v501
      %v503 = vrot.slane %v502, 4
      %v505 = vshll.u32 %v195, 16
      %v507 = vrot.slane %v505, 5
      %v508 = vsel %vm230, %v503, %v507
      %v509 = vshrl.u32 %v195, 16
      %v511 = vrot.slane %v509, 4
      %v512 = vor.u32 %v511, %v507
      %v513 = vrot.slane %v512, 4
      %v515 = vshll.u32 %v223, 16
      %v517 = vrot.slane %v515, 5
      %v518 = vsel %vm230, %v513, %v517
      %v520 = vshrl.u32 %v196, 16
      %v522 = vrot.slane %v520, 4
      %v523 = vshll.u32 %v196, 16
      %v525 = vrot.slane %v523, 5
      %v526 = vor.u32 %v522, %v525
      %v527 = vrot.slane %v526, 4
      %v529 = vshll.u32 %v197, 16
      %v531 = vrot.slane %v529, 5
      %v532 = vsel %vm230, %v527, %v531
      %v533 = vshrl.u32 %v197, 16
      %v535 = vrot.slane %v533, 4
      %v536 = vor.u32 %v535, %v531
      %v537 = vrot.slane %v536, 4
      %v539 = vshll.u32 %v224, 16
      %v541 = vrot.slane %v539, 5
      %v542 = vsel %vm230, %v537, %v541
      %v544 = vshrl.u32 %v198, 16
      %v546 = vrot.slane %v544, 4
      %v547 = vshll.u32 %v198, 16
      %v549 = vrot.slane %v547, 5
      %v550 = vor.u32 %v546, %v549
      %v551 = vrot.slane %v550, 4
      %v553 = vshll.u32 %v199, 16
      %v555 = vrot.slane %v553, 5
      %v556 = vsel %vm230, %v551, %v555
      %v557 = vshrl.u32 %v199, 16
      %v559 = vrot.slane %v557, 4
      %v560 = vor.u32 %v559, %v555
      %v561 = vrot.slane %v560, 4
      %v563 = vshll.u32 %v225, 16
      %v565 = vrot.slane %v563, 5
      %v566 = vsel %vm230, %v561, %v565
      %v568 = vshrl.u32 %v200, 16
      %v570 = vrot.slane %v568, 4
      %v571 = vshll.u32 %v200, 16
      %v573 = vrot.slane %v571, 5
      %v574 = vor.u32 %v570, %v573
      %v575 = vrot.slane %v574, 4
      %v577 = vshll.u32 %v201, 16
      %v579 = vrot.slane %v577, 5
      %v580 = vsel %vm230, %v575, %v579
      %v581 = vshrl.u32 %v201, 16
      %v583 = vrot.slane %v581, 4
      %v584 = vor.u32 %v583, %v579
      %v585 = vrot.slane %v584, 4
      %v587 = vshll.u32 %v226, 16
      %v589 = vrot.slane %v587, 5
      %v590 = vsel %vm230, %v585, %v589
      %v592 = vshrl.u32 %v202, 16
      %v594 = vrot.slane %v592, 4
      %v595 = vshll.u32 %v202, 16
      %v597 = vrot.slane %v595, 5
      %v598 = vor.u32 %v594, %v597
      %v599 = vrot.slane %v598, 4
      %v601 = vshll.u32 %v203, 16
      %v603 = vrot.slane %v601, 5
      %v604 = vsel %vm230, %v599, %v603
      %v605 = vshrl.u32 %v203, 16
      %v607 = vrot.slane %v605, 4
      %v608 = vor.u32 %v607, %v603
      %v609 = vrot.slane %v608, 4
      %v611 = vshll.u32 %v227, 16
      %v613 = vrot.slane %v611, 5
      %v614 = vsel %vm230, %v609, %v613
      %s615 = scalar_lea.vmem %s1, 32
      %v616 = vld [vmem:[%s615] sm:$0xf]
      %v617 = vld [vmem:[%s615 + $0x4] sm:$0xf]
      %v618 = vld [vmem:[%s615 + $0x8] sm:$0xf]
      %v619 = vld [vmem:[%s615 + $0xc] sm:$0xf]
      %v620 = vld [vmem:[%s615 + $0x10] sm:$0xf]
      %v621 = vld [vmem:[%s615 + $0x14] sm:$0xf]
      %v622 = vld [vmem:[%s615 + $0x18] sm:$0xf]
      %v623 = vld [vmem:[%s615 + $0x1c] sm:$0xf]
      %v624 = vunpack.c.l.b16 %v244
      %v625 = vunpack.c.l.b16 %v254
      %v626 = vunpack.c.l.b16 %v268
      %v627 = vunpack.c.l.b16 %v278
      %v628 = vunpack.c.l.b16 %v292
      %v629 = vunpack.c.l.b16 %v302
      %v630 = vunpack.c.l.b16 %v316
      %v631 = vunpack.c.l.b16 %v326
      %v632 = vunpack.c.l.b16 %v340
      %v633 = vunpack.c.l.b16 %v350
      %v634 = vunpack.c.l.b16 %v364
      %v635 = vunpack.c.l.b16 %v374
      %v636 = vunpack.c.l.b16 %v388
      %v637 = vunpack.c.l.b16 %v398
      %v638 = vunpack.c.l.b16 %v412
      %v639 = vunpack.c.l.b16 %v422
      %v640 = vunpack.c.l.b16 %v436
      %v641 = vunpack.c.l.b16 %v446
      %v642 = vunpack.c.l.b16 %v460
      %v643 = vunpack.c.l.b16 %v470
      %v644 = vunpack.c.l.b16 %v484
      %v645 = vunpack.c.l.b16 %v494
      %v646 = vunpack.c.l.b16 %v508
      %v647 = vunpack.c.l.b16 %v518
      %v648 = vunpack.c.l.b16 %v532
      %v649 = vunpack.c.l.b16 %v542
      %v650 = vunpack.c.l.b16 %v556
      %v651 = vunpack.c.l.b16 %v566
      %v652 = vunpack.c.l.b16 %v580
      %v653 = vunpack.c.l.b16 %v590
      %v654 = vunpack.c.l.b16 %v604
      %v655 = vunpack.c.l.b16 %v614
      %v656 = vpack.c.b16 %v625, %v624
      %v657 = vpack.c.b16 %v627, %v626
      %v658 = vpack.c.b16 %v629, %v628
      %v659 = vpack.c.b16 %v631, %v630
      %v660 = vpack.c.b16 %v633, %v632
      %v661 = vpack.c.b16 %v635, %v634
      %v662 = vpack.c.b16 %v637, %v636
      %v663 = vpack.c.b16 %v639, %v638
      %v664 = vpack.c.b16 %v641, %v640
      %v665 = vpack.c.b16 %v643, %v642
      %v666 = vpack.c.b16 %v645, %v644
      %v667 = vpack.c.b16 %v647, %v646
      %v668 = vpack.c.b16 %v649, %v648
      %v669 = vpack.c.b16 %v651, %v650
      %v670 = vpack.c.b16 %v653, %v652
      %v671 = vpack.c.b16 %v655, %v654
      %v680 = vunpack.c.l.b16 %v616
      %v681 = vunpack.c.l.b16 %v617
      %v682 = vunpack.c.l.b16 %v618
      %v683 = vunpack.c.l.b16 %v619
      %v684 = vunpack.c.l.b16 %v620
      %v685 = vunpack.c.l.b16 %v621
      %v686 = vunpack.c.l.b16 %v622
      %v687 = vunpack.c.l.b16 %v623
      %v688 = vpack.c.b16 %v681, %v680
      %v689 = vpack.c.b16 %v683, %v682
      %v690 = vpack.c.b16 %v685, %v684
      %v691 = vpack.c.b16 %v687, %v686
      %vm696 = vcmask 523264
      %v698 = vsel %vm696, %v656, 0
      %v701 = vsel %vm696, %v657, 0
      %v704 = vsel %vm696, %v658, 0
      %v707 = vsel %vm696, %v659, 0
      %v710 = vsel %vm696, %v660, 0
      %v713 = vsel %vm696, %v661, 0
      %v716 = vsel %vm696, %v662, 0
      %v719 = vsel %vm696, %v663, 0
      %v722 = vsel %vm696, %v664, 0
      %v725 = vsel %vm696, %v665, 0
      %v728 = vsel %vm696, %v666, 0
      %v731 = vsel %vm696, %v667, 0
      %v734 = vsel %vm696, %v668, 0
      %v737 = vsel %vm696, %v669, 0
      %v740 = vsel %vm696, %v670, 0
      %v743 = vsel %vm696, %v671, 0
      %745 = vmatpush.bf16.msra.mxu0 0
      %746 = vmatpush.bf16.msra.mxu0 0
      %747 = vmatpush.bf16.msra.mxu0 0
      %748 = vmatpush.bf16.msra.mxu0 0
      %749 = vmatpush.bf16.msra.mxu0 %v691
      %750 = vmatpush.bf16.msra.mxu0 %v690
      %751 = vmatpush.bf16.msra.mxu0 %v689
      %752 = vmatpush.bf16.msra.mxu0 %v688
      %753 = vmatmul.bf16.gmra.mxu0 %v698
      %v754 = vpop.f32.mrf.mxu0
      %v755 = vadd.f32 0.0, %v754
      %v756 = vpop.f32.mrf.mxu0
      %v757 = vadd.f32 0.0, %v756
      %758 = vmatmul.bf16.gmra.mxu0 %v701
      %v759 = vpop.f32.mrf.mxu0
      %v760 = vadd.f32 0.0, %v759
      %v761 = vpop.f32.mrf.mxu0
      %v762 = vadd.f32 0.0, %v761
      %763 = vmatmul.bf16.gmra.mxu0 %v704
      %v764 = vpop.f32.mrf.mxu0
      %v765 = vadd.f32 0.0, %v764
      %v766 = vpop.f32.mrf.mxu0
      %v767 = vadd.f32 0.0, %v766
      %768 = vmatmul.bf16.gmra.mxu0 %v707
      %v769 = vpop.f32.mrf.mxu0
      %v770 = vadd.f32 0.0, %v769
      %v771 = vpop.f32.mrf.mxu0
      %v772 = vadd.f32 0.0, %v771
      %773 = vmatmul.bf16.gmra.mxu0 %v710
      %v774 = vpop.f32.mrf.mxu0
      %v775 = vadd.f32 0.0, %v774
      %v776 = vpop.f32.mrf.mxu0
      %v777 = vadd.f32 0.0, %v776
      %778 = vmatmul.bf16.gmra.mxu0 %v713
      %v779 = vpop.f32.mrf.mxu0
      %v780 = vadd.f32 0.0, %v779
      %v781 = vpop.f32.mrf.mxu0
      %v782 = vadd.f32 0.0, %v781
      %783 = vmatmul.bf16.gmra.mxu0 %v716
      %v784 = vpop.f32.mrf.mxu0
      %v785 = vadd.f32 0.0, %v784
      %v786 = vpop.f32.mrf.mxu0
      %v787 = vadd.f32 0.0, %v786
      %788 = vmatmul.bf16.gmra.mxu0 %v719
      %v789 = vpop.f32.mrf.mxu0
      %v790 = vadd.f32 0.0, %v789
      %v791 = vpop.f32.mrf.mxu0
      %v792 = vadd.f32 0.0, %v791
      %793 = vmatmul.bf16.gmra.mxu0 %v722
      %v794 = vpop.f32.mrf.mxu0
      %v795 = vadd.f32 0.0, %v794
      %v796 = vpop.f32.mrf.mxu0
      %v797 = vadd.f32 0.0, %v796
      %798 = vmatmul.bf16.gmra.mxu0 %v725
      %v799 = vpop.f32.mrf.mxu0
      %v800 = vadd.f32 0.0, %v799
      %v801 = vpop.f32.mrf.mxu0
      %v802 = vadd.f32 0.0, %v801
      %803 = vmatmul.bf16.gmra.mxu0 %v728
      %v804 = vpop.f32.mrf.mxu0
      %v805 = vadd.f32 0.0, %v804
      %v806 = vpop.f32.mrf.mxu0
      %v807 = vadd.f32 0.0, %v806
      %808 = vmatmul.bf16.gmra.mxu0 %v731
      %v809 = vpop.f32.mrf.mxu0
      %v810 = vadd.f32 0.0, %v809
      %v811 = vpop.f32.mrf.mxu0
      %v812 = vadd.f32 0.0, %v811
      %813 = vmatmul.bf16.gmra.mxu0 %v734
      %v814 = vpop.f32.mrf.mxu0
      %v815 = vadd.f32 0.0, %v814
      %v816 = vpop.f32.mrf.mxu0
      %v817 = vadd.f32 0.0, %v816
      %818 = vmatmul.bf16.gmra.mxu0 %v737
      %v819 = vpop.f32.mrf.mxu0
      %v820 = vadd.f32 0.0, %v819
      %v821 = vpop.f32.mrf.mxu0
      %v822 = vadd.f32 0.0, %v821
      %823 = vmatmul.bf16.gmra.mxu0 %v740
      %v824 = vpop.f32.mrf.mxu0
      %v825 = vadd.f32 0.0, %v824
      %v826 = vpop.f32.mrf.mxu0
      %v827 = vadd.f32 0.0, %v826
      %828 = vmatmul.bf16.gmra.mxu0 %v743
      %v829 = vpop.f32.mrf.mxu0
      %v830 = vadd.f32 0.0, %v829
      %v831 = vpop.f32.mrf.mxu0
      %v832 = vadd.f32 0.0, %v831
      %833 = vdwg.mxu0
      %v866 = vunpack.c.l.b16 %v172
      %v867 = vunpack.c.l.b16 %v173
      %v868 = vunpack.c.l.b16 %v174
      %v869 = vunpack.c.l.b16 %v175
      %v870 = vunpack.c.l.b16 %v176
      %v871 = vunpack.c.l.b16 %v177
      %v872 = vunpack.c.l.b16 %v178
      %v873 = vunpack.c.l.b16 %v179
      %v874 = vunpack.c.l.b16 %v180
      %v875 = vunpack.c.l.b16 %v181
      %v876 = vunpack.c.l.b16 %v182
      %v877 = vunpack.c.l.b16 %v183
      %v878 = vunpack.c.l.b16 %v184
      %v879 = vunpack.c.l.b16 %v185
      %v880 = vunpack.c.l.b16 %v186
      %v881 = vunpack.c.l.b16 %v187
      %v882 = vunpack.c.l.b16 %v188
      %v883 = vunpack.c.l.b16 %v189
      %v884 = vunpack.c.l.b16 %v190
      %v885 = vunpack.c.l.b16 %v191
      %v886 = vunpack.c.l.b16 %v192
      %v887 = vunpack.c.l.b16 %v193
      %v888 = vunpack.c.l.b16 %v194
      %v889 = vunpack.c.l.b16 %v195
      %v890 = vunpack.c.l.b16 %v196
      %v891 = vunpack.c.l.b16 %v197
      %v892 = vunpack.c.l.b16 %v198
      %v893 = vunpack.c.l.b16 %v199
      %v894 = vunpack.c.l.b16 %v200
      %v895 = vunpack.c.l.b16 %v201
      %v896 = vunpack.c.l.b16 %v202
      %v897 = vunpack.c.l.b16 %v203
      %v898 = vpack.c.b16 %v867, %v866
      %v899 = vpack.c.b16 %v869, %v868
      %v900 = vpack.c.b16 %v871, %v870
      %v901 = vpack.c.b16 %v873, %v872
      %v902 = vpack.c.b16 %v875, %v874
      %v903 = vpack.c.b16 %v877, %v876
      %v904 = vpack.c.b16 %v879, %v878
      %v905 = vpack.c.b16 %v881, %v880
      %v906 = vpack.c.b16 %v883, %v882
      %v907 = vpack.c.b16 %v885, %v884
      %v908 = vpack.c.b16 %v887, %v886
      %v909 = vpack.c.b16 %v889, %v888
      %v910 = vpack.c.b16 %v891, %v890
      %v911 = vpack.c.b16 %v893, %v892
      %v912 = vpack.c.b16 %v895, %v894
      %v913 = vpack.c.b16 %v897, %v896
      %v922 = vunpack.c.l.b16 %v204
      %v923 = vunpack.c.l.b16 %v205
      %v924 = vunpack.c.l.b16 %v206
      %v925 = vunpack.c.l.b16 %v207
      %v926 = vunpack.c.l.b16 %v208
      %v927 = vunpack.c.l.b16 %v209
      %v928 = vunpack.c.l.b16 %v210
      %v929 = vunpack.c.l.b16 %v211
      %v930 = vpack.c.b16 %v923, %v922
      %v931 = vpack.c.b16 %v925, %v924
      %v932 = vpack.c.b16 %v927, %v926
      %v933 = vpack.c.b16 %v929, %v928
      %v939 = vsel %vm696, %v898, 0
      %v942 = vsel %vm696, %v899, 0
      %v945 = vsel %vm696, %v900, 0
      %v948 = vsel %vm696, %v901, 0
      %v951 = vsel %vm696, %v902, 0
      %v954 = vsel %vm696, %v903, 0
      %v957 = vsel %vm696, %v904, 0
      %v960 = vsel %vm696, %v905, 0
      %v963 = vsel %vm696, %v906, 0
      %v966 = vsel %vm696, %v907, 0
      %v969 = vsel %vm696, %v908, 0
      %v972 = vsel %vm696, %v909, 0
      %v975 = vsel %vm696, %v910, 0
      %v978 = vsel %vm696, %v911, 0
      %v981 = vsel %vm696, %v912, 0
      %v984 = vsel %vm696, %v913, 0
      %986 = vmatpush.bf16.msra.mxu0 0
      %987 = vmatpush.bf16.msra.mxu0 0
      %988 = vmatpush.bf16.msra.mxu0 0
      %989 = vmatpush.bf16.msra.mxu0 0
      %990 = vmatpush.bf16.msra.mxu0 %v933
      %991 = vmatpush.bf16.msra.mxu0 %v932
      %992 = vmatpush.bf16.msra.mxu0 %v931
      %993 = vmatpush.bf16.msra.mxu0 %v930
      %994 = vmatmul.bf16.gmra.mxu0 %v939
      %v995 = vpop.f32.mrf.mxu0
      %v996 = vadd.f32 %v755, %v995
      %v997 = vpop.f32.mrf.mxu0
      %v998 = vadd.f32 %v757, %v997
      %999 = vmatmul.bf16.gmra.mxu0 %v942
      %v1000 = vpop.f32.mrf.mxu0
      %v1001 = vadd.f32 %v760, %v1000
      %v1002 = vpop.f32.mrf.mxu0
      %v1003 = vadd.f32 %v762, %v1002
      %1004 = vmatmul.bf16.gmra.mxu0 %v945
      %v1005 = vpop.f32.mrf.mxu0
      %v1006 = vadd.f32 %v765, %v1005
      %v1007 = vpop.f32.mrf.mxu0
      %v1008 = vadd.f32 %v767, %v1007
      %1009 = vmatmul.bf16.gmra.mxu0 %v948
      %v1010 = vpop.f32.mrf.mxu0
      %v1011 = vadd.f32 %v770, %v1010
      %v1012 = vpop.f32.mrf.mxu0
      %v1013 = vadd.f32 %v772, %v1012
      %1014 = vmatmul.bf16.gmra.mxu0 %v951
      %v1015 = vpop.f32.mrf.mxu0
      %v1016 = vadd.f32 %v775, %v1015
      %v1017 = vpop.f32.mrf.mxu0
      %v1018 = vadd.f32 %v777, %v1017
      %1019 = vmatmul.bf16.gmra.mxu0 %v954
      %v1020 = vpop.f32.mrf.mxu0
      %v1021 = vadd.f32 %v780, %v1020
      %v1022 = vpop.f32.mrf.mxu0
      %v1023 = vadd.f32 %v782, %v1022
      %1024 = vmatmul.bf16.gmra.mxu0 %v957
      %v1025 = vpop.f32.mrf.mxu0
      %v1026 = vadd.f32 %v785, %v1025
      %v1027 = vpop.f32.mrf.mxu0
      %v1028 = vadd.f32 %v787, %v1027
      %1029 = vmatmul.bf16.gmra.mxu0 %v960
      %v1030 = vpop.f32.mrf.mxu0
      %v1031 = vadd.f32 %v790, %v1030
      %v1032 = vpop.f32.mrf.mxu0
      %v1033 = vadd.f32 %v792, %v1032
      %1034 = vmatmul.bf16.gmra.mxu0 %v963
      %v1035 = vpop.f32.mrf.mxu0
      %v1036 = vadd.f32 %v795, %v1035
      %v1037 = vpop.f32.mrf.mxu0
      %v1038 = vadd.f32 %v797, %v1037
      %1039 = vmatmul.bf16.gmra.mxu0 %v966
      %v1040 = vpop.f32.mrf.mxu0
      %v1041 = vadd.f32 %v800, %v1040
      %v1042 = vpop.f32.mrf.mxu0
      %v1043 = vadd.f32 %v802, %v1042
      %1044 = vmatmul.bf16.gmra.mxu0 %v969
      %v1045 = vpop.f32.mrf.mxu0
      %v1046 = vadd.f32 %v805, %v1045
      %v1047 = vpop.f32.mrf.mxu0
      %v1048 = vadd.f32 %v807, %v1047
      %1049 = vmatmul.bf16.gmra.mxu0 %v972
      %v1050 = vpop.f32.mrf.mxu0
      %v1051 = vadd.f32 %v810, %v1050
      %v1052 = vpop.f32.mrf.mxu0
      %v1053 = vadd.f32 %v812, %v1052
      %1054 = vmatmul.bf16.gmra.mxu0 %v975
      %v1055 = vpop.f32.mrf.mxu0
      %v1056 = vadd.f32 %v815, %v1055
      %v1057 = vpop.f32.mrf.mxu0
      %v1058 = vadd.f32 %v817, %v1057
      %1059 = vmatmul.bf16.gmra.mxu0 %v978
      %v1060 = vpop.f32.mrf.mxu0
      %v1061 = vadd.f32 %v820, %v1060
      %v1062 = vpop.f32.mrf.mxu0
      %v1063 = vadd.f32 %v822, %v1062
      %1064 = vmatmul.bf16.gmra.mxu0 %v981
      %v1065 = vpop.f32.mrf.mxu0
      %v1066 = vadd.f32 %v825, %v1065
      %v1067 = vpop.f32.mrf.mxu0
      %v1068 = vadd.f32 %v827, %v1067
      %1069 = vmatmul.bf16.gmra.mxu0 %v984
      %v1070 = vpop.f32.mrf.mxu0
      %v1071 = vadd.f32 %v830, %v1070
      %v1072 = vpop.f32.mrf.mxu0
      %v1073 = vadd.f32 %v832, %v1072
      %1074 = vdwg.mxu0
      %v1075 = vld [vmem:[%s165] sm:$0xe]
      %v1076 = vld [vmem:[%s165 + $0xc] sm:$0xe]
      %v1077 = vld [vmem:[%s165 + $0x18] sm:$0xe]
      %v1078 = vld [vmem:[%s165 + $0x24] sm:$0xe]
      %v1079 = vld [vmem:[%s165 + $0x30] sm:$0xe]
      %v1080 = vld [vmem:[%s165 + $0x3c] sm:$0xe]
      %v1081 = vld [vmem:[%s165 + $0x48] sm:$0xe]
      %v1082 = vld [vmem:[%s165 + $0x54] sm:$0xe]
      %v1083 = vld [vmem:[%s165 + $0x60] sm:$0xe]
      %v1084 = vld [vmem:[%s165 + $0x6c] sm:$0xe]
      %v1085 = vld [vmem:[%s165 + $0x78] sm:$0xe]
      %v1086 = vld [vmem:[%s165 + $0x84] sm:$0xe]
      %v1087 = vld [vmem:[%s165 + $0x90] sm:$0xe]
      %v1088 = vld [vmem:[%s165 + $0x9c] sm:$0xe]
      %v1089 = vld [vmem:[%s165 + $0xa8] sm:$0xe]
      %v1090 = vld [vmem:[%s165 + $0xb4] sm:$0xe]
      %vm1123 = vcmask 1042432
      %vm1124 = vcmask 1046532
      %vm1125 = vmor %vm1123, %vm1124
      %v1126 = vrot.slane %v1075, 5
      %v1127 = vrot.slane %v1126, 4
      %v1128 = vrot.slane %v173, 5
      %v1129 = vsel %vm1125, %v1127, %v1128
      %v1130 = vrot.slane %v1128, 4
      %v1131 = vrot.slane %v212, 5
      %v1132 = vsel %vm1125, %v1130, %v1131
      %v1133 = vrot.slane %v1076, 5
      %v1134 = vrot.slane %v1133, 4
      %v1135 = vrot.slane %v175, 5
      %v1136 = vsel %vm1125, %v1134, %v1135
      %v1137 = vrot.slane %v1135, 4
      %v1138 = vrot.slane %v213, 5
      %v1139 = vsel %vm1125, %v1137, %v1138
      %v1140 = vrot.slane %v1077, 5
      %v1141 = vrot.slane %v1140, 4
      %v1142 = vrot.slane %v177, 5
      %v1143 = vsel %vm1125, %v1141, %v1142
      %v1144 = vrot.slane %v1142, 4
      %v1145 = vrot.slane %v214, 5
      %v1146 = vsel %vm1125, %v1144, %v1145
      %v1147 = vrot.slane %v1078, 5
      %v1148 = vrot.slane %v1147, 4
      %v1149 = vrot.slane %v179, 5
      %v1150 = vsel %vm1125, %v1148, %v1149
      %v1151 = vrot.slane %v1149, 4
      %v1152 = vrot.slane %v215, 5
      %v1153 = vsel %vm1125, %v1151, %v1152
      %v1154 = vrot.slane %v1079, 5
      %v1155 = vrot.slane %v1154, 4
      %v1156 = vrot.slane %v181, 5
      %v1157 = vsel %vm1125, %v1155, %v1156
      %v1158 = vrot.slane %v1156, 4
      %v1159 = vrot.slane %v216, 5
      %v1160 = vsel %vm1125, %v1158, %v1159
      %v1161 = vrot.slane %v1080, 5
      %v1162 = vrot.slane %v1161, 4
      %v1163 = vrot.slane %v183, 5
      %v1164 = vsel %vm1125, %v1162, %v1163
      %v1165 = vrot.slane %v1163, 4
      %v1166 = vrot.slane %v217, 5
      %v1167 = vsel %vm1125, %v1165, %v1166
      %v1168 = vrot.slane %v1081, 5
      %v1169 = vrot.slane %v1168, 4
      %v1170 = vrot.slane %v185, 5
      %v1171 = vsel %vm1125, %v1169, %v1170
      %v1172 = vrot.slane %v1170, 4
      %v1173 = vrot.slane %v218, 5
      %v1174 = vsel %vm1125, %v1172, %v1173
      %v1175 = vrot.slane %v1082, 5
      %v1176 = vrot.slane %v1175, 4
      %v1177 = vrot.slane %v187, 5
      %v1178 = vsel %vm1125, %v1176, %v1177
      %v1179 = vrot.slane %v1177, 4
      %v1180 = vrot.slane %v219, 5
      %v1181 = vsel %vm1125, %v1179, %v1180
      %v1182 = vrot.slane %v1083, 5
      %v1183 = vrot.slane %v1182, 4
      %v1184 = vrot.slane %v189, 5
      %v1185 = vsel %vm1125, %v1183, %v1184
      %v1186 = vrot.slane %v1184, 4
      %v1187 = vrot.slane %v220, 5
      %v1188 = vsel %vm1125, %v1186, %v1187
      %v1189 = vrot.slane %v1084, 5
      %v1190 = vrot.slane %v1189, 4
      %v1191 = vrot.slane %v191, 5
      %v1192 = vsel %vm1125, %v1190, %v1191
      %v1193 = vrot.slane %v1191, 4
      %v1194 = vrot.slane %v221, 5
      %v1195 = vsel %vm1125, %v1193, %v1194
      %v1196 = vrot.slane %v1085, 5
      %v1197 = vrot.slane %v1196, 4
      %v1198 = vrot.slane %v193, 5
      %v1199 = vsel %vm1125, %v1197, %v1198
      %v1200 = vrot.slane %v1198, 4
      %v1201 = vrot.slane %v222, 5
      %v1202 = vsel %vm1125, %v1200, %v1201
      %v1203 = vrot.slane %v1086, 5
      %v1204 = vrot.slane %v1203, 4
      %v1205 = vrot.slane %v195, 5
      %v1206 = vsel %vm1125, %v1204, %v1205
      %v1207 = vrot.slane %v1205, 4
      %v1208 = vrot.slane %v223, 5
      %v1209 = vsel %vm1125, %v1207, %v1208
      %v1210 = vrot.slane %v1087, 5
      %v1211 = vrot.slane %v1210, 4
      %v1212 = vrot.slane %v197, 5
      %v1213 = vsel %vm1125, %v1211, %v1212
      %v1214 = vrot.slane %v1212, 4
      %v1215 = vrot.slane %v224, 5
      %v1216 = vsel %vm1125, %v1214, %v1215
      %v1217 = vrot.slane %v1088, 5
      %v1218 = vrot.slane %v1217, 4
      %v1219 = vrot.slane %v199, 5
      %v1220 = vsel %vm1125, %v1218, %v1219
      %v1221 = vrot.slane %v1219, 4
      %v1222 = vrot.slane %v225, 5
      %v1223 = vsel %vm1125, %v1221, %v1222
      %v1224 = vrot.slane %v1089, 5
      %v1225 = vrot.slane %v1224, 4
      %v1226 = vrot.slane %v201, 5
      %v1227 = vsel %vm1125, %v1225, %v1226
      %v1228 = vrot.slane %v1226, 4
      %v1229 = vrot.slane %v226, 5
      %v1230 = vsel %vm1125, %v1228, %v1229
      %v1231 = vrot.slane %v1090, 5
      %v1232 = vrot.slane %v1231, 4
      %v1233 = vrot.slane %v203, 5
      %v1234 = vsel %vm1125, %v1232, %v1233
      %v1235 = vrot.slane %v1233, 4
      %v1236 = vrot.slane %v227, 5
      %v1237 = vsel %vm1125, %v1235, %v1236
      %s1238 = scalar_lea.vmem %s1, 64
      %v1239 = vld [vmem:[%s1238] sm:$0xf]
      %v1240 = vld [vmem:[%s1238 + $0x4] sm:$0xf]
      %v1241 = vld [vmem:[%s1238 + $0x8] sm:$0xf]
      %v1242 = vld [vmem:[%s1238 + $0xc] sm:$0xf]
      %v1243 = vld [vmem:[%s1238 + $0x10] sm:$0xf]
      %v1244 = vld [vmem:[%s1238 + $0x14] sm:$0xf]
      %v1245 = vld [vmem:[%s1238 + $0x18] sm:$0xf]
      %v1246 = vld [vmem:[%s1238 + $0x1c] sm:$0xf]
      %v1247 = vunpack.c.l.b16 %v1129
      %v1248 = vunpack.c.l.b16 %v1132
      %v1249 = vunpack.c.l.b16 %v1136
      %v1250 = vunpack.c.l.b16 %v1139
      %v1251 = vunpack.c.l.b16 %v1143
      %v1252 = vunpack.c.l.b16 %v1146
      %v1253 = vunpack.c.l.b16 %v1150
      %v1254 = vunpack.c.l.b16 %v1153
      %v1255 = vunpack.c.l.b16 %v1157
      %v1256 = vunpack.c.l.b16 %v1160
      %v1257 = vunpack.c.l.b16 %v1164
      %v1258 = vunpack.c.l.b16 %v1167
      %v1259 = vunpack.c.l.b16 %v1171
      %v1260 = vunpack.c.l.b16 %v1174
      %v1261 = vunpack.c.l.b16 %v1178
      %v1262 = vunpack.c.l.b16 %v1181
      %v1263 = vunpack.c.l.b16 %v1185
      %v1264 = vunpack.c.l.b16 %v1188
      %v1265 = vunpack.c.l.b16 %v1192
      %v1266 = vunpack.c.l.b16 %v1195
      %v1267 = vunpack.c.l.b16 %v1199
      %v1268 = vunpack.c.l.b16 %v1202
      %v1269 = vunpack.c.l.b16 %v1206
      %v1270 = vunpack.c.l.b16 %v1209
      %v1271 = vunpack.c.l.b16 %v1213
      %v1272 = vunpack.c.l.b16 %v1216
      %v1273 = vunpack.c.l.b16 %v1220
      %v1274 = vunpack.c.l.b16 %v1223
      %v1275 = vunpack.c.l.b16 %v1227
      %v1276 = vunpack.c.l.b16 %v1230
      %v1277 = vunpack.c.l.b16 %v1234
      %v1278 = vunpack.c.l.b16 %v1237
      %v1279 = vpack.c.b16 %v1248, %v1247
      %v1280 = vpack.c.b16 %v1250, %v1249
      %v1281 = vpack.c.b16 %v1252, %v1251
      %v1282 = vpack.c.b16 %v1254, %v1253
      %v1283 = vpack.c.b16 %v1256, %v1255
      %v1284 = vpack.c.b16 %v1258, %v1257
      %v1285 = vpack.c.b16 %v1260, %v1259
      %v1286 = vpack.c.b16 %v1262, %v1261
      %v1287 = vpack.c.b16 %v1264, %v1263
      %v1288 = vpack.c.b16 %v1266, %v1265
      %v1289 = vpack.c.b16 %v1268, %v1267
      %v1290 = vpack.c.b16 %v1270, %v1269
      %v1291 = vpack.c.b16 %v1272, %v1271
      %v1292 = vpack.c.b16 %v1274, %v1273
      %v1293 = vpack.c.b16 %v1276, %v1275
      %v1294 = vpack.c.b16 %v1278, %v1277
      %v1303 = vunpack.c.l.b16 %v1239
      %v1304 = vunpack.c.l.b16 %v1240
      %v1305 = vunpack.c.l.b16 %v1241
      %v1306 = vunpack.c.l.b16 %v1242
      %v1307 = vunpack.c.l.b16 %v1243
      %v1308 = vunpack.c.l.b16 %v1244
      %v1309 = vunpack.c.l.b16 %v1245
      %v1310 = vunpack.c.l.b16 %v1246
      %v1311 = vpack.c.b16 %v1304, %v1303
      %v1312 = vpack.c.b16 %v1306, %v1305
      %v1313 = vpack.c.b16 %v1308, %v1307
      %v1314 = vpack.c.b16 %v1310, %v1309
      %v1320 = vsel %vm696, %v1279, 0
      %v1323 = vsel %vm696, %v1280, 0
      %v1326 = vsel %vm696, %v1281, 0
      %v1329 = vsel %vm696, %v1282, 0
      %v1332 = vsel %vm696, %v1283, 0
      %v1335 = vsel %vm696, %v1284, 0
      %v1338 = vsel %vm696, %v1285, 0
      %v1341 = vsel %vm696, %v1286, 0
      %v1344 = vsel %vm696, %v1287, 0
      %v1347 = vsel %vm696, %v1288, 0
      %v1350 = vsel %vm696, %v1289, 0
      %v1353 = vsel %vm696, %v1290, 0
      %v1356 = vsel %vm696, %v1291, 0
      %v1359 = vsel %vm696, %v1292, 0
      %v1362 = vsel %vm696, %v1293, 0
      %v1365 = vsel %vm696, %v1294, 0
      %1367 = vmatpush.bf16.msra.mxu0 0
      %1368 = vmatpush.bf16.msra.mxu0 0
      %1369 = vmatpush.bf16.msra.mxu0 0
      %1370 = vmatpush.bf16.msra.mxu0 0
      %1371 = vmatpush.bf16.msra.mxu0 %v1314
      %1372 = vmatpush.bf16.msra.mxu0 %v1313
      %1373 = vmatpush.bf16.msra.mxu0 %v1312
      %1374 = vmatpush.bf16.msra.mxu0 %v1311
      %1375 = vmatmul.bf16.gmra.mxu0 %v1320
      %v1376 = vpop.f32.mrf.mxu0
      %v1377 = vadd.f32 0.0, %v1376
      %v1378 = vpop.f32.mrf.mxu0
      %v1379 = vadd.f32 0.0, %v1378
      %1380 = vmatmul.bf16.gmra.mxu0 %v1323
      %v1381 = vpop.f32.mrf.mxu0
      %v1382 = vadd.f32 0.0, %v1381
      %v1383 = vpop.f32.mrf.mxu0
      %v1384 = vadd.f32 0.0, %v1383
      %1385 = vmatmul.bf16.gmra.mxu0 %v1326
      %v1386 = vpop.f32.mrf.mxu0
      %v1387 = vadd.f32 0.0, %v1386
      %v1388 = vpop.f32.mrf.mxu0
      %v1389 = vadd.f32 0.0, %v1388
      %1390 = vmatmul.bf16.gmra.mxu0 %v1329
      %v1391 = vpop.f32.mrf.mxu0
      %v1392 = vadd.f32 0.0, %v1391
      %v1393 = vpop.f32.mrf.mxu0
      %v1394 = vadd.f32 0.0, %v1393
      %1395 = vmatmul.bf16.gmra.mxu0 %v1332
      %v1396 = vpop.f32.mrf.mxu0
      %v1397 = vadd.f32 0.0, %v1396
      %v1398 = vpop.f32.mrf.mxu0
      %v1399 = vadd.f32 0.0, %v1398
      %1400 = vmatmul.bf16.gmra.mxu0 %v1335
      %v1401 = vpop.f32.mrf.mxu0
      %v1402 = vadd.f32 0.0, %v1401
      %v1403 = vpop.f32.mrf.mxu0
      %v1404 = vadd.f32 0.0, %v1403
      %1405 = vmatmul.bf16.gmra.mxu0 %v1338
      %v1406 = vpop.f32.mrf.mxu0
      %v1407 = vadd.f32 0.0, %v1406
      %v1408 = vpop.f32.mrf.mxu0
      %v1409 = vadd.f32 0.0, %v1408
      %1410 = vmatmul.bf16.gmra.mxu0 %v1341
      %v1411 = vpop.f32.mrf.mxu0
      %v1412 = vadd.f32 0.0, %v1411
      %v1413 = vpop.f32.mrf.mxu0
      %v1414 = vadd.f32 0.0, %v1413
      %1415 = vmatmul.bf16.gmra.mxu0 %v1344
      %v1416 = vpop.f32.mrf.mxu0
      %v1417 = vadd.f32 0.0, %v1416
      %v1418 = vpop.f32.mrf.mxu0
      %v1419 = vadd.f32 0.0, %v1418
      %1420 = vmatmul.bf16.gmra.mxu0 %v1347
      %v1421 = vpop.f32.mrf.mxu0
      %v1422 = vadd.f32 0.0, %v1421
      %v1423 = vpop.f32.mrf.mxu0
      %v1424 = vadd.f32 0.0, %v1423
      %1425 = vmatmul.bf16.gmra.mxu0 %v1350
      %v1426 = vpop.f32.mrf.mxu0
      %v1427 = vadd.f32 0.0, %v1426
      %v1428 = vpop.f32.mrf.mxu0
      %v1429 = vadd.f32 0.0, %v1428
      %1430 = vmatmul.bf16.gmra.mxu0 %v1353
      %v1431 = vpop.f32.mrf.mxu0
      %v1432 = vadd.f32 0.0, %v1431
      %v1433 = vpop.f32.mrf.mxu0
      %v1434 = vadd.f32 0.0, %v1433
      %1435 = vmatmul.bf16.gmra.mxu0 %v1356
      %v1436 = vpop.f32.mrf.mxu0
      %v1437 = vadd.f32 0.0, %v1436
      %v1438 = vpop.f32.mrf.mxu0
      %v1439 = vadd.f32 0.0, %v1438
      %1440 = vmatmul.bf16.gmra.mxu0 %v1359
      %v1441 = vpop.f32.mrf.mxu0
      %v1442 = vadd.f32 0.0, %v1441
      %v1443 = vpop.f32.mrf.mxu0
      %v1444 = vadd.f32 0.0, %v1443
      %1445 = vmatmul.bf16.gmra.mxu0 %v1362
      %v1446 = vpop.f32.mrf.mxu0
      %v1447 = vadd.f32 0.0, %v1446
      %v1448 = vpop.f32.mrf.mxu0
      %v1449 = vadd.f32 0.0, %v1448
      %1450 = vmatmul.bf16.gmra.mxu0 %v1365
      %v1451 = vpop.f32.mrf.mxu0
      %v1452 = vadd.f32 0.0, %v1451
      %v1453 = vpop.f32.mrf.mxu0
      %v1454 = vadd.f32 0.0, %v1453
      %1455 = vdwg.mxu0
      %v1456 = vadd.f32 %v996, %v1377
      %v1457 = vadd.f32 %v998, %v1379
      %v1458 = vadd.f32 %v1001, %v1382
      %v1459 = vadd.f32 %v1003, %v1384
      %v1460 = vadd.f32 %v1006, %v1387
      %v1461 = vadd.f32 %v1008, %v1389
      %v1462 = vadd.f32 %v1011, %v1392
      %v1463 = vadd.f32 %v1013, %v1394
      %v1464 = vadd.f32 %v1016, %v1397
      %v1465 = vadd.f32 %v1018, %v1399
      %v1466 = vadd.f32 %v1021, %v1402
      %v1467 = vadd.f32 %v1023, %v1404
      %v1468 = vadd.f32 %v1026, %v1407
      %v1469 = vadd.f32 %v1028, %v1409
      %v1470 = vadd.f32 %v1031, %v1412
      %v1471 = vadd.f32 %v1033, %v1414
      %v1472 = vadd.f32 %v1036, %v1417
      %v1473 = vadd.f32 %v1038, %v1419
      %v1474 = vadd.f32 %v1041, %v1422
      %v1475 = vadd.f32 %v1043, %v1424
      %v1476 = vadd.f32 %v1046, %v1427
      %v1477 = vadd.f32 %v1048, %v1429
      %v1478 = vadd.f32 %v1051, %v1432
      %v1479 = vadd.f32 %v1053, %v1434
      %v1480 = vadd.f32 %v1056, %v1437
      %v1481 = vadd.f32 %v1058, %v1439
      %v1482 = vadd.f32 %v1061, %v1442
      %v1483 = vadd.f32 %v1063, %v1444
      %v1484 = vadd.f32 %v1066, %v1447
      %v1485 = vadd.f32 %v1068, %v1449
      %v1486 = vadd.f32 %v1071, %v1452
      %v1487 = vadd.f32 %v1073, %v1454
      %s1488 = scalar_lea.vmem %s165, 12
      %v1489 = vld [vmem:[%s1488] sm:$0xf]
      %v1490 = vld [vmem:[%s1488 + $0x4] sm:$0xf]
      %v1491 = vld [vmem:[%s1488 + $0xc] sm:$0xf]
      %v1492 = vld [vmem:[%s1488 + $0x10] sm:$0xf]
      %v1493 = vld [vmem:[%s1488 + $0x18] sm:$0xf]
      %v1494 = vld [vmem:[%s1488 + $0x1c] sm:$0xf]
      %v1495 = vld [vmem:[%s1488 + $0x24] sm:$0xf]
      %v1496 = vld [vmem:[%s1488 + $0x28] sm:$0xf]
      %v1497 = vld [vmem:[%s1488 + $0x30] sm:$0xf]
      %v1498 = vld [vmem:[%s1488 + $0x34] sm:$0xf]
      %v1499 = vld [vmem:[%s1488 + $0x3c] sm:$0xf]
      %v1500 = vld [vmem:[%s1488 + $0x40] sm:$0xf]
      %v1501 = vld [vmem:[%s1488 + $0x48] sm:$0xf]
      %v1502 = vld [vmem:[%s1488 + $0x4c] sm:$0xf]
      %v1503 = vld [vmem:[%s1488 + $0x54] sm:$0xf]
      %v1504 = vld [vmem:[%s1488 + $0x58] sm:$0xf]
      %v1505 = vld [vmem:[%s1488 + $0x60] sm:$0xf]
      %v1506 = vld [vmem:[%s1488 + $0x64] sm:$0xf]
      %v1507 = vld [vmem:[%s1488 + $0x6c] sm:$0xf]
      %v1508 = vld [vmem:[%s1488 + $0x70] sm:$0xf]
      %v1509 = vld [vmem:[%s1488 + $0x78] sm:$0xf]
      %v1510 = vld [vmem:[%s1488 + $0x7c] sm:$0xf]
      %v1511 = vld [vmem:[%s1488 + $0x84] sm:$0xf]
      %v1512 = vld [vmem:[%s1488 + $0x88] sm:$0xf]
      %v1513 = vld [vmem:[%s1488 + $0x90] sm:$0xf]
      %v1514 = vld [vmem:[%s1488 + $0x94] sm:$0xf]
      %v1515 = vld [vmem:[%s1488 + $0x9c] sm:$0xf]
      %v1516 = vld [vmem:[%s1488 + $0xa0] sm:$0xf]
      %v1517 = vld [vmem:[%s1488 + $0xa8] sm:$0xf]
      %v1518 = vld [vmem:[%s1488 + $0xac] sm:$0xf]
      %v1519 = vld [vmem:[%s1488 + $0xb4] sm:$0xf]
      %v1520 = vld [vmem:[%s1488 + $0xb8] sm:$0xf]
      %s1521 = scalar_lea.vmem %s1, 96
      %v1522 = vld [vmem:[%s1521] sm:$0xf]
      %v1523 = vld [vmem:[%s1521 + $0x4] sm:$0xf]
      %v1524 = vld [vmem:[%s1521 + $0x8] sm:$0xf]
      %v1525 = vld [vmem:[%s1521 + $0xc] sm:$0xf]
      %v1526 = vld [vmem:[%s1521 + $0x10] sm:$0xf]
      %v1527 = vld [vmem:[%s1521 + $0x14] sm:$0xf]
      %v1528 = vld [vmem:[%s1521 + $0x18] sm:$0xf]
      %v1529 = vld [vmem:[%s1521 + $0x1c] sm:$0xf]
      %v1562 = vunpack.c.l.b16 %v1489
      %v1563 = vunpack.c.l.b16 %v1490
      %v1564 = vunpack.c.l.b16 %v1491
      %v1565 = vunpack.c.l.b16 %v1492
      %v1566 = vunpack.c.l.b16 %v1493
      %v1567 = vunpack.c.l.b16 %v1494
      %v1568 = vunpack.c.l.b16 %v1495
      %v1569 = vunpack.c.l.b16 %v1496
      %v1570 = vunpack.c.l.b16 %v1497
      %v1571 = vunpack.c.l.b16 %v1498
      %v1572 = vunpack.c.l.b16 %v1499
      %v1573 = vunpack.c.l.b16 %v1500
      %v1574 = vunpack.c.l.b16 %v1501
      %v1575 = vunpack.c.l.b16 %v1502
      %v1576 = vunpack.c.l.b16 %v1503
      %v1577 = vunpack.c.l.b16 %v1504
      %v1578 = vunpack.c.l.b16 %v1505
      %v1579 = vunpack.c.l.b16 %v1506
      %v1580 = vunpack.c.l.b16 %v1507
      %v1581 = vunpack.c.l.b16 %v1508
      %v1582 = vunpack.c.l.b16 %v1509
      %v1583 = vunpack.c.l.b16 %v1510
      %v1584 = vunpack.c.l.b16 %v1511
      %v1585 = vunpack.c.l.b16 %v1512
      %v1586 = vunpack.c.l.b16 %v1513
      %v1587 = vunpack.c.l.b16 %v1514
      %v1588 = vunpack.c.l.b16 %v1515
      %v1589 = vunpack.c.l.b16 %v1516
      %v1590 = vunpack.c.l.b16 %v1517
      %v1591 = vunpack.c.l.b16 %v1518
      %v1592 = vunpack.c.l.b16 %v1519
      %v1593 = vunpack.c.l.b16 %v1520
      %v1594 = vpack.c.b16 %v1563, %v1562
      %v1595 = vpack.c.b16 %v1565, %v1564
      %v1596 = vpack.c.b16 %v1567, %v1566
      %v1597 = vpack.c.b16 %v1569, %v1568
      %v1598 = vpack.c.b16 %v1571, %v1570
      %v1599 = vpack.c.b16 %v1573, %v1572
      %v1600 = vpack.c.b16 %v1575, %v1574
      %v1601 = vpack.c.b16 %v1577, %v1576
      %v1602 = vpack.c.b16 %v1579, %v1578
      %v1603 = vpack.c.b16 %v1581, %v1580
      %v1604 = vpack.c.b16 %v1583, %v1582
      %v1605 = vpack.c.b16 %v1585, %v1584
      %v1606 = vpack.c.b16 %v1587, %v1586
      %v1607 = vpack.c.b16 %v1589, %v1588
      %v1608 = vpack.c.b16 %v1591, %v1590
      %v1609 = vpack.c.b16 %v1593, %v1592
      %v1618 = vunpack.c.l.b16 %v1522
      %v1619 = vunpack.c.l.b16 %v1523
      %v1620 = vunpack.c.l.b16 %v1524
      %v1621 = vunpack.c.l.b16 %v1525
      %v1622 = vunpack.c.l.b16 %v1526
      %v1623 = vunpack.c.l.b16 %v1527
      %v1624 = vunpack.c.l.b16 %v1528
      %v1625 = vunpack.c.l.b16 %v1529
      %v1626 = vpack.c.b16 %v1619, %v1618
      %v1627 = vpack.c.b16 %v1621, %v1620
      %v1628 = vpack.c.b16 %v1623, %v1622
      %v1629 = vpack.c.b16 %v1625, %v1624
      %v1635 = vsel %vm696, %v1594, 0
      %v1638 = vsel %vm696, %v1595, 0
      %v1641 = vsel %vm696, %v1596, 0
      %v1644 = vsel %vm696, %v1597, 0
      %v1647 = vsel %vm696, %v1598, 0
      %v1650 = vsel %vm696, %v1599, 0
      %v1653 = vsel %vm696, %v1600, 0
      %v1656 = vsel %vm696, %v1601, 0
      %v1659 = vsel %vm696, %v1602, 0
      %v1662 = vsel %vm696, %v1603, 0
      %v1665 = vsel %vm696, %v1604, 0
      %v1668 = vsel %vm696, %v1605, 0
      %v1671 = vsel %vm696, %v1606, 0
      %v1674 = vsel %vm696, %v1607, 0
      %v1677 = vsel %vm696, %v1608, 0
      %v1680 = vsel %vm696, %v1609, 0
      %1682 = vmatpush.bf16.msra.mxu0 0
      %1683 = vmatpush.bf16.msra.mxu0 0
      %1684 = vmatpush.bf16.msra.mxu0 0
      %1685 = vmatpush.bf16.msra.mxu0 0
      %1686 = vmatpush.bf16.msra.mxu0 %v1629
      %1687 = vmatpush.bf16.msra.mxu0 %v1628
      %1688 = vmatpush.bf16.msra.mxu0 %v1627
      %1689 = vmatpush.bf16.msra.mxu0 %v1626
      %1690 = vmatmul.bf16.gmra.mxu0 %v1635
      %v1691 = vpop.f32.mrf.mxu0
      %v1692 = vadd.f32 0.0, %v1691
      %v1693 = vpop.f32.mrf.mxu0
      %v1694 = vadd.f32 0.0, %v1693
      %1695 = vmatmul.bf16.gmra.mxu0 %v1638
      %v1696 = vpop.f32.mrf.mxu0
      %v1697 = vadd.f32 0.0, %v1696
      %v1698 = vpop.f32.mrf.mxu0
      %v1699 = vadd.f32 0.0, %v1698
      %1700 = vmatmul.bf16.gmra.mxu0 %v1641
      %v1701 = vpop.f32.mrf.mxu0
      %v1702 = vadd.f32 0.0, %v1701
      %v1703 = vpop.f32.mrf.mxu0
      %v1704 = vadd.f32 0.0, %v1703
      %1705 = vmatmul.bf16.gmra.mxu0 %v1644
      %v1706 = vpop.f32.mrf.mxu0
      %v1707 = vadd.f32 0.0, %v1706
      %v1708 = vpop.f32.mrf.mxu0
      %v1709 = vadd.f32 0.0, %v1708
      %1710 = vmatmul.bf16.gmra.mxu0 %v1647
      %v1711 = vpop.f32.mrf.mxu0
      %v1712 = vadd.f32 0.0, %v1711
      %v1713 = vpop.f32.mrf.mxu0
      %v1714 = vadd.f32 0.0, %v1713
      %1715 = vmatmul.bf16.gmra.mxu0 %v1650
      %v1716 = vpop.f32.mrf.mxu0
      %v1717 = vadd.f32 0.0, %v1716
      %v1718 = vpop.f32.mrf.mxu0
      %v1719 = vadd.f32 0.0, %v1718
      %1720 = vmatmul.bf16.gmra.mxu0 %v1653
      %v1721 = vpop.f32.mrf.mxu0
      %v1722 = vadd.f32 0.0, %v1721
      %v1723 = vpop.f32.mrf.mxu0
      %v1724 = vadd.f32 0.0, %v1723
      %1725 = vmatmul.bf16.gmra.mxu0 %v1656
      %v1726 = vpop.f32.mrf.mxu0
      %v1727 = vadd.f32 0.0, %v1726
      %v1728 = vpop.f32.mrf.mxu0
      %v1729 = vadd.f32 0.0, %v1728
      %1730 = vmatmul.bf16.gmra.mxu0 %v1659
      %v1731 = vpop.f32.mrf.mxu0
      %v1732 = vadd.f32 0.0, %v1731
      %v1733 = vpop.f32.mrf.mxu0
      %v1734 = vadd.f32 0.0, %v1733
      %1735 = vmatmul.bf16.gmra.mxu0 %v1662
      %v1736 = vpop.f32.mrf.mxu0
      %v1737 = vadd.f32 0.0, %v1736
      %v1738 = vpop.f32.mrf.mxu0
      %v1739 = vadd.f32 0.0, %v1738
      %1740 = vmatmul.bf16.gmra.mxu0 %v1665
      %v1741 = vpop.f32.mrf.mxu0
      %v1742 = vadd.f32 0.0, %v1741
      %v1743 = vpop.f32.mrf.mxu0
      %v1744 = vadd.f32 0.0, %v1743
      %1745 = vmatmul.bf16.gmra.mxu0 %v1668
      %v1746 = vpop.f32.mrf.mxu0
      %v1747 = vadd.f32 0.0, %v1746
      %v1748 = vpop.f32.mrf.mxu0
      %v1749 = vadd.f32 0.0, %v1748
      %1750 = vmatmul.bf16.gmra.mxu0 %v1671
      %v1751 = vpop.f32.mrf.mxu0
      %v1752 = vadd.f32 0.0, %v1751
      %v1753 = vpop.f32.mrf.mxu0
      %v1754 = vadd.f32 0.0, %v1753
      %1755 = vmatmul.bf16.gmra.mxu0 %v1674
      %v1756 = vpop.f32.mrf.mxu0
      %v1757 = vadd.f32 0.0, %v1756
      %v1758 = vpop.f32.mrf.mxu0
      %v1759 = vadd.f32 0.0, %v1758
      %1760 = vmatmul.bf16.gmra.mxu0 %v1677
      %v1761 = vpop.f32.mrf.mxu0
      %v1762 = vadd.f32 0.0, %v1761
      %v1763 = vpop.f32.mrf.mxu0
      %v1764 = vadd.f32 0.0, %v1763
      %1765 = vmatmul.bf16.gmra.mxu0 %v1680
      %v1766 = vpop.f32.mrf.mxu0
      %v1767 = vadd.f32 0.0, %v1766
      %v1768 = vpop.f32.mrf.mxu0
      %v1769 = vadd.f32 0.0, %v1768
      %1770 = vdwg.mxu0
      %v1771 = vadd.f32 %v1456, %v1692
      %v1772 = vadd.f32 %v1457, %v1694
      %v1773 = vadd.f32 %v1458, %v1697
      %v1774 = vadd.f32 %v1459, %v1699
      %v1775 = vadd.f32 %v1460, %v1702
      %v1776 = vadd.f32 %v1461, %v1704
      %v1777 = vadd.f32 %v1462, %v1707
      %v1778 = vadd.f32 %v1463, %v1709
      %v1779 = vadd.f32 %v1464, %v1712
      %v1780 = vadd.f32 %v1465, %v1714
      %v1781 = vadd.f32 %v1466, %v1717
      %v1782 = vadd.f32 %v1467, %v1719
      %v1783 = vadd.f32 %v1468, %v1722
      %v1784 = vadd.f32 %v1469, %v1724
      %v1785 = vadd.f32 %v1470, %v1727
      %v1786 = vadd.f32 %v1471, %v1729
      %v1787 = vadd.f32 %v1472, %v1732
      %v1788 = vadd.f32 %v1473, %v1734
      %v1789 = vadd.f32 %v1474, %v1737
      %v1790 = vadd.f32 %v1475, %v1739
      %v1791 = vadd.f32 %v1476, %v1742
      %v1792 = vadd.f32 %v1477, %v1744
      %v1793 = vadd.f32 %v1478, %v1747
      %v1794 = vadd.f32 %v1479, %v1749
      %v1795 = vadd.f32 %v1480, %v1752
      %v1796 = vadd.f32 %v1481, %v1754
      %v1797 = vadd.f32 %v1482, %v1757
      %v1798 = vadd.f32 %v1483, %v1759
      %v1799 = vadd.f32 %v1484, %v1762
      %v1800 = vadd.f32 %v1485, %v1764
      %v1801 = vadd.f32 %v1486, %v1767
      %v1802 = vadd.f32 %v1487, %v1769
      %v1803 = vld [vmem:[%s1488] sm:$0xf]
      %v1804 = vld [vmem:[%s1488 + $0x4] sm:$0xf]
      %v1805 = vld [vmem:[%s1488 + $0x8] sm:$0x1]
      %v1806 = vld [vmem:[%s1488 + $0xc] sm:$0xf]
      %v1807 = vld [vmem:[%s1488 + $0x10] sm:$0xf]
      %v1808 = vld [vmem:[%s1488 + $0x14] sm:$0x1]
      %v1809 = vld [vmem:[%s1488 + $0x18] sm:$0xf]
      %v1810 = vld [vmem:[%s1488 + $0x1c] sm:$0xf]
      %v1811 = vld [vmem:[%s1488 + $0x20] sm:$0x1]
      %v1812 = vld [vmem:[%s1488 + $0x24] sm:$0xf]
      %v1813 = vld [vmem:[%s1488 + $0x28] sm:$0xf]
      %v1814 = vld [vmem:[%s1488 + $0x2c] sm:$0x1]
      %v1815 = vld [vmem:[%s1488 + $0x30] sm:$0xf]
      %v1816 = vld [vmem:[%s1488 + $0x34] sm:$0xf]
      %v1817 = vld [vmem:[%s1488 + $0x38] sm:$0x1]
      %v1818 = vld [vmem:[%s1488 + $0x3c] sm:$0xf]
      %v1819 = vld [vmem:[%s1488 + $0x40] sm:$0xf]
      %v1820 = vld [vmem:[%s1488 + $0x44] sm:$0x1]
      %v1821 = vld [vmem:[%s1488 + $0x48] sm:$0xf]
      %v1822 = vld [vmem:[%s1488 + $0x4c] sm:$0xf]
      %v1823 = vld [vmem:[%s1488 + $0x50] sm:$0x1]
      %v1824 = vld [vmem:[%s1488 + $0x54] sm:$0xf]
      %v1825 = vld [vmem:[%s1488 + $0x58] sm:$0xf]
      %v1826 = vld [vmem:[%s1488 + $0x5c] sm:$0x1]
      %v1827 = vld [vmem:[%s1488 + $0x60] sm:$0xf]
      %v1828 = vld [vmem:[%s1488 + $0x64] sm:$0xf]
      %v1829 = vld [vmem:[%s1488 + $0x68] sm:$0x1]
      %v1830 = vld [vmem:[%s1488 + $0x6c] sm:$0xf]
      %v1831 = vld [vmem:[%s1488 + $0x70] sm:$0xf]
      %v1832 = vld [vmem:[%s1488 + $0x74] sm:$0x1]
      %v1833 = vld [vmem:[%s1488 + $0x78] sm:$0xf]
      %v1834 = vld [vmem:[%s1488 + $0x7c] sm:$0xf]
      %v1835 = vld [vmem:[%s1488 + $0x80] sm:$0x1]
      %v1836 = vld [vmem:[%s1488 + $0x84] sm:$0xf]
      %v1837 = vld [vmem:[%s1488 + $0x88] sm:$0xf]
      %v1838 = vld [vmem:[%s1488 + $0x8c] sm:$0x1]
      %v1839 = vld [vmem:[%s1488 + $0x90] sm:$0xf]
      %v1840 = vld [vmem:[%s1488 + $0x94] sm:$0xf]
      %v1841 = vld [vmem:[%s1488 + $0x98] sm:$0x1]
      %v1842 = vld [vmem:[%s1488 + $0x9c] sm:$0xf]
      %v1843 = vld [vmem:[%s1488 + $0xa0] sm:$0xf]
      %v1844 = vld [vmem:[%s1488 + $0xa4] sm:$0x1]
      %v1845 = vld [vmem:[%s1488 + $0xa8] sm:$0xf]
      %v1846 = vld [vmem:[%s1488 + $0xac] sm:$0xf]
      %v1847 = vld [vmem:[%s1488 + $0xb0] sm:$0x1]
      %v1848 = vld [vmem:[%s1488 + $0xb4] sm:$0xf]
      %v1849 = vld [vmem:[%s1488 + $0xb8] sm:$0xf]
      %v1850 = vld [vmem:[%s1488 + $0xbc] sm:$0x1]
      %v1852 = vshrl.u32 %v1803, 16
      %v1854 = vrot.slane %v1852, 4
      %v1855 = vshll.u32 %v1803, 16
      %v1857 = vrot.slane %v1855, 5
      %v1858 = vor.u32 %v1854, %v1857
      %v1859 = vrot.slane %v1858, 4
      %v1861 = vshll.u32 %v1804, 16
      %v1863 = vrot.slane %v1861, 5
      %v1864 = vsel %vm230, %v1859, %v1863
      %v1865 = vshrl.u32 %v1804, 16
      %v1867 = vrot.slane %v1865, 4
      %v1868 = vor.u32 %v1867, %v1863
      %v1869 = vrot.slane %v1868, 4
      %v1871 = vshll.u32 %v1805, 16
      %v1873 = vrot.slane %v1871, 5
      %v1874 = vsel %vm230, %v1869, %v1873
      %v1876 = vshrl.u32 %v1806, 16
      %v1878 = vrot.slane %v1876, 4
      %v1879 = vshll.u32 %v1806, 16
      %v1881 = vrot.slane %v1879, 5
      %v1882 = vor.u32 %v1878, %v1881
      %v1883 = vrot.slane %v1882, 4
      %v1885 = vshll.u32 %v1807, 16
      %v1887 = vrot.slane %v1885, 5
      %v1888 = vsel %vm230, %v1883, %v1887
      %v1889 = vshrl.u32 %v1807, 16
      %v1891 = vrot.slane %v1889, 4
      %v1892 = vor.u32 %v1891, %v1887
      %v1893 = vrot.slane %v1892, 4
      %v1895 = vshll.u32 %v1808, 16
      %v1897 = vrot.slane %v1895, 5
      %v1898 = vsel %vm230, %v1893, %v1897
      %v1900 = vshrl.u32 %v1809, 16
      %v1902 = vrot.slane %v1900, 4
      %v1903 = vshll.u32 %v1809, 16
      %v1905 = vrot.slane %v1903, 5
      %v1906 = vor.u32 %v1902, %v1905
      %v1907 = vrot.slane %v1906, 4
      %v1909 = vshll.u32 %v1810, 16
      %v1911 = vrot.slane %v1909, 5
      %v1912 = vsel %vm230, %v1907, %v1911
      %v1913 = vshrl.u32 %v1810, 16
      %v1915 = vrot.slane %v1913, 4
      %v1916 = vor.u32 %v1915, %v1911
      %v1917 = vrot.slane %v1916, 4
      %v1919 = vshll.u32 %v1811, 16
      %v1921 = vrot.slane %v1919, 5
      %v1922 = vsel %vm230, %v1917, %v1921
      %v1924 = vshrl.u32 %v1812, 16
      %v1926 = vrot.slane %v1924, 4
      %v1927 = vshll.u32 %v1812, 16
      %v1929 = vrot.slane %v1927, 5
      %v1930 = vor.u32 %v1926, %v1929
      %v1931 = vrot.slane %v1930, 4
      %v1933 = vshll.u32 %v1813, 16
      %v1935 = vrot.slane %v1933, 5
      %v1936 = vsel %vm230, %v1931, %v1935
      %v1937 = vshrl.u32 %v1813, 16
      %v1939 = vrot.slane %v1937, 4
      %v1940 = vor.u32 %v1939, %v1935
      %v1941 = vrot.slane %v1940, 4
      %v1943 = vshll.u32 %v1814, 16
      %v1945 = vrot.slane %v1943, 5
      %v1946 = vsel %vm230, %v1941, %v1945
      %v1948 = vshrl.u32 %v1815, 16
      %v1950 = vrot.slane %v1948, 4
      %v1951 = vshll.u32 %v1815, 16
      %v1953 = vrot.slane %v1951, 5
      %v1954 = vor.u32 %v1950, %v1953
      %v1955 = vrot.slane %v1954, 4
      %v1957 = vshll.u32 %v1816, 16
      %v1959 = vrot.slane %v1957, 5
      %v1960 = vsel %vm230, %v1955, %v1959
      %v1961 = vshrl.u32 %v1816, 16
      %v1963 = vrot.slane %v1961, 4
      %v1964 = vor.u32 %v1963, %v1959
      %v1965 = vrot.slane %v1964, 4
      %v1967 = vshll.u32 %v1817, 16
      %v1969 = vrot.slane %v1967, 5
      %v1970 = vsel %vm230, %v1965, %v1969
      %v1972 = vshrl.u32 %v1818, 16
      %v1974 = vrot.slane %v1972, 4
      %v1975 = vshll.u32 %v1818, 16
      %v1977 = vrot.slane %v1975, 5
      %v1978 = vor.u32 %v1974, %v1977
      %v1979 = vrot.slane %v1978, 4
      %v1981 = vshll.u32 %v1819, 16
      %v1983 = vrot.slane %v1981, 5
      %v1984 = vsel %vm230, %v1979, %v1983
      %v1985 = vshrl.u32 %v1819, 16
      %v1987 = vrot.slane %v1985, 4
      %v1988 = vor.u32 %v1987, %v1983
      %v1989 = vrot.slane %v1988, 4
      %v1991 = vshll.u32 %v1820, 16
      %v1993 = vrot.slane %v1991, 5
      %v1994 = vsel %vm230, %v1989, %v1993
      %v1996 = vshrl.u32 %v1821, 16
      %v1998 = vrot.slane %v1996, 4
      %v1999 = vshll.u32 %v1821, 16
      %v2001 = vrot.slane %v1999, 5
      %v2002 = vor.u32 %v1998, %v2001
      %v2003 = vrot.slane %v2002, 4
      %v2005 = vshll.u32 %v1822, 16
      %v2007 = vrot.slane %v2005, 5
      %v2008 = vsel %vm230, %v2003, %v2007
      %v2009 = vshrl.u32 %v1822, 16
      %v2011 = vrot.slane %v2009, 4
      %v2012 = vor.u32 %v2011, %v2007
      %v2013 = vrot.slane %v2012, 4
      %v2015 = vshll.u32 %v1823, 16
      %v2017 = vrot.slane %v2015, 5
      %v2018 = vsel %vm230, %v2013, %v2017
      %v2020 = vshrl.u32 %v1824, 16
      %v2022 = vrot.slane %v2020, 4
      %v2023 = vshll.u32 %v1824, 16
      %v2025 = vrot.slane %v2023, 5
      %v2026 = vor.u32 %v2022, %v2025
      %v2027 = vrot.slane %v2026, 4
      %v2029 = vshll.u32 %v1825, 16
      %v2031 = vrot.slane %v2029, 5
      %v2032 = vsel %vm230, %v2027, %v2031
      %v2033 = vshrl.u32 %v1825, 16
      %v2035 = vrot.slane %v2033, 4
      %v2036 = vor.u32 %v2035, %v2031
      %v2037 = vrot.slane %v2036, 4
      %v2039 = vshll.u32 %v1826, 16
      %v2041 = vrot.slane %v2039, 5
      %v2042 = vsel %vm230, %v2037, %v2041
      %v2044 = vshrl.u32 %v1827, 16
      %v2046 = vrot.slane %v2044, 4
      %v2047 = vshll.u32 %v1827, 16
      %v2049 = vrot.slane %v2047, 5
      %v2050 = vor.u32 %v2046, %v2049
      %v2051 = vrot.slane %v2050, 4
      %v2053 = vshll.u32 %v1828, 16
      %v2055 = vrot.slane %v2053, 5
      %v2056 = vsel %vm230, %v2051, %v2055
      %v2057 = vshrl.u32 %v1828, 16
      %v2059 = vrot.slane %v2057, 4
      %v2060 = vor.u32 %v2059, %v2055
      %v2061 = vrot.slane %v2060, 4
      %v2063 = vshll.u32 %v1829, 16
      %v2065 = vrot.slane %v2063, 5
      %v2066 = vsel %vm230, %v2061, %v2065
      %v2068 = vshrl.u32 %v1830, 16
      %v2070 = vrot.slane %v2068, 4
      %v2071 = vshll.u32 %v1830, 16
      %v2073 = vrot.slane %v2071, 5
      %v2074 = vor.u32 %v2070, %v2073
      %v2075 = vrot.slane %v2074, 4
      %v2077 = vshll.u32 %v1831, 16
      %v2079 = vrot.slane %v2077, 5
      %v2080 = vsel %vm230, %v2075, %v2079
      %v2081 = vshrl.u32 %v1831, 16
      %v2083 = vrot.slane %v2081, 4
      %v2084 = vor.u32 %v2083, %v2079
      %v2085 = vrot.slane %v2084, 4
      %v2087 = vshll.u32 %v1832, 16
      %v2089 = vrot.slane %v2087, 5
      %v2090 = vsel %vm230, %v2085, %v2089
      %v2092 = vshrl.u32 %v1833, 16
      %v2094 = vrot.slane %v2092, 4
      %v2095 = vshll.u32 %v1833, 16
      %v2097 = vrot.slane %v2095, 5
      %v2098 = vor.u32 %v2094, %v2097
      %v2099 = vrot.slane %v2098, 4
      %v2101 = vshll.u32 %v1834, 16
      %v2103 = vrot.slane %v2101, 5
      %v2104 = vsel %vm230, %v2099, %v2103
      %v2105 = vshrl.u32 %v1834, 16
      %v2107 = vrot.slane %v2105, 4
      %v2108 = vor.u32 %v2107, %v2103
      %v2109 = vrot.slane %v2108, 4
      %v2111 = vshll.u32 %v1835, 16
      %v2113 = vrot.slane %v2111, 5
      %v2114 = vsel %vm230, %v2109, %v2113
      %v2116 = vshrl.u32 %v1836, 16
      %v2118 = vrot.slane %v2116, 4
      %v2119 = vshll.u32 %v1836, 16
      %v2121 = vrot.slane %v2119, 5
      %v2122 = vor.u32 %v2118, %v2121
      %v2123 = vrot.slane %v2122, 4
      %v2125 = vshll.u32 %v1837, 16
      %v2127 = vrot.slane %v2125, 5
      %v2128 = vsel %vm230, %v2123, %v2127
      %v2129 = vshrl.u32 %v1837, 16
      %v2131 = vrot.slane %v2129, 4
      %v2132 = vor.u32 %v2131, %v2127
      %v2133 = vrot.slane %v2132, 4
      %v2135 = vshll.u32 %v1838, 16
      %v2137 = vrot.slane %v2135, 5
      %v2138 = vsel %vm230, %v2133, %v2137
      %v2140 = vshrl.u32 %v1839, 16
      %v2142 = vrot.slane %v2140, 4
      %v2143 = vshll.u32 %v1839, 16
      %v2145 = vrot.slane %v2143, 5
      %v2146 = vor.u32 %v2142, %v2145
      %v2147 = vrot.slane %v2146, 4
      %v2149 = vshll.u32 %v1840, 16
      %v2151 = vrot.slane %v2149, 5
      %v2152 = vsel %vm230, %v2147, %v2151
      %v2153 = vshrl.u32 %v1840, 16
      %v2155 = vrot.slane %v2153, 4
      %v2156 = vor.u32 %v2155, %v2151
      %v2157 = vrot.slane %v2156, 4
      %v2159 = vshll.u32 %v1841, 16
      %v2161 = vrot.slane %v2159, 5
      %v2162 = vsel %vm230, %v2157, %v2161
      %v2164 = vshrl.u32 %v1842, 16
      %v2166 = vrot.slane %v2164, 4
      %v2167 = vshll.u32 %v1842, 16
      %v2169 = vrot.slane %v2167, 5
      %v2170 = vor.u32 %v2166, %v2169
      %v2171 = vrot.slane %v2170, 4
      %v2173 = vshll.u32 %v1843, 16
      %v2175 = vrot.slane %v2173, 5
      %v2176 = vsel %vm230, %v2171, %v2175
      %v2177 = vshrl.u32 %v1843, 16
      %v2179 = vrot.slane %v2177, 4
      %v2180 = vor.u32 %v2179, %v2175
      %v2181 = vrot.slane %v2180, 4
      %v2183 = vshll.u32 %v1844, 16
      %v2185 = vrot.slane %v2183, 5
      %v2186 = vsel %vm230, %v2181, %v2185
      %v2188 = vshrl.u32 %v1845, 16
      %v2190 = vrot.slane %v2188, 4
      %v2191 = vshll.u32 %v1845, 16
      %v2193 = vrot.slane %v2191, 5
      %v2194 = vor.u32 %v2190, %v2193
      %v2195 = vrot.slane %v2194, 4
      %v2197 = vshll.u32 %v1846, 16
      %v2199 = vrot.slane %v2197, 5
      %v2200 = vsel %vm230, %v2195, %v2199
      %v2201 = vshrl.u32 %v1846, 16
      %v2203 = vrot.slane %v2201, 4
      %v2204 = vor.u32 %v2203, %v2199
      %v2205 = vrot.slane %v2204, 4
      %v2207 = vshll.u32 %v1847, 16
      %v2209 = vrot.slane %v2207, 5
      %v2210 = vsel %vm230, %v2205, %v2209
      %v2212 = vshrl.u32 %v1848, 16
      %v2214 = vrot.slane %v2212, 4
      %v2215 = vshll.u32 %v1848, 16
      %v2217 = vrot.slane %v2215, 5
      %v2218 = vor.u32 %v2214, %v2217
      %v2219 = vrot.slane %v2218, 4
      %v2221 = vshll.u32 %v1849, 16
      %v2223 = vrot.slane %v2221, 5
      %v2224 = vsel %vm230, %v2219, %v2223
      %v2225 = vshrl.u32 %v1849, 16
      %v2227 = vrot.slane %v2225, 4
      %v2228 = vor.u32 %v2227, %v2223
      %v2229 = vrot.slane %v2228, 4
      %v2231 = vshll.u32 %v1850, 16
      %v2233 = vrot.slane %v2231, 5
      %v2234 = vsel %vm230, %v2229, %v2233
      %s2235 = scalar_lea.vmem %s1, 128
      %v2236 = vld [vmem:[%s2235] sm:$0xf]
      %v2237 = vld [vmem:[%s2235 + $0x4] sm:$0xf]
      %v2238 = vld [vmem:[%s2235 + $0x8] sm:$0xf]
      %v2239 = vld [vmem:[%s2235 + $0xc] sm:$0xf]
      %v2240 = vld [vmem:[%s2235 + $0x10] sm:$0xf]
      %v2241 = vld [vmem:[%s2235 + $0x14] sm:$0xf]
      %v2242 = vld [vmem:[%s2235 + $0x18] sm:$0xf]
      %v2243 = vld [vmem:[%s2235 + $0x1c] sm:$0xf]
      %v2244 = vunpack.c.l.b16 %v1864
      %v2245 = vunpack.c.l.b16 %v1874
      %v2246 = vunpack.c.l.b16 %v1888
      %v2247 = vunpack.c.l.b16 %v1898
      %v2248 = vunpack.c.l.b16 %v1912
      %v2249 = vunpack.c.l.b16 %v1922
      %v2250 = vunpack.c.l.b16 %v1936
      %v2251 = vunpack.c.l.b16 %v1946
      %v2252 = vunpack.c.l.b16 %v1960
      %v2253 = vunpack.c.l.b16 %v1970
      %v2254 = vunpack.c.l.b16 %v1984
      %v2255 = vunpack.c.l.b16 %v1994
      %v2256 = vunpack.c.l.b16 %v2008
      %v2257 = vunpack.c.l.b16 %v2018
      %v2258 = vunpack.c.l.b16 %v2032
      %v2259 = vunpack.c.l.b16 %v2042
      %v2260 = vunpack.c.l.b16 %v2056
      %v2261 = vunpack.c.l.b16 %v2066
      %v2262 = vunpack.c.l.b16 %v2080
      %v2263 = vunpack.c.l.b16 %v2090
      %v2264 = vunpack.c.l.b16 %v2104
      %v2265 = vunpack.c.l.b16 %v2114
      %v2266 = vunpack.c.l.b16 %v2128
      %v2267 = vunpack.c.l.b16 %v2138
      %v2268 = vunpack.c.l.b16 %v2152
      %v2269 = vunpack.c.l.b16 %v2162
      %v2270 = vunpack.c.l.b16 %v2176
      %v2271 = vunpack.c.l.b16 %v2186
      %v2272 = vunpack.c.l.b16 %v2200
      %v2273 = vunpack.c.l.b16 %v2210
      %v2274 = vunpack.c.l.b16 %v2224
      %v2275 = vunpack.c.l.b16 %v2234
      %v2276 = vpack.c.b16 %v2245, %v2244
      %v2277 = vpack.c.b16 %v2247, %v2246
      %v2278 = vpack.c.b16 %v2249, %v2248
      %v2279 = vpack.c.b16 %v2251, %v2250
      %v2280 = vpack.c.b16 %v2253, %v2252
      %v2281 = vpack.c.b16 %v2255, %v2254
      %v2282 = vpack.c.b16 %v2257, %v2256
      %v2283 = vpack.c.b16 %v2259, %v2258
      %v2284 = vpack.c.b16 %v2261, %v2260
      %v2285 = vpack.c.b16 %v2263, %v2262
      %v2286 = vpack.c.b16 %v2265, %v2264
      %v2287 = vpack.c.b16 %v2267, %v2266
      %v2288 = vpack.c.b16 %v2269, %v2268
      %v2289 = vpack.c.b16 %v2271, %v2270
      %v2290 = vpack.c.b16 %v2273, %v2272
      %v2291 = vpack.c.b16 %v2275, %v2274
      %v2300 = vunpack.c.l.b16 %v2236
      %v2301 = vunpack.c.l.b16 %v2237
      %v2302 = vunpack.c.l.b16 %v2238
      %v2303 = vunpack.c.l.b16 %v2239
      %v2304 = vunpack.c.l.b16 %v2240
      %v2305 = vunpack.c.l.b16 %v2241
      %v2306 = vunpack.c.l.b16 %v2242
      %v2307 = vunpack.c.l.b16 %v2243
      %v2308 = vpack.c.b16 %v2301, %v2300
      %v2309 = vpack.c.b16 %v2303, %v2302
      %v2310 = vpack.c.b16 %v2305, %v2304
      %v2311 = vpack.c.b16 %v2307, %v2306
      %v2317 = vsel %vm696, %v2276, 0
      %v2320 = vsel %vm696, %v2277, 0
      %v2323 = vsel %vm696, %v2278, 0
      %v2326 = vsel %vm696, %v2279, 0
      %v2329 = vsel %vm696, %v2280, 0
      %v2332 = vsel %vm696, %v2281, 0
      %v2335 = vsel %vm696, %v2282, 0
      %v2338 = vsel %vm696, %v2283, 0
      %v2341 = vsel %vm696, %v2284, 0
      %v2344 = vsel %vm696, %v2285, 0
      %v2347 = vsel %vm696, %v2286, 0
      %v2350 = vsel %vm696, %v2287, 0
      %v2353 = vsel %vm696, %v2288, 0
      %v2356 = vsel %vm696, %v2289, 0
      %v2359 = vsel %vm696, %v2290, 0
      %v2362 = vsel %vm696, %v2291, 0
      %2364 = vmatpush.bf16.msra.mxu0 0
      %2365 = vmatpush.bf16.msra.mxu0 0
      %2366 = vmatpush.bf16.msra.mxu0 0
      %2367 = vmatpush.bf16.msra.mxu0 0
      %2368 = vmatpush.bf16.msra.mxu0 %v2311
      %2369 = vmatpush.bf16.msra.mxu0 %v2310
      %2370 = vmatpush.bf16.msra.mxu0 %v2309
      %2371 = vmatpush.bf16.msra.mxu0 %v2308
      %2372 = vmatmul.bf16.gmra.mxu0 %v2317
      %v2373 = vpop.f32.mrf.mxu0
      %v2374 = vadd.f32 0.0, %v2373
      %v2375 = vpop.f32.mrf.mxu0
      %v2376 = vadd.f32 0.0, %v2375
      %2377 = vmatmul.bf16.gmra.mxu0 %v2320
      %v2378 = vpop.f32.mrf.mxu0
      %v2379 = vadd.f32 0.0, %v2378
      %v2380 = vpop.f32.mrf.mxu0
      %v2381 = vadd.f32 0.0, %v2380
      %2382 = vmatmul.bf16.gmra.mxu0 %v2323
      %v2383 = vpop.f32.mrf.mxu0
      %v2384 = vadd.f32 0.0, %v2383
      %v2385 = vpop.f32.mrf.mxu0
      %v2386 = vadd.f32 0.0, %v2385
      %2387 = vmatmul.bf16.gmra.mxu0 %v2326
      %v2388 = vpop.f32.mrf.mxu0
      %v2389 = vadd.f32 0.0, %v2388
      %v2390 = vpop.f32.mrf.mxu0
      %v2391 = vadd.f32 0.0, %v2390
      %2392 = vmatmul.bf16.gmra.mxu0 %v2329
      %v2393 = vpop.f32.mrf.mxu0
      %v2394 = vadd.f32 0.0, %v2393
      %v2395 = vpop.f32.mrf.mxu0
      %v2396 = vadd.f32 0.0, %v2395
      %2397 = vmatmul.bf16.gmra.mxu0 %v2332
      %v2398 = vpop.f32.mrf.mxu0
      %v2399 = vadd.f32 0.0, %v2398
      %v2400 = vpop.f32.mrf.mxu0
      %v2401 = vadd.f32 0.0, %v2400
      %2402 = vmatmul.bf16.gmra.mxu0 %v2335
      %v2403 = vpop.f32.mrf.mxu0
      %v2404 = vadd.f32 0.0, %v2403
      %v2405 = vpop.f32.mrf.mxu0
      %v2406 = vadd.f32 0.0, %v2405
      %2407 = vmatmul.bf16.gmra.mxu0 %v2338
      %v2408 = vpop.f32.mrf.mxu0
      %v2409 = vadd.f32 0.0, %v2408
      %v2410 = vpop.f32.mrf.mxu0
      %v2411 = vadd.f32 0.0, %v2410
      %2412 = vmatmul.bf16.gmra.mxu0 %v2341
      %v2413 = vpop.f32.mrf.mxu0
      %v2414 = vadd.f32 0.0, %v2413
      %v2415 = vpop.f32.mrf.mxu0
      %v2416 = vadd.f32 0.0, %v2415
      %2417 = vmatmul.bf16.gmra.mxu0 %v2344
      %v2418 = vpop.f32.mrf.mxu0
      %v2419 = vadd.f32 0.0, %v2418
      %v2420 = vpop.f32.mrf.mxu0
      %v2421 = vadd.f32 0.0, %v2420
      %2422 = vmatmul.bf16.gmra.mxu0 %v2347
      %v2423 = vpop.f32.mrf.mxu0
      %v2424 = vadd.f32 0.0, %v2423
      %v2425 = vpop.f32.mrf.mxu0
      %v2426 = vadd.f32 0.0, %v2425
      %2427 = vmatmul.bf16.gmra.mxu0 %v2350
      %v2428 = vpop.f32.mrf.mxu0
      %v2429 = vadd.f32 0.0, %v2428
      %v2430 = vpop.f32.mrf.mxu0
      %v2431 = vadd.f32 0.0, %v2430
      %2432 = vmatmul.bf16.gmra.mxu0 %v2353
      %v2433 = vpop.f32.mrf.mxu0
      %v2434 = vadd.f32 0.0, %v2433
      %v2435 = vpop.f32.mrf.mxu0
      %v2436 = vadd.f32 0.0, %v2435
      %2437 = vmatmul.bf16.gmra.mxu0 %v2356
      %v2438 = vpop.f32.mrf.mxu0
      %v2439 = vadd.f32 0.0, %v2438
      %v2440 = vpop.f32.mrf.mxu0
      %v2441 = vadd.f32 0.0, %v2440
      %2442 = vmatmul.bf16.gmra.mxu0 %v2359
      %v2443 = vpop.f32.mrf.mxu0
      %v2444 = vadd.f32 0.0, %v2443
      %v2445 = vpop.f32.mrf.mxu0
      %v2446 = vadd.f32 0.0, %v2445
      %2447 = vmatmul.bf16.gmra.mxu0 %v2362
      %v2448 = vpop.f32.mrf.mxu0
      %v2449 = vadd.f32 0.0, %v2448
      %v2450 = vpop.f32.mrf.mxu0
      %v2451 = vadd.f32 0.0, %v2450
      %2452 = vdwg.mxu0
      %v2453 = vadd.f32 %v1771, %v2374
      %v2454 = vadd.f32 %v1772, %v2376
      %v2455 = vadd.f32 %v1773, %v2379
      %v2456 = vadd.f32 %v1774, %v2381
      %v2457 = vadd.f32 %v1775, %v2384
      %v2458 = vadd.f32 %v1776, %v2386
      %v2459 = vadd.f32 %v1777, %v2389
      %v2460 = vadd.f32 %v1778, %v2391
      %v2461 = vadd.f32 %v1779, %v2394
      %v2462 = vadd.f32 %v1780, %v2396
      %v2463 = vadd.f32 %v1781, %v2399
      %v2464 = vadd.f32 %v1782, %v2401
      %v2465 = vadd.f32 %v1783, %v2404
      %v2466 = vadd.f32 %v1784, %v2406
      %v2467 = vadd.f32 %v1785, %v2409
      %v2468 = vadd.f32 %v1786, %v2411
      %v2469 = vadd.f32 %v1787, %v2414
      %v2470 = vadd.f32 %v1788, %v2416
      %v2471 = vadd.f32 %v1789, %v2419
      %v2472 = vadd.f32 %v1790, %v2421
      %v2473 = vadd.f32 %v1791, %v2424
      %v2474 = vadd.f32 %v1792, %v2426
      %v2475 = vadd.f32 %v1793, %v2429
      %v2476 = vadd.f32 %v1794, %v2431
      %v2477 = vadd.f32 %v1795, %v2434
      %v2478 = vadd.f32 %v1796, %v2436
      %v2479 = vadd.f32 %v1797, %v2439
      %v2480 = vadd.f32 %v1798, %v2441
      %v2481 = vadd.f32 %v1799, %v2444
      %v2482 = vadd.f32 %v1800, %v2446
      %v2483 = vadd.f32 %v1801, %v2449
      %v2484 = vadd.f32 %v1802, %v2451
      %v2485 = vld [vmem:[%s1488] sm:$0xe]
      %v2486 = vld [vmem:[%s1488 + $0xc] sm:$0xe]
      %v2487 = vld [vmem:[%s1488 + $0x18] sm:$0xe]
      %v2488 = vld [vmem:[%s1488 + $0x24] sm:$0xe]
      %v2489 = vld [vmem:[%s1488 + $0x30] sm:$0xe]
      %v2490 = vld [vmem:[%s1488 + $0x3c] sm:$0xe]
      %v2491 = vld [vmem:[%s1488 + $0x48] sm:$0xe]
      %v2492 = vld [vmem:[%s1488 + $0x54] sm:$0xe]
      %v2493 = vld [vmem:[%s1488 + $0x60] sm:$0xe]
      %v2494 = vld [vmem:[%s1488 + $0x6c] sm:$0xe]
      %v2495 = vld [vmem:[%s1488 + $0x78] sm:$0xe]
      %v2496 = vld [vmem:[%s1488 + $0x84] sm:$0xe]
      %v2497 = vld [vmem:[%s1488 + $0x90] sm:$0xe]
      %v2498 = vld [vmem:[%s1488 + $0x9c] sm:$0xe]
      %v2499 = vld [vmem:[%s1488 + $0xa8] sm:$0xe]
      %v2500 = vld [vmem:[%s1488 + $0xb4] sm:$0xe]
      %v2549 = vrot.slane %v2485, 5
      %v2550 = vrot.slane %v2549, 4
      %v2551 = vrot.slane %v1804, 5
      %v2552 = vsel %vm1125, %v2550, %v2551
      %v2553 = vrot.slane %v2551, 4
      %v2554 = vrot.slane %v1805, 5
      %v2555 = vsel %vm1125, %v2553, %v2554
      %v2556 = vrot.slane %v2486, 5
      %v2557 = vrot.slane %v2556, 4
      %v2558 = vrot.slane %v1807, 5
      %v2559 = vsel %vm1125, %v2557, %v2558
      %v2560 = vrot.slane %v2558, 4
      %v2561 = vrot.slane %v1808, 5
      %v2562 = vsel %vm1125, %v2560, %v2561
      %v2563 = vrot.slane %v2487, 5
      %v2564 = vrot.slane %v2563, 4
      %v2565 = vrot.slane %v1810, 5
      %v2566 = vsel %vm1125, %v2564, %v2565
      %v2567 = vrot.slane %v2565, 4
      %v2568 = vrot.slane %v1811, 5
      %v2569 = vsel %vm1125, %v2567, %v2568
      %v2570 = vrot.slane %v2488, 5
      %v2571 = vrot.slane %v2570, 4
      %v2572 = vrot.slane %v1813, 5
      %v2573 = vsel %vm1125, %v2571, %v2572
      %v2574 = vrot.slane %v2572, 4
      %v2575 = vrot.slane %v1814, 5
      %v2576 = vsel %vm1125, %v2574, %v2575
      %v2577 = vrot.slane %v2489, 5
      %v2578 = vrot.slane %v2577, 4
      %v2579 = vrot.slane %v1816, 5
      %v2580 = vsel %vm1125, %v2578, %v2579
      %v2581 = vrot.slane %v2579, 4
      %v2582 = vrot.slane %v1817, 5
      %v2583 = vsel %vm1125, %v2581, %v2582
      %v2584 = vrot.slane %v2490, 5
      %v2585 = vrot.slane %v2584, 4
      %v2586 = vrot.slane %v1819, 5
      %v2587 = vsel %vm1125, %v2585, %v2586
      %v2588 = vrot.slane %v2586, 4
      %v2589 = vrot.slane %v1820, 5
      %v2590 = vsel %vm1125, %v2588, %v2589
      %v2591 = vrot.slane %v2491, 5
      %v2592 = vrot.slane %v2591, 4
      %v2593 = vrot.slane %v1822, 5
      %v2594 = vsel %vm1125, %v2592, %v2593
      %v2595 = vrot.slane %v2593, 4
      %v2596 = vrot.slane %v1823, 5
      %v2597 = vsel %vm1125, %v2595, %v2596
      %v2598 = vrot.slane %v2492, 5
      %v2599 = vrot.slane %v2598, 4
      %v2600 = vrot.slane %v1825, 5
      %v2601 = vsel %vm1125, %v2599, %v2600
      %v2602 = vrot.slane %v2600, 4
      %v2603 = vrot.slane %v1826, 5
      %v2604 = vsel %vm1125, %v2602, %v2603
      %v2605 = vrot.slane %v2493, 5
      %v2606 = vrot.slane %v2605, 4
      %v2607 = vrot.slane %v1828, 5
      %v2608 = vsel %vm1125, %v2606, %v2607
      %v2609 = vrot.slane %v2607, 4
      %v2610 = vrot.slane %v1829, 5
      %v2611 = vsel %vm1125, %v2609, %v2610
      %v2612 = vrot.slane %v2494, 5
      %v2613 = vrot.slane %v2612, 4
      %v2614 = vrot.slane %v1831, 5
      %v2615 = vsel %vm1125, %v2613, %v2614
      %v2616 = vrot.slane %v2614, 4
      %v2617 = vrot.slane %v1832, 5
      %v2618 = vsel %vm1125, %v2616, %v2617
      %v2619 = vrot.slane %v2495, 5
      %v2620 = vrot.slane %v2619, 4
      %v2621 = vrot.slane %v1834, 5
      %v2622 = vsel %vm1125, %v2620, %v2621
      %v2623 = vrot.slane %v2621, 4
      %v2624 = vrot.slane %v1835, 5
      %v2625 = vsel %vm1125, %v2623, %v2624
      %v2626 = vrot.slane %v2496, 5
      %v2627 = vrot.slane %v2626, 4
      %v2628 = vrot.slane %v1837, 5
      %v2629 = vsel %vm1125, %v2627, %v2628
      %v2630 = vrot.slane %v2628, 4
      %v2631 = vrot.slane %v1838, 5
      %v2632 = vsel %vm1125, %v2630, %v2631
      %v2633 = vrot.slane %v2497, 5
      %v2634 = vrot.slane %v2633, 4
      %v2635 = vrot.slane %v1840, 5
      %v2636 = vsel %vm1125, %v2634, %v2635
      %v2637 = vrot.slane %v2635, 4
      %v2638 = vrot.slane %v1841, 5
      %v2639 = vsel %vm1125, %v2637, %v2638
      %v2640 = vrot.slane %v2498, 5
      %v2641 = vrot.slane %v2640, 4
      %v2642 = vrot.slane %v1843, 5
      %v2643 = vsel %vm1125, %v2641, %v2642
      %v2644 = vrot.slane %v2642, 4
      %v2645 = vrot.slane %v1844, 5
      %v2646 = vsel %vm1125, %v2644, %v2645
      %v2647 = vrot.slane %v2499, 5
      %v2648 = vrot.slane %v2647, 4
      %v2649 = vrot.slane %v1846, 5
      %v2650 = vsel %vm1125, %v2648, %v2649
      %v2651 = vrot.slane %v2649, 4
      %v2652 = vrot.slane %v1847, 5
      %v2653 = vsel %vm1125, %v2651, %v2652
      %v2654 = vrot.slane %v2500, 5
      %v2655 = vrot.slane %v2654, 4
      %v2656 = vrot.slane %v1849, 5
      %v2657 = vsel %vm1125, %v2655, %v2656
      %v2658 = vrot.slane %v2656, 4
      %v2659 = vrot.slane %v1850, 5
      %v2660 = vsel %vm1125, %v2658, %v2659
      %s2661 = scalar_lea.vmem %s1, 160
      %v2662 = vld [vmem:[%s2661] sm:$0xf]
      %v2663 = vld [vmem:[%s2661 + $0x4] sm:$0xf]
      %v2664 = vld [vmem:[%s2661 + $0x8] sm:$0xf]
      %v2665 = vld [vmem:[%s2661 + $0xc] sm:$0xf]
      %v2666 = vld [vmem:[%s2661 + $0x10] sm:$0xf]
      %v2667 = vld [vmem:[%s2661 + $0x14] sm:$0xf]
      %v2668 = vld [vmem:[%s2661 + $0x18] sm:$0xf]
      %v2669 = vld [vmem:[%s2661 + $0x1c] sm:$0xf]
      %v2670 = vunpack.c.l.b16 %v2552
      %v2671 = vunpack.c.l.b16 %v2555
      %v2672 = vunpack.c.l.b16 %v2559
      %v2673 = vunpack.c.l.b16 %v2562
      %v2674 = vunpack.c.l.b16 %v2566
      %v2675 = vunpack.c.l.b16 %v2569
      %v2676 = vunpack.c.l.b16 %v2573
      %v2677 = vunpack.c.l.b16 %v2576
      %v2678 = vunpack.c.l.b16 %v2580
      %v2679 = vunpack.c.l.b16 %v2583
      %v2680 = vunpack.c.l.b16 %v2587
      %v2681 = vunpack.c.l.b16 %v2590
      %v2682 = vunpack.c.l.b16 %v2594
      %v2683 = vunpack.c.l.b16 %v2597
      %v2684 = vunpack.c.l.b16 %v2601
      %v2685 = vunpack.c.l.b16 %v2604
      %v2686 = vunpack.c.l.b16 %v2608
      %v2687 = vunpack.c.l.b16 %v2611
      %v2688 = vunpack.c.l.b16 %v2615
      %v2689 = vunpack.c.l.b16 %v2618
      %v2690 = vunpack.c.l.b16 %v2622
      %v2691 = vunpack.c.l.b16 %v2625
      %v2692 = vunpack.c.l.b16 %v2629
      %v2693 = vunpack.c.l.b16 %v2632
      %v2694 = vunpack.c.l.b16 %v2636
      %v2695 = vunpack.c.l.b16 %v2639
      %v2696 = vunpack.c.l.b16 %v2643
      %v2697 = vunpack.c.l.b16 %v2646
      %v2698 = vunpack.c.l.b16 %v2650
      %v2699 = vunpack.c.l.b16 %v2653
      %v2700 = vunpack.c.l.b16 %v2657
      %v2701 = vunpack.c.l.b16 %v2660
      %v2702 = vpack.c.b16 %v2671, %v2670
      %v2703 = vpack.c.b16 %v2673, %v2672
      %v2704 = vpack.c.b16 %v2675, %v2674
      %v2705 = vpack.c.b16 %v2677, %v2676
      %v2706 = vpack.c.b16 %v2679, %v2678
      %v2707 = vpack.c.b16 %v2681, %v2680
      %v2708 = vpack.c.b16 %v2683, %v2682
      %v2709 = vpack.c.b16 %v2685, %v2684
      %v2710 = vpack.c.b16 %v2687, %v2686
      %v2711 = vpack.c.b16 %v2689, %v2688
      %v2712 = vpack.c.b16 %v2691, %v2690
      %v2713 = vpack.c.b16 %v2693, %v2692
      %v2714 = vpack.c.b16 %v2695, %v2694
      %v2715 = vpack.c.b16 %v2697, %v2696
      %v2716 = vpack.c.b16 %v2699, %v2698
      %v2717 = vpack.c.b16 %v2701, %v2700
      %v2726 = vunpack.c.l.b16 %v2662
      %v2727 = vunpack.c.l.b16 %v2663
      %v2728 = vunpack.c.l.b16 %v2664
      %v2729 = vunpack.c.l.b16 %v2665
      %v2730 = vunpack.c.l.b16 %v2666
      %v2731 = vunpack.c.l.b16 %v2667
      %v2732 = vunpack.c.l.b16 %v2668
      %v2733 = vunpack.c.l.b16 %v2669
      %v2734 = vpack.c.b16 %v2727, %v2726
      %v2735 = vpack.c.b16 %v2729, %v2728
      %v2736 = vpack.c.b16 %v2731, %v2730
      %v2737 = vpack.c.b16 %v2733, %v2732
      %v2743 = vsel %vm696, %v2702, 0
      %v2746 = vsel %vm696, %v2703, 0
      %v2749 = vsel %vm696, %v2704, 0
      %v2752 = vsel %vm696, %v2705, 0
      %v2755 = vsel %vm696, %v2706, 0
      %v2758 = vsel %vm696, %v2707, 0
      %v2761 = vsel %vm696, %v2708, 0
      %v2764 = vsel %vm696, %v2709, 0
      %v2767 = vsel %vm696, %v2710, 0
      %v2770 = vsel %vm696, %v2711, 0
      %v2773 = vsel %vm696, %v2712, 0
      %v2776 = vsel %vm696, %v2713, 0
      %v2779 = vsel %vm696, %v2714, 0
      %v2782 = vsel %vm696, %v2715, 0
      %v2785 = vsel %vm696, %v2716, 0
      %v2788 = vsel %vm696, %v2717, 0
      %2790 = vmatpush.bf16.msra.mxu0 0
      %2791 = vmatpush.bf16.msra.mxu0 0
      %2792 = vmatpush.bf16.msra.mxu0 0
      %2793 = vmatpush.bf16.msra.mxu0 0
      %2794 = vmatpush.bf16.msra.mxu0 %v2737
      %2795 = vmatpush.bf16.msra.mxu0 %v2736
      %2796 = vmatpush.bf16.msra.mxu0 %v2735
      %2797 = vmatpush.bf16.msra.mxu0 %v2734
      %2798 = vmatmul.bf16.gmra.mxu0 %v2743
      %v2799 = vpop.f32.mrf.mxu0
      %v2800 = vadd.f32 0.0, %v2799
      %v2801 = vpop.f32.mrf.mxu0
      %v2802 = vadd.f32 0.0, %v2801
      %2803 = vmatmul.bf16.gmra.mxu0 %v2746
      %v2804 = vpop.f32.mrf.mxu0
      %v2805 = vadd.f32 0.0, %v2804
      %v2806 = vpop.f32.mrf.mxu0
      %v2807 = vadd.f32 0.0, %v2806
      %2808 = vmatmul.bf16.gmra.mxu0 %v2749
      %v2809 = vpop.f32.mrf.mxu0
      %v2810 = vadd.f32 0.0, %v2809
      %v2811 = vpop.f32.mrf.mxu0
      %v2812 = vadd.f32 0.0, %v2811
      %2813 = vmatmul.bf16.gmra.mxu0 %v2752
      %v2814 = vpop.f32.mrf.mxu0
      %v2815 = vadd.f32 0.0, %v2814
      %v2816 = vpop.f32.mrf.mxu0
      %v2817 = vadd.f32 0.0, %v2816
      %2818 = vmatmul.bf16.gmra.mxu0 %v2755
      %v2819 = vpop.f32.mrf.mxu0
      %v2820 = vadd.f32 0.0, %v2819
      %v2821 = vpop.f32.mrf.mxu0
      %v2822 = vadd.f32 0.0, %v2821
      %2823 = vmatmul.bf16.gmra.mxu0 %v2758
      %v2824 = vpop.f32.mrf.mxu0
      %v2825 = vadd.f32 0.0, %v2824
      %v2826 = vpop.f32.mrf.mxu0
      %v2827 = vadd.f32 0.0, %v2826
      %2828 = vmatmul.bf16.gmra.mxu0 %v2761
      %v2829 = vpop.f32.mrf.mxu0
      %v2830 = vadd.f32 0.0, %v2829
      %v2831 = vpop.f32.mrf.mxu0
      %v2832 = vadd.f32 0.0, %v2831
      %2833 = vmatmul.bf16.gmra.mxu0 %v2764
      %v2834 = vpop.f32.mrf.mxu0
      %v2835 = vadd.f32 0.0, %v2834
      %v2836 = vpop.f32.mrf.mxu0
      %v2837 = vadd.f32 0.0, %v2836
      %2838 = vmatmul.bf16.gmra.mxu0 %v2767
      %v2839 = vpop.f32.mrf.mxu0
      %v2840 = vadd.f32 0.0, %v2839
      %v2841 = vpop.f32.mrf.mxu0
      %v2842 = vadd.f32 0.0, %v2841
      %2843 = vmatmul.bf16.gmra.mxu0 %v2770
      %v2844 = vpop.f32.mrf.mxu0
      %v2845 = vadd.f32 0.0, %v2844
      %v2846 = vpop.f32.mrf.mxu0
      %v2847 = vadd.f32 0.0, %v2846
      %2848 = vmatmul.bf16.gmra.mxu0 %v2773
      %v2849 = vpop.f32.mrf.mxu0
      %v2850 = vadd.f32 0.0, %v2849
      %v2851 = vpop.f32.mrf.mxu0
      %v2852 = vadd.f32 0.0, %v2851
      %2853 = vmatmul.bf16.gmra.mxu0 %v2776
      %v2854 = vpop.f32.mrf.mxu0
      %v2855 = vadd.f32 0.0, %v2854
      %v2856 = vpop.f32.mrf.mxu0
      %v2857 = vadd.f32 0.0, %v2856
      %2858 = vmatmul.bf16.gmra.mxu0 %v2779
      %v2859 = vpop.f32.mrf.mxu0
      %v2860 = vadd.f32 0.0, %v2859
      %v2861 = vpop.f32.mrf.mxu0
      %v2862 = vadd.f32 0.0, %v2861
      %2863 = vmatmul.bf16.gmra.mxu0 %v2782
      %v2864 = vpop.f32.mrf.mxu0
      %v2865 = vadd.f32 0.0, %v2864
      %v2866 = vpop.f32.mrf.mxu0
      %v2867 = vadd.f32 0.0, %v2866
      %2868 = vmatmul.bf16.gmra.mxu0 %v2785
      %v2869 = vpop.f32.mrf.mxu0
      %v2870 = vadd.f32 0.0, %v2869
      %v2871 = vpop.f32.mrf.mxu0
      %v2872 = vadd.f32 0.0, %v2871
      %2873 = vmatmul.bf16.gmra.mxu0 %v2788
      %v2874 = vpop.f32.mrf.mxu0
      %v2875 = vadd.f32 0.0, %v2874
      %v2876 = vpop.f32.mrf.mxu0
      %v2877 = vadd.f32 0.0, %v2876
      %2878 = vdwg.mxu0
      %v2879 = vadd.f32 %v2453, %v2800
      %v2880 = vadd.f32 %v2454, %v2802
      %v2881 = vadd.f32 %v2455, %v2805
      %v2882 = vadd.f32 %v2456, %v2807
      %v2883 = vadd.f32 %v2457, %v2810
      %v2884 = vadd.f32 %v2458, %v2812
      %v2885 = vadd.f32 %v2459, %v2815
      %v2886 = vadd.f32 %v2460, %v2817
      %v2887 = vadd.f32 %v2461, %v2820
      %v2888 = vadd.f32 %v2462, %v2822
      %v2889 = vadd.f32 %v2463, %v2825
      %v2890 = vadd.f32 %v2464, %v2827
      %v2891 = vadd.f32 %v2465, %v2830
      %v2892 = vadd.f32 %v2466, %v2832
      %v2893 = vadd.f32 %v2467, %v2835
      %v2894 = vadd.f32 %v2468, %v2837
      %v2895 = vadd.f32 %v2469, %v2840
      %v2896 = vadd.f32 %v2470, %v2842
      %v2897 = vadd.f32 %v2471, %v2845
      %v2898 = vadd.f32 %v2472, %v2847
      %v2899 = vadd.f32 %v2473, %v2850
      %v2900 = vadd.f32 %v2474, %v2852
      %v2901 = vadd.f32 %v2475, %v2855
      %v2902 = vadd.f32 %v2476, %v2857
      %v2903 = vadd.f32 %v2477, %v2860
      %v2904 = vadd.f32 %v2478, %v2862
      %v2905 = vadd.f32 %v2479, %v2865
      %v2906 = vadd.f32 %v2480, %v2867
      %v2907 = vadd.f32 %v2481, %v2870
      %v2908 = vadd.f32 %v2482, %v2872
      %v2909 = vadd.f32 %v2483, %v2875
      %v2910 = vadd.f32 %v2484, %v2877
      %s2911 = scalar_lea.vmem %s165, 24
      %v2912 = vld [vmem:[%s2911] sm:$0xf]
      %v2913 = vld [vmem:[%s2911 + $0x4] sm:$0xf]
      %v2914 = vld [vmem:[%s2911 + $0xc] sm:$0xf]
      %v2915 = vld [vmem:[%s2911 + $0x10] sm:$0xf]
      %v2916 = vld [vmem:[%s2911 + $0x18] sm:$0xf]
      %v2917 = vld [vmem:[%s2911 + $0x1c] sm:$0xf]
      %v2918 = vld [vmem:[%s2911 + $0x24] sm:$0xf]
      %v2919 = vld [vmem:[%s2911 + $0x28] sm:$0xf]
      %v2920 = vld [vmem:[%s2911 + $0x30] sm:$0xf]
      %v2921 = vld [vmem:[%s2911 + $0x34] sm:$0xf]
      %v2922 = vld [vmem:[%s2911 + $0x3c] sm:$0xf]
      %v2923 = vld [vmem:[%s2911 + $0x40] sm:$0xf]
      %v2924 = vld [vmem:[%s2911 + $0x48] sm:$0xf]
      %v2925 = vld [vmem:[%s2911 + $0x4c] sm:$0xf]
      %v2926 = vld [vmem:[%s2911 + $0x54] sm:$0xf]
      %v2927 = vld [vmem:[%s2911 + $0x58] sm:$0xf]
      %v2928 = vld [vmem:[%s2911 + $0x60] sm:$0xf]
      %v2929 = vld [vmem:[%s2911 + $0x64] sm:$0xf]
      %v2930 = vld [vmem:[%s2911 + $0x6c] sm:$0xf]
      %v2931 = vld [vmem:[%s2911 + $0x70] sm:$0xf]
      %v2932 = vld [vmem:[%s2911 + $0x78] sm:$0xf]
      %v2933 = vld [vmem:[%s2911 + $0x7c] sm:$0xf]
      %v2934 = vld [vmem:[%s2911 + $0x84] sm:$0xf]
      %v2935 = vld [vmem:[%s2911 + $0x88] sm:$0xf]
      %v2936 = vld [vmem:[%s2911 + $0x90] sm:$0xf]
      %v2937 = vld [vmem:[%s2911 + $0x94] sm:$0xf]
      %v2938 = vld [vmem:[%s2911 + $0x9c] sm:$0xf]
      %v2939 = vld [vmem:[%s2911 + $0xa0] sm:$0xf]
      %v2940 = vld [vmem:[%s2911 + $0xa8] sm:$0xf]
      %v2941 = vld [vmem:[%s2911 + $0xac] sm:$0xf]
      %v2942 = vld [vmem:[%s2911 + $0xb4] sm:$0xf]
      %v2943 = vld [vmem:[%s2911 + $0xb8] sm:$0xf]
      %s2944 = scalar_lea.vmem %s1, 192
      %v2945 = vld [vmem:[%s2944] sm:$0xf]
      %v2946 = vld [vmem:[%s2944 + $0x4] sm:$0xf]
      %v2947 = vld [vmem:[%s2944 + $0x8] sm:$0xf]
      %v2948 = vld [vmem:[%s2944 + $0xc] sm:$0xf]
      %v2949 = vld [vmem:[%s2944 + $0x10] sm:$0xf]
      %v2950 = vld [vmem:[%s2944 + $0x14] sm:$0xf]
      %v2951 = vld [vmem:[%s2944 + $0x18] sm:$0xf]
      %v2952 = vld [vmem:[%s2944 + $0x1c] sm:$0xf]
      %v2985 = vunpack.c.l.b16 %v2912
      %v2986 = vunpack.c.l.b16 %v2913
      %v2987 = vunpack.c.l.b16 %v2914
      %v2988 = vunpack.c.l.b16 %v2915
      %v2989 = vunpack.c.l.b16 %v2916
      %v2990 = vunpack.c.l.b16 %v2917
      %v2991 = vunpack.c.l.b16 %v2918
      %v2992 = vunpack.c.l.b16 %v2919
      %v2993 = vunpack.c.l.b16 %v2920
      %v2994 = vunpack.c.l.b16 %v2921
      %v2995 = vunpack.c.l.b16 %v2922
      %v2996 = vunpack.c.l.b16 %v2923
      %v2997 = vunpack.c.l.b16 %v2924
      %v2998 = vunpack.c.l.b16 %v2925
      %v2999 = vunpack.c.l.b16 %v2926
      %v3000 = vunpack.c.l.b16 %v2927
      %v3001 = vunpack.c.l.b16 %v2928
      %v3002 = vunpack.c.l.b16 %v2929
      %v3003 = vunpack.c.l.b16 %v2930
      %v3004 = vunpack.c.l.b16 %v2931
      %v3005 = vunpack.c.l.b16 %v2932
      %v3006 = vunpack.c.l.b16 %v2933
      %v3007 = vunpack.c.l.b16 %v2934
      %v3008 = vunpack.c.l.b16 %v2935
      %v3009 = vunpack.c.l.b16 %v2936
      %v3010 = vunpack.c.l.b16 %v2937
      %v3011 = vunpack.c.l.b16 %v2938
      %v3012 = vunpack.c.l.b16 %v2939
      %v3013 = vunpack.c.l.b16 %v2940
      %v3014 = vunpack.c.l.b16 %v2941
      %v3015 = vunpack.c.l.b16 %v2942
      %v3016 = vunpack.c.l.b16 %v2943
      %v3017 = vpack.c.b16 %v2986, %v2985
      %v3018 = vpack.c.b16 %v2988, %v2987
      %v3019 = vpack.c.b16 %v2990, %v2989
      %v3020 = vpack.c.b16 %v2992, %v2991
      %v3021 = vpack.c.b16 %v2994, %v2993
      %v3022 = vpack.c.b16 %v2996, %v2995
      %v3023 = vpack.c.b16 %v2998, %v2997
      %v3024 = vpack.c.b16 %v3000, %v2999
      %v3025 = vpack.c.b16 %v3002, %v3001
      %v3026 = vpack.c.b16 %v3004, %v3003
      %v3027 = vpack.c.b16 %v3006, %v3005
      %v3028 = vpack.c.b16 %v3008, %v3007
      %v3029 = vpack.c.b16 %v3010, %v3009
      %v3030 = vpack.c.b16 %v3012, %v3011
      %v3031 = vpack.c.b16 %v3014, %v3013
      %v3032 = vpack.c.b16 %v3016, %v3015
      %v3041 = vunpack.c.l.b16 %v2945
      %v3042 = vunpack.c.l.b16 %v2946
      %v3043 = vunpack.c.l.b16 %v2947
      %v3044 = vunpack.c.l.b16 %v2948
      %v3045 = vunpack.c.l.b16 %v2949
      %v3046 = vunpack.c.l.b16 %v2950
      %v3047 = vunpack.c.l.b16 %v2951
      %v3048 = vunpack.c.l.b16 %v2952
      %v3049 = vpack.c.b16 %v3042, %v3041
      %v3050 = vpack.c.b16 %v3044, %v3043
      %v3051 = vpack.c.b16 %v3046, %v3045
      %v3052 = vpack.c.b16 %v3048, %v3047
      %v3058 = vsel %vm696, %v3017, 0
      %v3061 = vsel %vm696, %v3018, 0
      %v3064 = vsel %vm696, %v3019, 0
      %v3067 = vsel %vm696, %v3020, 0
      %v3070 = vsel %vm696, %v3021, 0
      %v3073 = vsel %vm696, %v3022, 0
      %v3076 = vsel %vm696, %v3023, 0
      %v3079 = vsel %vm696, %v3024, 0
      %v3082 = vsel %vm696, %v3025, 0
      %v3085 = vsel %vm696, %v3026, 0
      %v3088 = vsel %vm696, %v3027, 0
      %v3091 = vsel %vm696, %v3028, 0
      %v3094 = vsel %vm696, %v3029, 0
      %v3097 = vsel %vm696, %v3030, 0
      %v3100 = vsel %vm696, %v3031, 0
      %v3103 = vsel %vm696, %v3032, 0
      %3105 = vmatpush.bf16.msra.mxu0 0
      %3106 = vmatpush.bf16.msra.mxu0 0
      %3107 = vmatpush.bf16.msra.mxu0 0
      %3108 = vmatpush.bf16.msra.mxu0 0
      %3109 = vmatpush.bf16.msra.mxu0 %v3052
      %3110 = vmatpush.bf16.msra.mxu0 %v3051
      %3111 = vmatpush.bf16.msra.mxu0 %v3050
      %3112 = vmatpush.bf16.msra.mxu0 %v3049
      %3113 = vmatmul.bf16.gmra.mxu0 %v3058
      %v3114 = vpop.f32.mrf.mxu0
      %v3115 = vadd.f32 0.0, %v3114
      %v3116 = vpop.f32.mrf.mxu0
      %v3117 = vadd.f32 0.0, %v3116
      %3118 = vmatmul.bf16.gmra.mxu0 %v3061
      %v3119 = vpop.f32.mrf.mxu0
      %v3120 = vadd.f32 0.0, %v3119
      %v3121 = vpop.f32.mrf.mxu0
      %v3122 = vadd.f32 0.0, %v3121
      %3123 = vmatmul.bf16.gmra.mxu0 %v3064
      %v3124 = vpop.f32.mrf.mxu0
      %v3125 = vadd.f32 0.0, %v3124
      %v3126 = vpop.f32.mrf.mxu0
      %v3127 = vadd.f32 0.0, %v3126
      %3128 = vmatmul.bf16.gmra.mxu0 %v3067
      %v3129 = vpop.f32.mrf.mxu0
      %v3130 = vadd.f32 0.0, %v3129
      %v3131 = vpop.f32.mrf.mxu0
      %v3132 = vadd.f32 0.0, %v3131
      %3133 = vmatmul.bf16.gmra.mxu0 %v3070
      %v3134 = vpop.f32.mrf.mxu0
      %v3135 = vadd.f32 0.0, %v3134
      %v3136 = vpop.f32.mrf.mxu0
      %v3137 = vadd.f32 0.0, %v3136
      %3138 = vmatmul.bf16.gmra.mxu0 %v3073
      %v3139 = vpop.f32.mrf.mxu0
      %v3140 = vadd.f32 0.0, %v3139
      %v3141 = vpop.f32.mrf.mxu0
      %v3142 = vadd.f32 0.0, %v3141
      %3143 = vmatmul.bf16.gmra.mxu0 %v3076
      %v3144 = vpop.f32.mrf.mxu0
      %v3145 = vadd.f32 0.0, %v3144
      %v3146 = vpop.f32.mrf.mxu0
      %v3147 = vadd.f32 0.0, %v3146
      %3148 = vmatmul.bf16.gmra.mxu0 %v3079
      %v3149 = vpop.f32.mrf.mxu0
      %v3150 = vadd.f32 0.0, %v3149
      %v3151 = vpop.f32.mrf.mxu0
      %v3152 = vadd.f32 0.0, %v3151
      %3153 = vmatmul.bf16.gmra.mxu0 %v3082
      %v3154 = vpop.f32.mrf.mxu0
      %v3155 = vadd.f32 0.0, %v3154
      %v3156 = vpop.f32.mrf.mxu0
      %v3157 = vadd.f32 0.0, %v3156
      %3158 = vmatmul.bf16.gmra.mxu0 %v3085
      %v3159 = vpop.f32.mrf.mxu0
      %v3160 = vadd.f32 0.0, %v3159
      %v3161 = vpop.f32.mrf.mxu0
      %v3162 = vadd.f32 0.0, %v3161
      %3163 = vmatmul.bf16.gmra.mxu0 %v3088
      %v3164 = vpop.f32.mrf.mxu0
      %v3165 = vadd.f32 0.0, %v3164
      %v3166 = vpop.f32.mrf.mxu0
      %v3167 = vadd.f32 0.0, %v3166
      %3168 = vmatmul.bf16.gmra.mxu0 %v3091
      %v3169 = vpop.f32.mrf.mxu0
      %v3170 = vadd.f32 0.0, %v3169
      %v3171 = vpop.f32.mrf.mxu0
      %v3172 = vadd.f32 0.0, %v3171
      %3173 = vmatmul.bf16.gmra.mxu0 %v3094
      %v3174 = vpop.f32.mrf.mxu0
      %v3175 = vadd.f32 0.0, %v3174
      %v3176 = vpop.f32.mrf.mxu0
      %v3177 = vadd.f32 0.0, %v3176
      %3178 = vmatmul.bf16.gmra.mxu0 %v3097
      %v3179 = vpop.f32.mrf.mxu0
      %v3180 = vadd.f32 0.0, %v3179
      %v3181 = vpop.f32.mrf.mxu0
      %v3182 = vadd.f32 0.0, %v3181
      %3183 = vmatmul.bf16.gmra.mxu0 %v3100
      %v3184 = vpop.f32.mrf.mxu0
      %v3185 = vadd.f32 0.0, %v3184
      %v3186 = vpop.f32.mrf.mxu0
      %v3187 = vadd.f32 0.0, %v3186
      %3188 = vmatmul.bf16.gmra.mxu0 %v3103
      %v3189 = vpop.f32.mrf.mxu0
      %v3190 = vadd.f32 0.0, %v3189
      %v3191 = vpop.f32.mrf.mxu0
      %v3192 = vadd.f32 0.0, %v3191
      %3193 = vdwg.mxu0
      %v3194 = vadd.f32 %v2879, %v3115
      %v3195 = vadd.f32 %v2880, %v3117
      %v3196 = vadd.f32 %v2881, %v3120
      %v3197 = vadd.f32 %v2882, %v3122
      %v3198 = vadd.f32 %v2883, %v3125
      %v3199 = vadd.f32 %v2884, %v3127
      %v3200 = vadd.f32 %v2885, %v3130
      %v3201 = vadd.f32 %v2886, %v3132
      %v3202 = vadd.f32 %v2887, %v3135
      %v3203 = vadd.f32 %v2888, %v3137
      %v3204 = vadd.f32 %v2889, %v3140
      %v3205 = vadd.f32 %v2890, %v3142
      %v3206 = vadd.f32 %v2891, %v3145
      %v3207 = vadd.f32 %v2892, %v3147
      %v3208 = vadd.f32 %v2893, %v3150
      %v3209 = vadd.f32 %v2894, %v3152
      %v3210 = vadd.f32 %v2895, %v3155
      %v3211 = vadd.f32 %v2896, %v3157
      %v3212 = vadd.f32 %v2897, %v3160
      %v3213 = vadd.f32 %v2898, %v3162
      %v3214 = vadd.f32 %v2899, %v3165
      %v3215 = vadd.f32 %v2900, %v3167
      %v3216 = vadd.f32 %v2901, %v3170
      %v3217 = vadd.f32 %v2902, %v3172
      %v3218 = vadd.f32 %v2903, %v3175
      %v3219 = vadd.f32 %v2904, %v3177
      %v3220 = vadd.f32 %v2905, %v3180
      %v3221 = vadd.f32 %v2906, %v3182
      %v3222 = vadd.f32 %v2907, %v3185
      %v3223 = vadd.f32 %v2908, %v3187
      %v3224 = vadd.f32 %v2909, %v3190
      %v3225 = vadd.f32 %v2910, %v3192
      %v3226 = vld [vmem:[%s2911] sm:$0xf]
      %v3227 = vld [vmem:[%s2911 + $0x4] sm:$0xf]
      %v3228 = vld [vmem:[%s2911 + $0x8] sm:$0x1]
      %v3229 = vld [vmem:[%s2911 + $0xc] sm:$0xf]
      %v3230 = vld [vmem:[%s2911 + $0x10] sm:$0xf]
      %v3231 = vld [vmem:[%s2911 + $0x14] sm:$0x1]
      %v3232 = vld [vmem:[%s2911 + $0x18] sm:$0xf]
      %v3233 = vld [vmem:[%s2911 + $0x1c] sm:$0xf]
      %v3234 = vld [vmem:[%s2911 + $0x20] sm:$0x1]
      %v3235 = vld [vmem:[%s2911 + $0x24] sm:$0xf]
      %v3236 = vld [vmem:[%s2911 + $0x28] sm:$0xf]
      %v3237 = vld [vmem:[%s2911 + $0x2c] sm:$0x1]
      %v3238 = vld [vmem:[%s2911 + $0x30] sm:$0xf]
      %v3239 = vld [vmem:[%s2911 + $0x34] sm:$0xf]
      %v3240 = vld [vmem:[%s2911 + $0x38] sm:$0x1]
      %v3241 = vld [vmem:[%s2911 + $0x3c] sm:$0xf]
      %v3242 = vld [vmem:[%s2911 + $0x40] sm:$0xf]
      %v3243 = vld [vmem:[%s2911 + $0x44] sm:$0x1]
      %v3244 = vld [vmem:[%s2911 + $0x48] sm:$0xf]
      %v3245 = vld [vmem:[%s2911 + $0x4c] sm:$0xf]
      %v3246 = vld [vmem:[%s2911 + $0x50] sm:$0x1]
      %v3247 = vld [vmem:[%s2911 + $0x54] sm:$0xf]
      %v3248 = vld [vmem:[%s2911 + $0x58] sm:$0xf]
      %v3249 = vld [vmem:[%s2911 + $0x5c] sm:$0x1]
      %v3250 = vld [vmem:[%s2911 + $0x60] sm:$0xf]
      %v3251 = vld [vmem:[%s2911 + $0x64] sm:$0xf]
      %v3252 = vld [vmem:[%s2911 + $0x68] sm:$0x1]
      %v3253 = vld [vmem:[%s2911 + $0x6c] sm:$0xf]
      %v3254 = vld [vmem:[%s2911 + $0x70] sm:$0xf]
      %v3255 = vld [vmem:[%s2911 + $0x74] sm:$0x1]
      %v3256 = vld [vmem:[%s2911 + $0x78] sm:$0xf]
      %v3257 = vld [vmem:[%s2911 + $0x7c] sm:$0xf]
      %v3258 = vld [vmem:[%s2911 + $0x80] sm:$0x1]
      %v3259 = vld [vmem:[%s2911 + $0x84] sm:$0xf]
      %v3260 = vld [vmem:[%s2911 + $0x88] sm:$0xf]
      %v3261 = vld [vmem:[%s2911 + $0x8c] sm:$0x1]
      %v3262 = vld [vmem:[%s2911 + $0x90] sm:$0xf]
      %v3263 = vld [vmem:[%s2911 + $0x94] sm:$0xf]
      %v3264 = vld [vmem:[%s2911 + $0x98] sm:$0x1]
      %v3265 = vld [vmem:[%s2911 + $0x9c] sm:$0xf]
      %v3266 = vld [vmem:[%s2911 + $0xa0] sm:$0xf]
      %v3267 = vld [vmem:[%s2911 + $0xa4] sm:$0x1]
      %v3268 = vld [vmem:[%s2911 + $0xa8] sm:$0xf]
      %v3269 = vld [vmem:[%s2911 + $0xac] sm:$0xf]
      %v3270 = vld [vmem:[%s2911 + $0xb0] sm:$0x1]
      %v3271 = vld [vmem:[%s2911 + $0xb4] sm:$0xf]
      %v3272 = vld [vmem:[%s2911 + $0xb8] sm:$0xf]
      %v3273 = vld [vmem:[%s2911 + $0xbc] sm:$0x1]
      %v3275 = vshrl.u32 %v3226, 16
      %v3277 = vrot.slane %v3275, 4
      %v3278 = vshll.u32 %v3226, 16
      %v3280 = vrot.slane %v3278, 5
      %v3281 = vor.u32 %v3277, %v3280
      %v3282 = vrot.slane %v3281, 4
      %v3284 = vshll.u32 %v3227, 16
      %v3286 = vrot.slane %v3284, 5
      %v3287 = vsel %vm230, %v3282, %v3286
      %v3288 = vshrl.u32 %v3227, 16
      %v3290 = vrot.slane %v3288, 4
      %v3291 = vor.u32 %v3290, %v3286
      %v3292 = vrot.slane %v3291, 4
      %v3294 = vshll.u32 %v3228, 16
      %v3296 = vrot.slane %v3294, 5
      %v3297 = vsel %vm230, %v3292, %v3296
      %v3299 = vshrl.u32 %v3229, 16
      %v3301 = vrot.slane %v3299, 4
      %v3302 = vshll.u32 %v3229, 16
      %v3304 = vrot.slane %v3302, 5
      %v3305 = vor.u32 %v3301, %v3304
      %v3306 = vrot.slane %v3305, 4
      %v3308 = vshll.u32 %v3230, 16
      %v3310 = vrot.slane %v3308, 5
      %v3311 = vsel %vm230, %v3306, %v3310
      %v3312 = vshrl.u32 %v3230, 16
      %v3314 = vrot.slane %v3312, 4
      %v3315 = vor.u32 %v3314, %v3310
      %v3316 = vrot.slane %v3315, 4
      %v3318 = vshll.u32 %v3231, 16
      %v3320 = vrot.slane %v3318, 5
      %v3321 = vsel %vm230, %v3316, %v3320
      %v3323 = vshrl.u32 %v3232, 16
      %v3325 = vrot.slane %v3323, 4
      %v3326 = vshll.u32 %v3232, 16
      %v3328 = vrot.slane %v3326, 5
      %v3329 = vor.u32 %v3325, %v3328
      %v3330 = vrot.slane %v3329, 4
      %v3332 = vshll.u32 %v3233, 16
      %v3334 = vrot.slane %v3332, 5
      %v3335 = vsel %vm230, %v3330, %v3334
      %v3336 = vshrl.u32 %v3233, 16
      %v3338 = vrot.slane %v3336, 4
      %v3339 = vor.u32 %v3338, %v3334
      %v3340 = vrot.slane %v3339, 4
      %v3342 = vshll.u32 %v3234, 16
      %v3344 = vrot.slane %v3342, 5
      %v3345 = vsel %vm230, %v3340, %v3344
      %v3347 = vshrl.u32 %v3235, 16
      %v3349 = vrot.slane %v3347, 4
      %v3350 = vshll.u32 %v3235, 16
      %v3352 = vrot.slane %v3350, 5
      %v3353 = vor.u32 %v3349, %v3352
      %v3354 = vrot.slane %v3353, 4
      %v3356 = vshll.u32 %v3236, 16
      %v3358 = vrot.slane %v3356, 5
      %v3359 = vsel %vm230, %v3354, %v3358
      %v3360 = vshrl.u32 %v3236, 16
      %v3362 = vrot.slane %v3360, 4
      %v3363 = vor.u32 %v3362, %v3358
      %v3364 = vrot.slane %v3363, 4
      %v3366 = vshll.u32 %v3237, 16
      %v3368 = vrot.slane %v3366, 5
      %v3369 = vsel %vm230, %v3364, %v3368
      %v3371 = vshrl.u32 %v3238, 16
      %v3373 = vrot.slane %v3371, 4
      %v3374 = vshll.u32 %v3238, 16
      %v3376 = vrot.slane %v3374, 5
      %v3377 = vor.u32 %v3373, %v3376
      %v3378 = vrot.slane %v3377, 4
      %v3380 = vshll.u32 %v3239, 16
      %v3382 = vrot.slane %v3380, 5
      %v3383 = vsel %vm230, %v3378, %v3382
      %v3384 = vshrl.u32 %v3239, 16
      %v3386 = vrot.slane %v3384, 4
      %v3387 = vor.u32 %v3386, %v3382
      %v3388 = vrot.slane %v3387, 4
      %v3390 = vshll.u32 %v3240, 16
      %v3392 = vrot.slane %v3390, 5
      %v3393 = vsel %vm230, %v3388, %v3392
      %v3395 = vshrl.u32 %v3241, 16
      %v3397 = vrot.slane %v3395, 4
      %v3398 = vshll.u32 %v3241, 16
      %v3400 = vrot.slane %v3398, 5
      %v3401 = vor.u32 %v3397, %v3400
      %v3402 = vrot.slane %v3401, 4
      %v3404 = vshll.u32 %v3242, 16
      %v3406 = vrot.slane %v3404, 5
      %v3407 = vsel %vm230, %v3402, %v3406
      %v3408 = vshrl.u32 %v3242, 16
      %v3410 = vrot.slane %v3408, 4
      %v3411 = vor.u32 %v3410, %v3406
      %v3412 = vrot.slane %v3411, 4
      %v3414 = vshll.u32 %v3243, 16
      %v3416 = vrot.slane %v3414, 5
      %v3417 = vsel %vm230, %v3412, %v3416
      %v3419 = vshrl.u32 %v3244, 16
      %v3421 = vrot.slane %v3419, 4
      %v3422 = vshll.u32 %v3244, 16
      %v3424 = vrot.slane %v3422, 5
      %v3425 = vor.u32 %v3421, %v3424
      %v3426 = vrot.slane %v3425, 4
      %v3428 = vshll.u32 %v3245, 16
      %v3430 = vrot.slane %v3428, 5
      %v3431 = vsel %vm230, %v3426, %v3430
      %v3432 = vshrl.u32 %v3245, 16
      %v3434 = vrot.slane %v3432, 4
      %v3435 = vor.u32 %v3434, %v3430
      %v3436 = vrot.slane %v3435, 4
      %v3438 = vshll.u32 %v3246, 16
      %v3440 = vrot.slane %v3438, 5
      %v3441 = vsel %vm230, %v3436, %v3440
      %v3443 = vshrl.u32 %v3247, 16
      %v3445 = vrot.slane %v3443, 4
      %v3446 = vshll.u32 %v3247, 16
      %v3448 = vrot.slane %v3446, 5
      %v3449 = vor.u32 %v3445, %v3448
      %v3450 = vrot.slane %v3449, 4
      %v3452 = vshll.u32 %v3248, 16
      %v3454 = vrot.slane %v3452, 5
      %v3455 = vsel %vm230, %v3450, %v3454
      %v3456 = vshrl.u32 %v3248, 16
      %v3458 = vrot.slane %v3456, 4
      %v3459 = vor.u32 %v3458, %v3454
      %v3460 = vrot.slane %v3459, 4
      %v3462 = vshll.u32 %v3249, 16
      %v3464 = vrot.slane %v3462, 5
      %v3465 = vsel %vm230, %v3460, %v3464
      %v3467 = vshrl.u32 %v3250, 16
      %v3469 = vrot.slane %v3467, 4
      %v3470 = vshll.u32 %v3250, 16
      %v3472 = vrot.slane %v3470, 5
      %v3473 = vor.u32 %v3469, %v3472
      %v3474 = vrot.slane %v3473, 4
      %v3476 = vshll.u32 %v3251, 16
      %v3478 = vrot.slane %v3476, 5
      %v3479 = vsel %vm230, %v3474, %v3478
      %v3480 = vshrl.u32 %v3251, 16
      %v3482 = vrot.slane %v3480, 4
      %v3483 = vor.u32 %v3482, %v3478
      %v3484 = vrot.slane %v3483, 4
      %v3486 = vshll.u32 %v3252, 16
      %v3488 = vrot.slane %v3486, 5
      %v3489 = vsel %vm230, %v3484, %v3488
      %v3491 = vshrl.u32 %v3253, 16
      %v3493 = vrot.slane %v3491, 4
      %v3494 = vshll.u32 %v3253, 16
      %v3496 = vrot.slane %v3494, 5
      %v3497 = vor.u32 %v3493, %v3496
      %v3498 = vrot.slane %v3497, 4
      %v3500 = vshll.u32 %v3254, 16
      %v3502 = vrot.slane %v3500, 5
      %v3503 = vsel %vm230, %v3498, %v3502
      %v3504 = vshrl.u32 %v3254, 16
      %v3506 = vrot.slane %v3504, 4
      %v3507 = vor.u32 %v3506, %v3502
      %v3508 = vrot.slane %v3507, 4
      %v3510 = vshll.u32 %v3255, 16
      %v3512 = vrot.slane %v3510, 5
      %v3513 = vsel %vm230, %v3508, %v3512
      %v3515 = vshrl.u32 %v3256, 16
      %v3517 = vrot.slane %v3515, 4
      %v3518 = vshll.u32 %v3256, 16
      %v3520 = vrot.slane %v3518, 5
      %v3521 = vor.u32 %v3517, %v3520
      %v3522 = vrot.slane %v3521, 4
      %v3524 = vshll.u32 %v3257, 16
      %v3526 = vrot.slane %v3524, 5
      %v3527 = vsel %vm230, %v3522, %v3526
      %v3528 = vshrl.u32 %v3257, 16
      %v3530 = vrot.slane %v3528, 4
      %v3531 = vor.u32 %v3530, %v3526
      %v3532 = vrot.slane %v3531, 4
      %v3534 = vshll.u32 %v3258, 16
      %v3536 = vrot.slane %v3534, 5
      %v3537 = vsel %vm230, %v3532, %v3536
      %v3539 = vshrl.u32 %v3259, 16
      %v3541 = vrot.slane %v3539, 4
      %v3542 = vshll.u32 %v3259, 16
      %v3544 = vrot.slane %v3542, 5
      %v3545 = vor.u32 %v3541, %v3544
      %v3546 = vrot.slane %v3545, 4
      %v3548 = vshll.u32 %v3260, 16
      %v3550 = vrot.slane %v3548, 5
      %v3551 = vsel %vm230, %v3546, %v3550
      %v3552 = vshrl.u32 %v3260, 16
      %v3554 = vrot.slane %v3552, 4
      %v3555 = vor.u32 %v3554, %v3550
      %v3556 = vrot.slane %v3555, 4
      %v3558 = vshll.u32 %v3261, 16
      %v3560 = vrot.slane %v3558, 5
      %v3561 = vsel %vm230, %v3556, %v3560
      %v3563 = vshrl.u32 %v3262, 16
      %v3565 = vrot.slane %v3563, 4
      %v3566 = vshll.u32 %v3262, 16
      %v3568 = vrot.slane %v3566, 5
      %v3569 = vor.u32 %v3565, %v3568
      %v3570 = vrot.slane %v3569, 4
      %v3572 = vshll.u32 %v3263, 16
      %v3574 = vrot.slane %v3572, 5
      %v3575 = vsel %vm230, %v3570, %v3574
      %v3576 = vshrl.u32 %v3263, 16
      %v3578 = vrot.slane %v3576, 4
      %v3579 = vor.u32 %v3578, %v3574
      %v3580 = vrot.slane %v3579, 4
      %v3582 = vshll.u32 %v3264, 16
      %v3584 = vrot.slane %v3582, 5
      %v3585 = vsel %vm230, %v3580, %v3584
      %v3587 = vshrl.u32 %v3265, 16
      %v3589 = vrot.slane %v3587, 4
      %v3590 = vshll.u32 %v3265, 16
      %v3592 = vrot.slane %v3590, 5
      %v3593 = vor.u32 %v3589, %v3592
      %v3594 = vrot.slane %v3593, 4
      %v3596 = vshll.u32 %v3266, 16
      %v3598 = vrot.slane %v3596, 5
      %v3599 = vsel %vm230, %v3594, %v3598
      %v3600 = vshrl.u32 %v3266, 16
      %v3602 = vrot.slane %v3600, 4
      %v3603 = vor.u32 %v3602, %v3598
      %v3604 = vrot.slane %v3603, 4
      %v3606 = vshll.u32 %v3267, 16
      %v3608 = vrot.slane %v3606, 5
      %v3609 = vsel %vm230, %v3604, %v3608
      %v3611 = vshrl.u32 %v3268, 16
      %v3613 = vrot.slane %v3611, 4
      %v3614 = vshll.u32 %v3268, 16
      %v3616 = vrot.slane %v3614, 5
      %v3617 = vor.u32 %v3613, %v3616
      %v3618 = vrot.slane %v3617, 4
      %v3620 = vshll.u32 %v3269, 16
      %v3622 = vrot.slane %v3620, 5
      %v3623 = vsel %vm230, %v3618, %v3622
      %v3624 = vshrl.u32 %v3269, 16
      %v3626 = vrot.slane %v3624, 4
      %v3627 = vor.u32 %v3626, %v3622
      %v3628 = vrot.slane %v3627, 4
      %v3630 = vshll.u32 %v3270, 16
      %v3632 = vrot.slane %v3630, 5
      %v3633 = vsel %vm230, %v3628, %v3632
      %v3635 = vshrl.u32 %v3271, 16
      %v3637 = vrot.slane %v3635, 4
      %v3638 = vshll.u32 %v3271, 16
      %v3640 = vrot.slane %v3638, 5
      %v3641 = vor.u32 %v3637, %v3640
      %v3642 = vrot.slane %v3641, 4
      %v3644 = vshll.u32 %v3272, 16
      %v3646 = vrot.slane %v3644, 5
      %v3647 = vsel %vm230, %v3642, %v3646
      %v3648 = vshrl.u32 %v3272, 16
      %v3650 = vrot.slane %v3648, 4
      %v3651 = vor.u32 %v3650, %v3646
      %v3652 = vrot.slane %v3651, 4
      %v3654 = vshll.u32 %v3273, 16
      %v3656 = vrot.slane %v3654, 5
      %v3657 = vsel %vm230, %v3652, %v3656
      %s3658 = scalar_lea.vmem %s1, 224
      %v3659 = vld [vmem:[%s3658] sm:$0xf]
      %v3660 = vld [vmem:[%s3658 + $0x4] sm:$0xf]
      %v3661 = vld [vmem:[%s3658 + $0x8] sm:$0xf]
      %v3662 = vld [vmem:[%s3658 + $0xc] sm:$0xf]
      %v3663 = vld [vmem:[%s3658 + $0x10] sm:$0xf]
      %v3664 = vld [vmem:[%s3658 + $0x14] sm:$0xf]
      %v3665 = vld [vmem:[%s3658 + $0x18] sm:$0xf]
      %v3666 = vld [vmem:[%s3658 + $0x1c] sm:$0xf]
      %v3667 = vunpack.c.l.b16 %v3287
      %v3668 = vunpack.c.l.b16 %v3297
      %v3669 = vunpack.c.l.b16 %v3311
      %v3670 = vunpack.c.l.b16 %v3321
      %v3671 = vunpack.c.l.b16 %v3335
      %v3672 = vunpack.c.l.b16 %v3345
      %v3673 = vunpack.c.l.b16 %v3359
      %v3674 = vunpack.c.l.b16 %v3369
      %v3675 = vunpack.c.l.b16 %v3383
      %v3676 = vunpack.c.l.b16 %v3393
      %v3677 = vunpack.c.l.b16 %v3407
      %v3678 = vunpack.c.l.b16 %v3417
      %v3679 = vunpack.c.l.b16 %v3431
      %v3680 = vunpack.c.l.b16 %v3441
      %v3681 = vunpack.c.l.b16 %v3455
      %v3682 = vunpack.c.l.b16 %v3465
      %v3683 = vunpack.c.l.b16 %v3479
      %v3684 = vunpack.c.l.b16 %v3489
      %v3685 = vunpack.c.l.b16 %v3503
      %v3686 = vunpack.c.l.b16 %v3513
      %v3687 = vunpack.c.l.b16 %v3527
      %v3688 = vunpack.c.l.b16 %v3537
      %v3689 = vunpack.c.l.b16 %v3551
      %v3690 = vunpack.c.l.b16 %v3561
      %v3691 = vunpack.c.l.b16 %v3575
      %v3692 = vunpack.c.l.b16 %v3585
      %v3693 = vunpack.c.l.b16 %v3599
      %v3694 = vunpack.c.l.b16 %v3609
      %v3695 = vunpack.c.l.b16 %v3623
      %v3696 = vunpack.c.l.b16 %v3633
      %v3697 = vunpack.c.l.b16 %v3647
      %v3698 = vunpack.c.l.b16 %v3657
      %v3699 = vpack.c.b16 %v3668, %v3667
      %v3700 = vpack.c.b16 %v3670, %v3669
      %v3701 = vpack.c.b16 %v3672, %v3671
      %v3702 = vpack.c.b16 %v3674, %v3673
      %v3703 = vpack.c.b16 %v3676, %v3675
      %v3704 = vpack.c.b16 %v3678, %v3677
      %v3705 = vpack.c.b16 %v3680, %v3679
      %v3706 = vpack.c.b16 %v3682, %v3681
      %v3707 = vpack.c.b16 %v3684, %v3683
      %v3708 = vpack.c.b16 %v3686, %v3685
      %v3709 = vpack.c.b16 %v3688, %v3687
      %v3710 = vpack.c.b16 %v3690, %v3689
      %v3711 = vpack.c.b16 %v3692, %v3691
      %v3712 = vpack.c.b16 %v3694, %v3693
      %v3713 = vpack.c.b16 %v3696, %v3695
      %v3714 = vpack.c.b16 %v3698, %v3697
      %v3723 = vunpack.c.l.b16 %v3659
      %v3724 = vunpack.c.l.b16 %v3660
      %v3725 = vunpack.c.l.b16 %v3661
      %v3726 = vunpack.c.l.b16 %v3662
      %v3727 = vunpack.c.l.b16 %v3663
      %v3728 = vunpack.c.l.b16 %v3664
      %v3729 = vunpack.c.l.b16 %v3665
      %v3730 = vunpack.c.l.b16 %v3666
      %v3731 = vpack.c.b16 %v3724, %v3723
      %v3732 = vpack.c.b16 %v3726, %v3725
      %v3733 = vpack.c.b16 %v3728, %v3727
      %v3734 = vpack.c.b16 %v3730, %v3729
      %v3740 = vsel %vm696, %v3699, 0
      %v3743 = vsel %vm696, %v3700, 0
      %v3746 = vsel %vm696, %v3701, 0
      %v3749 = vsel %vm696, %v3702, 0
      %v3752 = vsel %vm696, %v3703, 0
      %v3755 = vsel %vm696, %v3704, 0
      %v3758 = vsel %vm696, %v3705, 0
      %v3761 = vsel %vm696, %v3706, 0
      %v3764 = vsel %vm696, %v3707, 0
      %v3767 = vsel %vm696, %v3708, 0
      %v3770 = vsel %vm696, %v3709, 0
      %v3773 = vsel %vm696, %v3710, 0
      %v3776 = vsel %vm696, %v3711, 0
      %v3779 = vsel %vm696, %v3712, 0
      %v3782 = vsel %vm696, %v3713, 0
      %v3785 = vsel %vm696, %v3714, 0
      %3787 = vmatpush.bf16.msra.mxu0 0
      %3788 = vmatpush.bf16.msra.mxu0 0
      %3789 = vmatpush.bf16.msra.mxu0 0
      %3790 = vmatpush.bf16.msra.mxu0 0
      %3791 = vmatpush.bf16.msra.mxu0 %v3734
      %3792 = vmatpush.bf16.msra.mxu0 %v3733
      %3793 = vmatpush.bf16.msra.mxu0 %v3732
      %3794 = vmatpush.bf16.msra.mxu0 %v3731
      %3795 = vmatmul.bf16.gmra.mxu0 %v3740
      %v3796 = vpop.f32.mrf.mxu0
      %v3797 = vadd.f32 0.0, %v3796
      %v3798 = vpop.f32.mrf.mxu0
      %v3799 = vadd.f32 0.0, %v3798
      %3800 = vmatmul.bf16.gmra.mxu0 %v3743
      %v3801 = vpop.f32.mrf.mxu0
      %v3802 = vadd.f32 0.0, %v3801
      %v3803 = vpop.f32.mrf.mxu0
      %v3804 = vadd.f32 0.0, %v3803
      %3805 = vmatmul.bf16.gmra.mxu0 %v3746
      %v3806 = vpop.f32.mrf.mxu0
      %v3807 = vadd.f32 0.0, %v3806
      %v3808 = vpop.f32.mrf.mxu0
      %v3809 = vadd.f32 0.0, %v3808
      %3810 = vmatmul.bf16.gmra.mxu0 %v3749
      %v3811 = vpop.f32.mrf.mxu0
      %v3812 = vadd.f32 0.0, %v3811
      %v3813 = vpop.f32.mrf.mxu0
      %v3814 = vadd.f32 0.0, %v3813
      %3815 = vmatmul.bf16.gmra.mxu0 %v3752
      %v3816 = vpop.f32.mrf.mxu0
      %v3817 = vadd.f32 0.0, %v3816
      %v3818 = vpop.f32.mrf.mxu0
      %v3819 = vadd.f32 0.0, %v3818
      %3820 = vmatmul.bf16.gmra.mxu0 %v3755
      %v3821 = vpop.f32.mrf.mxu0
      %v3822 = vadd.f32 0.0, %v3821
      %v3823 = vpop.f32.mrf.mxu0
      %v3824 = vadd.f32 0.0, %v3823
      %3825 = vmatmul.bf16.gmra.mxu0 %v3758
      %v3826 = vpop.f32.mrf.mxu0
      %v3827 = vadd.f32 0.0, %v3826
      %v3828 = vpop.f32.mrf.mxu0
      %v3829 = vadd.f32 0.0, %v3828
      %3830 = vmatmul.bf16.gmra.mxu0 %v3761
      %v3831 = vpop.f32.mrf.mxu0
      %v3832 = vadd.f32 0.0, %v3831
      %v3833 = vpop.f32.mrf.mxu0
      %v3834 = vadd.f32 0.0, %v3833
      %3835 = vmatmul.bf16.gmra.mxu0 %v3764
      %v3836 = vpop.f32.mrf.mxu0
      %v3837 = vadd.f32 0.0, %v3836
      %v3838 = vpop.f32.mrf.mxu0
      %v3839 = vadd.f32 0.0, %v3838
      %3840 = vmatmul.bf16.gmra.mxu0 %v3767
      %v3841 = vpop.f32.mrf.mxu0
      %v3842 = vadd.f32 0.0, %v3841
      %v3843 = vpop.f32.mrf.mxu0
      %v3844 = vadd.f32 0.0, %v3843
      %3845 = vmatmul.bf16.gmra.mxu0 %v3770
      %v3846 = vpop.f32.mrf.mxu0
      %v3847 = vadd.f32 0.0, %v3846
      %v3848 = vpop.f32.mrf.mxu0
      %v3849 = vadd.f32 0.0, %v3848
      %3850 = vmatmul.bf16.gmra.mxu0 %v3773
      %v3851 = vpop.f32.mrf.mxu0
      %v3852 = vadd.f32 0.0, %v3851
      %v3853 = vpop.f32.mrf.mxu0
      %v3854 = vadd.f32 0.0, %v3853
      %3855 = vmatmul.bf16.gmra.mxu0 %v3776
      %v3856 = vpop.f32.mrf.mxu0
      %v3857 = vadd.f32 0.0, %v3856
      %v3858 = vpop.f32.mrf.mxu0
      %v3859 = vadd.f32 0.0, %v3858
      %3860 = vmatmul.bf16.gmra.mxu0 %v3779
      %v3861 = vpop.f32.mrf.mxu0
      %v3862 = vadd.f32 0.0, %v3861
      %v3863 = vpop.f32.mrf.mxu0
      %v3864 = vadd.f32 0.0, %v3863
      %3865 = vmatmul.bf16.gmra.mxu0 %v3782
      %v3866 = vpop.f32.mrf.mxu0
      %v3867 = vadd.f32 0.0, %v3866
      %v3868 = vpop.f32.mrf.mxu0
      %v3869 = vadd.f32 0.0, %v3868
      %3870 = vmatmul.bf16.gmra.mxu0 %v3785
      %v3871 = vpop.f32.mrf.mxu0
      %v3872 = vadd.f32 0.0, %v3871
      %v3873 = vpop.f32.mrf.mxu0
      %v3874 = vadd.f32 0.0, %v3873
      %3875 = vdwg.mxu0
      %v3876 = vadd.f32 %v3194, %v3797
      %v3877 = vadd.f32 %v3195, %v3799
      %v3878 = vadd.f32 %v3196, %v3802
      %v3879 = vadd.f32 %v3197, %v3804
      %v3880 = vadd.f32 %v3198, %v3807
      %v3881 = vadd.f32 %v3199, %v3809
      %v3882 = vadd.f32 %v3200, %v3812
      %v3883 = vadd.f32 %v3201, %v3814
      %v3884 = vadd.f32 %v3202, %v3817
      %v3885 = vadd.f32 %v3203, %v3819
      %v3886 = vadd.f32 %v3204, %v3822
      %v3887 = vadd.f32 %v3205, %v3824
      %v3888 = vadd.f32 %v3206, %v3827
      %v3889 = vadd.f32 %v3207, %v3829
      %v3890 = vadd.f32 %v3208, %v3832
      %v3891 = vadd.f32 %v3209, %v3834
      %v3892 = vadd.f32 %v3210, %v3837
      %v3893 = vadd.f32 %v3211, %v3839
      %v3894 = vadd.f32 %v3212, %v3842
      %v3895 = vadd.f32 %v3213, %v3844
      %v3896 = vadd.f32 %v3214, %v3847
      %v3897 = vadd.f32 %v3215, %v3849
      %v3898 = vadd.f32 %v3216, %v3852
      %v3899 = vadd.f32 %v3217, %v3854
      %v3900 = vadd.f32 %v3218, %v3857
      %v3901 = vadd.f32 %v3219, %v3859
      %v3902 = vadd.f32 %v3220, %v3862
      %v3903 = vadd.f32 %v3221, %v3864
      %v3904 = vadd.f32 %v3222, %v3867
      %v3905 = vadd.f32 %v3223, %v3869
      %v3906 = vadd.f32 %v3224, %v3872
      %v3907 = vadd.f32 %v3225, %v3874
      %v3908 = vld [vmem:[%s2911] sm:$0xe]
      %v3909 = vld [vmem:[%s2911 + $0xc] sm:$0xe]
      %v3910 = vld [vmem:[%s2911 + $0x18] sm:$0xe]
      %v3911 = vld [vmem:[%s2911 + $0x24] sm:$0xe]
      %v3912 = vld [vmem:[%s2911 + $0x30] sm:$0xe]
      %v3913 = vld [vmem:[%s2911 + $0x3c] sm:$0xe]
      %v3914 = vld [vmem:[%s2911 + $0x48] sm:$0xe]
      %v3915 = vld [vmem:[%s2911 + $0x54] sm:$0xe]
      %v3916 = vld [vmem:[%s2911 + $0x60] sm:$0xe]
      %v3917 = vld [vmem:[%s2911 + $0x6c] sm:$0xe]
      %v3918 = vld [vmem:[%s2911 + $0x78] sm:$0xe]
      %v3919 = vld [vmem:[%s2911 + $0x84] sm:$0xe]
      %v3920 = vld [vmem:[%s2911 + $0x90] sm:$0xe]
      %v3921 = vld [vmem:[%s2911 + $0x9c] sm:$0xe]
      %v3922 = vld [vmem:[%s2911 + $0xa8] sm:$0xe]
      %v3923 = vld [vmem:[%s2911 + $0xb4] sm:$0xe]
      %v3972 = vrot.slane %v3908, 5
      %v3973 = vrot.slane %v3972, 4
      %v3974 = vrot.slane %v3227, 5
      %v3975 = vsel %vm1125, %v3973, %v3974
      %v3976 = vrot.slane %v3974, 4
      %v3977 = vrot.slane %v3228, 5
      %v3978 = vsel %vm1125, %v3976, %v3977
      %v3979 = vrot.slane %v3909, 5
      %v3980 = vrot.slane %v3979, 4
      %v3981 = vrot.slane %v3230, 5
      %v3982 = vsel %vm1125, %v3980, %v3981
      %v3983 = vrot.slane %v3981, 4
      %v3984 = vrot.slane %v3231, 5
      %v3985 = vsel %vm1125, %v3983, %v3984
      %v3986 = vrot.slane %v3910, 5
      %v3987 = vrot.slane %v3986, 4
      %v3988 = vrot.slane %v3233, 5
      %v3989 = vsel %vm1125, %v3987, %v3988
      %v3990 = vrot.slane %v3988, 4
      %v3991 = vrot.slane %v3234, 5
      %v3992 = vsel %vm1125, %v3990, %v3991
      %v3993 = vrot.slane %v3911, 5
      %v3994 = vrot.slane %v3993, 4
      %v3995 = vrot.slane %v3236, 5
      %v3996 = vsel %vm1125, %v3994, %v3995
      %v3997 = vrot.slane %v3995, 4
      %v3998 = vrot.slane %v3237, 5
      %v3999 = vsel %vm1125, %v3997, %v3998
      %v4000 = vrot.slane %v3912, 5
      %v4001 = vrot.slane %v4000, 4
      %v4002 = vrot.slane %v3239, 5
      %v4003 = vsel %vm1125, %v4001, %v4002
      %v4004 = vrot.slane %v4002, 4
      %v4005 = vrot.slane %v3240, 5
      %v4006 = vsel %vm1125, %v4004, %v4005
      %v4007 = vrot.slane %v3913, 5
      %v4008 = vrot.slane %v4007, 4
      %v4009 = vrot.slane %v3242, 5
      %v4010 = vsel %vm1125, %v4008, %v4009
      %v4011 = vrot.slane %v4009, 4
      %v4012 = vrot.slane %v3243, 5
      %v4013 = vsel %vm1125, %v4011, %v4012
      %v4014 = vrot.slane %v3914, 5
      %v4015 = vrot.slane %v4014, 4
      %v4016 = vrot.slane %v3245, 5
      %v4017 = vsel %vm1125, %v4015, %v4016
      %v4018 = vrot.slane %v4016, 4
      %v4019 = vrot.slane %v3246, 5
      %v4020 = vsel %vm1125, %v4018, %v4019
      %v4021 = vrot.slane %v3915, 5
      %v4022 = vrot.slane %v4021, 4
      %v4023 = vrot.slane %v3248, 5
      %v4024 = vsel %vm1125, %v4022, %v4023
      %v4025 = vrot.slane %v4023, 4
      %v4026 = vrot.slane %v3249, 5
      %v4027 = vsel %vm1125, %v4025, %v4026
      %v4028 = vrot.slane %v3916, 5
      %v4029 = vrot.slane %v4028, 4
      %v4030 = vrot.slane %v3251, 5
      %v4031 = vsel %vm1125, %v4029, %v4030
      %v4032 = vrot.slane %v4030, 4
      %v4033 = vrot.slane %v3252, 5
      %v4034 = vsel %vm1125, %v4032, %v4033
      %v4035 = vrot.slane %v3917, 5
      %v4036 = vrot.slane %v4035, 4
      %v4037 = vrot.slane %v3254, 5
      %v4038 = vsel %vm1125, %v4036, %v4037
      %v4039 = vrot.slane %v4037, 4
      %v4040 = vrot.slane %v3255, 5
      %v4041 = vsel %vm1125, %v4039, %v4040
      %v4042 = vrot.slane %v3918, 5
      %v4043 = vrot.slane %v4042, 4
      %v4044 = vrot.slane %v3257, 5
      %v4045 = vsel %vm1125, %v4043, %v4044
      %v4046 = vrot.slane %v4044, 4
      %v4047 = vrot.slane %v3258, 5
      %v4048 = vsel %vm1125, %v4046, %v4047
      %v4049 = vrot.slane %v3919, 5
      %v4050 = vrot.slane %v4049, 4
      %v4051 = vrot.slane %v3260, 5
      %v4052 = vsel %vm1125, %v4050, %v4051
      %v4053 = vrot.slane %v4051, 4
      %v4054 = vrot.slane %v3261, 5
      %v4055 = vsel %vm1125, %v4053, %v4054
      %v4056 = vrot.slane %v3920, 5
      %v4057 = vrot.slane %v4056, 4
      %v4058 = vrot.slane %v3263, 5
      %v4059 = vsel %vm1125, %v4057, %v4058
      %v4060 = vrot.slane %v4058, 4
      %v4061 = vrot.slane %v3264, 5
      %v4062 = vsel %vm1125, %v4060, %v4061
      %v4063 = vrot.slane %v3921, 5
      %v4064 = vrot.slane %v4063, 4
      %v4065 = vrot.slane %v3266, 5
      %v4066 = vsel %vm1125, %v4064, %v4065
      %v4067 = vrot.slane %v4065, 4
      %v4068 = vrot.slane %v3267, 5
      %v4069 = vsel %vm1125, %v4067, %v4068
      %v4070 = vrot.slane %v3922, 5
      %v4071 = vrot.slane %v4070, 4
      %v4072 = vrot.slane %v3269, 5
      %v4073 = vsel %vm1125, %v4071, %v4072
      %v4074 = vrot.slane %v4072, 4
      %v4075 = vrot.slane %v3270, 5
      %v4076 = vsel %vm1125, %v4074, %v4075
      %v4077 = vrot.slane %v3923, 5
      %v4078 = vrot.slane %v4077, 4
      %v4079 = vrot.slane %v3272, 5
      %v4080 = vsel %vm1125, %v4078, %v4079
      %v4081 = vrot.slane %v4079, 4
      %v4082 = vrot.slane %v3273, 5
      %v4083 = vsel %vm1125, %v4081, %v4082
      %s4084 = scalar_lea.vmem %s1, 256
      %v4085 = vld [vmem:[%s4084] sm:$0xf]
      %v4086 = vld [vmem:[%s4084 + $0x4] sm:$0xf]
      %v4087 = vld [vmem:[%s4084 + $0x8] sm:$0xf]
      %v4088 = vld [vmem:[%s4084 + $0xc] sm:$0xf]
      %v4089 = vld [vmem:[%s4084 + $0x10] sm:$0xf]
      %v4090 = vld [vmem:[%s4084 + $0x14] sm:$0xf]
      %v4091 = vld [vmem:[%s4084 + $0x18] sm:$0xf]
      %v4092 = vld [vmem:[%s4084 + $0x1c] sm:$0xf]
      %v4093 = vunpack.c.l.b16 %v3975
      %v4094 = vunpack.c.l.b16 %v3978
      %v4095 = vunpack.c.l.b16 %v3982
      %v4096 = vunpack.c.l.b16 %v3985
      %v4097 = vunpack.c.l.b16 %v3989
      %v4098 = vunpack.c.l.b16 %v3992
      %v4099 = vunpack.c.l.b16 %v3996
      %v4100 = vunpack.c.l.b16 %v3999
      %v4101 = vunpack.c.l.b16 %v4003
      %v4102 = vunpack.c.l.b16 %v4006
      %v4103 = vunpack.c.l.b16 %v4010
      %v4104 = vunpack.c.l.b16 %v4013
      %v4105 = vunpack.c.l.b16 %v4017
      %v4106 = vunpack.c.l.b16 %v4020
      %v4107 = vunpack.c.l.b16 %v4024
      %v4108 = vunpack.c.l.b16 %v4027
      %v4109 = vunpack.c.l.b16 %v4031
      %v4110 = vunpack.c.l.b16 %v4034
      %v4111 = vunpack.c.l.b16 %v4038
      %v4112 = vunpack.c.l.b16 %v4041
      %v4113 = vunpack.c.l.b16 %v4045
      %v4114 = vunpack.c.l.b16 %v4048
      %v4115 = vunpack.c.l.b16 %v4052
      %v4116 = vunpack.c.l.b16 %v4055
      %v4117 = vunpack.c.l.b16 %v4059
      %v4118 = vunpack.c.l.b16 %v4062
      %v4119 = vunpack.c.l.b16 %v4066
      %v4120 = vunpack.c.l.b16 %v4069
      %v4121 = vunpack.c.l.b16 %v4073
      %v4122 = vunpack.c.l.b16 %v4076
      %v4123 = vunpack.c.l.b16 %v4080
      %v4124 = vunpack.c.l.b16 %v4083
      %v4125 = vpack.c.b16 %v4094, %v4093
      %v4126 = vpack.c.b16 %v4096, %v4095
      %v4127 = vpack.c.b16 %v4098, %v4097
      %v4128 = vpack.c.b16 %v4100, %v4099
      %v4129 = vpack.c.b16 %v4102, %v4101
      %v4130 = vpack.c.b16 %v4104, %v4103
      %v4131 = vpack.c.b16 %v4106, %v4105
      %v4132 = vpack.c.b16 %v4108, %v4107
      %v4133 = vpack.c.b16 %v4110, %v4109
      %v4134 = vpack.c.b16 %v4112, %v4111
      %v4135 = vpack.c.b16 %v4114, %v4113
      %v4136 = vpack.c.b16 %v4116, %v4115
      %v4137 = vpack.c.b16 %v4118, %v4117
      %v4138 = vpack.c.b16 %v4120, %v4119
      %v4139 = vpack.c.b16 %v4122, %v4121
      %v4140 = vpack.c.b16 %v4124, %v4123
      %v4149 = vunpack.c.l.b16 %v4085
      %v4150 = vunpack.c.l.b16 %v4086
      %v4151 = vunpack.c.l.b16 %v4087
      %v4152 = vunpack.c.l.b16 %v4088
      %v4153 = vunpack.c.l.b16 %v4089
      %v4154 = vunpack.c.l.b16 %v4090
      %v4155 = vunpack.c.l.b16 %v4091
      %v4156 = vunpack.c.l.b16 %v4092
      %v4157 = vpack.c.b16 %v4150, %v4149
      %v4158 = vpack.c.b16 %v4152, %v4151
      %v4159 = vpack.c.b16 %v4154, %v4153
      %v4160 = vpack.c.b16 %v4156, %v4155
      %v4166 = vsel %vm696, %v4125, 0
      %v4169 = vsel %vm696, %v4126, 0
      %v4172 = vsel %vm696, %v4127, 0
      %v4175 = vsel %vm696, %v4128, 0
      %v4178 = vsel %vm696, %v4129, 0
      %v4181 = vsel %vm696, %v4130, 0
      %v4184 = vsel %vm696, %v4131, 0
      %v4187 = vsel %vm696, %v4132, 0
      %v4190 = vsel %vm696, %v4133, 0
      %v4193 = vsel %vm696, %v4134, 0
      %v4196 = vsel %vm696, %v4135, 0
      %v4199 = vsel %vm696, %v4136, 0
      %v4202 = vsel %vm696, %v4137, 0
      %v4205 = vsel %vm696, %v4138, 0
      %v4208 = vsel %vm696, %v4139, 0
      %v4211 = vsel %vm696, %v4140, 0
      %4213 = vmatpush.bf16.msra.mxu0 0
      %4214 = vmatpush.bf16.msra.mxu0 0
      %4215 = vmatpush.bf16.msra.mxu0 0
      %4216 = vmatpush.bf16.msra.mxu0 0
      %4217 = vmatpush.bf16.msra.mxu0 %v4160
      %4218 = vmatpush.bf16.msra.mxu0 %v4159
      %4219 = vmatpush.bf16.msra.mxu0 %v4158
      %4220 = vmatpush.bf16.msra.mxu0 %v4157
      %4221 = vmatmul.bf16.gmra.mxu0 %v4166
      %v4222 = vpop.f32.mrf.mxu0
      %v4223 = vadd.f32 0.0, %v4222
      %v4224 = vpop.f32.mrf.mxu0
      %v4225 = vadd.f32 0.0, %v4224
      %4226 = vmatmul.bf16.gmra.mxu0 %v4169
      %v4227 = vpop.f32.mrf.mxu0
      %v4228 = vadd.f32 0.0, %v4227
      %v4229 = vpop.f32.mrf.mxu0
      %v4230 = vadd.f32 0.0, %v4229
      %4231 = vmatmul.bf16.gmra.mxu0 %v4172
      %v4232 = vpop.f32.mrf.mxu0
      %v4233 = vadd.f32 0.0, %v4232
      %v4234 = vpop.f32.mrf.mxu0
      %v4235 = vadd.f32 0.0, %v4234
      %4236 = vmatmul.bf16.gmra.mxu0 %v4175
      %v4237 = vpop.f32.mrf.mxu0
      %v4238 = vadd.f32 0.0, %v4237
      %v4239 = vpop.f32.mrf.mxu0
      %v4240 = vadd.f32 0.0, %v4239
      %4241 = vmatmul.bf16.gmra.mxu0 %v4178
      %v4242 = vpop.f32.mrf.mxu0
      %v4243 = vadd.f32 0.0, %v4242
      %v4244 = vpop.f32.mrf.mxu0
      %v4245 = vadd.f32 0.0, %v4244
      %4246 = vmatmul.bf16.gmra.mxu0 %v4181
      %v4247 = vpop.f32.mrf.mxu0
      %v4248 = vadd.f32 0.0, %v4247
      %v4249 = vpop.f32.mrf.mxu0
      %v4250 = vadd.f32 0.0, %v4249
      %4251 = vmatmul.bf16.gmra.mxu0 %v4184
      %v4252 = vpop.f32.mrf.mxu0
      %v4253 = vadd.f32 0.0, %v4252
      %v4254 = vpop.f32.mrf.mxu0
      %v4255 = vadd.f32 0.0, %v4254
      %4256 = vmatmul.bf16.gmra.mxu0 %v4187
      %v4257 = vpop.f32.mrf.mxu0
      %v4258 = vadd.f32 0.0, %v4257
      %v4259 = vpop.f32.mrf.mxu0
      %v4260 = vadd.f32 0.0, %v4259
      %4261 = vmatmul.bf16.gmra.mxu0 %v4190
      %v4262 = vpop.f32.mrf.mxu0
      %v4263 = vadd.f32 0.0, %v4262
      %v4264 = vpop.f32.mrf.mxu0
      %v4265 = vadd.f32 0.0, %v4264
      %4266 = vmatmul.bf16.gmra.mxu0 %v4193
      %v4267 = vpop.f32.mrf.mxu0
      %v4268 = vadd.f32 0.0, %v4267
      %v4269 = vpop.f32.mrf.mxu0
      %v4270 = vadd.f32 0.0, %v4269
      %4271 = vmatmul.bf16.gmra.mxu0 %v4196
      %v4272 = vpop.f32.mrf.mxu0
      %v4273 = vadd.f32 0.0, %v4272
      %v4274 = vpop.f32.mrf.mxu0
      %v4275 = vadd.f32 0.0, %v4274
      %4276 = vmatmul.bf16.gmra.mxu0 %v4199
      %v4277 = vpop.f32.mrf.mxu0
      %v4278 = vadd.f32 0.0, %v4277
      %v4279 = vpop.f32.mrf.mxu0
      %v4280 = vadd.f32 0.0, %v4279
      %4281 = vmatmul.bf16.gmra.mxu0 %v4202
      %v4282 = vpop.f32.mrf.mxu0
      %v4283 = vadd.f32 0.0, %v4282
      %v4284 = vpop.f32.mrf.mxu0
      %v4285 = vadd.f32 0.0, %v4284
      %4286 = vmatmul.bf16.gmra.mxu0 %v4205
      %v4287 = vpop.f32.mrf.mxu0
      %v4288 = vadd.f32 0.0, %v4287
      %v4289 = vpop.f32.mrf.mxu0
      %v4290 = vadd.f32 0.0, %v4289
      %4291 = vmatmul.bf16.gmra.mxu0 %v4208
      %v4292 = vpop.f32.mrf.mxu0
      %v4293 = vadd.f32 0.0, %v4292
      %v4294 = vpop.f32.mrf.mxu0
      %v4295 = vadd.f32 0.0, %v4294
      %4296 = vmatmul.bf16.gmra.mxu0 %v4211
      %v4297 = vpop.f32.mrf.mxu0
      %v4298 = vadd.f32 0.0, %v4297
      %v4299 = vpop.f32.mrf.mxu0
      %v4300 = vadd.f32 0.0, %v4299
      %4301 = vdwg.mxu0
      %v4302 = vadd.f32 %v3876, %v4223
      %v4303 = vadd.f32 %v3877, %v4225
      %v4304 = vadd.f32 %v3878, %v4228
      %v4305 = vadd.f32 %v3879, %v4230
      %v4306 = vadd.f32 %v3880, %v4233
      %v4307 = vadd.f32 %v3881, %v4235
      %v4308 = vadd.f32 %v3882, %v4238
      %v4309 = vadd.f32 %v3883, %v4240
      %v4310 = vadd.f32 %v3884, %v4243
      %v4311 = vadd.f32 %v3885, %v4245
      %v4312 = vadd.f32 %v3886, %v4248
      %v4313 = vadd.f32 %v3887, %v4250
      %v4314 = vadd.f32 %v3888, %v4253
      %v4315 = vadd.f32 %v3889, %v4255
      %v4316 = vadd.f32 %v3890, %v4258
      %v4317 = vadd.f32 %v3891, %v4260
      %v4318 = vadd.f32 %v3892, %v4263
      %v4319 = vadd.f32 %v3893, %v4265
      %v4320 = vadd.f32 %v3894, %v4268
      %v4321 = vadd.f32 %v3895, %v4270
      %v4322 = vadd.f32 %v3896, %v4273
      %v4323 = vadd.f32 %v3897, %v4275
      %v4324 = vadd.f32 %v3898, %v4278
      %v4325 = vadd.f32 %v3899, %v4280
      %v4326 = vadd.f32 %v3900, %v4283
      %v4327 = vadd.f32 %v3901, %v4285
      %v4328 = vadd.f32 %v3902, %v4288
      %v4329 = vadd.f32 %v3903, %v4290
      %v4330 = vadd.f32 %v3904, %v4293
      %v4331 = vadd.f32 %v3905, %v4295
      %v4332 = vadd.f32 %v3906, %v4298
      %v4333 = vadd.f32 %v3907, %v4300
      %v4334 = vld [vmem:[%s2] sm:$0x1]
      %v4336 = vperm.slane %v4334, 0
      %v4338 = vadd.f32 %v4302, %v4336
      %v4339 = vadd.f32 %v4303, %v4336
      %v4340 = vadd.f32 %v4304, %v4336
      %v4341 = vadd.f32 %v4305, %v4336
      %v4342 = vadd.f32 %v4306, %v4336
      %v4343 = vadd.f32 %v4307, %v4336
      %v4344 = vadd.f32 %v4308, %v4336
      %v4345 = vadd.f32 %v4309, %v4336
      %v4346 = vadd.f32 %v4310, %v4336
      %v4347 = vadd.f32 %v4311, %v4336
      %v4348 = vadd.f32 %v4312, %v4336
      %v4349 = vadd.f32 %v4313, %v4336
      %v4350 = vadd.f32 %v4314, %v4336
      %v4351 = vadd.f32 %v4315, %v4336
      %v4352 = vadd.f32 %v4316, %v4336
      %v4353 = vadd.f32 %v4317, %v4336
      %v4354 = vadd.f32 %v4318, %v4336
      %v4355 = vadd.f32 %v4319, %v4336
      %v4356 = vadd.f32 %v4320, %v4336
      %v4357 = vadd.f32 %v4321, %v4336
      %v4358 = vadd.f32 %v4322, %v4336
      %v4359 = vadd.f32 %v4323, %v4336
      %v4360 = vadd.f32 %v4324, %v4336
      %v4361 = vadd.f32 %v4325, %v4336
      %v4362 = vadd.f32 %v4326, %v4336
      %v4363 = vadd.f32 %v4327, %v4336
      %v4364 = vadd.f32 %v4328, %v4336
      %v4365 = vadd.f32 %v4329, %v4336
      %v4366 = vadd.f32 %v4330, %v4336
      %v4367 = vadd.f32 %v4331, %v4336
      %v4368 = vadd.f32 %v4332, %v4336
      %v4369 = vadd.f32 %v4333, %v4336
      %v4370 = vmul.f32 %v4338, 0.5
      %v4371 = vmul.f32 %v4339, 0.5
      %v4372 = vmul.f32 %v4340, 0.5
      %v4373 = vmul.f32 %v4341, 0.5
      %v4374 = vmul.f32 %v4342, 0.5
      %v4375 = vmul.f32 %v4343, 0.5
      %v4376 = vmul.f32 %v4344, 0.5
      %v4377 = vmul.f32 %v4345, 0.5
      %v4378 = vmul.f32 %v4346, 0.5
      %v4379 = vmul.f32 %v4347, 0.5
      %v4380 = vmul.f32 %v4348, 0.5
      %v4381 = vmul.f32 %v4349, 0.5
      %v4382 = vmul.f32 %v4350, 0.5
      %v4383 = vmul.f32 %v4351, 0.5
      %v4384 = vmul.f32 %v4352, 0.5
      %v4385 = vmul.f32 %v4353, 0.5
      %v4386 = vmul.f32 %v4354, 0.5
      %v4387 = vmul.f32 %v4355, 0.5
      %v4388 = vmul.f32 %v4356, 0.5
      %v4389 = vmul.f32 %v4357, 0.5
      %v4390 = vmul.f32 %v4358, 0.5
      %v4391 = vmul.f32 %v4359, 0.5
      %v4392 = vmul.f32 %v4360, 0.5
      %v4393 = vmul.f32 %v4361, 0.5
      %v4394 = vmul.f32 %v4362, 0.5
      %v4395 = vmul.f32 %v4363, 0.5
      %v4396 = vmul.f32 %v4364, 0.5
      %v4397 = vmul.f32 %v4365, 0.5
      %v4398 = vmul.f32 %v4366, 0.5
      %v4399 = vmul.f32 %v4367, 0.5
      %v4400 = vmul.f32 %v4368, 0.5
      %v4401 = vmul.f32 %v4369, 0.5
      %v4402 = vmul.f32 %v4338, 0.70710677
      %v4403 = vmul.f32 %v4339, 0.70710677
      %v4404 = vmul.f32 %v4340, 0.70710677
      %v4405 = vmul.f32 %v4341, 0.70710677
      %v4406 = vmul.f32 %v4342, 0.70710677
      %v4407 = vmul.f32 %v4343, 0.70710677
      %v4408 = vmul.f32 %v4344, 0.70710677
      %v4409 = vmul.f32 %v4345, 0.70710677
      %v4410 = vmul.f32 %v4346, 0.70710677
      %v4411 = vmul.f32 %v4347, 0.70710677
      %v4412 = vmul.f32 %v4348, 0.70710677
      %v4413 = vmul.f32 %v4349, 0.70710677
      %v4414 = vmul.f32 %v4350, 0.70710677
      %v4415 = vmul.f32 %v4351, 0.70710677
      %v4416 = vmul.f32 %v4352, 0.70710677
      %v4417 = vmul.f32 %v4353, 0.70710677
      %v4418 = vmul.f32 %v4354, 0.70710677
      %v4419 = vmul.f32 %v4355, 0.70710677
      %v4420 = vmul.f32 %v4356, 0.70710677
      %v4421 = vmul.f32 %v4357, 0.70710677
      %v4422 = vmul.f32 %v4358, 0.70710677
      %v4423 = vmul.f32 %v4359, 0.70710677
      %v4424 = vmul.f32 %v4360, 0.70710677
      %v4425 = vmul.f32 %v4361, 0.70710677
      %v4426 = vmul.f32 %v4362, 0.70710677
      %v4427 = vmul.f32 %v4363, 0.70710677
      %v4428 = vmul.f32 %v4364, 0.70710677
      %v4429 = vmul.f32 %v4365, 0.70710677
      %v4430 = vmul.f32 %v4366, 0.70710677
      %v4431 = vmul.f32 %v4367, 0.70710677
      %v4432 = vmul.f32 %v4368, 0.70710677
      %v4433 = vmul.f32 %v4369, 0.70710677
      %v4434 = vand.u32 2147483647, %v4402
      %v4435 = vand.u32 2147483647, %v4403
      %v4436 = vand.u32 2147483647, %v4404
      %v4437 = vand.u32 2147483647, %v4405
      %v4438 = vand.u32 2147483647, %v4406
      %v4439 = vand.u32 2147483647, %v4407
      %v4440 = vand.u32 2147483647, %v4408
      %v4441 = vand.u32 2147483647, %v4409
      %v4442 = vand.u32 2147483647, %v4410
      %v4443 = vand.u32 2147483647, %v4411
      %v4444 = vand.u32 2147483647, %v4412
      %v4445 = vand.u32 2147483647, %v4413
      %v4446 = vand.u32 2147483647, %v4414
      %v4447 = vand.u32 2147483647, %v4415
      %v4448 = vand.u32 2147483647, %v4416
      %v4449 = vand.u32 2147483647, %v4417
      %v4450 = vand.u32 2147483647, %v4418
      %v4451 = vand.u32 2147483647, %v4419
      %v4452 = vand.u32 2147483647, %v4420
      %v4453 = vand.u32 2147483647, %v4421
      %v4454 = vand.u32 2147483647, %v4422
      %v4455 = vand.u32 2147483647, %v4423
      %v4456 = vand.u32 2147483647, %v4424
      %v4457 = vand.u32 2147483647, %v4425
      %v4458 = vand.u32 2147483647, %v4426
      %v4459 = vand.u32 2147483647, %v4427
      %v4460 = vand.u32 2147483647, %v4428
      %v4461 = vand.u32 2147483647, %v4429
      %v4462 = vand.u32 2147483647, %v4430
      %v4463 = vand.u32 2147483647, %v4431
      %v4464 = vand.u32 2147483647, %v4432
      %v4465 = vand.u32 2147483647, %v4433
      %v4466 = vmul.f32 %v4434, 0.3275911
      %v4467 = vmul.f32 %v4435, 0.3275911
      %v4468 = vmul.f32 %v4436, 0.3275911
      %v4469 = vmul.f32 %v4437, 0.3275911
      %v4470 = vmul.f32 %v4438, 0.3275911
      %v4471 = vmul.f32 %v4439, 0.3275911
      %v4472 = vmul.f32 %v4440, 0.3275911
      %v4473 = vmul.f32 %v4441, 0.3275911
      %v4474 = vmul.f32 %v4442, 0.3275911
      %v4475 = vmul.f32 %v4443, 0.3275911
      %v4476 = vmul.f32 %v4444, 0.3275911
      %v4477 = vmul.f32 %v4445, 0.3275911
      %v4478 = vmul.f32 %v4446, 0.3275911
      %v4479 = vmul.f32 %v4447, 0.3275911
      %v4480 = vmul.f32 %v4448, 0.3275911
      %v4481 = vmul.f32 %v4449, 0.3275911
      %v4482 = vmul.f32 %v4450, 0.3275911
      %v4483 = vmul.f32 %v4451, 0.3275911
      %v4484 = vmul.f32 %v4452, 0.3275911
      %v4485 = vmul.f32 %v4453, 0.3275911
      %v4486 = vmul.f32 %v4454, 0.3275911
      %v4487 = vmul.f32 %v4455, 0.3275911
      %v4488 = vmul.f32 %v4456, 0.3275911
      %v4489 = vmul.f32 %v4457, 0.3275911
      %v4490 = vmul.f32 %v4458, 0.3275911
      %v4491 = vmul.f32 %v4459, 0.3275911
      %v4492 = vmul.f32 %v4460, 0.3275911
      %v4493 = vmul.f32 %v4461, 0.3275911
      %v4494 = vmul.f32 %v4462, 0.3275911
      %v4495 = vmul.f32 %v4463, 0.3275911
      %v4496 = vmul.f32 %v4464, 0.3275911
      %v4497 = vmul.f32 %v4465, 0.3275911
      %v4498 = vadd.f32 %v4466, 1.0
      %v4499 = vadd.f32 %v4467, 1.0
      %v4500 = vadd.f32 %v4468, 1.0
      %v4501 = vadd.f32 %v4469, 1.0
      %v4502 = vadd.f32 %v4470, 1.0
      %v4503 = vadd.f32 %v4471, 1.0
      %v4504 = vadd.f32 %v4472, 1.0
      %v4505 = vadd.f32 %v4473, 1.0
      %v4506 = vadd.f32 %v4474, 1.0
      %v4507 = vadd.f32 %v4475, 1.0
      %v4508 = vadd.f32 %v4476, 1.0
      %v4509 = vadd.f32 %v4477, 1.0
      %v4510 = vadd.f32 %v4478, 1.0
      %v4511 = vadd.f32 %v4479, 1.0
      %v4512 = vadd.f32 %v4480, 1.0
      %v4513 = vadd.f32 %v4481, 1.0
      %v4514 = vadd.f32 %v4482, 1.0
      %v4515 = vadd.f32 %v4483, 1.0
      %v4516 = vadd.f32 %v4484, 1.0
      %v4517 = vadd.f32 %v4485, 1.0
      %v4518 = vadd.f32 %v4486, 1.0
      %v4519 = vadd.f32 %v4487, 1.0
      %v4520 = vadd.f32 %v4488, 1.0
      %v4521 = vadd.f32 %v4489, 1.0
      %v4522 = vadd.f32 %v4490, 1.0
      %v4523 = vadd.f32 %v4491, 1.0
      %v4524 = vadd.f32 %v4492, 1.0
      %v4525 = vadd.f32 %v4493, 1.0
      %v4526 = vadd.f32 %v4494, 1.0
      %v4527 = vadd.f32 %v4495, 1.0
      %v4528 = vadd.f32 %v4496, 1.0
      %v4529 = vadd.f32 %v4497, 1.0
      %v4530 = vrcp.pop %v4498
      %v4531 = vmul.f32 %v4498, %v4530
      %v4532 = vsub.f32 1.0, %v4531
      %v4533 = vmul.f32 %v4530, %v4532
      %v4534 = vadd.f32 %v4530, %v4533
      %vm4535 = vweird.f32 %v4498
      %vm4536 = vweird.f32 %v4530
      %vm4537 = vmor %vm4535, %vm4536
      %v4538 = vsel %vm4537, %v4530, %v4534
      %v4539 = vand.u32 2147483647, %v4498
      %vm4540 = vcmp.eq.f32.partialorder %v4539, 8.507059e+37
      %v4541 = vand.u32 %v4498, 2147483648
      %v4542 = vor.u32 1.1754944e-38, %v4541
      %v4543 = vsel %vm4540, %v4542, %v4538
      %v4544 = vmul.f32 1.0, %v4543
      %v4545 = vrcp.pop %v4499
      %v4546 = vmul.f32 %v4499, %v4545
      %v4547 = vsub.f32 1.0, %v4546
      %v4548 = vmul.f32 %v4545, %v4547
      %v4549 = vadd.f32 %v4545, %v4548
      %vm4550 = vweird.f32 %v4499
      %vm4551 = vweird.f32 %v4545
      %vm4552 = vmor %vm4550, %vm4551
      %v4553 = vsel %vm4552, %v4545, %v4549
      %v4554 = vand.u32 2147483647, %v4499
      %vm4555 = vcmp.eq.f32.partialorder %v4554, 8.507059e+37
      %v4556 = vand.u32 %v4499, 2147483648
      %v4557 = vor.u32 1.1754944e-38, %v4556
      %v4558 = vsel %vm4555, %v4557, %v4553
      %v4559 = vmul.f32 1.0, %v4558
      %v4560 = vrcp.pop %v4500
      %v4561 = vmul.f32 %v4500, %v4560
      %v4562 = vsub.f32 1.0, %v4561
      %v4563 = vmul.f32 %v4560, %v4562
      %v4564 = vadd.f32 %v4560, %v4563
      %vm4565 = vweird.f32 %v4500
      %vm4566 = vweird.f32 %v4560
      %vm4567 = vmor %vm4565, %vm4566
      %v4568 = vsel %vm4567, %v4560, %v4564
      %v4569 = vand.u32 2147483647, %v4500
      %vm4570 = vcmp.eq.f32.partialorder %v4569, 8.507059e+37
      %v4571 = vand.u32 %v4500, 2147483648
      %v4572 = vor.u32 1.1754944e-38, %v4571
      %v4573 = vsel %vm4570, %v4572, %v4568
      %v4574 = vmul.f32 1.0, %v4573
      %v4575 = vrcp.pop %v4501
      %v4576 = vmul.f32 %v4501, %v4575
      %v4577 = vsub.f32 1.0, %v4576
      %v4578 = vmul.f32 %v4575, %v4577
      %v4579 = vadd.f32 %v4575, %v4578
      %vm4580 = vweird.f32 %v4501
      %vm4581 = vweird.f32 %v4575
      %vm4582 = vmor %vm4580, %vm4581
      %v4583 = vsel %vm4582, %v4575, %v4579
      %v4584 = vand.u32 2147483647, %v4501
      %vm4585 = vcmp.eq.f32.partialorder %v4584, 8.507059e+37
      %v4586 = vand.u32 %v4501, 2147483648
      %v4587 = vor.u32 1.1754944e-38, %v4586
      %v4588 = vsel %vm4585, %v4587, %v4583
      %v4589 = vmul.f32 1.0, %v4588
      %v4590 = vrcp.pop %v4502
      %v4591 = vmul.f32 %v4502, %v4590
      %v4592 = vsub.f32 1.0, %v4591
      %v4593 = vmul.f32 %v4590, %v4592
      %v4594 = vadd.f32 %v4590, %v4593
      %vm4595 = vweird.f32 %v4502
      %vm4596 = vweird.f32 %v4590
      %vm4597 = vmor %vm4595, %vm4596
      %v4598 = vsel %vm4597, %v4590, %v4594
      %v4599 = vand.u32 2147483647, %v4502
      %vm4600 = vcmp.eq.f32.partialorder %v4599, 8.507059e+37
      %v4601 = vand.u32 %v4502, 2147483648
      %v4602 = vor.u32 1.1754944e-38, %v4601
      %v4603 = vsel %vm4600, %v4602, %v4598
      %v4604 = vmul.f32 1.0, %v4603
      %v4605 = vrcp.pop %v4503
      %v4606 = vmul.f32 %v4503, %v4605
      %v4607 = vsub.f32 1.0, %v4606
      %v4608 = vmul.f32 %v4605, %v4607
      %v4609 = vadd.f32 %v4605, %v4608
      %vm4610 = vweird.f32 %v4503
      %vm4611 = vweird.f32 %v4605
      %vm4612 = vmor %vm4610, %vm4611
      %v4613 = vsel %vm4612, %v4605, %v4609
      %v4614 = vand.u32 2147483647, %v4503
      %vm4615 = vcmp.eq.f32.partialorder %v4614, 8.507059e+37
      %v4616 = vand.u32 %v4503, 2147483648
      %v4617 = vor.u32 1.1754944e-38, %v4616
      %v4618 = vsel %vm4615, %v4617, %v4613
      %v4619 = vmul.f32 1.0, %v4618
      %v4620 = vrcp.pop %v4504
      %v4621 = vmul.f32 %v4504, %v4620
      %v4622 = vsub.f32 1.0, %v4621
      %v4623 = vmul.f32 %v4620, %v4622
      %v4624 = vadd.f32 %v4620, %v4623
      %vm4625 = vweird.f32 %v4504
      %vm4626 = vweird.f32 %v4620
      %vm4627 = vmor %vm4625, %vm4626
      %v4628 = vsel %vm4627, %v4620, %v4624
      %v4629 = vand.u32 2147483647, %v4504
      %vm4630 = vcmp.eq.f32.partialorder %v4629, 8.507059e+37
      %v4631 = vand.u32 %v4504, 2147483648
      %v4632 = vor.u32 1.1754944e-38, %v4631
      %v4633 = vsel %vm4630, %v4632, %v4628
      %v4634 = vmul.f32 1.0, %v4633
      %v4635 = vrcp.pop %v4505
      %v4636 = vmul.f32 %v4505, %v4635
      %v4637 = vsub.f32 1.0, %v4636
      %v4638 = vmul.f32 %v4635, %v4637
      %v4639 = vadd.f32 %v4635, %v4638
      %vm4640 = vweird.f32 %v4505
      %vm4641 = vweird.f32 %v4635
      %vm4642 = vmor %vm4640, %vm4641
      %v4643 = vsel %vm4642, %v4635, %v4639
      %v4644 = vand.u32 2147483647, %v4505
      %vm4645 = vcmp.eq.f32.partialorder %v4644, 8.507059e+37
      %v4646 = vand.u32 %v4505, 2147483648
      %v4647 = vor.u32 1.1754944e-38, %v4646
      %v4648 = vsel %vm4645, %v4647, %v4643
      %v4649 = vmul.f32 1.0, %v4648
      %v4650 = vrcp.pop %v4506
      %v4651 = vmul.f32 %v4506, %v4650
      %v4652 = vsub.f32 1.0, %v4651
      %v4653 = vmul.f32 %v4650, %v4652
      %v4654 = vadd.f32 %v4650, %v4653
      %vm4655 = vweird.f32 %v4506
      %vm4656 = vweird.f32 %v4650
      %vm4657 = vmor %vm4655, %vm4656
      %v4658 = vsel %vm4657, %v4650, %v4654
      %v4659 = vand.u32 2147483647, %v4506
      %vm4660 = vcmp.eq.f32.partialorder %v4659, 8.507059e+37
      %v4661 = vand.u32 %v4506, 2147483648
      %v4662 = vor.u32 1.1754944e-38, %v4661
      %v4663 = vsel %vm4660, %v4662, %v4658
      %v4664 = vmul.f32 1.0, %v4663
      %v4665 = vrcp.pop %v4507
      %v4666 = vmul.f32 %v4507, %v4665
      %v4667 = vsub.f32 1.0, %v4666
      %v4668 = vmul.f32 %v4665, %v4667
      %v4669 = vadd.f32 %v4665, %v4668
      %vm4670 = vweird.f32 %v4507
      %vm4671 = vweird.f32 %v4665
      %vm4672 = vmor %vm4670, %vm4671
      %v4673 = vsel %vm4672, %v4665, %v4669
      %v4674 = vand.u32 2147483647, %v4507
      %vm4675 = vcmp.eq.f32.partialorder %v4674, 8.507059e+37
      %v4676 = vand.u32 %v4507, 2147483648
      %v4677 = vor.u32 1.1754944e-38, %v4676
      %v4678 = vsel %vm4675, %v4677, %v4673
      %v4679 = vmul.f32 1.0, %v4678
      %v4680 = vrcp.pop %v4508
      %v4681 = vmul.f32 %v4508, %v4680
      %v4682 = vsub.f32 1.0, %v4681
      %v4683 = vmul.f32 %v4680, %v4682
      %v4684 = vadd.f32 %v4680, %v4683
      %vm4685 = vweird.f32 %v4508
      %vm4686 = vweird.f32 %v4680
      %vm4687 = vmor %vm4685, %vm4686
      %v4688 = vsel %vm4687, %v4680, %v4684
      %v4689 = vand.u32 2147483647, %v4508
      %vm4690 = vcmp.eq.f32.partialorder %v4689, 8.507059e+37
      %v4691 = vand.u32 %v4508, 2147483648
      %v4692 = vor.u32 1.1754944e-38, %v4691
      %v4693 = vsel %vm4690, %v4692, %v4688
      %v4694 = vmul.f32 1.0, %v4693
      %v4695 = vrcp.pop %v4509
      %v4696 = vmul.f32 %v4509, %v4695
      %v4697 = vsub.f32 1.0, %v4696
      %v4698 = vmul.f32 %v4695, %v4697
      %v4699 = vadd.f32 %v4695, %v4698
      %vm4700 = vweird.f32 %v4509
      %vm4701 = vweird.f32 %v4695
      %vm4702 = vmor %vm4700, %vm4701
      %v4703 = vsel %vm4702, %v4695, %v4699
      %v4704 = vand.u32 2147483647, %v4509
      %vm4705 = vcmp.eq.f32.partialorder %v4704, 8.507059e+37
      %v4706 = vand.u32 %v4509, 2147483648
      %v4707 = vor.u32 1.1754944e-38, %v4706
      %v4708 = vsel %vm4705, %v4707, %v4703
      %v4709 = vmul.f32 1.0, %v4708
      %v4710 = vrcp.pop %v4510
      %v4711 = vmul.f32 %v4510, %v4710
      %v4712 = vsub.f32 1.0, %v4711
      %v4713 = vmul.f32 %v4710, %v4712
      %v4714 = vadd.f32 %v4710, %v4713
      %vm4715 = vweird.f32 %v4510
      %vm4716 = vweird.f32 %v4710
      %vm4717 = vmor %vm4715, %vm4716
      %v4718 = vsel %vm4717, %v4710, %v4714
      %v4719 = vand.u32 2147483647, %v4510
      %vm4720 = vcmp.eq.f32.partialorder %v4719, 8.507059e+37
      %v4721 = vand.u32 %v4510, 2147483648
      %v4722 = vor.u32 1.1754944e-38, %v4721
      %v4723 = vsel %vm4720, %v4722, %v4718
      %v4724 = vmul.f32 1.0, %v4723
      %v4725 = vrcp.pop %v4511
      %v4726 = vmul.f32 %v4511, %v4725
      %v4727 = vsub.f32 1.0, %v4726
      %v4728 = vmul.f32 %v4725, %v4727
      %v4729 = vadd.f32 %v4725, %v4728
      %vm4730 = vweird.f32 %v4511
      %vm4731 = vweird.f32 %v4725
      %vm4732 = vmor %vm4730, %vm4731
      %v4733 = vsel %vm4732, %v4725, %v4729
      %v4734 = vand.u32 2147483647, %v4511
      %vm4735 = vcmp.eq.f32.partialorder %v4734, 8.507059e+37
      %v4736 = vand.u32 %v4511, 2147483648
      %v4737 = vor.u32 1.1754944e-38, %v4736
      %v4738 = vsel %vm4735, %v4737, %v4733
      %v4739 = vmul.f32 1.0, %v4738
      %v4740 = vrcp.pop %v4512
      %v4741 = vmul.f32 %v4512, %v4740
      %v4742 = vsub.f32 1.0, %v4741
      %v4743 = vmul.f32 %v4740, %v4742
      %v4744 = vadd.f32 %v4740, %v4743
      %vm4745 = vweird.f32 %v4512
      %vm4746 = vweird.f32 %v4740
      %vm4747 = vmor %vm4745, %vm4746
      %v4748 = vsel %vm4747, %v4740, %v4744
      %v4749 = vand.u32 2147483647, %v4512
      %vm4750 = vcmp.eq.f32.partialorder %v4749, 8.507059e+37
      %v4751 = vand.u32 %v4512, 2147483648
      %v4752 = vor.u32 1.1754944e-38, %v4751
      %v4753 = vsel %vm4750, %v4752, %v4748
      %v4754 = vmul.f32 1.0, %v4753
      %v4755 = vrcp.pop %v4513
      %v4756 = vmul.f32 %v4513, %v4755
      %v4757 = vsub.f32 1.0, %v4756
      %v4758 = vmul.f32 %v4755, %v4757
      %v4759 = vadd.f32 %v4755, %v4758
      %vm4760 = vweird.f32 %v4513
      %vm4761 = vweird.f32 %v4755
      %vm4762 = vmor %vm4760, %vm4761
      %v4763 = vsel %vm4762, %v4755, %v4759
      %v4764 = vand.u32 2147483647, %v4513
      %vm4765 = vcmp.eq.f32.partialorder %v4764, 8.507059e+37
      %v4766 = vand.u32 %v4513, 2147483648
      %v4767 = vor.u32 1.1754944e-38, %v4766
      %v4768 = vsel %vm4765, %v4767, %v4763
      %v4769 = vmul.f32 1.0, %v4768
      %v4770 = vrcp.pop %v4514
      %v4771 = vmul.f32 %v4514, %v4770
      %v4772 = vsub.f32 1.0, %v4771
      %v4773 = vmul.f32 %v4770, %v4772
      %v4774 = vadd.f32 %v4770, %v4773
      %vm4775 = vweird.f32 %v4514
      %vm4776 = vweird.f32 %v4770
      %vm4777 = vmor %vm4775, %vm4776
      %v4778 = vsel %vm4777, %v4770, %v4774
      %v4779 = vand.u32 2147483647, %v4514
      %vm4780 = vcmp.eq.f32.partialorder %v4779, 8.507059e+37
      %v4781 = vand.u32 %v4514, 2147483648
      %v4782 = vor.u32 1.1754944e-38, %v4781
      %v4783 = vsel %vm4780, %v4782, %v4778
      %v4784 = vmul.f32 1.0, %v4783
      %v4785 = vrcp.pop %v4515
      %v4786 = vmul.f32 %v4515, %v4785
      %v4787 = vsub.f32 1.0, %v4786
      %v4788 = vmul.f32 %v4785, %v4787
      %v4789 = vadd.f32 %v4785, %v4788
      %vm4790 = vweird.f32 %v4515
      %vm4791 = vweird.f32 %v4785
      %vm4792 = vmor %vm4790, %vm4791
      %v4793 = vsel %vm4792, %v4785, %v4789
      %v4794 = vand.u32 2147483647, %v4515
      %vm4795 = vcmp.eq.f32.partialorder %v4794, 8.507059e+37
      %v4796 = vand.u32 %v4515, 2147483648
      %v4797 = vor.u32 1.1754944e-38, %v4796
      %v4798 = vsel %vm4795, %v4797, %v4793
      %v4799 = vmul.f32 1.0, %v4798
      %v4800 = vrcp.pop %v4516
      %v4801 = vmul.f32 %v4516, %v4800
      %v4802 = vsub.f32 1.0, %v4801
      %v4803 = vmul.f32 %v4800, %v4802
      %v4804 = vadd.f32 %v4800, %v4803
      %vm4805 = vweird.f32 %v4516
      %vm4806 = vweird.f32 %v4800
      %vm4807 = vmor %vm4805, %vm4806
      %v4808 = vsel %vm4807, %v4800, %v4804
      %v4809 = vand.u32 2147483647, %v4516
      %vm4810 = vcmp.eq.f32.partialorder %v4809, 8.507059e+37
      %v4811 = vand.u32 %v4516, 2147483648
      %v4812 = vor.u32 1.1754944e-38, %v4811
      %v4813 = vsel %vm4810, %v4812, %v4808
      %v4814 = vmul.f32 1.0, %v4813
      %v4815 = vrcp.pop %v4517
      %v4816 = vmul.f32 %v4517, %v4815
      %v4817 = vsub.f32 1.0, %v4816
      %v4818 = vmul.f32 %v4815, %v4817
      %v4819 = vadd.f32 %v4815, %v4818
      %vm4820 = vweird.f32 %v4517
      %vm4821 = vweird.f32 %v4815
      %vm4822 = vmor %vm4820, %vm4821
      %v4823 = vsel %vm4822, %v4815, %v4819
      %v4824 = vand.u32 2147483647, %v4517
      %vm4825 = vcmp.eq.f32.partialorder %v4824, 8.507059e+37
      %v4826 = vand.u32 %v4517, 2147483648
      %v4827 = vor.u32 1.1754944e-38, %v4826
      %v4828 = vsel %vm4825, %v4827, %v4823
      %v4829 = vmul.f32 1.0, %v4828
      %v4830 = vrcp.pop %v4518
      %v4831 = vmul.f32 %v4518, %v4830
      %v4832 = vsub.f32 1.0, %v4831
      %v4833 = vmul.f32 %v4830, %v4832
      %v4834 = vadd.f32 %v4830, %v4833
      %vm4835 = vweird.f32 %v4518
      %vm4836 = vweird.f32 %v4830
      %vm4837 = vmor %vm4835, %vm4836
      %v4838 = vsel %vm4837, %v4830, %v4834
      %v4839 = vand.u32 2147483647, %v4518
      %vm4840 = vcmp.eq.f32.partialorder %v4839, 8.507059e+37
      %v4841 = vand.u32 %v4518, 2147483648
      %v4842 = vor.u32 1.1754944e-38, %v4841
      %v4843 = vsel %vm4840, %v4842, %v4838
      %v4844 = vmul.f32 1.0, %v4843
      %v4845 = vrcp.pop %v4519
      %v4846 = vmul.f32 %v4519, %v4845
      %v4847 = vsub.f32 1.0, %v4846
      %v4848 = vmul.f32 %v4845, %v4847
      %v4849 = vadd.f32 %v4845, %v4848
      %vm4850 = vweird.f32 %v4519
      %vm4851 = vweird.f32 %v4845
      %vm4852 = vmor %vm4850, %vm4851
      %v4853 = vsel %vm4852, %v4845, %v4849
      %v4854 = vand.u32 2147483647, %v4519
      %vm4855 = vcmp.eq.f32.partialorder %v4854, 8.507059e+37
      %v4856 = vand.u32 %v4519, 2147483648
      %v4857 = vor.u32 1.1754944e-38, %v4856
      %v4858 = vsel %vm4855, %v4857, %v4853
      %v4859 = vmul.f32 1.0, %v4858
      %v4860 = vrcp.pop %v4520
      %v4861 = vmul.f32 %v4520, %v4860
      %v4862 = vsub.f32 1.0, %v4861
      %v4863 = vmul.f32 %v4860, %v4862
      %v4864 = vadd.f32 %v4860, %v4863
      %vm4865 = vweird.f32 %v4520
      %vm4866 = vweird.f32 %v4860
      %vm4867 = vmor %vm4865, %vm4866
      %v4868 = vsel %vm4867, %v4860, %v4864
      %v4869 = vand.u32 2147483647, %v4520
      %vm4870 = vcmp.eq.f32.partialorder %v4869, 8.507059e+37
      %v4871 = vand.u32 %v4520, 2147483648
      %v4872 = vor.u32 1.1754944e-38, %v4871
      %v4873 = vsel %vm4870, %v4872, %v4868
      %v4874 = vmul.f32 1.0, %v4873
      %v4875 = vrcp.pop %v4521
      %v4876 = vmul.f32 %v4521, %v4875
      %v4877 = vsub.f32 1.0, %v4876
      %v4878 = vmul.f32 %v4875, %v4877
      %v4879 = vadd.f32 %v4875, %v4878
      %vm4880 = vweird.f32 %v4521
      %vm4881 = vweird.f32 %v4875
      %vm4882 = vmor %vm4880, %vm4881
      %v4883 = vsel %vm4882, %v4875, %v4879
      %v4884 = vand.u32 2147483647, %v4521
      %vm4885 = vcmp.eq.f32.partialorder %v4884, 8.507059e+37
      %v4886 = vand.u32 %v4521, 2147483648
      %v4887 = vor.u32 1.1754944e-38, %v4886
      %v4888 = vsel %vm4885, %v4887, %v4883
      %v4889 = vmul.f32 1.0, %v4888
      %v4890 = vrcp.pop %v4522
      %v4891 = vmul.f32 %v4522, %v4890
      %v4892 = vsub.f32 1.0, %v4891
      %v4893 = vmul.f32 %v4890, %v4892
      %v4894 = vadd.f32 %v4890, %v4893
      %vm4895 = vweird.f32 %v4522
      %vm4896 = vweird.f32 %v4890
      %vm4897 = vmor %vm4895, %vm4896
      %v4898 = vsel %vm4897, %v4890, %v4894
      %v4899 = vand.u32 2147483647, %v4522
      %vm4900 = vcmp.eq.f32.partialorder %v4899, 8.507059e+37
      %v4901 = vand.u32 %v4522, 2147483648
      %v4902 = vor.u32 1.1754944e-38, %v4901
      %v4903 = vsel %vm4900, %v4902, %v4898
      %v4904 = vmul.f32 1.0, %v4903
      %v4905 = vrcp.pop %v4523
      %v4906 = vmul.f32 %v4523, %v4905
      %v4907 = vsub.f32 1.0, %v4906
      %v4908 = vmul.f32 %v4905, %v4907
      %v4909 = vadd.f32 %v4905, %v4908
      %vm4910 = vweird.f32 %v4523
      %vm4911 = vweird.f32 %v4905
      %vm4912 = vmor %vm4910, %vm4911
      %v4913 = vsel %vm4912, %v4905, %v4909
      %v4914 = vand.u32 2147483647, %v4523
      %vm4915 = vcmp.eq.f32.partialorder %v4914, 8.507059e+37
      %v4916 = vand.u32 %v4523, 2147483648
      %v4917 = vor.u32 1.1754944e-38, %v4916
      %v4918 = vsel %vm4915, %v4917, %v4913
      %v4919 = vmul.f32 1.0, %v4918
      %v4920 = vrcp.pop %v4524
      %v4921 = vmul.f32 %v4524, %v4920
      %v4922 = vsub.f32 1.0, %v4921
      %v4923 = vmul.f32 %v4920, %v4922
      %v4924 = vadd.f32 %v4920, %v4923
      %vm4925 = vweird.f32 %v4524
      %vm4926 = vweird.f32 %v4920
      %vm4927 = vmor %vm4925, %vm4926
      %v4928 = vsel %vm4927, %v4920, %v4924
      %v4929 = vand.u32 2147483647, %v4524
      %vm4930 = vcmp.eq.f32.partialorder %v4929, 8.507059e+37
      %v4931 = vand.u32 %v4524, 2147483648
      %v4932 = vor.u32 1.1754944e-38, %v4931
      %v4933 = vsel %vm4930, %v4932, %v4928
      %v4934 = vmul.f32 1.0, %v4933
      %v4935 = vrcp.pop %v4525
      %v4936 = vmul.f32 %v4525, %v4935
      %v4937 = vsub.f32 1.0, %v4936
      %v4938 = vmul.f32 %v4935, %v4937
      %v4939 = vadd.f32 %v4935, %v4938
      %vm4940 = vweird.f32 %v4525
      %vm4941 = vweird.f32 %v4935
      %vm4942 = vmor %vm4940, %vm4941
      %v4943 = vsel %vm4942, %v4935, %v4939
      %v4944 = vand.u32 2147483647, %v4525
      %vm4945 = vcmp.eq.f32.partialorder %v4944, 8.507059e+37
      %v4946 = vand.u32 %v4525, 2147483648
      %v4947 = vor.u32 1.1754944e-38, %v4946
      %v4948 = vsel %vm4945, %v4947, %v4943
      %v4949 = vmul.f32 1.0, %v4948
      %v4950 = vrcp.pop %v4526
      %v4951 = vmul.f32 %v4526, %v4950
      %v4952 = vsub.f32 1.0, %v4951
      %v4953 = vmul.f32 %v4950, %v4952
      %v4954 = vadd.f32 %v4950, %v4953
      %vm4955 = vweird.f32 %v4526
      %vm4956 = vweird.f32 %v4950
      %vm4957 = vmor %vm4955, %vm4956
      %v4958 = vsel %vm4957, %v4950, %v4954
      %v4959 = vand.u32 2147483647, %v4526
      %vm4960 = vcmp.eq.f32.partialorder %v4959, 8.507059e+37
      %v4961 = vand.u32 %v4526, 2147483648
      %v4962 = vor.u32 1.1754944e-38, %v4961
      %v4963 = vsel %vm4960, %v4962, %v4958
      %v4964 = vmul.f32 1.0, %v4963
      %v4965 = vrcp.pop %v4527
      %v4966 = vmul.f32 %v4527, %v4965
      %v4967 = vsub.f32 1.0, %v4966
      %v4968 = vmul.f32 %v4965, %v4967
      %v4969 = vadd.f32 %v4965, %v4968
      %vm4970 = vweird.f32 %v4527
      %vm4971 = vweird.f32 %v4965
      %vm4972 = vmor %vm4970, %vm4971
      %v4973 = vsel %vm4972, %v4965, %v4969
      %v4974 = vand.u32 2147483647, %v4527
      %vm4975 = vcmp.eq.f32.partialorder %v4974, 8.507059e+37
      %v4976 = vand.u32 %v4527, 2147483648
      %v4977 = vor.u32 1.1754944e-38, %v4976
      %v4978 = vsel %vm4975, %v4977, %v4973
      %v4979 = vmul.f32 1.0, %v4978
      %v4980 = vrcp.pop %v4528
      %v4981 = vmul.f32 %v4528, %v4980
      %v4982 = vsub.f32 1.0, %v4981
      %v4983 = vmul.f32 %v4980, %v4982
      %v4984 = vadd.f32 %v4980, %v4983
      %vm4985 = vweird.f32 %v4528
      %vm4986 = vweird.f32 %v4980
      %vm4987 = vmor %vm4985, %vm4986
      %v4988 = vsel %vm4987, %v4980, %v4984
      %v4989 = vand.u32 2147483647, %v4528
      %vm4990 = vcmp.eq.f32.partialorder %v4989, 8.507059e+37
      %v4991 = vand.u32 %v4528, 2147483648
      %v4992 = vor.u32 1.1754944e-38, %v4991
      %v4993 = vsel %vm4990, %v4992, %v4988
      %v4994 = vmul.f32 1.0, %v4993
      %v4995 = vrcp.pop %v4529
      %v4996 = vmul.f32 %v4529, %v4995
      %v4997 = vsub.f32 1.0, %v4996
      %v4998 = vmul.f32 %v4995, %v4997
      %v4999 = vadd.f32 %v4995, %v4998
      %vm5000 = vweird.f32 %v4529
      %vm5001 = vweird.f32 %v4995
      %vm5002 = vmor %vm5000, %vm5001
      %v5003 = vsel %vm5002, %v4995, %v4999
      %v5004 = vand.u32 2147483647, %v4529
      %vm5005 = vcmp.eq.f32.partialorder %v5004, 8.507059e+37
      %v5006 = vand.u32 %v4529, 2147483648
      %v5007 = vor.u32 1.1754944e-38, %v5006
      %v5008 = vsel %vm5005, %v5007, %v5003
      %v5009 = vmul.f32 1.0, %v5008
      %v5010 = vmul.f32 %v4544, 1.0614054
      %v5011 = vmul.f32 %v4559, 1.0614054
      %v5012 = vmul.f32 %v4574, 1.0614054
      %v5013 = vmul.f32 %v4589, 1.0614054
      %v5014 = vmul.f32 %v4604, 1.0614054
      %v5015 = vmul.f32 %v4619, 1.0614054
      %v5016 = vmul.f32 %v4634, 1.0614054
      %v5017 = vmul.f32 %v4649, 1.0614054
      %v5018 = vmul.f32 %v4664, 1.0614054
      %v5019 = vmul.f32 %v4679, 1.0614054
      %v5020 = vmul.f32 %v4694, 1.0614054
      %v5021 = vmul.f32 %v4709, 1.0614054
      %v5022 = vmul.f32 %v4724, 1.0614054
      %v5023 = vmul.f32 %v4739, 1.0614054
      %v5024 = vmul.f32 %v4754, 1.0614054
      %v5025 = vmul.f32 %v4769, 1.0614054
      %v5026 = vmul.f32 %v4784, 1.0614054
      %v5027 = vmul.f32 %v4799, 1.0614054
      %v5028 = vmul.f32 %v4814, 1.0614054
      %v5029 = vmul.f32 %v4829, 1.0614054
      %v5030 = vmul.f32 %v4844, 1.0614054
      %v5031 = vmul.f32 %v4859, 1.0614054
      %v5032 = vmul.f32 %v4874, 1.0614054
      %v5033 = vmul.f32 %v4889, 1.0614054
      %v5034 = vmul.f32 %v4904, 1.0614054
      %v5035 = vmul.f32 %v4919, 1.0614054
      %v5036 = vmul.f32 %v4934, 1.0614054
      %v5037 = vmul.f32 %v4949, 1.0614054
      %v5038 = vmul.f32 %v4964, 1.0614054
      %v5039 = vmul.f32 %v4979, 1.0614054
      %v5040 = vmul.f32 %v4994, 1.0614054
      %v5041 = vmul.f32 %v5009, 1.0614054
      %v5042 = vadd.f32 %v5010, -1.4531521
      %v5043 = vadd.f32 %v5011, -1.4531521
      %v5044 = vadd.f32 %v5012, -1.4531521
      %v5045 = vadd.f32 %v5013, -1.4531521
      %v5046 = vadd.f32 %v5014, -1.4531521
      %v5047 = vadd.f32 %v5015, -1.4531521
      %v5048 = vadd.f32 %v5016, -1.4531521
      %v5049 = vadd.f32 %v5017, -1.4531521
      %v5050 = vadd.f32 %v5018, -1.4531521
      %v5051 = vadd.f32 %v5019, -1.4531521
      %v5052 = vadd.f32 %v5020, -1.4531521
      %v5053 = vadd.f32 %v5021, -1.4531521
      %v5054 = vadd.f32 %v5022, -1.4531521
      %v5055 = vadd.f32 %v5023, -1.4531521
      %v5056 = vadd.f32 %v5024, -1.4531521
      %v5057 = vadd.f32 %v5025, -1.4531521
      %v5058 = vadd.f32 %v5026, -1.4531521
      %v5059 = vadd.f32 %v5027, -1.4531521
      %v5060 = vadd.f32 %v5028, -1.4531521
      %v5061 = vadd.f32 %v5029, -1.4531521
      %v5062 = vadd.f32 %v5030, -1.4531521
      %v5063 = vadd.f32 %v5031, -1.4531521
      %v5064 = vadd.f32 %v5032, -1.4531521
      %v5065 = vadd.f32 %v5033, -1.4531521
      %v5066 = vadd.f32 %v5034, -1.4531521
      %v5067 = vadd.f32 %v5035, -1.4531521
      %v5068 = vadd.f32 %v5036, -1.4531521
      %v5069 = vadd.f32 %v5037, -1.4531521
      %v5070 = vadd.f32 %v5038, -1.4531521
      %v5071 = vadd.f32 %v5039, -1.4531521
      %v5072 = vadd.f32 %v5040, -1.4531521
      %v5073 = vadd.f32 %v5041, -1.4531521
      %v5074 = vmul.f32 %v5042, %v4544
      %v5075 = vmul.f32 %v5043, %v4559
      %v5076 = vmul.f32 %v5044, %v4574
      %v5077 = vmul.f32 %v5045, %v4589
      %v5078 = vmul.f32 %v5046, %v4604
      %v5079 = vmul.f32 %v5047, %v4619
      %v5080 = vmul.f32 %v5048, %v4634
      %v5081 = vmul.f32 %v5049, %v4649
      %v5082 = vmul.f32 %v5050, %v4664
      %v5083 = vmul.f32 %v5051, %v4679
      %v5084 = vmul.f32 %v5052, %v4694
      %v5085 = vmul.f32 %v5053, %v4709
      %v5086 = vmul.f32 %v5054, %v4724
      %v5087 = vmul.f32 %v5055, %v4739
      %v5088 = vmul.f32 %v5056, %v4754
      %v5089 = vmul.f32 %v5057, %v4769
      %v5090 = vmul.f32 %v5058, %v4784
      %v5091 = vmul.f32 %v5059, %v4799
      %v5092 = vmul.f32 %v5060, %v4814
      %v5093 = vmul.f32 %v5061, %v4829
      %v5094 = vmul.f32 %v5062, %v4844
      %v5095 = vmul.f32 %v5063, %v4859
      %v5096 = vmul.f32 %v5064, %v4874
      %v5097 = vmul.f32 %v5065, %v4889
      %v5098 = vmul.f32 %v5066, %v4904
      %v5099 = vmul.f32 %v5067, %v4919
      %v5100 = vmul.f32 %v5068, %v4934
      %v5101 = vmul.f32 %v5069, %v4949
      %v5102 = vmul.f32 %v5070, %v4964
      %v5103 = vmul.f32 %v5071, %v4979
      %v5104 = vmul.f32 %v5072, %v4994
      %v5105 = vmul.f32 %v5073, %v5009
      %v5106 = vadd.f32 %v5074, 1.4214138
      %v5107 = vadd.f32 %v5075, 1.4214138
      %v5108 = vadd.f32 %v5076, 1.4214138
      %v5109 = vadd.f32 %v5077, 1.4214138
      %v5110 = vadd.f32 %v5078, 1.4214138
      %v5111 = vadd.f32 %v5079, 1.4214138
      %v5112 = vadd.f32 %v5080, 1.4214138
      %v5113 = vadd.f32 %v5081, 1.4214138
      %v5114 = vadd.f32 %v5082, 1.4214138
      %v5115 = vadd.f32 %v5083, 1.4214138
      %v5116 = vadd.f32 %v5084, 1.4214138
      %v5117 = vadd.f32 %v5085, 1.4214138
      %v5118 = vadd.f32 %v5086, 1.4214138
      %v5119 = vadd.f32 %v5087, 1.4214138
      %v5120 = vadd.f32 %v5088, 1.4214138
      %v5121 = vadd.f32 %v5089, 1.4214138
      %v5122 = vadd.f32 %v5090, 1.4214138
      %v5123 = vadd.f32 %v5091, 1.4214138
      %v5124 = vadd.f32 %v5092, 1.4214138
      %v5125 = vadd.f32 %v5093, 1.4214138
      %v5126 = vadd.f32 %v5094, 1.4214138
      %v5127 = vadd.f32 %v5095, 1.4214138
      %v5128 = vadd.f32 %v5096, 1.4214138
      %v5129 = vadd.f32 %v5097, 1.4214138
      %v5130 = vadd.f32 %v5098, 1.4214138
      %v5131 = vadd.f32 %v5099, 1.4214138
      %v5132 = vadd.f32 %v5100, 1.4214138
      %v5133 = vadd.f32 %v5101, 1.4214138
      %v5134 = vadd.f32 %v5102, 1.4214138
      %v5135 = vadd.f32 %v5103, 1.4214138
      %v5136 = vadd.f32 %v5104, 1.4214138
      %v5137 = vadd.f32 %v5105, 1.4214138
      %v5138 = vmul.f32 %v5106, %v4544
      %v5139 = vmul.f32 %v5107, %v4559
      %v5140 = vmul.f32 %v5108, %v4574
      %v5141 = vmul.f32 %v5109, %v4589
      %v5142 = vmul.f32 %v5110, %v4604
      %v5143 = vmul.f32 %v5111, %v4619
      %v5144 = vmul.f32 %v5112, %v4634
      %v5145 = vmul.f32 %v5113, %v4649
      %v5146 = vmul.f32 %v5114, %v4664
      %v5147 = vmul.f32 %v5115, %v4679
      %v5148 = vmul.f32 %v5116, %v4694
      %v5149 = vmul.f32 %v5117, %v4709
      %v5150 = vmul.f32 %v5118, %v4724
      %v5151 = vmul.f32 %v5119, %v4739
      %v5152 = vmul.f32 %v5120, %v4754
      %v5153 = vmul.f32 %v5121, %v4769
      %v5154 = vmul.f32 %v5122, %v4784
      %v5155 = vmul.f32 %v5123, %v4799
      %v5156 = vmul.f32 %v5124, %v4814
      %v5157 = vmul.f32 %v5125, %v4829
      %v5158 = vmul.f32 %v5126, %v4844
      %v5159 = vmul.f32 %v5127, %v4859
      %v5160 = vmul.f32 %v5128, %v4874
      %v5161 = vmul.f32 %v5129, %v4889
      %v5162 = vmul.f32 %v5130, %v4904
      %v5163 = vmul.f32 %v5131, %v4919
      %v5164 = vmul.f32 %v5132, %v4934
      %v5165 = vmul.f32 %v5133, %v4949
      %v5166 = vmul.f32 %v5134, %v4964
      %v5167 = vmul.f32 %v5135, %v4979
      %v5168 = vmul.f32 %v5136, %v4994
      %v5169 = vmul.f32 %v5137, %v5009
      %v5170 = vadd.f32 %v5138, -0.28449672
      %v5171 = vadd.f32 %v5139, -0.28449672
      %v5172 = vadd.f32 %v5140, -0.28449672
      %v5173 = vadd.f32 %v5141, -0.28449672
      %v5174 = vadd.f32 %v5142, -0.28449672
      %v5175 = vadd.f32 %v5143, -0.28449672
      %v5176 = vadd.f32 %v5144, -0.28449672
      %v5177 = vadd.f32 %v5145, -0.28449672
      %v5178 = vadd.f32 %v5146, -0.28449672
      %v5179 = vadd.f32 %v5147, -0.28449672
      %v5180 = vadd.f32 %v5148, -0.28449672
      %v5181 = vadd.f32 %v5149, -0.28449672
      %v5182 = vadd.f32 %v5150, -0.28449672
      %v5183 = vadd.f32 %v5151, -0.28449672
      %v5184 = vadd.f32 %v5152, -0.28449672
      %v5185 = vadd.f32 %v5153, -0.28449672
      %v5186 = vadd.f32 %v5154, -0.28449672
      %v5187 = vadd.f32 %v5155, -0.28449672
      %v5188 = vadd.f32 %v5156, -0.28449672
      %v5189 = vadd.f32 %v5157, -0.28449672
      %v5190 = vadd.f32 %v5158, -0.28449672
      %v5191 = vadd.f32 %v5159, -0.28449672
      %v5192 = vadd.f32 %v5160, -0.28449672
      %v5193 = vadd.f32 %v5161, -0.28449672
      %v5194 = vadd.f32 %v5162, -0.28449672
      %v5195 = vadd.f32 %v5163, -0.28449672
      %v5196 = vadd.f32 %v5164, -0.28449672
      %v5197 = vadd.f32 %v5165, -0.28449672
      %v5198 = vadd.f32 %v5166, -0.28449672
      %v5199 = vadd.f32 %v5167, -0.28449672
      %v5200 = vadd.f32 %v5168, -0.28449672
      %v5201 = vadd.f32 %v5169, -0.28449672
      %v5202 = vmul.f32 %v5170, %v4544
      %v5203 = vmul.f32 %v5171, %v4559
      %v5204 = vmul.f32 %v5172, %v4574
      %v5205 = vmul.f32 %v5173, %v4589
      %v5206 = vmul.f32 %v5174, %v4604
      %v5207 = vmul.f32 %v5175, %v4619
      %v5208 = vmul.f32 %v5176, %v4634
      %v5209 = vmul.f32 %v5177, %v4649
      %v5210 = vmul.f32 %v5178, %v4664
      %v5211 = vmul.f32 %v5179, %v4679
      %v5212 = vmul.f32 %v5180, %v4694
      %v5213 = vmul.f32 %v5181, %v4709
      %v5214 = vmul.f32 %v5182, %v4724
      %v5215 = vmul.f32 %v5183, %v4739
      %v5216 = vmul.f32 %v5184, %v4754
      %v5217 = vmul.f32 %v5185, %v4769
      %v5218 = vmul.f32 %v5186, %v4784
      %v5219 = vmul.f32 %v5187, %v4799
      %v5220 = vmul.f32 %v5188, %v4814
      %v5221 = vmul.f32 %v5189, %v4829
      %v5222 = vmul.f32 %v5190, %v4844
      %v5223 = vmul.f32 %v5191, %v4859
      %v5224 = vmul.f32 %v5192, %v4874
      %v5225 = vmul.f32 %v5193, %v4889
      %v5226 = vmul.f32 %v5194, %v4904
      %v5227 = vmul.f32 %v5195, %v4919
      %v5228 = vmul.f32 %v5196, %v4934
      %v5229 = vmul.f32 %v5197, %v4949
      %v5230 = vmul.f32 %v5198, %v4964
      %v5231 = vmul.f32 %v5199, %v4979
      %v5232 = vmul.f32 %v5200, %v4994
      %v5233 = vmul.f32 %v5201, %v5009
      %v5234 = vadd.f32 %v5202, 0.2548296
      %v5235 = vadd.f32 %v5203, 0.2548296
      %v5236 = vadd.f32 %v5204, 0.2548296
      %v5237 = vadd.f32 %v5205, 0.2548296
      %v5238 = vadd.f32 %v5206, 0.2548296
      %v5239 = vadd.f32 %v5207, 0.2548296
      %v5240 = vadd.f32 %v5208, 0.2548296
      %v5241 = vadd.f32 %v5209, 0.2548296
      %v5242 = vadd.f32 %v5210, 0.2548296
      %v5243 = vadd.f32 %v5211, 0.2548296
      %v5244 = vadd.f32 %v5212, 0.2548296
      %v5245 = vadd.f32 %v5213, 0.2548296
      %v5246 = vadd.f32 %v5214, 0.2548296
      %v5247 = vadd.f32 %v5215, 0.2548296
      %v5248 = vadd.f32 %v5216, 0.2548296
      %v5249 = vadd.f32 %v5217, 0.2548296
      %v5250 = vadd.f32 %v5218, 0.2548296
      %v5251 = vadd.f32 %v5219, 0.2548296
      %v5252 = vadd.f32 %v5220, 0.2548296
      %v5253 = vadd.f32 %v5221, 0.2548296
      %v5254 = vadd.f32 %v5222, 0.2548296
      %v5255 = vadd.f32 %v5223, 0.2548296
      %v5256 = vadd.f32 %v5224, 0.2548296
      %v5257 = vadd.f32 %v5225, 0.2548296
      %v5258 = vadd.f32 %v5226, 0.2548296
      %v5259 = vadd.f32 %v5227, 0.2548296
      %v5260 = vadd.f32 %v5228, 0.2548296
      %v5261 = vadd.f32 %v5229, 0.2548296
      %v5262 = vadd.f32 %v5230, 0.2548296
      %v5263 = vadd.f32 %v5231, 0.2548296
      %v5264 = vadd.f32 %v5232, 0.2548296
      %v5265 = vadd.f32 %v5233, 0.2548296
      %v5266 = vmul.f32 %v5234, %v4544
      %v5267 = vmul.f32 %v5235, %v4559
      %v5268 = vmul.f32 %v5236, %v4574
      %v5269 = vmul.f32 %v5237, %v4589
      %v5270 = vmul.f32 %v5238, %v4604
      %v5271 = vmul.f32 %v5239, %v4619
      %v5272 = vmul.f32 %v5240, %v4634
      %v5273 = vmul.f32 %v5241, %v4649
      %v5274 = vmul.f32 %v5242, %v4664
      %v5275 = vmul.f32 %v5243, %v4679
      %v5276 = vmul.f32 %v5244, %v4694
      %v5277 = vmul.f32 %v5245, %v4709
      %v5278 = vmul.f32 %v5246, %v4724
      %v5279 = vmul.f32 %v5247, %v4739
      %v5280 = vmul.f32 %v5248, %v4754
      %v5281 = vmul.f32 %v5249, %v4769
      %v5282 = vmul.f32 %v5250, %v4784
      %v5283 = vmul.f32 %v5251, %v4799
      %v5284 = vmul.f32 %v5252, %v4814
      %v5285 = vmul.f32 %v5253, %v4829
      %v5286 = vmul.f32 %v5254, %v4844
      %v5287 = vmul.f32 %v5255, %v4859
      %v5288 = vmul.f32 %v5256, %v4874
      %v5289 = vmul.f32 %v5257, %v4889
      %v5290 = vmul.f32 %v5258, %v4904
      %v5291 = vmul.f32 %v5259, %v4919
      %v5292 = vmul.f32 %v5260, %v4934
      %v5293 = vmul.f32 %v5261, %v4949
      %v5294 = vmul.f32 %v5262, %v4964
      %v5295 = vmul.f32 %v5263, %v4979
      %v5296 = vmul.f32 %v5264, %v4994
      %v5297 = vmul.f32 %v5265, %v5009
      %v5298 = vsub.f32 0.0, %v4434
      %v5299 = vsub.f32 0.0, %v4435
      %v5300 = vsub.f32 0.0, %v4436
      %v5301 = vsub.f32 0.0, %v4437
      %v5302 = vsub.f32 0.0, %v4438
      %v5303 = vsub.f32 0.0, %v4439
      %v5304 = vsub.f32 0.0, %v4440
      %v5305 = vsub.f32 0.0, %v4441
      %v5306 = vsub.f32 0.0, %v4442
      %v5307 = vsub.f32 0.0, %v4443
      %v5308 = vsub.f32 0.0, %v4444
      %v5309 = vsub.f32 0.0, %v4445
      %v5310 = vsub.f32 0.0, %v4446
      %v5311 = vsub.f32 0.0, %v4447
      %v5312 = vsub.f32 0.0, %v4448
      %v5313 = vsub.f32 0.0, %v4449
      %v5314 = vsub.f32 0.0, %v4450
      %v5315 = vsub.f32 0.0, %v4451
      %v5316 = vsub.f32 0.0, %v4452
      %v5317 = vsub.f32 0.0, %v4453
      %v5318 = vsub.f32 0.0, %v4454
      %v5319 = vsub.f32 0.0, %v4455
      %v5320 = vsub.f32 0.0, %v4456
      %v5321 = vsub.f32 0.0, %v4457
      %v5322 = vsub.f32 0.0, %v4458
      %v5323 = vsub.f32 0.0, %v4459
      %v5324 = vsub.f32 0.0, %v4460
      %v5325 = vsub.f32 0.0, %v4461
      %v5326 = vsub.f32 0.0, %v4462
      %v5327 = vsub.f32 0.0, %v4463
      %v5328 = vsub.f32 0.0, %v4464
      %v5329 = vsub.f32 0.0, %v4465
      %v5330 = vmul.f32 %v5298, %v4434
      %v5331 = vmul.f32 %v5299, %v4435
      %v5332 = vmul.f32 %v5300, %v4436
      %v5333 = vmul.f32 %v5301, %v4437
      %v5334 = vmul.f32 %v5302, %v4438
      %v5335 = vmul.f32 %v5303, %v4439
      %v5336 = vmul.f32 %v5304, %v4440
      %v5337 = vmul.f32 %v5305, %v4441
      %v5338 = vmul.f32 %v5306, %v4442
      %v5339 = vmul.f32 %v5307, %v4443
      %v5340 = vmul.f32 %v5308, %v4444
      %v5341 = vmul.f32 %v5309, %v4445
      %v5342 = vmul.f32 %v5310, %v4446
      %v5343 = vmul.f32 %v5311, %v4447
      %v5344 = vmul.f32 %v5312, %v4448
      %v5345 = vmul.f32 %v5313, %v4449
      %v5346 = vmul.f32 %v5314, %v4450
      %v5347 = vmul.f32 %v5315, %v4451
      %v5348 = vmul.f32 %v5316, %v4452
      %v5349 = vmul.f32 %v5317, %v4453
      %v5350 = vmul.f32 %v5318, %v4454
      %v5351 = vmul.f32 %v5319, %v4455
      %v5352 = vmul.f32 %v5320, %v4456
      %v5353 = vmul.f32 %v5321, %v4457
      %v5354 = vmul.f32 %v5322, %v4458
      %v5355 = vmul.f32 %v5323, %v4459
      %v5356 = vmul.f32 %v5324, %v4460
      %v5357 = vmul.f32 %v5325, %v4461
      %v5358 = vmul.f32 %v5326, %v4462
      %v5359 = vmul.f32 %v5327, %v4463
      %v5360 = vmul.f32 %v5328, %v4464
      %v5361 = vmul.f32 %v5329, %v4465
      %v5362 = vmul.f32 %v5330, 1.442695
      %v5363 = vpow.pop %v5362
      %v5364 = vmul.f32 %v5331, 1.442695
      %v5365 = vpow.pop %v5364
      %v5366 = vmul.f32 %v5332, 1.442695
      %v5367 = vpow.pop %v5366
      %v5368 = vmul.f32 %v5333, 1.442695
      %v5369 = vpow.pop %v5368
      %v5370 = vmul.f32 %v5334, 1.442695
      %v5371 = vpow.pop %v5370
      %v5372 = vmul.f32 %v5335, 1.442695
      %v5373 = vpow.pop %v5372
      %v5374 = vmul.f32 %v5336, 1.442695
      %v5375 = vpow.pop %v5374
      %v5376 = vmul.f32 %v5337, 1.442695
      %v5377 = vpow.pop %v5376
      %v5378 = vmul.f32 %v5338, 1.442695
      %v5379 = vpow.pop %v5378
      %v5380 = vmul.f32 %v5339, 1.442695
      %v5381 = vpow.pop %v5380
      %v5382 = vmul.f32 %v5340, 1.442695
      %v5383 = vpow.pop %v5382
      %v5384 = vmul.f32 %v5341, 1.442695
      %v5385 = vpow.pop %v5384
      %v5386 = vmul.f32 %v5342, 1.442695
      %v5387 = vpow.pop %v5386
      %v5388 = vmul.f32 %v5343, 1.442695
      %v5389 = vpow.pop %v5388
      %v5390 = vmul.f32 %v5344, 1.442695
      %v5391 = vpow.pop %v5390
      %v5392 = vmul.f32 %v5345, 1.442695
      %v5393 = vpow.pop %v5392
      %v5394 = vmul.f32 %v5346, 1.442695
      %v5395 = vpow.pop %v5394
      %v5396 = vmul.f32 %v5347, 1.442695
      %v5397 = vpow.pop %v5396
      %v5398 = vmul.f32 %v5348, 1.442695
      %v5399 = vpow.pop %v5398
      %v5400 = vmul.f32 %v5349, 1.442695
      %v5401 = vpow.pop %v5400
      %v5402 = vmul.f32 %v5350, 1.442695
      %v5403 = vpow.pop %v5402
      %v5404 = vmul.f32 %v5351, 1.442695
      %v5405 = vpow.pop %v5404
      %v5406 = vmul.f32 %v5352, 1.442695
      %v5407 = vpow.pop %v5406
      %v5408 = vmul.f32 %v5353, 1.442695
      %v5409 = vpow.pop %v5408
      %v5410 = vmul.f32 %v5354, 1.442695
      %v5411 = vpow.pop %v5410
      %v5412 = vmul.f32 %v5355, 1.442695
      %v5413 = vpow.pop %v5412
      %v5414 = vmul.f32 %v5356, 1.442695
      %v5415 = vpow.pop %v5414
      %v5416 = vmul.f32 %v5357, 1.442695
      %v5417 = vpow.pop %v5416
      %v5418 = vmul.f32 %v5358, 1.442695
      %v5419 = vpow.pop %v5418
      %v5420 = vmul.f32 %v5359, 1.442695
      %v5421 = vpow.pop %v5420
      %v5422 = vmul.f32 %v5360, 1.442695
      %v5423 = vpow.pop %v5422
      %v5424 = vmul.f32 %v5361, 1.442695
      %v5425 = vpow.pop %v5424
      %v5426 = vmul.f32 %v5266, %v5363
      %v5427 = vmul.f32 %v5267, %v5365
      %v5428 = vmul.f32 %v5268, %v5367
      %v5429 = vmul.f32 %v5269, %v5369
      %v5430 = vmul.f32 %v5270, %v5371
      %v5431 = vmul.f32 %v5271, %v5373
      %v5432 = vmul.f32 %v5272, %v5375
      %v5433 = vmul.f32 %v5273, %v5377
      %v5434 = vmul.f32 %v5274, %v5379
      %v5435 = vmul.f32 %v5275, %v5381
      %v5436 = vmul.f32 %v5276, %v5383
      %v5437 = vmul.f32 %v5277, %v5385
      %v5438 = vmul.f32 %v5278, %v5387
      %v5439 = vmul.f32 %v5279, %v5389
      %v5440 = vmul.f32 %v5280, %v5391
      %v5441 = vmul.f32 %v5281, %v5393
      %v5442 = vmul.f32 %v5282, %v5395
      %v5443 = vmul.f32 %v5283, %v5397
      %v5444 = vmul.f32 %v5284, %v5399
      %v5445 = vmul.f32 %v5285, %v5401
      %v5446 = vmul.f32 %v5286, %v5403
      %v5447 = vmul.f32 %v5287, %v5405
      %v5448 = vmul.f32 %v5288, %v5407
      %v5449 = vmul.f32 %v5289, %v5409
      %v5450 = vmul.f32 %v5290, %v5411
      %v5451 = vmul.f32 %v5291, %v5413
      %v5452 = vmul.f32 %v5292, %v5415
      %v5453 = vmul.f32 %v5293, %v5417
      %v5454 = vmul.f32 %v5294, %v5419
      %v5455 = vmul.f32 %v5295, %v5421
      %v5456 = vmul.f32 %v5296, %v5423
      %v5457 = vmul.f32 %v5297, %v5425
      %v5458 = vsub.f32 1.0, %v5426
      %v5459 = vsub.f32 1.0, %v5427
      %v5460 = vsub.f32 1.0, %v5428
      %v5461 = vsub.f32 1.0, %v5429
      %v5462 = vsub.f32 1.0, %v5430
      %v5463 = vsub.f32 1.0, %v5431
      %v5464 = vsub.f32 1.0, %v5432
      %v5465 = vsub.f32 1.0, %v5433
      %v5466 = vsub.f32 1.0, %v5434
      %v5467 = vsub.f32 1.0, %v5435
      %v5468 = vsub.f32 1.0, %v5436
      %v5469 = vsub.f32 1.0, %v5437
      %v5470 = vsub.f32 1.0, %v5438
      %v5471 = vsub.f32 1.0, %v5439
      %v5472 = vsub.f32 1.0, %v5440
      %v5473 = vsub.f32 1.0, %v5441
      %v5474 = vsub.f32 1.0, %v5442
      %v5475 = vsub.f32 1.0, %v5443
      %v5476 = vsub.f32 1.0, %v5444
      %v5477 = vsub.f32 1.0, %v5445
      %v5478 = vsub.f32 1.0, %v5446
      %v5479 = vsub.f32 1.0, %v5447
      %v5480 = vsub.f32 1.0, %v5448
      %v5481 = vsub.f32 1.0, %v5449
      %v5482 = vsub.f32 1.0, %v5450
      %v5483 = vsub.f32 1.0, %v5451
      %v5484 = vsub.f32 1.0, %v5452
      %v5485 = vsub.f32 1.0, %v5453
      %v5486 = vsub.f32 1.0, %v5454
      %v5487 = vsub.f32 1.0, %v5455
      %v5488 = vsub.f32 1.0, %v5456
      %v5489 = vsub.f32 1.0, %v5457
      %vm5490 = vcmp.ge.f32.partialorder %v4402, 0.0
      %vm5491 = vcmp.ge.f32.partialorder %v4403, 0.0
      %vm5492 = vcmp.ge.f32.partialorder %v4404, 0.0
      %vm5493 = vcmp.ge.f32.partialorder %v4405, 0.0
      %vm5494 = vcmp.ge.f32.partialorder %v4406, 0.0
      %vm5495 = vcmp.ge.f32.partialorder %v4407, 0.0
      %vm5496 = vcmp.ge.f32.partialorder %v4408, 0.0
      %vm5497 = vcmp.ge.f32.partialorder %v4409, 0.0
      %vm5498 = vcmp.ge.f32.partialorder %v4410, 0.0
      %vm5499 = vcmp.ge.f32.partialorder %v4411, 0.0
      %vm5500 = vcmp.ge.f32.partialorder %v4412, 0.0
      %vm5501 = vcmp.ge.f32.partialorder %v4413, 0.0
      %vm5502 = vcmp.ge.f32.partialorder %v4414, 0.0
      %vm5503 = vcmp.ge.f32.partialorder %v4415, 0.0
      %vm5504 = vcmp.ge.f32.partialorder %v4416, 0.0
      %vm5505 = vcmp.ge.f32.partialorder %v4417, 0.0
      %vm5506 = vcmp.ge.f32.partialorder %v4418, 0.0
      %vm5507 = vcmp.ge.f32.partialorder %v4419, 0.0
      %vm5508 = vcmp.ge.f32.partialorder %v4420, 0.0
      %vm5509 = vcmp.ge.f32.partialorder %v4421, 0.0
      %vm5510 = vcmp.ge.f32.partialorder %v4422, 0.0
      %vm5511 = vcmp.ge.f32.partialorder %v4423, 0.0
      %vm5512 = vcmp.ge.f32.partialorder %v4424, 0.0
      %vm5513 = vcmp.ge.f32.partialorder %v4425, 0.0
      %vm5514 = vcmp.ge.f32.partialorder %v4426, 0.0
      %vm5515 = vcmp.ge.f32.partialorder %v4427, 0.0
      %vm5516 = vcmp.ge.f32.partialorder %v4428, 0.0
      %vm5517 = vcmp.ge.f32.partialorder %v4429, 0.0
      %vm5518 = vcmp.ge.f32.partialorder %v4430, 0.0
      %vm5519 = vcmp.ge.f32.partialorder %v4431, 0.0
      %vm5520 = vcmp.ge.f32.partialorder %v4432, 0.0
      %vm5521 = vcmp.ge.f32.partialorder %v4433, 0.0
      %v5522 = vsub.f32 0.0, %v5458
      %v5523 = vsub.f32 0.0, %v5459
      %v5524 = vsub.f32 0.0, %v5460
      %v5525 = vsub.f32 0.0, %v5461
      %v5526 = vsub.f32 0.0, %v5462
      %v5527 = vsub.f32 0.0, %v5463
      %v5528 = vsub.f32 0.0, %v5464
      %v5529 = vsub.f32 0.0, %v5465
      %v5530 = vsub.f32 0.0, %v5466
      %v5531 = vsub.f32 0.0, %v5467
      %v5532 = vsub.f32 0.0, %v5468
      %v5533 = vsub.f32 0.0, %v5469
      %v5534 = vsub.f32 0.0, %v5470
      %v5535 = vsub.f32 0.0, %v5471
      %v5536 = vsub.f32 0.0, %v5472
      %v5537 = vsub.f32 0.0, %v5473
      %v5538 = vsub.f32 0.0, %v5474
      %v5539 = vsub.f32 0.0, %v5475
      %v5540 = vsub.f32 0.0, %v5476
      %v5541 = vsub.f32 0.0, %v5477
      %v5542 = vsub.f32 0.0, %v5478
      %v5543 = vsub.f32 0.0, %v5479
      %v5544 = vsub.f32 0.0, %v5480
      %v5545 = vsub.f32 0.0, %v5481
      %v5546 = vsub.f32 0.0, %v5482
      %v5547 = vsub.f32 0.0, %v5483
      %v5548 = vsub.f32 0.0, %v5484
      %v5549 = vsub.f32 0.0, %v5485
      %v5550 = vsub.f32 0.0, %v5486
      %v5551 = vsub.f32 0.0, %v5487
      %v5552 = vsub.f32 0.0, %v5488
      %v5553 = vsub.f32 0.0, %v5489
      %v5554 = vsel %vm5490, %v5458, %v5522
      %v5555 = vsel %vm5491, %v5459, %v5523
      %v5556 = vsel %vm5492, %v5460, %v5524
      %v5557 = vsel %vm5493, %v5461, %v5525
      %v5558 = vsel %vm5494, %v5462, %v5526
      %v5559 = vsel %vm5495, %v5463, %v5527
      %v5560 = vsel %vm5496, %v5464, %v5528
      %v5561 = vsel %vm5497, %v5465, %v5529
      %v5562 = vsel %vm5498, %v5466, %v5530
      %v5563 = vsel %vm5499, %v5467, %v5531
      %v5564 = vsel %vm5500, %v5468, %v5532
      %v5565 = vsel %vm5501, %v5469, %v5533
      %v5566 = vsel %vm5502, %v5470, %v5534
      %v5567 = vsel %vm5503, %v5471, %v5535
      %v5568 = vsel %vm5504, %v5472, %v5536
      %v5569 = vsel %vm5505, %v5473, %v5537
      %v5570 = vsel %vm5506, %v5474, %v5538
      %v5571 = vsel %vm5507, %v5475, %v5539
      %v5572 = vsel %vm5508, %v5476, %v5540
      %v5573 = vsel %vm5509, %v5477, %v5541
      %v5574 = vsel %vm5510, %v5478, %v5542
      %v5575 = vsel %vm5511, %v5479, %v5543
      %v5576 = vsel %vm5512, %v5480, %v5544
      %v5577 = vsel %vm5513, %v5481, %v5545
      %v5578 = vsel %vm5514, %v5482, %v5546
      %v5579 = vsel %vm5515, %v5483, %v5547
      %v5580 = vsel %vm5516, %v5484, %v5548
      %v5581 = vsel %vm5517, %v5485, %v5549
      %v5582 = vsel %vm5518, %v5486, %v5550
      %v5583 = vsel %vm5519, %v5487, %v5551
      %v5584 = vsel %vm5520, %v5488, %v5552
      %v5585 = vsel %vm5521, %v5489, %v5553
      %v5586 = vadd.f32 %v5554, 1.0
      %v5587 = vadd.f32 %v5555, 1.0
      %v5588 = vadd.f32 %v5556, 1.0
      %v5589 = vadd.f32 %v5557, 1.0
      %v5590 = vadd.f32 %v5558, 1.0
      %v5591 = vadd.f32 %v5559, 1.0
      %v5592 = vadd.f32 %v5560, 1.0
      %v5593 = vadd.f32 %v5561, 1.0
      %v5594 = vadd.f32 %v5562, 1.0
      %v5595 = vadd.f32 %v5563, 1.0
      %v5596 = vadd.f32 %v5564, 1.0
      %v5597 = vadd.f32 %v5565, 1.0
      %v5598 = vadd.f32 %v5566, 1.0
      %v5599 = vadd.f32 %v5567, 1.0
      %v5600 = vadd.f32 %v5568, 1.0
      %v5601 = vadd.f32 %v5569, 1.0
      %v5602 = vadd.f32 %v5570, 1.0
      %v5603 = vadd.f32 %v5571, 1.0
      %v5604 = vadd.f32 %v5572, 1.0
      %v5605 = vadd.f32 %v5573, 1.0
      %v5606 = vadd.f32 %v5574, 1.0
      %v5607 = vadd.f32 %v5575, 1.0
      %v5608 = vadd.f32 %v5576, 1.0
      %v5609 = vadd.f32 %v5577, 1.0
      %v5610 = vadd.f32 %v5578, 1.0
      %v5611 = vadd.f32 %v5579, 1.0
      %v5612 = vadd.f32 %v5580, 1.0
      %v5613 = vadd.f32 %v5581, 1.0
      %v5614 = vadd.f32 %v5582, 1.0
      %v5615 = vadd.f32 %v5583, 1.0
      %v5616 = vadd.f32 %v5584, 1.0
      %v5617 = vadd.f32 %v5585, 1.0
      %v5618 = vmul.f32 %v4370, %v5586
      %v5619 = vmul.f32 %v4371, %v5587
      %v5620 = vmul.f32 %v4372, %v5588
      %v5621 = vmul.f32 %v4373, %v5589
      %v5622 = vmul.f32 %v4374, %v5590
      %v5623 = vmul.f32 %v4375, %v5591
      %v5624 = vmul.f32 %v4376, %v5592
      %v5625 = vmul.f32 %v4377, %v5593
      %v5626 = vmul.f32 %v4378, %v5594
      %v5627 = vmul.f32 %v4379, %v5595
      %v5628 = vmul.f32 %v4380, %v5596
      %v5629 = vmul.f32 %v4381, %v5597
      %v5630 = vmul.f32 %v4382, %v5598
      %v5631 = vmul.f32 %v4383, %v5599
      %v5632 = vmul.f32 %v4384, %v5600
      %v5633 = vmul.f32 %v4385, %v5601
      %v5634 = vmul.f32 %v4386, %v5602
      %v5635 = vmul.f32 %v4387, %v5603
      %v5636 = vmul.f32 %v4388, %v5604
      %v5637 = vmul.f32 %v4389, %v5605
      %v5638 = vmul.f32 %v4390, %v5606
      %v5639 = vmul.f32 %v4391, %v5607
      %v5640 = vmul.f32 %v4392, %v5608
      %v5641 = vmul.f32 %v4393, %v5609
      %v5642 = vmul.f32 %v4394, %v5610
      %v5643 = vmul.f32 %v4395, %v5611
      %v5644 = vmul.f32 %v4396, %v5612
      %v5645 = vmul.f32 %v4397, %v5613
      %v5646 = vmul.f32 %v4398, %v5614
      %v5647 = vmul.f32 %v4399, %v5615
      %v5648 = vmul.f32 %v4400, %v5616
      %v5649 = vmul.f32 %v4401, %v5617
      %5650 = vst.msk [vmem:[%s170] sm:$0xff] %vm696, %v5618
      %5651 = vst.msk [vmem:[%s170 + $0x8] sm:$0xff] %vm696, %v5619
      %5652 = vst.msk [vmem:[%s170 + $0x10] sm:$0xff] %vm696, %v5620
      %5653 = vst.msk [vmem:[%s170 + $0x18] sm:$0xff] %vm696, %v5621
      %5654 = vst.msk [vmem:[%s170 + $0x20] sm:$0xff] %vm696, %v5622
      %5655 = vst.msk [vmem:[%s170 + $0x28] sm:$0xff] %vm696, %v5623
      %5656 = vst.msk [vmem:[%s170 + $0x30] sm:$0xff] %vm696, %v5624
      %5657 = vst.msk [vmem:[%s170 + $0x38] sm:$0xff] %vm696, %v5625
      %5658 = vst.msk [vmem:[%s170 + $0x40] sm:$0xff] %vm696, %v5626
      %5659 = vst.msk [vmem:[%s170 + $0x48] sm:$0xff] %vm696, %v5627
      %5660 = vst.msk [vmem:[%s170 + $0x50] sm:$0xff] %vm696, %v5628
      %5661 = vst.msk [vmem:[%s170 + $0x58] sm:$0xff] %vm696, %v5629
      %5662 = vst.msk [vmem:[%s170 + $0x60] sm:$0xff] %vm696, %v5630
      %5663 = vst.msk [vmem:[%s170 + $0x68] sm:$0xff] %vm696, %v5631
      %5664 = vst.msk [vmem:[%s170 + $0x70] sm:$0xff] %vm696, %v5632
      %5665 = vst.msk [vmem:[%s170 + $0x78] sm:$0xff] %vm696, %v5633
      %5666 = vst.msk [vmem:[%s170 + $0x80] sm:$0xff] %vm696, %v5634
      %5667 = vst.msk [vmem:[%s170 + $0x88] sm:$0xff] %vm696, %v5635
      %5668 = vst.msk [vmem:[%s170 + $0x90] sm:$0xff] %vm696, %v5636
      %5669 = vst.msk [vmem:[%s170 + $0x98] sm:$0xff] %vm696, %v5637
      %5670 = vst.msk [vmem:[%s170 + $0xa0] sm:$0xff] %vm696, %v5638
      %5671 = vst.msk [vmem:[%s170 + $0xa8] sm:$0xff] %vm696, %v5639
      %5672 = vst.msk [vmem:[%s170 + $0xb0] sm:$0xff] %vm696, %v5640
      %5673 = vst.msk [vmem:[%s170 + $0xb8] sm:$0xff] %vm696, %v5641
      %5674 = vst.msk [vmem:[%s170 + $0xc0] sm:$0xff] %vm696, %v5642
      %5675 = vst.msk [vmem:[%s170 + $0xc8] sm:$0xff] %vm696, %v5643
      %5676 = vst.msk [vmem:[%s170 + $0xd0] sm:$0xff] %vm696, %v5644
      %5677 = vst.msk [vmem:[%s170 + $0xd8] sm:$0xff] %vm696, %v5645
      %5678 = vst.msk [vmem:[%s170 + $0xe0] sm:$0xff] %vm696, %v5646
      %5679 = vst.msk [vmem:[%s170 + $0xe8] sm:$0xff] %vm696, %v5647
      %5680 = vst.msk [vmem:[%s170 + $0xf0] sm:$0xff] %vm696, %v5648
      %5681 = vst.msk [vmem:[%s170 + $0xf8] sm:$0xff] %vm696, %v5649
      %p5682 = scmp.lt.s32.totalorder %s14, 1
      %s5683 = scalar_select %p5682, %s14, 1
      %s5684 = smul.addr %s5683, 32
      %s5685 = smul.addr %s5684, 8
      %s5686 = scalar_lea.vmem %s3, %s5685
      // Predicated region
      $region33: #{rcab_forward.4} parent=31 // pred_check
        %p5687 = pneg %p100
      $region34: #{rcab_forward.4} parent=31 // pred_check_branch
        %5689 = sbr.rel (%p5687) target = $region36
      $region35: #{rcab_forward.4} parent=31 // pred_region
        _
      $region36: #{rcab_forward.4} parent=31 // pred_fallthru
        _
    $region32: #{rcab_forward.4} parent=5 // pred_fallthru
      _
    %p5690 = scmp.le.s32.totalorder 2, %s9
    // Predicated region
    $region37: #{rcab_forward.4} parent=5 // pred_check
      %p5691 = pneg %p5690
    $region38: #{rcab_forward.4} parent=5 // pred_check_branch
      %5693 = sbr.rel (%p5691) target = $region40
    $region39: #{rcab_forward.4} parent=5 // pred_region
      %s5694 = ssub.s32 %s9, 2
      // Predicated region
      $region41: #{rcab_forward.4} parent=39 // pred_check
        %p5695 = pneg %p106
      $region42: #{rcab_forward.4} parent=39 // pred_check_branch
        %5697 = sbr.rel (%p5695) target = $region44
      $region43: #{rcab_forward.4} parent=39 // pred_region
        %p5698 = scmp.lt.s32.totalorder %s15, 1
        %s5699 = scalar_select %p5698, %s15, 1
        %s5700 = smul.addr %s5699, 32
        %s5701 = smul.addr %s5700, 8
        %s5702 = scalar_lea.vmem %s3, %s5701
      $region44: #{rcab_forward.4} parent=39 // pred_fallthru
        _
    $region40: #{rcab_forward.4} parent=5 // pred_fallthru
      _
  $region6: #{rcab_forward.4} parent=0 // loop_footer
    %s13 = sadd.s32 1, %s9
  $region7: #{rcab_forward.4} parent=0 // loop_footer_branch
    %8 = sbr.rel target = $region3
  $region8: #{rcab_forward.4} parent=0 // loop_exit
    _

// kernel: rcab_forward.7
$region0: #{rcab_forward.7}
  #allocation0 [shape = 'u32[]', space=smem, size = 0x4, offset = 0x4, fixed_abs, tag = 'smem constant byte address 0x4 - core index']
  #allocation1 [shape = 'u32[72,128]{1,0:T(1,128)}', space=vmem, size = 0x9000, scoped, tag = 'internal scratch']
  %s0 = inlined_call_operand.vmem [shape: bf16[2,18,18,64], index: 0, kind: input, shape index: {}]
  %s1 = inlined_call_operand.vmem [shape: bf16[9,64,64], index: 1, kind: input, shape index: {}]
  %s2 = inlined_call_operand.vmem [shape: f32[1,64], index: 2, kind: input, shape index: {}]
  %s3 = inlined_call_operand.vmem [shape: f32[2,1,64], index: 3, kind: output, shape index: {}]
  %s4 = sld [smem:[#allocation0]]
  $region45: #{rcab_forward.7} parent=0
    _
  %s6 = ssub.s32 1, %s4
  %s7 = scalar_select 0, %s6, %s4
  loop: start=0, step=1, limit=4
  $region2: #{rcab_forward.7} parent=0 // loop_pre_header
    _
  $region3: #{rcab_forward.7} parent=0 // loop_header
    %s9 = sphi 0, %s13
    %p10 = scmp.ge.s32.totalorder %s9, 4
    %s19 = sphi 0, %s21
    %s22 = sphi 0, %s19
    %s23 = sphi 0, %s22
    %s39 = sphi 0, %s23
    %s43 = sphi 0, %s43
    %s45 = sphi 0, %s43
    %s46 = sphi 0, %s45
    %s60 = sphi 0, %s46
    %s64 = sphi 0, %s64
    %s66 = sphi 0, %s64
    %s67 = sphi 0, %s66
    %s81 = sphi 0, %s67
    %s87 = sphi 0, %s89
    %s90 = sphi 0, %s87
    %s91 = sphi 0, %s90
    %s107 = sphi 0, %s91
  $region4: #{rcab_forward.7} parent=0 // loop_header_branch
    %12 = sbr.rel (%p10) target = $region8
  $region5: #{rcab_forward.7} parent=0 // loop_body
    %s14 = ssub.s32 %s9, 1
    %s15 = ssub.s32 %s9, 2
    %s16 = sadd.s32 %s9, 1
    %s17 = ssub.s32 %s9, %s16
    %p18 = scmp.eq.s32.totalorder %s17, 0
    %s20 = sadd.s32 %s19, 1
    %s21 = scalar_select %p18, %s19, %s20
    %p24 = pneg %p18
    %p25 = scmp.eq.s32.totalorder %s9, 1
    %p26 = por %p24, %p25
    %p27 = scmp.ne.s32.totalorder %s19, %s22
    %p28 = scmp.eq.s32.totalorder %s9, 0
    %p29 = por %p27, %p28
    %p30 = scmp.ne.s32.totalorder %s19, %s22
    %p31 = scmp.eq.s32.totalorder %s14, 1
    %p32 = por %p30, %p31
    %p33 = scmp.ne.s32.totalorder %s22, %s23
    %p34 = scmp.eq.s32.totalorder %s14, 0
    %p35 = por %p33, %p34
    %p36 = scmp.ne.s32.totalorder %s22, %s23
    %p37 = scmp.eq.s32.totalorder %s15, 1
    %p38 = por %p36, %p37
    %p40 = scmp.ne.s32.totalorder %s23, %s39
    %p41 = scmp.eq.s32.totalorder %s15, 0
    %p42 = por %p40, %p41
    %s44 = sadd.s32 %s43, 1
    %p47 = scmp.eq.s32.totalorder %s9, 1
    %p48 = scmp.ne.s32.totalorder %s43, %s45
    %p49 = scmp.eq.s32.totalorder %s9, 0
    %p50 = por %p48, %p49
    %p51 = scmp.ne.s32.totalorder %s43, %s45
    %p52 = scmp.eq.s32.totalorder %s14, 1
    %p53 = por %p51, %p52
    %p54 = scmp.ne.s32.totalorder %s45, %s46
    %p55 = scmp.eq.s32.totalorder %s14, 0
    %p56 = por %p54, %p55
    %p57 = scmp.ne.s32.totalorder %s45, %s46
    %p58 = scmp.eq.s32.totalorder %s15, 1
    %p59 = por %p57, %p58
    %p61 = scmp.ne.s32.totalorder %s46, %s60
    %p62 = scmp.eq.s32.totalorder %s15, 0
    %p63 = por %p61, %p62
    %s65 = sadd.s32 %s64, 1
    %p68 = scmp.eq.s32.totalorder %s9, 1
    %p69 = scmp.ne.s32.totalorder %s64, %s66
    %p70 = scmp.eq.s32.totalorder %s9, 0
    %p71 = por %p69, %p70
    %p72 = scmp.ne.s32.totalorder %s64, %s66
    %p73 = scmp.eq.s32.totalorder %s14, 1
    %p74 = por %p72, %p73
    %p75 = scmp.ne.s32.totalorder %s66, %s67
    %p76 = scmp.eq.s32.totalorder %s14, 0
    %p77 = por %p75, %p76
    %p78 = scmp.ne.s32.totalorder %s66, %s67
    %p79 = scmp.eq.s32.totalorder %s15, 1
    %p80 = por %p78, %p79
    %p82 = scmp.ne.s32.totalorder %s67, %s81
    %p83 = scmp.eq.s32.totalorder %s15, 0
    %p84 = por %p82, %p83
    %s85 = ssub.s32 %s9, %s16
    %p86 = scmp.eq.s32.totalorder %s85, 0
    %s88 = sadd.s32 %s87, 1
    %s89 = scalar_select %p86, %s87, %s88
    %p92 = pneg %p86
    %p93 = scmp.eq.s32.totalorder %s9, 1
    %p94 = por %p92, %p93
    %p95 = scmp.ne.s32.totalorder %s87, %s90
    %p96 = scmp.eq.s32.totalorder %s9, 0
    %p97 = por %p95, %p96
    %p98 = scmp.ne.s32.totalorder %s87, %s90
    %p99 = scmp.eq.s32.totalorder %s14, 1
    %p100 = por %p98, %p99
    %p101 = scmp.ne.s32.totalorder %s90, %s91
    %p102 = scmp.eq.s32.totalorder %s14, 0
    %p103 = por %p101, %p102
    %p104 = scmp.ne.s32.totalorder %s90, %s91
    %p105 = scmp.eq.s32.totalorder %s15, 1
    %p106 = por %p104, %p105
    %p108 = scmp.ne.s32.totalorder %s91, %s107
    %p109 = scmp.eq.s32.totalorder %s15, 0
    %p110 = por %p108, %p109
    %p111 = scmp.le.s32.totalorder 1, %s9
    %p112 = scmp.lt.s32.totalorder %s9, 3
    %p113 = pnand %p111, %p112
    %p114 = pneg %p113
    // Predicated region
    $region9: #{rcab_forward.7} parent=5 // pred_check
      _
    $region10: #{rcab_forward.7} parent=5 // pred_check_branch
      %116 = sbr.rel (%p113) target = $region12
    $region11: #{rcab_forward.7} parent=5 // pred_region
      %s117 = ssub.s32 %s9, 1
      // Predicated region
      $region13: #{rcab_forward.7} parent=11 // pred_check
        %p118 = pneg %p56
      $region14: #{rcab_forward.7} parent=11 // pred_check_branch
        %120 = sbr.rel (%p118) target = $region16
      $region15: #{rcab_forward.7} parent=11 // pred_region
        _
      $region16: #{rcab_forward.7} parent=11 // pred_fallthru
        _
      // Predicated region
      $region17: #{rcab_forward.7} parent=11 // pred_check
        %p121 = pneg %p77
      $region18: #{rcab_forward.7} parent=11 // pred_check_branch
        %123 = sbr.rel (%p121) target = $region20
      $region19: #{rcab_forward.7} parent=11 // pred_region
        _
      $region20: #{rcab_forward.7} parent=11 // pred_fallthru
        _
    $region12: #{rcab_forward.7} parent=5 // pred_fallthru
      _
    %p124 = scmp.lt.s32.totalorder %s9, 2
    // Predicated region
    $region21: #{rcab_forward.7} parent=5 // pred_check
      %p125 = pneg %p124
    $region22: #{rcab_forward.7} parent=5 // pred_check_branch
      %127 = sbr.rel (%p125) target = $region24
    $region23: #{rcab_forward.7} parent=5 // pred_region
      // Predicated region
      $region25: #{rcab_forward.7} parent=23 // pred_check
        %p128 = pneg %p29
      $region26: #{rcab_forward.7} parent=23 // pred_check_branch
        %130 = sbr.rel (%p128) target = $region28
      $region27: #{rcab_forward.7} parent=23 // pred_region
        %p131 = scmp.lt.s32.totalorder %s9, 1
        %s132 = scalar_select %p131, %s9, 1
        %s133 = smul.addr %s132, 54
        %s134 = smul.addr %s133, 4
        %s135 = scalar_lea.vmem %s0, %s134
      $region28: #{rcab_forward.7} parent=23 // pred_fallthru
        _
    $region24: #{rcab_forward.7} parent=5 // pred_fallthru
      _
    %p136 = scmp.le.s32.totalorder 1, %s9
    %p137 = scmp.lt.s32.totalorder %s9, 3
    %p138 = pnand %p136, %p137
    %p139 = pneg %p138
    // Predicated region
    $region29: #{rcab_forward.7} parent=5 // pred_check
      _
    $region30: #{rcab_forward.7} parent=5 // pred_check_branch
      %141 = sbr.rel (%p138) target = $region32
    $region31: #{rcab_forward.7} parent=5 // pred_region
      %s142 = ssub.s32 %s9, 1
      %p143 = scmp.lt.s32.totalorder %s14, 1
      %s144 = scalar_select %p143, %s14, 1
      %s145 = smul.addr %s144, 54
      %s146 = smul.addr %s145, 4
      %s147 = scalar_lea.vmem %s0, %s146
      %p148 = pneg %p35
      %p149 = pneg %p32
      %p150 = pneg %p56
      %p151 = pneg %p53
      %p152 = pneg %p77
      %p153 = pneg %p74
      %p154 = pneg %p103
      %p155 = pneg %p100
      %p156 = scmp.lt.s32.totalorder %s14, 1
      %s157 = scalar_select %p156, %s14, 1
      %s158 = scalar_lea.vmem %s3, %s157
      %p159 = scmp.lt.s32.totalorder %s14, 1
      %s160 = scalar_select %p159, %s14, 1
      %s161 = smul.addr %s160, 54
      %s162 = smul.addr %s161, 4
      %s163 = scalar_lea.vmem %s0, %s162
      %p164 = scmp.lt.s32.totalorder %s14, 1
      %s165 = scalar_select %p164, %s14, 1
      %s166 = scalar_lea.vmem %s3, %s165
      %v168 = vld [vmem:[%s163] sm:$0xf]
      %v169 = vld [vmem:[%s163 + $0x4] sm:$0xf]
      %v170 = vld [vmem:[%s163 + $0xc] sm:$0xf]
      %v171 = vld [vmem:[%s163 + $0x10] sm:$0xf]
      %v172 = vld [vmem:[%s163 + $0x18] sm:$0xf]
      %v173 = vld [vmem:[%s163 + $0x1c] sm:$0xf]
      %v174 = vld [vmem:[%s163 + $0x24] sm:$0xf]
      %v175 = vld [vmem:[%s163 + $0x28] sm:$0xf]
      %v176 = vld [vmem:[%s163 + $0x30] sm:$0xf]
      %v177 = vld [vmem:[%s163 + $0x34] sm:$0xf]
      %v178 = vld [vmem:[%s163 + $0x3c] sm:$0xf]
      %v179 = vld [vmem:[%s163 + $0x40] sm:$0xf]
      %v180 = vld [vmem:[%s163 + $0x48] sm:$0xf]
      %v181 = vld [vmem:[%s163 + $0x4c] sm:$0xf]
      %v182 = vld [vmem:[%s163 + $0x54] sm:$0xf]
      %v183 = vld [vmem:[%s163 + $0x58] sm:$0xf]
      %v184 = vld [vmem:[%s163 + $0x60] sm:$0xf]
      %v185 = vld [vmem:[%s163 + $0x64] sm:$0xf]
      %v186 = vld [vmem:[%s163 + $0x6c] sm:$0xf]
      %v187 = vld [vmem:[%s163 + $0x70] sm:$0xf]
      %v188 = vld [vmem:[%s163 + $0x78] sm:$0xf]
      %v189 = vld [vmem:[%s163 + $0x7c] sm:$0xf]
      %v190 = vld [vmem:[%s163 + $0x84] sm:$0xf]
      %v191 = vld [vmem:[%s163 + $0x88] sm:$0xf]
      %v192 = vld [vmem:[%s163 + $0x90] sm:$0xf]
      %v193 = vld [vmem:[%s163 + $0x94] sm:$0xf]
      %v194 = vld [vmem:[%s163 + $0x9c] sm:$0xf]
      %v195 = vld [vmem:[%s163 + $0xa0] sm:$0xf]
      %v196 = vld [vmem:[%s163 + $0xa8] sm:$0xf]
      %v197 = vld [vmem:[%s163 + $0xac] sm:$0xf]
      %v198 = vld [vmem:[%s163 + $0xb4] sm:$0xf]
      %v199 = vld [vmem:[%s163 + $0xb8] sm:$0xf]
      %v200 = vld [vmem:[%s1] sm:$0xf]
      %v201 = vld [vmem:[%s1 + $0x4] sm:$0xf]
      %v202 = vld [vmem:[%s1 + $0x8] sm:$0xf]
      %v203 = vld [vmem:[%s1 + $0xc] sm:$0xf]
      %v204 = vld [vmem:[%s1 + $0x10] sm:$0xf]
      %v205 = vld [vmem:[%s1 + $0x14] sm:$0xf]
      %v206 = vld [vmem:[%s1 + $0x18] sm:$0xf]
      %v207 = vld [vmem:[%s1 + $0x1c] sm:$0xf]
      %v208 = vld [vmem:[%s163 + $0x8] sm:$0x1]
      %v209 = vld [vmem:[%s163 + $0x14] sm:$0x1]
      %v210 = vld [vmem:[%s163 + $0x20] sm:$0x1]
      %v211 = vld [vmem:[%s163 + $0x2c] sm:$0x1]
      %v212 = vld [vmem:[%s163 + $0x38] sm:$0x1]
      %v213 = vld [vmem:[%s163 + $0x44] sm:$0x1]
      %v214 = vld [vmem:[%s163 + $0x50] sm:$0x1]
      %v215 = vld [vmem:[%s163 + $0x5c] sm:$0x1]
      %v216 = vld [vmem:[%s163 + $0x68] sm:$0x1]
      %v217 = vld [vmem:[%s163 + $0x74] sm:$0x1]
      %v218 = vld [vmem:[%s163 + $0x80] sm:$0x1]
      %v219 = vld [vmem:[%s163 + $0x8c] sm:$0x1]
      %v220 = vld [vmem:[%s163 + $0x98] sm:$0x1]
      %v221 = vld [vmem:[%s163 + $0xa4] sm:$0x1]
      %v222 = vld [vmem:[%s163 + $0xb0] sm:$0x1]
      %v223 = vld [vmem:[%s163 + $0xbc] sm:$0x1]
      %vm224 = vsmask.f32 3328
      %vm225 = vsmask.f32 7440
      %vm226 = vmor %vm224, %vm225
      %v228 = vshrl.u32 %v168, 16
      %v230 = vrot.slane %v228, 4
      %v231 = vshll.u32 %v168, 16
      %v233 = vrot.slane %v231, 5
      %v234 = vor.u32 %v230, %v233
      %v235 = vrot.slane %v234, 4
      %v237 = vshll.u32 %v169, 16
      %v239 = vrot.slane %v237, 5
      %v240 = vsel %vm226, %v235, %v239
      %v241 = vshrl.u32 %v169, 16
      %v243 = vrot.slane %v241, 4
      %v244 = vor.u32 %v243, %v239
      %v245 = vrot.slane %v244, 4
      %v247 = vshll.u32 %v208, 16
      %v249 = vrot.slane %v247, 5
      %v250 = vsel %vm226, %v245, %v249
      %v252 = vshrl.u32 %v170, 16
      %v254 = vrot.slane %v252, 4
      %v255 = vshll.u32 %v170, 16
      %v257 = vrot.slane %v255, 5
      %v258 = vor.u32 %v254, %v257
      %v259 = vrot.slane %v258, 4
      %v261 = vshll.u32 %v171, 16
      %v263 = vrot.slane %v261, 5
      %v264 = vsel %vm226, %v259, %v263
      %v265 = vshrl.u32 %v171, 16
      %v267 = vrot.slane %v265, 4
      %v268 = vor.u32 %v267, %v263
      %v269 = vrot.slane %v268, 4
      %v271 = vshll.u32 %v209, 16
      %v273 = vrot.slane %v271, 5
      %v274 = vsel %vm226, %v269, %v273
      %v276 = vshrl.u32 %v172, 16
      %v278 = vrot.slane %v276, 4
      %v279 = vshll.u32 %v172, 16
      %v281 = vrot.slane %v279, 5
      %v282 = vor.u32 %v278, %v281
      %v283 = vrot.slane %v282, 4
      %v285 = vshll.u32 %v173, 16
      %v287 = vrot.slane %v285, 5
      %v288 = vsel %vm226, %v283, %v287
      %v289 = vshrl.u32 %v173, 16
      %v291 = vrot.slane %v289, 4
      %v292 = vor.u32 %v291, %v287
      %v293 = vrot.slane %v292, 4
      %v295 = vshll.u32 %v210, 16
      %v297 = vrot.slane %v295, 5
      %v298 = vsel %vm226, %v293, %v297
      %v300 = vshrl.u32 %v174, 16
      %v302 = vrot.slane %v300, 4
      %v303 = vshll.u32 %v174, 16
      %v305 = vrot.slane %v303, 5
      %v306 = vor.u32 %v302, %v305
      %v307 = vrot.slane %v306, 4
      %v309 = vshll.u32 %v175, 16
      %v311 = vrot.slane %v309, 5
      %v312 = vsel %vm226, %v307, %v311
      %v313 = vshrl.u32 %v175, 16
      %v315 = vrot.slane %v313, 4
      %v316 = vor.u32 %v315, %v311
      %v317 = vrot.slane %v316, 4
      %v319 = vshll.u32 %v211, 16
      %v321 = vrot.slane %v319, 5
      %v322 = vsel %vm226, %v317, %v321
      %v324 = vshrl.u32 %v176, 16
      %v326 = vrot.slane %v324, 4
      %v327 = vshll.u32 %v176, 16
      %v329 = vrot.slane %v327, 5
      %v330 = vor.u32 %v326, %v329
      %v331 = vrot.slane %v330, 4
      %v333 = vshll.u32 %v177, 16
      %v335 = vrot.slane %v333, 5
      %v336 = vsel %vm226, %v331, %v335
      %v337 = vshrl.u32 %v177, 16
      %v339 = vrot.slane %v337, 4
      %v340 = vor.u32 %v339, %v335
      %v341 = vrot.slane %v340, 4
      %v343 = vshll.u32 %v212, 16
      %v345 = vrot.slane %v343, 5
      %v346 = vsel %vm226, %v341, %v345
      %v348 = vshrl.u32 %v178, 16
      %v350 = vrot.slane %v348, 4
      %v351 = vshll.u32 %v178, 16
      %v353 = vrot.slane %v351, 5
      %v354 = vor.u32 %v350, %v353
      %v355 = vrot.slane %v354, 4
      %v357 = vshll.u32 %v179, 16
      %v359 = vrot.slane %v357, 5
      %v360 = vsel %vm226, %v355, %v359
      %v361 = vshrl.u32 %v179, 16
      %v363 = vrot.slane %v361, 4
      %v364 = vor.u32 %v363, %v359
      %v365 = vrot.slane %v364, 4
      %v367 = vshll.u32 %v213, 16
      %v369 = vrot.slane %v367, 5
      %v370 = vsel %vm226, %v365, %v369
      %v372 = vshrl.u32 %v180, 16
      %v374 = vrot.slane %v372, 4
      %v375 = vshll.u32 %v180, 16
      %v377 = vrot.slane %v375, 5
      %v378 = vor.u32 %v374, %v377
      %v379 = vrot.slane %v378, 4
      %v381 = vshll.u32 %v181, 16
      %v383 = vrot.slane %v381, 5
      %v384 = vsel %vm226, %v379, %v383
      %v385 = vshrl.u32 %v181, 16
      %v387 = vrot.slane %v385, 4
      %v388 = vor.u32 %v387, %v383
      %v389 = vrot.slane %v388, 4
      %v391 = vshll.u32 %v214, 16
      %v393 = vrot.slane %v391, 5
      %v394 = vsel %vm226, %v389, %v393
      %v396 = vshrl.u32 %v182, 16
      %v398 = vrot.slane %v396, 4
      %v399 = vshll.u32 %v182, 16
      %v401 = vrot.slane %v399, 5
      %v402 = vor.u32 %v398, %v401
      %v403 = vrot.slane %v402, 4
      %v405 = vshll.u32 %v183, 16
      %v407 = vrot.slane %v405, 5
      %v408 = vsel %vm226, %v403, %v407
      %v409 = vshrl.u32 %v183, 16
      %v411 = vrot.slane %v409, 4
      %v412 = vor.u32 %v411, %v407
      %v413 = vrot.slane %v412, 4
      %v415 = vshll.u32 %v215, 16
      %v417 = vrot.slane %v415, 5
      %v418 = vsel %vm226, %v413, %v417
      %v420 = vshrl.u32 %v184, 16
      %v422 = vrot.slane %v420, 4
      %v423 = vshll.u32 %v184, 16
      %v425 = vrot.slane %v423, 5
      %v426 = vor.u32 %v422, %v425
      %v427 = vrot.slane %v426, 4
      %v429 = vshll.u32 %v185, 16
      %v431 = vrot.slane %v429, 5
      %v432 = vsel %vm226, %v427, %v431
      %v433 = vshrl.u32 %v185, 16
      %v435 = vrot.slane %v433, 4
      %v436 = vor.u32 %v435, %v431
      %v437 = vrot.slane %v436, 4
      %v439 = vshll.u32 %v216, 16
      %v441 = vrot.slane %v439, 5
      %v442 = vsel %vm226, %v437, %v441
      %v444 = vshrl.u32 %v186, 16
      %v446 = vrot.slane %v444, 4
      %v447 = vshll.u32 %v186, 16
      %v449 = vrot.slane %v447, 5
      %v450 = vor.u32 %v446, %v449
      %v451 = vrot.slane %v450, 4
      %v453 = vshll.u32 %v187, 16
      %v455 = vrot.slane %v453, 5
      %v456 = vsel %vm226, %v451, %v455
      %v457 = vshrl.u32 %v187, 16
      %v459 = vrot.slane %v457, 4
      %v460 = vor.u32 %v459, %v455
      %v461 = vrot.slane %v460, 4
      %v463 = vshll.u32 %v217, 16
      %v465 = vrot.slane %v463, 5
      %v466 = vsel %vm226, %v461, %v465
      %v468 = vshrl.u32 %v188, 16
      %v470 = vrot.slane %v468, 4
      %v471 = vshll.u32 %v188, 16
      %v473 = vrot.slane %v471, 5
      %v474 = vor.u32 %v470, %v473
      %v475 = vrot.slane %v474, 4
      %v477 = vshll.u32 %v189, 16
      %v479 = vrot.slane %v477, 5
      %v480 = vsel %vm226, %v475, %v479
      %v481 = vshrl.u32 %v189, 16
      %v483 = vrot.slane %v481, 4
      %v484 = vor.u32 %v483, %v479
      %v485 = vrot.slane %v484, 4
      %v487 = vshll.u32 %v218, 16
      %v489 = vrot.slane %v487, 5
      %v490 = vsel %vm226, %v485, %v489
      %v492 = vshrl.u32 %v190, 16
      %v494 = vrot.slane %v492, 4
      %v495 = vshll.u32 %v190, 16
      %v497 = vrot.slane %v495, 5
      %v498 = vor.u32 %v494, %v497
      %v499 = vrot.slane %v498, 4
      %v501 = vshll.u32 %v191, 16
      %v503 = vrot.slane %v501, 5
      %v504 = vsel %vm226, %v499, %v503
      %v505 = vshrl.u32 %v191, 16
      %v507 = vrot.slane %v505, 4
      %v508 = vor.u32 %v507, %v503
      %v509 = vrot.slane %v508, 4
      %v511 = vshll.u32 %v219, 16
      %v513 = vrot.slane %v511, 5
      %v514 = vsel %vm226, %v509, %v513
      %v516 = vshrl.u32 %v192, 16
      %v518 = vrot.slane %v516, 4
      %v519 = vshll.u32 %v192, 16
      %v521 = vrot.slane %v519, 5
      %v522 = vor.u32 %v518, %v521
      %v523 = vrot.slane %v522, 4
      %v525 = vshll.u32 %v193, 16
      %v527 = vrot.slane %v525, 5
      %v528 = vsel %vm226, %v523, %v527
      %v529 = vshrl.u32 %v193, 16
      %v531 = vrot.slane %v529, 4
      %v532 = vor.u32 %v531, %v527
      %v533 = vrot.slane %v532, 4
      %v535 = vshll.u32 %v220, 16
      %v537 = vrot.slane %v535, 5
      %v538 = vsel %vm226, %v533, %v537
      %v540 = vshrl.u32 %v194, 16
      %v542 = vrot.slane %v540, 4
      %v543 = vshll.u32 %v194, 16
      %v545 = vrot.slane %v543, 5
      %v546 = vor.u32 %v542, %v545
      %v547 = vrot.slane %v546, 4
      %v549 = vshll.u32 %v195, 16
      %v551 = vrot.slane %v549, 5
      %v552 = vsel %vm226, %v547, %v551
      %v553 = vshrl.u32 %v195, 16
      %v555 = vrot.slane %v553, 4
      %v556 = vor.u32 %v555, %v551
      %v557 = vrot.slane %v556, 4
      %v559 = vshll.u32 %v221, 16
      %v561 = vrot.slane %v559, 5
      %v562 = vsel %vm226, %v557, %v561
      %v564 = vshrl.u32 %v196, 16
      %v566 = vrot.slane %v564, 4
      %v567 = vshll.u32 %v196, 16
      %v569 = vrot.slane %v567, 5
      %v570 = vor.u32 %v566, %v569
      %v571 = vrot.slane %v570, 4
      %v573 = vshll.u32 %v197, 16
      %v575 = vrot.slane %v573, 5
      %v576 = vsel %vm226, %v571, %v575
      %v577 = vshrl.u32 %v197, 16
      %v579 = vrot.slane %v577, 4
      %v580 = vor.u32 %v579, %v575
      %v581 = vrot.slane %v580, 4
      %v583 = vshll.u32 %v222, 16
      %v585 = vrot.slane %v583, 5
      %v586 = vsel %vm226, %v581, %v585
      %v588 = vshrl.u32 %v198, 16
      %v590 = vrot.slane %v588, 4
      %v591 = vshll.u32 %v198, 16
      %v593 = vrot.slane %v591, 5
      %v594 = vor.u32 %v590, %v593
      %v595 = vrot.slane %v594, 4
      %v597 = vshll.u32 %v199, 16
      %v599 = vrot.slane %v597, 5
      %v600 = vsel %vm226, %v595, %v599
      %v601 = vshrl.u32 %v199, 16
      %v603 = vrot.slane %v601, 4
      %v604 = vor.u32 %v603, %v599
      %v605 = vrot.slane %v604, 4
      %v607 = vshll.u32 %v223, 16
      %v609 = vrot.slane %v607, 5
      %v610 = vsel %vm226, %v605, %v609
      %s611 = scalar_lea.vmem %s1, 32
      %v612 = vld [vmem:[%s611] sm:$0xf]
      %v613 = vld [vmem:[%s611 + $0x4] sm:$0xf]
      %v614 = vld [vmem:[%s611 + $0x8] sm:$0xf]
      %v615 = vld [vmem:[%s611 + $0xc] sm:$0xf]
      %v616 = vld [vmem:[%s611 + $0x10] sm:$0xf]
      %v617 = vld [vmem:[%s611 + $0x14] sm:$0xf]
      %v618 = vld [vmem:[%s611 + $0x18] sm:$0xf]
      %v619 = vld [vmem:[%s611 + $0x1c] sm:$0xf]
      %v620 = vunpack.c.l.b16 %v240
      %v621 = vunpack.c.l.b16 %v250
      %v622 = vunpack.c.l.b16 %v264
      %v623 = vunpack.c.l.b16 %v274
      %v624 = vunpack.c.l.b16 %v288
      %v625 = vunpack.c.l.b16 %v298
      %v626 = vunpack.c.l.b16 %v312
      %v627 = vunpack.c.l.b16 %v322
      %v628 = vunpack.c.l.b16 %v336
      %v629 = vunpack.c.l.b16 %v346
      %v630 = vunpack.c.l.b16 %v360
      %v631 = vunpack.c.l.b16 %v370
      %v632 = vunpack.c.l.b16 %v384
      %v633 = vunpack.c.l.b16 %v394
      %v634 = vunpack.c.l.b16 %v408
      %v635 = vunpack.c.l.b16 %v418
      %v636 = vunpack.c.l.b16 %v432
      %v637 = vunpack.c.l.b16 %v442
      %v638 = vunpack.c.l.b16 %v456
      %v639 = vunpack.c.l.b16 %v466
      %v640 = vunpack.c.l.b16 %v480
      %v641 = vunpack.c.l.b16 %v490
      %v642 = vunpack.c.l.b16 %v504
      %v643 = vunpack.c.l.b16 %v514
      %v644 = vunpack.c.l.b16 %v528
      %v645 = vunpack.c.l.b16 %v538
      %v646 = vunpack.c.l.b16 %v552
      %v647 = vunpack.c.l.b16 %v562
      %v648 = vunpack.c.l.b16 %v576
      %v649 = vunpack.c.l.b16 %v586
      %v650 = vunpack.c.l.b16 %v600
      %v651 = vunpack.c.l.b16 %v610
      %v652 = vpack.c.b16 %v621, %v620
      %v653 = vpack.c.b16 %v623, %v622
      %v654 = vpack.c.b16 %v625, %v624
      %v655 = vpack.c.b16 %v627, %v626
      %v656 = vpack.c.b16 %v629, %v628
      %v657 = vpack.c.b16 %v631, %v630
      %v658 = vpack.c.b16 %v633, %v632
      %v659 = vpack.c.b16 %v635, %v634
      %v660 = vpack.c.b16 %v637, %v636
      %v661 = vpack.c.b16 %v639, %v638
      %v662 = vpack.c.b16 %v641, %v640
      %v663 = vpack.c.b16 %v643, %v642
      %v664 = vpack.c.b16 %v645, %v644
      %v665 = vpack.c.b16 %v647, %v646
      %v666 = vpack.c.b16 %v649, %v648
      %v667 = vpack.c.b16 %v651, %v650
      %v676 = vunpack.c.l.b16 %v612
      %v677 = vunpack.c.l.b16 %v613
      %v678 = vunpack.c.l.b16 %v614
      %v679 = vunpack.c.l.b16 %v615
      %v680 = vunpack.c.l.b16 %v616
      %v681 = vunpack.c.l.b16 %v617
      %v682 = vunpack.c.l.b16 %v618
      %v683 = vunpack.c.l.b16 %v619
      %v684 = vpack.c.b16 %v677, %v676
      %v685 = vpack.c.b16 %v679, %v678
      %v686 = vpack.c.b16 %v681, %v680
      %v687 = vpack.c.b16 %v683, %v682
      %vm692 = vcmask 523264
      %v694 = vsel %vm692, %v652, 0
      %v697 = vsel %vm692, %v653, 0
      %v700 = vsel %vm692, %v654, 0
      %v703 = vsel %vm692, %v655, 0
      %v706 = vsel %vm692, %v656, 0
      %v709 = vsel %vm692, %v657, 0
      %v712 = vsel %vm692, %v658, 0
      %v715 = vsel %vm692, %v659, 0
      %v718 = vsel %vm692, %v660, 0
      %v721 = vsel %vm692, %v661, 0
      %v724 = vsel %vm692, %v662, 0
      %v727 = vsel %vm692, %v663, 0
      %v730 = vsel %vm692, %v664, 0
      %v733 = vsel %vm692, %v665, 0
      %v736 = vsel %vm692, %v666, 0
      %v739 = vsel %vm692, %v667, 0
      %741 = vmatpush.bf16.msra.mxu0 0
      %742 = vmatpush.bf16.msra.mxu0 0
      %743 = vmatpush.bf16.msra.mxu0 0
      %744 = vmatpush.bf16.msra.mxu0 0
      %745 = vmatpush.bf16.msra.mxu0 %v687
      %746 = vmatpush.bf16.msra.mxu0 %v686
      %747 = vmatpush.bf16.msra.mxu0 %v685
      %748 = vmatpush.bf16.msra.mxu0 %v684
      %749 = vmatmul.bf16.gmra.mxu0 %v694
      %v750 = vpop.f32.mrf.mxu0
      %v751 = vadd.f32 0.0, %v750
      %v752 = vpop.f32.mrf.mxu0
      %v753 = vadd.f32 0.0, %v752
      %754 = vmatmul.bf16.gmra.mxu0 %v697
      %v755 = vpop.f32.mrf.mxu0
      %v756 = vadd.f32 0.0, %v755
      %v757 = vpop.f32.mrf.mxu0
      %v758 = vadd.f32 0.0, %v757
      %759 = vmatmul.bf16.gmra.mxu0 %v700
      %v760 = vpop.f32.mrf.mxu0
      %v761 = vadd.f32 0.0, %v760
      %v762 = vpop.f32.mrf.mxu0
      %v763 = vadd.f32 0.0, %v762
      %764 = vmatmul.bf16.gmra.mxu0 %v703
      %v765 = vpop.f32.mrf.mxu0
      %v766 = vadd.f32 0.0, %v765
      %v767 = vpop.f32.mrf.mxu0
      %v768 = vadd.f32 0.0, %v767
      %769 = vmatmul.bf16.gmra.mxu0 %v706
      %v770 = vpop.f32.mrf.mxu0
      %v771 = vadd.f32 0.0, %v770
      %v772 = vpop.f32.mrf.mxu0
      %v773 = vadd.f32 0.0, %v772
      %774 = vmatmul.bf16.gmra.mxu0 %v709
      %v775 = vpop.f32.mrf.mxu0
      %v776 = vadd.f32 0.0, %v775
      %v777 = vpop.f32.mrf.mxu0
      %v778 = vadd.f32 0.0, %v777
      %779 = vmatmul.bf16.gmra.mxu0 %v712
      %v780 = vpop.f32.mrf.mxu0
      %v781 = vadd.f32 0.0, %v780
      %v782 = vpop.f32.mrf.mxu0
      %v783 = vadd.f32 0.0, %v782
      %784 = vmatmul.bf16.gmra.mxu0 %v715
      %v785 = vpop.f32.mrf.mxu0
      %v786 = vadd.f32 0.0, %v785
      %v787 = vpop.f32.mrf.mxu0
      %v788 = vadd.f32 0.0, %v787
      %789 = vmatmul.bf16.gmra.mxu0 %v718
      %v790 = vpop.f32.mrf.mxu0
      %v791 = vadd.f32 0.0, %v790
      %v792 = vpop.f32.mrf.mxu0
      %v793 = vadd.f32 0.0, %v792
      %794 = vmatmul.bf16.gmra.mxu0 %v721
      %v795 = vpop.f32.mrf.mxu0
      %v796 = vadd.f32 0.0, %v795
      %v797 = vpop.f32.mrf.mxu0
      %v798 = vadd.f32 0.0, %v797
      %799 = vmatmul.bf16.gmra.mxu0 %v724
      %v800 = vpop.f32.mrf.mxu0
      %v801 = vadd.f32 0.0, %v800
      %v802 = vpop.f32.mrf.mxu0
      %v803 = vadd.f32 0.0, %v802
      %804 = vmatmul.bf16.gmra.mxu0 %v727
      %v805 = vpop.f32.mrf.mxu0
      %v806 = vadd.f32 0.0, %v805
      %v807 = vpop.f32.mrf.mxu0
      %v808 = vadd.f32 0.0, %v807
      %809 = vmatmul.bf16.gmra.mxu0 %v730
      %v810 = vpop.f32.mrf.mxu0
      %v811 = vadd.f32 0.0, %v810
      %v812 = vpop.f32.mrf.mxu0
      %v813 = vadd.f32 0.0, %v812
      %814 = vmatmul.bf16.gmra.mxu0 %v733
      %v815 = vpop.f32.mrf.mxu0
      %v816 = vadd.f32 0.0, %v815
      %v817 = vpop.f32.mrf.mxu0
      %v818 = vadd.f32 0.0, %v817
      %819 = vmatmul.bf16.gmra.mxu0 %v736
      %v820 = vpop.f32.mrf.mxu0
      %v821 = vadd.f32 0.0, %v820
      %v822 = vpop.f32.mrf.mxu0
      %v823 = vadd.f32 0.0, %v822
      %824 = vmatmul.bf16.gmra.mxu0 %v739
      %v825 = vpop.f32.mrf.mxu0
      %v826 = vadd.f32 0.0, %v825
      %v827 = vpop.f32.mrf.mxu0
      %v828 = vadd.f32 0.0, %v827
      %829 = vdwg.mxu0
      %v862 = vunpack.c.l.b16 %v168
      %v863 = vunpack.c.l.b16 %v169
      %v864 = vunpack.c.l.b16 %v170
      %v865 = vunpack.c.l.b16 %v171
      %v866 = vunpack.c.l.b16 %v172
      %v867 = vunpack.c.l.b16 %v173
      %v868 = vunpack.c.l.b16 %v174
      %v869 = vunpack.c.l.b16 %v175
      %v870 = vunpack.c.l.b16 %v176
      %v871 = vunpack.c.l.b16 %v177
      %v872 = vunpack.c.l.b16 %v178
      %v873 = vunpack.c.l.b16 %v179
      %v874 = vunpack.c.l.b16 %v180
      %v875 = vunpack.c.l.b16 %v181
      %v876 = vunpack.c.l.b16 %v182
      %v877 = vunpack.c.l.b16 %v183
      %v878 = vunpack.c.l.b16 %v184
      %v879 = vunpack.c.l.b16 %v185
      %v880 = vunpack.c.l.b16 %v186
      %v881 = vunpack.c.l.b16 %v187
      %v882 = vunpack.c.l.b16 %v188
      %v883 = vunpack.c.l.b16 %v189
      %v884 = vunpack.c.l.b16 %v190
      %v885 = vunpack.c.l.b16 %v191
      %v886 = vunpack.c.l.b16 %v192
      %v887 = vunpack.c.l.b16 %v193
      %v888 = vunpack.c.l.b16 %v194
      %v889 = vunpack.c.l.b16 %v195
      %v890 = vunpack.c.l.b16 %v196
      %v891 = vunpack.c.l.b16 %v197
      %v892 = vunpack.c.l.b16 %v198
      %v893 = vunpack.c.l.b16 %v199
      %v894 = vpack.c.b16 %v863, %v862
      %v895 = vpack.c.b16 %v865, %v864
      %v896 = vpack.c.b16 %v867, %v866
      %v897 = vpack.c.b16 %v869, %v868
      %v898 = vpack.c.b16 %v871, %v870
      %v899 = vpack.c.b16 %v873, %v872
      %v900 = vpack.c.b16 %v875, %v874
      %v901 = vpack.c.b16 %v877, %v876
      %v902 = vpack.c.b16 %v879, %v878
      %v903 = vpack.c.b16 %v881, %v880
      %v904 = vpack.c.b16 %v883, %v882
      %v905 = vpack.c.b16 %v885, %v884
      %v906 = vpack.c.b16 %v887, %v886
      %v907 = vpack.c.b16 %v889, %v888
      %v908 = vpack.c.b16 %v891, %v890
      %v909 = vpack.c.b16 %v893, %v892
      %v918 = vunpack.c.l.b16 %v200
      %v919 = vunpack.c.l.b16 %v201
      %v920 = vunpack.c.l.b16 %v202
      %v921 = vunpack.c.l.b16 %v203
      %v922 = vunpack.c.l.b16 %v204
      %v923 = vunpack.c.l.b16 %v205
      %v924 = vunpack.c.l.b16 %v206
      %v925 = vunpack.c.l.b16 %v207
      %v926 = vpack.c.b16 %v919, %v918
      %v927 = vpack.c.b16 %v921, %v920
      %v928 = vpack.c.b16 %v923, %v922
      %v929 = vpack.c.b16 %v925, %v924
      %v935 = vsel %vm692, %v894, 0
      %v938 = vsel %vm692, %v895, 0
      %v941 = vsel %vm692, %v896, 0
      %v944 = vsel %vm692, %v897, 0
      %v947 = vsel %vm692, %v898, 0
      %v950 = vsel %vm692, %v899, 0
      %v953 = vsel %vm692, %v900, 0
      %v956 = vsel %vm692, %v901, 0
      %v959 = vsel %vm692, %v902, 0
      %v962 = vsel %vm692, %v903, 0
      %v965 = vsel %vm692, %v904, 0
      %v968 = vsel %vm692, %v905, 0
      %v971 = vsel %vm692, %v906, 0
      %v974 = vsel %vm692, %v907, 0
      %v977 = vsel %vm692, %v908, 0
      %v980 = vsel %vm692, %v909, 0
      %982 = vmatpush.bf16.msra.mxu0 0
      %983 = vmatpush.bf16.msra.mxu0 0
      %984 = vmatpush.bf16.msra.mxu0 0
      %985 = vmatpush.bf16.msra.mxu0 0
      %986 = vmatpush.bf16.msra.mxu0 %v929
      %987 = vmatpush.bf16.msra.mxu0 %v928
      %988 = vmatpush.bf16.msra.mxu0 %v927
      %989 = vmatpush.bf16.msra.mxu0 %v926
      %990 = vmatmul.bf16.gmra.mxu0 %v935
      %v991 = vpop.f32.mrf.mxu0
      %v992 = vadd.f32 %v751, %v991
      %v993 = vpop.f32.mrf.mxu0
      %v994 = vadd.f32 %v753, %v993
      %995 = vmatmul.bf16.gmra.mxu0 %v938
      %v996 = vpop.f32.mrf.mxu0
      %v997 = vadd.f32 %v756, %v996
      %v998 = vpop.f32.mrf.mxu0
      %v999 = vadd.f32 %v758, %v998
      %1000 = vmatmul.bf16.gmra.mxu0 %v941
      %v1001 = vpop.f32.mrf.mxu0
      %v1002 = vadd.f32 %v761, %v1001
      %v1003 = vpop.f32.mrf.mxu0
      %v1004 = vadd.f32 %v763, %v1003
      %1005 = vmatmul.bf16.gmra.mxu0 %v944
      %v1006 = vpop.f32.mrf.mxu0
      %v1007 = vadd.f32 %v766, %v1006
      %v1008 = vpop.f32.mrf.mxu0
      %v1009 = vadd.f32 %v768, %v1008
      %1010 = vmatmul.bf16.gmra.mxu0 %v947
      %v1011 = vpop.f32.mrf.mxu0
      %v1012 = vadd.f32 %v771, %v1011
      %v1013 = vpop.f32.mrf.mxu0
      %v1014 = vadd.f32 %v773, %v1013
      %1015 = vmatmul.bf16.gmra.mxu0 %v950
      %v1016 = vpop.f32.mrf.mxu0
      %v1017 = vadd.f32 %v776, %v1016
      %v1018 = vpop.f32.mrf.mxu0
      %v1019 = vadd.f32 %v778, %v1018
      %1020 = vmatmul.bf16.gmra.mxu0 %v953
      %v1021 = vpop.f32.mrf.mxu0
      %v1022 = vadd.f32 %v781, %v1021
      %v1023 = vpop.f32.mrf.mxu0
      %v1024 = vadd.f32 %v783, %v1023
      %1025 = vmatmul.bf16.gmra.mxu0 %v956
      %v1026 = vpop.f32.mrf.mxu0
      %v1027 = vadd.f32 %v786, %v1026
      %v1028 = vpop.f32.mrf.mxu0
      %v1029 = vadd.f32 %v788, %v1028
      %1030 = vmatmul.bf16.gmra.mxu0 %v959
      %v1031 = vpop.f32.mrf.mxu0
      %v1032 = vadd.f32 %v791, %v1031
      %v1033 = vpop.f32.mrf.mxu0
      %v1034 = vadd.f32 %v793, %v1033
      %1035 = vmatmul.bf16.gmra.mxu0 %v962
      %v1036 = vpop.f32.mrf.mxu0
      %v1037 = vadd.f32 %v796, %v1036
      %v1038 = vpop.f32.mrf.mxu0
      %v1039 = vadd.f32 %v798, %v1038
      %1040 = vmatmul.bf16.gmra.mxu0 %v965
      %v1041 = vpop.f32.mrf.mxu0
      %v1042 = vadd.f32 %v801, %v1041
      %v1043 = vpop.f32.mrf.mxu0
      %v1044 = vadd.f32 %v803, %v1043
      %1045 = vmatmul.bf16.gmra.mxu0 %v968
      %v1046 = vpop.f32.mrf.mxu0
      %v1047 = vadd.f32 %v806, %v1046
      %v1048 = vpop.f32.mrf.mxu0
      %v1049 = vadd.f32 %v808, %v1048
      %1050 = vmatmul.bf16.gmra.mxu0 %v971
      %v1051 = vpop.f32.mrf.mxu0
      %v1052 = vadd.f32 %v811, %v1051
      %v1053 = vpop.f32.mrf.mxu0
      %v1054 = vadd.f32 %v813, %v1053
      %1055 = vmatmul.bf16.gmra.mxu0 %v974
      %v1056 = vpop.f32.mrf.mxu0
      %v1057 = vadd.f32 %v816, %v1056
      %v1058 = vpop.f32.mrf.mxu0
      %v1059 = vadd.f32 %v818, %v1058
      %1060 = vmatmul.bf16.gmra.mxu0 %v977
      %v1061 = vpop.f32.mrf.mxu0
      %v1062 = vadd.f32 %v821, %v1061
      %v1063 = vpop.f32.mrf.mxu0
      %v1064 = vadd.f32 %v823, %v1063
      %1065 = vmatmul.bf16.gmra.mxu0 %v980
      %v1066 = vpop.f32.mrf.mxu0
      %v1067 = vadd.f32 %v826, %v1066
      %v1068 = vpop.f32.mrf.mxu0
      %v1069 = vadd.f32 %v828, %v1068
      %1070 = vdwg.mxu0
      %v1071 = vld [vmem:[%s163] sm:$0xe]
      %v1072 = vld [vmem:[%s163 + $0xc] sm:$0xe]
      %v1073 = vld [vmem:[%s163 + $0x18] sm:$0xe]
      %v1074 = vld [vmem:[%s163 + $0x24] sm:$0xe]
      %v1075 = vld [vmem:[%s163 + $0x30] sm:$0xe]
      %v1076 = vld [vmem:[%s163 + $0x3c] sm:$0xe]
      %v1077 = vld [vmem:[%s163 + $0x48] sm:$0xe]
      %v1078 = vld [vmem:[%s163 + $0x54] sm:$0xe]
      %v1079 = vld [vmem:[%s163 + $0x60] sm:$0xe]
      %v1080 = vld [vmem:[%s163 + $0x6c] sm:$0xe]
      %v1081 = vld [vmem:[%s163 + $0x78] sm:$0xe]
      %v1082 = vld [vmem:[%s163 + $0x84] sm:$0xe]
      %v1083 = vld [vmem:[%s163 + $0x90] sm:$0xe]
      %v1084 = vld [vmem:[%s163 + $0x9c] sm:$0xe]
      %v1085 = vld [vmem:[%s163 + $0xa8] sm:$0xe]
      %v1086 = vld [vmem:[%s163 + $0xb4] sm:$0xe]
      %vm1119 = vcmask 1042432
      %vm1120 = vcmask 1046532
      %vm1121 = vmor %vm1119, %vm1120
      %v1122 = vrot.slane %v1071, 5
      %v1123 = vrot.slane %v1122, 4
      %v1124 = vrot.slane %v169, 5
      %v1125 = vsel %vm1121, %v1123, %v1124
      %v1126 = vrot.slane %v1124, 4
      %v1127 = vrot.slane %v208, 5
      %v1128 = vsel %vm1121, %v1126, %v1127
      %v1129 = vrot.slane %v1072, 5
      %v1130 = vrot.slane %v1129, 4
      %v1131 = vrot.slane %v171, 5
      %v1132 = vsel %vm1121, %v1130, %v1131
      %v1133 = vrot.slane %v1131, 4
      %v1134 = vrot.slane %v209, 5
      %v1135 = vsel %vm1121, %v1133, %v1134
      %v1136 = vrot.slane %v1073, 5
      %v1137 = vrot.slane %v1136, 4
      %v1138 = vrot.slane %v173, 5
      %v1139 = vsel %vm1121, %v1137, %v1138
      %v1140 = vrot.slane %v1138, 4
      %v1141 = vrot.slane %v210, 5
      %v1142 = vsel %vm1121, %v1140, %v1141
      %v1143 = vrot.slane %v1074, 5
      %v1144 = vrot.slane %v1143, 4
      %v1145 = vrot.slane %v175, 5
      %v1146 = vsel %vm1121, %v1144, %v1145
      %v1147 = vrot.slane %v1145, 4
      %v1148 = vrot.slane %v211, 5
      %v1149 = vsel %vm1121, %v1147, %v1148
      %v1150 = vrot.slane %v1075, 5
      %v1151 = vrot.slane %v1150, 4
      %v1152 = vrot.slane %v177, 5
      %v1153 = vsel %vm1121, %v1151, %v1152
      %v1154 = vrot.slane %v1152, 4
      %v1155 = vrot.slane %v212, 5
      %v1156 = vsel %vm1121, %v1154, %v1155
      %v1157 = vrot.slane %v1076, 5
      %v1158 = vrot.slane %v1157, 4
      %v1159 = vrot.slane %v179, 5
      %v1160 = vsel %vm1121, %v1158, %v1159
      %v1161 = vrot.slane %v1159, 4
      %v1162 = vrot.slane %v213, 5
      %v1163 = vsel %vm1121, %v1161, %v1162
      %v1164 = vrot.slane %v1077, 5
      %v1165 = vrot.slane %v1164, 4
      %v1166 = vrot.slane %v181, 5
      %v1167 = vsel %vm1121, %v1165, %v1166
      %v1168 = vrot.slane %v1166, 4
      %v1169 = vrot.slane %v214, 5
      %v1170 = vsel %vm1121, %v1168, %v1169
      %v1171 = vrot.slane %v1078, 5
      %v1172 = vrot.slane %v1171, 4
      %v1173 = vrot.slane %v183, 5
      %v1174 = vsel %vm1121, %v1172, %v1173
      %v1175 = vrot.slane %v1173, 4
      %v1176 = vrot.slane %v215, 5
      %v1177 = vsel %vm1121, %v1175, %v1176
      %v1178 = vrot.slane %v1079, 5
      %v1179 = vrot.slane %v1178, 4
      %v1180 = vrot.slane %v185, 5
      %v1181 = vsel %vm1121, %v1179, %v1180
      %v1182 = vrot.slane %v1180, 4
      %v1183 = vrot.slane %v216, 5
      %v1184 = vsel %vm1121, %v1182, %v1183
      %v1185 = vrot.slane %v1080, 5
      %v1186 = vrot.slane %v1185, 4
      %v1187 = vrot.slane %v187, 5
      %v1188 = vsel %vm1121, %v1186, %v1187
      %v1189 = vrot.slane %v1187, 4
      %v1190 = vrot.slane %v217, 5
      %v1191 = vsel %vm1121, %v1189, %v1190
      %v1192 = vrot.slane %v1081, 5
      %v1193 = vrot.slane %v1192, 4
      %v1194 = vrot.slane %v189, 5
      %v1195 = vsel %vm1121, %v1193, %v1194
      %v1196 = vrot.slane %v1194, 4
      %v1197 = vrot.slane %v218, 5
      %v1198 = vsel %vm1121, %v1196, %v1197
      %v1199 = vrot.slane %v1082, 5
      %v1200 = vrot.slane %v1199, 4
      %v1201 = vrot.slane %v191, 5
      %v1202 = vsel %vm1121, %v1200, %v1201
      %v1203 = vrot.slane %v1201, 4
      %v1204 = vrot.slane %v219, 5
      %v1205 = vsel %vm1121, %v1203, %v1204
      %v1206 = vrot.slane %v1083, 5
      %v1207 = vrot.slane %v1206, 4
      %v1208 = vrot.slane %v193, 5
      %v1209 = vsel %vm1121, %v1207, %v1208
      %v1210 = vrot.slane %v1208, 4
      %v1211 = vrot.slane %v220, 5
      %v1212 = vsel %vm1121, %v1210, %v1211
      %v1213 = vrot.slane %v1084, 5
      %v1214 = vrot.slane %v1213, 4
      %v1215 = vrot.slane %v195, 5
      %v1216 = vsel %vm1121, %v1214, %v1215
      %v1217 = vrot.slane %v1215, 4
      %v1218 = vrot.slane %v221, 5
      %v1219 = vsel %vm1121, %v1217, %v1218
      %v1220 = vrot.slane %v1085, 5
      %v1221 = vrot.slane %v1220, 4
      %v1222 = vrot.slane %v197, 5
      %v1223 = vsel %vm1121, %v1221, %v1222
      %v1224 = vrot.slane %v1222, 4
      %v1225 = vrot.slane %v222, 5
      %v1226 = vsel %vm1121, %v1224, %v1225
      %v1227 = vrot.slane %v1086, 5
      %v1228 = vrot.slane %v1227, 4
      %v1229 = vrot.slane %v199, 5
      %v1230 = vsel %vm1121, %v1228, %v1229
      %v1231 = vrot.slane %v1229, 4
      %v1232 = vrot.slane %v223, 5
      %v1233 = vsel %vm1121, %v1231, %v1232
      %s1234 = scalar_lea.vmem %s1, 64
      %v1235 = vld [vmem:[%s1234] sm:$0xf]
      %v1236 = vld [vmem:[%s1234 + $0x4] sm:$0xf]
      %v1237 = vld [vmem:[%s1234 + $0x8] sm:$0xf]
      %v1238 = vld [vmem:[%s1234 + $0xc] sm:$0xf]
      %v1239 = vld [vmem:[%s1234 + $0x10] sm:$0xf]
      %v1240 = vld [vmem:[%s1234 + $0x14] sm:$0xf]
      %v1241 = vld [vmem:[%s1234 + $0x18] sm:$0xf]
      %v1242 = vld [vmem:[%s1234 + $0x1c] sm:$0xf]
      %v1243 = vunpack.c.l.b16 %v1125
      %v1244 = vunpack.c.l.b16 %v1128
      %v1245 = vunpack.c.l.b16 %v1132
      %v1246 = vunpack.c.l.b16 %v1135
      %v1247 = vunpack.c.l.b16 %v1139
      %v1248 = vunpack.c.l.b16 %v1142
      %v1249 = vunpack.c.l.b16 %v1146
      %v1250 = vunpack.c.l.b16 %v1149
      %v1251 = vunpack.c.l.b16 %v1153
      %v1252 = vunpack.c.l.b16 %v1156
      %v1253 = vunpack.c.l.b16 %v1160
      %v1254 = vunpack.c.l.b16 %v1163
      %v1255 = vunpack.c.l.b16 %v1167
      %v1256 = vunpack.c.l.b16 %v1170
      %v1257 = vunpack.c.l.b16 %v1174
      %v1258 = vunpack.c.l.b16 %v1177
      %v1259 = vunpack.c.l.b16 %v1181
      %v1260 = vunpack.c.l.b16 %v1184
      %v1261 = vunpack.c.l.b16 %v1188
      %v1262 = vunpack.c.l.b16 %v1191
      %v1263 = vunpack.c.l.b16 %v1195
      %v1264 = vunpack.c.l.b16 %v1198
      %v1265 = vunpack.c.l.b16 %v1202
      %v1266 = vunpack.c.l.b16 %v1205
      %v1267 = vunpack.c.l.b16 %v1209
      %v1268 = vunpack.c.l.b16 %v1212
      %v1269 = vunpack.c.l.b16 %v1216
      %v1270 = vunpack.c.l.b16 %v1219
      %v1271 = vunpack.c.l.b16 %v1223
      %v1272 = vunpack.c.l.b16 %v1226
      %v1273 = vunpack.c.l.b16 %v1230
      %v1274 = vunpack.c.l.b16 %v1233
      %v1275 = vpack.c.b16 %v1244, %v1243
      %v1276 = vpack.c.b16 %v1246, %v1245
      %v1277 = vpack.c.b16 %v1248, %v1247
      %v1278 = vpack.c.b16 %v1250, %v1249
      %v1279 = vpack.c.b16 %v1252, %v1251
      %v1280 = vpack.c.b16 %v1254, %v1253
      %v1281 = vpack.c.b16 %v1256, %v1255
      %v1282 = vpack.c.b16 %v1258, %v1257
      %v1283 = vpack.c.b16 %v1260, %v1259
      %v1284 = vpack.c.b16 %v1262, %v1261
      %v1285 = vpack.c.b16 %v1264, %v1263
      %v1286 = vpack.c.b16 %v1266, %v1265
      %v1287 = vpack.c.b16 %v1268, %v1267
      %v1288 = vpack.c.b16 %v1270, %v1269
      %v1289 = vpack.c.b16 %v1272, %v1271
      %v1290 = vpack.c.b16 %v1274, %v1273
      %v1299 = vunpack.c.l.b16 %v1235
      %v1300 = vunpack.c.l.b16 %v1236
      %v1301 = vunpack.c.l.b16 %v1237
      %v1302 = vunpack.c.l.b16 %v1238
      %v1303 = vunpack.c.l.b16 %v1239
      %v1304 = vunpack.c.l.b16 %v1240
      %v1305 = vunpack.c.l.b16 %v1241
      %v1306 = vunpack.c.l.b16 %v1242
      %v1307 = vpack.c.b16 %v1300, %v1299
      %v1308 = vpack.c.b16 %v1302, %v1301
      %v1309 = vpack.c.b16 %v1304, %v1303
      %v1310 = vpack.c.b16 %v1306, %v1305
      %v1316 = vsel %vm692, %v1275, 0
      %v1319 = vsel %vm692, %v1276, 0
      %v1322 = vsel %vm692, %v1277, 0
      %v1325 = vsel %vm692, %v1278, 0
      %v1328 = vsel %vm692, %v1279, 0
      %v1331 = vsel %vm692, %v1280, 0
      %v1334 = vsel %vm692, %v1281, 0
      %v1337 = vsel %vm692, %v1282, 0
      %v1340 = vsel %vm692, %v1283, 0
      %v1343 = vsel %vm692, %v1284, 0
      %v1346 = vsel %vm692, %v1285, 0
      %v1349 = vsel %vm692, %v1286, 0
      %v1352 = vsel %vm692, %v1287, 0
      %v1355 = vsel %vm692, %v1288, 0
      %v1358 = vsel %vm692, %v1289, 0
      %v1361 = vsel %vm692, %v1290, 0
      %1363 = vmatpush.bf16.msra.mxu0 0
      %1364 = vmatpush.bf16.msra.mxu0 0
      %1365 = vmatpush.bf16.msra.mxu0 0
      %1366 = vmatpush.bf16.msra.mxu0 0
      %1367 = vmatpush.bf16.msra.mxu0 %v1310
      %1368 = vmatpush.bf16.msra.mxu0 %v1309
      %1369 = vmatpush.bf16.msra.mxu0 %v1308
      %1370 = vmatpush.bf16.msra.mxu0 %v1307
      %1371 = vmatmul.bf16.gmra.mxu0 %v1316
      %v1372 = vpop.f32.mrf.mxu0
      %v1373 = vadd.f32 0.0, %v1372
      %v1374 = vpop.f32.mrf.mxu0
      %v1375 = vadd.f32 0.0, %v1374
      %1376 = vmatmul.bf16.gmra.mxu0 %v1319
      %v1377 = vpop.f32.mrf.mxu0
      %v1378 = vadd.f32 0.0, %v1377
      %v1379 = vpop.f32.mrf.mxu0
      %v1380 = vadd.f32 0.0, %v1379
      %1381 = vmatmul.bf16.gmra.mxu0 %v1322
      %v1382 = vpop.f32.mrf.mxu0
      %v1383 = vadd.f32 0.0, %v1382
      %v1384 = vpop.f32.mrf.mxu0
      %v1385 = vadd.f32 0.0, %v1384
      %1386 = vmatmul.bf16.gmra.mxu0 %v1325
      %v1387 = vpop.f32.mrf.mxu0
      %v1388 = vadd.f32 0.0, %v1387
      %v1389 = vpop.f32.mrf.mxu0
      %v1390 = vadd.f32 0.0, %v1389
      %1391 = vmatmul.bf16.gmra.mxu0 %v1328
      %v1392 = vpop.f32.mrf.mxu0
      %v1393 = vadd.f32 0.0, %v1392
      %v1394 = vpop.f32.mrf.mxu0
      %v1395 = vadd.f32 0.0, %v1394
      %1396 = vmatmul.bf16.gmra.mxu0 %v1331
      %v1397 = vpop.f32.mrf.mxu0
      %v1398 = vadd.f32 0.0, %v1397
      %v1399 = vpop.f32.mrf.mxu0
      %v1400 = vadd.f32 0.0, %v1399
      %1401 = vmatmul.bf16.gmra.mxu0 %v1334
      %v1402 = vpop.f32.mrf.mxu0
      %v1403 = vadd.f32 0.0, %v1402
      %v1404 = vpop.f32.mrf.mxu0
      %v1405 = vadd.f32 0.0, %v1404
      %1406 = vmatmul.bf16.gmra.mxu0 %v1337
      %v1407 = vpop.f32.mrf.mxu0
      %v1408 = vadd.f32 0.0, %v1407
      %v1409 = vpop.f32.mrf.mxu0
      %v1410 = vadd.f32 0.0, %v1409
      %1411 = vmatmul.bf16.gmra.mxu0 %v1340
      %v1412 = vpop.f32.mrf.mxu0
      %v1413 = vadd.f32 0.0, %v1412
      %v1414 = vpop.f32.mrf.mxu0
      %v1415 = vadd.f32 0.0, %v1414
      %1416 = vmatmul.bf16.gmra.mxu0 %v1343
      %v1417 = vpop.f32.mrf.mxu0
      %v1418 = vadd.f32 0.0, %v1417
      %v1419 = vpop.f32.mrf.mxu0
      %v1420 = vadd.f32 0.0, %v1419
      %1421 = vmatmul.bf16.gmra.mxu0 %v1346
      %v1422 = vpop.f32.mrf.mxu0
      %v1423 = vadd.f32 0.0, %v1422
      %v1424 = vpop.f32.mrf.mxu0
      %v1425 = vadd.f32 0.0, %v1424
      %1426 = vmatmul.bf16.gmra.mxu0 %v1349
      %v1427 = vpop.f32.mrf.mxu0
      %v1428 = vadd.f32 0.0, %v1427
      %v1429 = vpop.f32.mrf.mxu0
      %v1430 = vadd.f32 0.0, %v1429
      %1431 = vmatmul.bf16.gmra.mxu0 %v1352
      %v1432 = vpop.f32.mrf.mxu0
      %v1433 = vadd.f32 0.0, %v1432
      %v1434 = vpop.f32.mrf.mxu0
      %v1435 = vadd.f32 0.0, %v1434
      %1436 = vmatmul.bf16.gmra.mxu0 %v1355
      %v1437 = vpop.f32.mrf.mxu0
      %v1438 = vadd.f32 0.0, %v1437
      %v1439 = vpop.f32.mrf.mxu0
      %v1440 = vadd.f32 0.0, %v1439
      %1441 = vmatmul.bf16.gmra.mxu0 %v1358
      %v1442 = vpop.f32.mrf.mxu0
      %v1443 = vadd.f32 0.0, %v1442
      %v1444 = vpop.f32.mrf.mxu0
      %v1445 = vadd.f32 0.0, %v1444
      %1446 = vmatmul.bf16.gmra.mxu0 %v1361
      %v1447 = vpop.f32.mrf.mxu0
      %v1448 = vadd.f32 0.0, %v1447
      %v1449 = vpop.f32.mrf.mxu0
      %v1450 = vadd.f32 0.0, %v1449
      %1451 = vdwg.mxu0
      %v1452 = vadd.f32 %v992, %v1373
      %v1453 = vadd.f32 %v994, %v1375
      %v1454 = vadd.f32 %v997, %v1378
      %v1455 = vadd.f32 %v999, %v1380
      %v1456 = vadd.f32 %v1002, %v1383
      %v1457 = vadd.f32 %v1004, %v1385
      %v1458 = vadd.f32 %v1007, %v1388
      %v1459 = vadd.f32 %v1009, %v1390
      %v1460 = vadd.f32 %v1012, %v1393
      %v1461 = vadd.f32 %v1014, %v1395
      %v1462 = vadd.f32 %v1017, %v1398
      %v1463 = vadd.f32 %v1019, %v1400
      %v1464 = vadd.f32 %v1022, %v1403
      %v1465 = vadd.f32 %v1024, %v1405
      %v1466 = vadd.f32 %v1027, %v1408
      %v1467 = vadd.f32 %v1029, %v1410
      %v1468 = vadd.f32 %v1032, %v1413
      %v1469 = vadd.f32 %v1034, %v1415
      %v1470 = vadd.f32 %v1037, %v1418
      %v1471 = vadd.f32 %v1039, %v1420
      %v1472 = vadd.f32 %v1042, %v1423
      %v1473 = vadd.f32 %v1044, %v1425
      %v1474 = vadd.f32 %v1047, %v1428
      %v1475 = vadd.f32 %v1049, %v1430
      %v1476 = vadd.f32 %v1052, %v1433
      %v1477 = vadd.f32 %v1054, %v1435
      %v1478 = vadd.f32 %v1057, %v1438
      %v1479 = vadd.f32 %v1059, %v1440
      %v1480 = vadd.f32 %v1062, %v1443
      %v1481 = vadd.f32 %v1064, %v1445
      %v1482 = vadd.f32 %v1067, %v1448
      %v1483 = vadd.f32 %v1069, %v1450
      %s1484 = scalar_lea.vmem %s163, 12
      %v1485 = vld [vmem:[%s1484] sm:$0xf]
      %v1486 = vld [vmem:[%s1484 + $0x4] sm:$0xf]
      %v1487 = vld [vmem:[%s1484 + $0xc] sm:$0xf]
      %v1488 = vld [vmem:[%s1484 + $0x10] sm:$0xf]
      %v1489 = vld [vmem:[%s1484 + $0x18] sm:$0xf]
      %v1490 = vld [vmem:[%s1484 + $0x1c] sm:$0xf]
      %v1491 = vld [vmem:[%s1484 + $0x24] sm:$0xf]
      %v1492 = vld [vmem:[%s1484 + $0x28] sm:$0xf]
      %v1493 = vld [vmem:[%s1484 + $0x30] sm:$0xf]
      %v1494 = vld [vmem:[%s1484 + $0x34] sm:$0xf]
      %v1495 = vld [vmem:[%s1484 + $0x3c] sm:$0xf]
      %v1496 = vld [vmem:[%s1484 + $0x40] sm:$0xf]
      %v1497 = vld [vmem:[%s1484 + $0x48] sm:$0xf]
      %v1498 = vld [vmem:[%s1484 + $0x4c] sm:$0xf]
      %v1499 = vld [vmem:[%s1484 + $0x54] sm:$0xf]
      %v1500 = vld [vmem:[%s1484 + $0x58] sm:$0xf]
      %v1501 = vld [vmem:[%s1484 + $0x60] sm:$0xf]
      %v1502 = vld [vmem:[%s1484 + $0x64] sm:$0xf]
      %v1503 = vld [vmem:[%s1484 + $0x6c] sm:$0xf]
      %v1504 = vld [vmem:[%s1484 + $0x70] sm:$0xf]
      %v1505 = vld [vmem:[%s1484 + $0x78] sm:$0xf]
      %v1506 = vld [vmem:[%s1484 + $0x7c] sm:$0xf]
      %v1507 = vld [vmem:[%s1484 + $0x84] sm:$0xf]
      %v1508 = vld [vmem:[%s1484 + $0x88] sm:$0xf]
      %v1509 = vld [vmem:[%s1484 + $0x90] sm:$0xf]
      %v1510 = vld [vmem:[%s1484 + $0x94] sm:$0xf]
      %v1511 = vld [vmem:[%s1484 + $0x9c] sm:$0xf]
      %v1512 = vld [vmem:[%s1484 + $0xa0] sm:$0xf]
      %v1513 = vld [vmem:[%s1484 + $0xa8] sm:$0xf]
      %v1514 = vld [vmem:[%s1484 + $0xac] sm:$0xf]
      %v1515 = vld [vmem:[%s1484 + $0xb4] sm:$0xf]
      %v1516 = vld [vmem:[%s1484 + $0xb8] sm:$0xf]
      %s1517 = scalar_lea.vmem %s1, 96
      %v1518 = vld [vmem:[%s1517] sm:$0xf]
      %v1519 = vld [vmem:[%s1517 + $0x4] sm:$0xf]
      %v1520 = vld [vmem:[%s1517 + $0x8] sm:$0xf]
      %v1521 = vld [vmem:[%s1517 + $0xc] sm:$0xf]
      %v1522 = vld [vmem:[%s1517 + $0x10] sm:$0xf]
      %v1523 = vld [vmem:[%s1517 + $0x14] sm:$0xf]
      %v1524 = vld [vmem:[%s1517 + $0x18] sm:$0xf]
      %v1525 = vld [vmem:[%s1517 + $0x1c] sm:$0xf]
      %v1558 = vunpack.c.l.b16 %v1485
      %v1559 = vunpack.c.l.b16 %v1486
      %v1560 = vunpack.c.l.b16 %v1487
      %v1561 = vunpack.c.l.b16 %v1488
      %v1562 = vunpack.c.l.b16 %v1489
      %v1563 = vunpack.c.l.b16 %v1490
      %v1564 = vunpack.c.l.b16 %v1491
      %v1565 = vunpack.c.l.b16 %v1492
      %v1566 = vunpack.c.l.b16 %v1493
      %v1567 = vunpack.c.l.b16 %v1494
      %v1568 = vunpack.c.l.b16 %v1495
      %v1569 = vunpack.c.l.b16 %v1496
      %v1570 = vunpack.c.l.b16 %v1497
      %v1571 = vunpack.c.l.b16 %v1498
      %v1572 = vunpack.c.l.b16 %v1499
      %v1573 = vunpack.c.l.b16 %v1500
      %v1574 = vunpack.c.l.b16 %v1501
      %v1575 = vunpack.c.l.b16 %v1502
      %v1576 = vunpack.c.l.b16 %v1503
      %v1577 = vunpack.c.l.b16 %v1504
      %v1578 = vunpack.c.l.b16 %v1505
      %v1579 = vunpack.c.l.b16 %v1506
      %v1580 = vunpack.c.l.b16 %v1507
      %v1581 = vunpack.c.l.b16 %v1508
      %v1582 = vunpack.c.l.b16 %v1509
      %v1583 = vunpack.c.l.b16 %v1510
      %v1584 = vunpack.c.l.b16 %v1511
      %v1585 = vunpack.c.l.b16 %v1512
      %v1586 = vunpack.c.l.b16 %v1513
      %v1587 = vunpack.c.l.b16 %v1514
      %v1588 = vunpack.c.l.b16 %v1515
      %v1589 = vunpack.c.l.b16 %v1516
      %v1590 = vpack.c.b16 %v1559, %v1558
      %v1591 = vpack.c.b16 %v1561, %v1560
      %v1592 = vpack.c.b16 %v1563, %v1562
      %v1593 = vpack.c.b16 %v1565, %v1564
      %v1594 = vpack.c.b16 %v1567, %v1566
      %v1595 = vpack.c.b16 %v1569, %v1568
      %v1596 = vpack.c.b16 %v1571, %v1570
      %v1597 = vpack.c.b16 %v1573, %v1572
      %v1598 = vpack.c.b16 %v1575, %v1574
      %v1599 = vpack.c.b16 %v1577, %v1576
      %v1600 = vpack.c.b16 %v1579, %v1578
      %v1601 = vpack.c.b16 %v1581, %v1580
      %v1602 = vpack.c.b16 %v1583, %v1582
      %v1603 = vpack.c.b16 %v1585, %v1584
      %v1604 = vpack.c.b16 %v1587, %v1586
      %v1605 = vpack.c.b16 %v1589, %v1588
      %v1614 = vunpack.c.l.b16 %v1518
      %v1615 = vunpack.c.l.b16 %v1519
      %v1616 = vunpack.c.l.b16 %v1520
      %v1617 = vunpack.c.l.b16 %v1521
      %v1618 = vunpack.c.l.b16 %v1522
      %v1619 = vunpack.c.l.b16 %v1523
      %v1620 = vunpack.c.l.b16 %v1524
      %v1621 = vunpack.c.l.b16 %v1525
      %v1622 = vpack.c.b16 %v1615, %v1614
      %v1623 = vpack.c.b16 %v1617, %v1616
      %v1624 = vpack.c.b16 %v1619, %v1618
      %v1625 = vpack.c.b16 %v1621, %v1620
      %v1631 = vsel %vm692, %v1590, 0
      %v1634 = vsel %vm692, %v1591, 0
      %v1637 = vsel %vm692, %v1592, 0
      %v1640 = vsel %vm692, %v1593, 0
      %v1643 = vsel %vm692, %v1594, 0
      %v1646 = vsel %vm692, %v1595, 0
      %v1649 = vsel %vm692, %v1596, 0
      %v1652 = vsel %vm692, %v1597, 0
      %v1655 = vsel %vm692, %v1598, 0
      %v1658 = vsel %vm692, %v1599, 0
      %v1661 = vsel %vm692, %v1600, 0
      %v1664 = vsel %vm692, %v1601, 0
      %v1667 = vsel %vm692, %v1602, 0
      %v1670 = vsel %vm692, %v1603, 0
      %v1673 = vsel %vm692, %v1604, 0
      %v1676 = vsel %vm692, %v1605, 0
      %1678 = vmatpush.bf16.msra.mxu0 0
      %1679 = vmatpush.bf16.msra.mxu0 0
      %1680 = vmatpush.bf16.msra.mxu0 0
      %1681 = vmatpush.bf16.msra.mxu0 0
      %1682 = vmatpush.bf16.msra.mxu0 %v1625
      %1683 = vmatpush.bf16.msra.mxu0 %v1624
      %1684 = vmatpush.bf16.msra.mxu0 %v1623
      %1685 = vmatpush.bf16.msra.mxu0 %v1622
      %1686 = vmatmul.bf16.gmra.mxu0 %v1631
      %v1687 = vpop.f32.mrf.mxu0
      %v1688 = vadd.f32 0.0, %v1687
      %v1689 = vpop.f32.mrf.mxu0
      %v1690 = vadd.f32 0.0, %v1689
      %1691 = vmatmul.bf16.gmra.mxu0 %v1634
      %v1692 = vpop.f32.mrf.mxu0
      %v1693 = vadd.f32 0.0, %v1692
      %v1694 = vpop.f32.mrf.mxu0
      %v1695 = vadd.f32 0.0, %v1694
      %1696 = vmatmul.bf16.gmra.mxu0 %v1637
      %v1697 = vpop.f32.mrf.mxu0
      %v1698 = vadd.f32 0.0, %v1697
      %v1699 = vpop.f32.mrf.mxu0
      %v1700 = vadd.f32 0.0, %v1699
      %1701 = vmatmul.bf16.gmra.mxu0 %v1640
      %v1702 = vpop.f32.mrf.mxu0
      %v1703 = vadd.f32 0.0, %v1702
      %v1704 = vpop.f32.mrf.mxu0
      %v1705 = vadd.f32 0.0, %v1704
      %1706 = vmatmul.bf16.gmra.mxu0 %v1643
      %v1707 = vpop.f32.mrf.mxu0
      %v1708 = vadd.f32 0.0, %v1707
      %v1709 = vpop.f32.mrf.mxu0
      %v1710 = vadd.f32 0.0, %v1709
      %1711 = vmatmul.bf16.gmra.mxu0 %v1646
      %v1712 = vpop.f32.mrf.mxu0
      %v1713 = vadd.f32 0.0, %v1712
      %v1714 = vpop.f32.mrf.mxu0
      %v1715 = vadd.f32 0.0, %v1714
      %1716 = vmatmul.bf16.gmra.mxu0 %v1649
      %v1717 = vpop.f32.mrf.mxu0
      %v1718 = vadd.f32 0.0, %v1717
      %v1719 = vpop.f32.mrf.mxu0
      %v1720 = vadd.f32 0.0, %v1719
      %1721 = vmatmul.bf16.gmra.mxu0 %v1652
      %v1722 = vpop.f32.mrf.mxu0
      %v1723 = vadd.f32 0.0, %v1722
      %v1724 = vpop.f32.mrf.mxu0
      %v1725 = vadd.f32 0.0, %v1724
      %1726 = vmatmul.bf16.gmra.mxu0 %v1655
      %v1727 = vpop.f32.mrf.mxu0
      %v1728 = vadd.f32 0.0, %v1727
      %v1729 = vpop.f32.mrf.mxu0
      %v1730 = vadd.f32 0.0, %v1729
      %1731 = vmatmul.bf16.gmra.mxu0 %v1658
      %v1732 = vpop.f32.mrf.mxu0
      %v1733 = vadd.f32 0.0, %v1732
      %v1734 = vpop.f32.mrf.mxu0
      %v1735 = vadd.f32 0.0, %v1734
      %1736 = vmatmul.bf16.gmra.mxu0 %v1661
      %v1737 = vpop.f32.mrf.mxu0
      %v1738 = vadd.f32 0.0, %v1737
      %v1739 = vpop.f32.mrf.mxu0
      %v1740 = vadd.f32 0.0, %v1739
      %1741 = vmatmul.bf16.gmra.mxu0 %v1664
      %v1742 = vpop.f32.mrf.mxu0
      %v1743 = vadd.f32 0.0, %v1742
      %v1744 = vpop.f32.mrf.mxu0
      %v1745 = vadd.f32 0.0, %v1744
      %1746 = vmatmul.bf16.gmra.mxu0 %v1667
      %v1747 = vpop.f32.mrf.mxu0
      %v1748 = vadd.f32 0.0, %v1747
      %v1749 = vpop.f32.mrf.mxu0
      %v1750 = vadd.f32 0.0, %v1749
      %1751 = vmatmul.bf16.gmra.mxu0 %v1670
      %v1752 = vpop.f32.mrf.mxu0
      %v1753 = vadd.f32 0.0, %v1752
      %v1754 = vpop.f32.mrf.mxu0
      %v1755 = vadd.f32 0.0, %v1754
      %1756 = vmatmul.bf16.gmra.mxu0 %v1673
      %v1757 = vpop.f32.mrf.mxu0
      %v1758 = vadd.f32 0.0, %v1757
      %v1759 = vpop.f32.mrf.mxu0
      %v1760 = vadd.f32 0.0, %v1759
      %1761 = vmatmul.bf16.gmra.mxu0 %v1676
      %v1762 = vpop.f32.mrf.mxu0
      %v1763 = vadd.f32 0.0, %v1762
      %v1764 = vpop.f32.mrf.mxu0
      %v1765 = vadd.f32 0.0, %v1764
      %1766 = vdwg.mxu0
      %v1767 = vadd.f32 %v1452, %v1688
      %v1768 = vadd.f32 %v1453, %v1690
      %v1769 = vadd.f32 %v1454, %v1693
      %v1770 = vadd.f32 %v1455, %v1695
      %v1771 = vadd.f32 %v1456, %v1698
      %v1772 = vadd.f32 %v1457, %v1700
      %v1773 = vadd.f32 %v1458, %v1703
      %v1774 = vadd.f32 %v1459, %v1705
      %v1775 = vadd.f32 %v1460, %v1708
      %v1776 = vadd.f32 %v1461, %v1710
      %v1777 = vadd.f32 %v1462, %v1713
      %v1778 = vadd.f32 %v1463, %v1715
      %v1779 = vadd.f32 %v1464, %v1718
      %v1780 = vadd.f32 %v1465, %v1720
      %v1781 = vadd.f32 %v1466, %v1723
      %v1782 = vadd.f32 %v1467, %v1725
      %v1783 = vadd.f32 %v1468, %v1728
      %v1784 = vadd.f32 %v1469, %v1730
      %v1785 = vadd.f32 %v1470, %v1733
      %v1786 = vadd.f32 %v1471, %v1735
      %v1787 = vadd.f32 %v1472, %v1738
      %v1788 = vadd.f32 %v1473, %v1740
      %v1789 = vadd.f32 %v1474, %v1743
      %v1790 = vadd.f32 %v1475, %v1745
      %v1791 = vadd.f32 %v1476, %v1748
      %v1792 = vadd.f32 %v1477, %v1750
      %v1793 = vadd.f32 %v1478, %v1753
      %v1794 = vadd.f32 %v1479, %v1755
      %v1795 = vadd.f32 %v1480, %v1758
      %v1796 = vadd.f32 %v1481, %v1760
      %v1797 = vadd.f32 %v1482, %v1763
      %v1798 = vadd.f32 %v1483, %v1765
      %v1799 = vld [vmem:[%s1484] sm:$0xf]
      %v1800 = vld [vmem:[%s1484 + $0x4] sm:$0xf]
      %v1801 = vld [vmem:[%s1484 + $0x8] sm:$0x1]
      %v1802 = vld [vmem:[%s1484 + $0xc] sm:$0xf]
      %v1803 = vld [vmem:[%s1484 + $0x10] sm:$0xf]
      %v1804 = vld [vmem:[%s1484 + $0x14] sm:$0x1]
      %v1805 = vld [vmem:[%s1484 + $0x18] sm:$0xf]
      %v1806 = vld [vmem:[%s1484 + $0x1c] sm:$0xf]
      %v1807 = vld [vmem:[%s1484 + $0x20] sm:$0x1]
      %v1808 = vld [vmem:[%s1484 + $0x24] sm:$0xf]
      %v1809 = vld [vmem:[%s1484 + $0x28] sm:$0xf]
      %v1810 = vld [vmem:[%s1484 + $0x2c] sm:$0x1]
      %v1811 = vld [vmem:[%s1484 + $0x30] sm:$0xf]
      %v1812 = vld [vmem:[%s1484 + $0x34] sm:$0xf]
      %v1813 = vld [vmem:[%s1484 + $0x38] sm:$0x1]
      %v1814 = vld [vmem:[%s1484 + $0x3c] sm:$0xf]
      %v1815 = vld [vmem:[%s1484 + $0x40] sm:$0xf]
      %v1816 = vld [vmem:[%s1484 + $0x44] sm:$0x1]
      %v1817 = vld [vmem:[%s1484 + $0x48] sm:$0xf]
      %v1818 = vld [vmem:[%s1484 + $0x4c] sm:$0xf]
      %v1819 = vld [vmem:[%s1484 + $0x50] sm:$0x1]
      %v1820 = vld [vmem:[%s1484 + $0x54] sm:$0xf]
      %v1821 = vld [vmem:[%s1484 + $0x58] sm:$0xf]
      %v1822 = vld [vmem:[%s1484 + $0x5c] sm:$0x1]
      %v1823 = vld [vmem:[%s1484 + $0x60] sm:$0xf]
      %v1824 = vld [vmem:[%s1484 + $0x64] sm:$0xf]
      %v1825 = vld [vmem:[%s1484 + $0x68] sm:$0x1]
      %v1826 = vld [vmem:[%s1484 + $0x6c] sm:$0xf]
      %v1827 = vld [vmem:[%s1484 + $0x70] sm:$0xf]
      %v1828 = vld [vmem:[%s1484 + $0x74] sm:$0x1]
      %v1829 = vld [vmem:[%s1484 + $0x78] sm:$0xf]
      %v1830 = vld [vmem:[%s1484 + $0x7c] sm:$0xf]
      %v1831 = vld [vmem:[%s1484 + $0x80] sm:$0x1]
      %v1832 = vld [vmem:[%s1484 + $0x84] sm:$0xf]
      %v1833 = vld [vmem:[%s1484 + $0x88] sm:$0xf]
      %v1834 = vld [vmem:[%s1484 + $0x8c] sm:$0x1]
      %v1835 = vld [vmem:[%s1484 + $0x90] sm:$0xf]
      %v1836 = vld [vmem:[%s1484 + $0x94] sm:$0xf]
      %v1837 = vld [vmem:[%s1484 + $0x98] sm:$0x1]
      %v1838 = vld [vmem:[%s1484 + $0x9c] sm:$0xf]
      %v1839 = vld [vmem:[%s1484 + $0xa0] sm:$0xf]
      %v1840 = vld [vmem:[%s1484 + $0xa4] sm:$0x1]
      %v1841 = vld [vmem:[%s1484 + $0xa8] sm:$0xf]
      %v1842 = vld [vmem:[%s1484 + $0xac] sm:$0xf]
      %v1843 = vld [vmem:[%s1484 + $0xb0] sm:$0x1]
      %v1844 = vld [vmem:[%s1484 + $0xb4] sm:$0xf]
      %v1845 = vld [vmem:[%s1484 + $0xb8] sm:$0xf]
      %v1846 = vld [vmem:[%s1484 + $0xbc] sm:$0x1]
      %v1848 = vshrl.u32 %v1799, 16
      %v1850 = vrot.slane %v1848, 4
      %v1851 = vshll.u32 %v1799, 16
      %v1853 = vrot.slane %v1851, 5
      %v1854 = vor.u32 %v1850, %v1853
      %v1855 = vrot.slane %v1854, 4
      %v1857 = vshll.u32 %v1800, 16
      %v1859 = vrot.slane %v1857, 5
      %v1860 = vsel %vm226, %v1855, %v1859
      %v1861 = vshrl.u32 %v1800, 16
      %v1863 = vrot.slane %v1861, 4
      %v1864 = vor.u32 %v1863, %v1859
      %v1865 = vrot.slane %v1864, 4
      %v1867 = vshll.u32 %v1801, 16
      %v1869 = vrot.slane %v1867, 5
      %v1870 = vsel %vm226, %v1865, %v1869
      %v1872 = vshrl.u32 %v1802, 16
      %v1874 = vrot.slane %v1872, 4
      %v1875 = vshll.u32 %v1802, 16
      %v1877 = vrot.slane %v1875, 5
      %v1878 = vor.u32 %v1874, %v1877
      %v1879 = vrot.slane %v1878, 4
      %v1881 = vshll.u32 %v1803, 16
      %v1883 = vrot.slane %v1881, 5
      %v1884 = vsel %vm226, %v1879, %v1883
      %v1885 = vshrl.u32 %v1803, 16
      %v1887 = vrot.slane %v1885, 4
      %v1888 = vor.u32 %v1887, %v1883
      %v1889 = vrot.slane %v1888, 4
      %v1891 = vshll.u32 %v1804, 16
      %v1893 = vrot.slane %v1891, 5
      %v1894 = vsel %vm226, %v1889, %v1893
      %v1896 = vshrl.u32 %v1805, 16
      %v1898 = vrot.slane %v1896, 4
      %v1899 = vshll.u32 %v1805, 16
      %v1901 = vrot.slane %v1899, 5
      %v1902 = vor.u32 %v1898, %v1901
      %v1903 = vrot.slane %v1902, 4
      %v1905 = vshll.u32 %v1806, 16
      %v1907 = vrot.slane %v1905, 5
      %v1908 = vsel %vm226, %v1903, %v1907
      %v1909 = vshrl.u32 %v1806, 16
      %v1911 = vrot.slane %v1909, 4
      %v1912 = vor.u32 %v1911, %v1907
      %v1913 = vrot.slane %v1912, 4
      %v1915 = vshll.u32 %v1807, 16
      %v1917 = vrot.slane %v1915, 5
      %v1918 = vsel %vm226, %v1913, %v1917
      %v1920 = vshrl.u32 %v1808, 16
      %v1922 = vrot.slane %v1920, 4
      %v1923 = vshll.u32 %v1808, 16
      %v1925 = vrot.slane %v1923, 5
      %v1926 = vor.u32 %v1922, %v1925
      %v1927 = vrot.slane %v1926, 4
      %v1929 = vshll.u32 %v1809, 16
      %v1931 = vrot.slane %v1929, 5
      %v1932 = vsel %vm226, %v1927, %v1931
      %v1933 = vshrl.u32 %v1809, 16
      %v1935 = vrot.slane %v1933, 4
      %v1936 = vor.u32 %v1935, %v1931
      %v1937 = vrot.slane %v1936, 4
      %v1939 = vshll.u32 %v1810, 16
      %v1941 = vrot.slane %v1939, 5
      %v1942 = vsel %vm226, %v1937, %v1941
      %v1944 = vshrl.u32 %v1811, 16
      %v1946 = vrot.slane %v1944, 4
      %v1947 = vshll.u32 %v1811, 16
      %v1949 = vrot.slane %v1947, 5
      %v1950 = vor.u32 %v1946, %v1949
      %v1951 = vrot.slane %v1950, 4
      %v1953 = vshll.u32 %v1812, 16
      %v1955 = vrot.slane %v1953, 5
      %v1956 = vsel %vm226, %v1951, %v1955
      %v1957 = vshrl.u32 %v1812, 16
      %v1959 = vrot.slane %v1957, 4
      %v1960 = vor.u32 %v1959, %v1955
      %v1961 = vrot.slane %v1960, 4
      %v1963 = vshll.u32 %v1813, 16
      %v1965 = vrot.slane %v1963, 5
      %v1966 = vsel %vm226, %v1961, %v1965
      %v1968 = vshrl.u32 %v1814, 16
      %v1970 = vrot.slane %v1968, 4
      %v1971 = vshll.u32 %v1814, 16
      %v1973 = vrot.slane %v1971, 5
      %v1974 = vor.u32 %v1970, %v1973
      %v1975 = vrot.slane %v1974, 4
      %v1977 = vshll.u32 %v1815, 16
      %v1979 = vrot.slane %v1977, 5
      %v1980 = vsel %vm226, %v1975, %v1979
      %v1981 = vshrl.u32 %v1815, 16
      %v1983 = vrot.slane %v1981, 4
      %v1984 = vor.u32 %v1983, %v1979
      %v1985 = vrot.slane %v1984, 4
      %v1987 = vshll.u32 %v1816, 16
      %v1989 = vrot.slane %v1987, 5
      %v1990 = vsel %vm226, %v1985, %v1989
      %v1992 = vshrl.u32 %v1817, 16
      %v1994 = vrot.slane %v1992, 4
      %v1995 = vshll.u32 %v1817, 16
      %v1997 = vrot.slane %v1995, 5
      %v1998 = vor.u32 %v1994, %v1997
      %v1999 = vrot.slane %v1998, 4
      %v2001 = vshll.u32 %v1818, 16
      %v2003 = vrot.slane %v2001, 5
      %v2004 = vsel %vm226, %v1999, %v2003
      %v2005 = vshrl.u32 %v1818, 16
      %v2007 = vrot.slane %v2005, 4
      %v2008 = vor.u32 %v2007, %v2003
      %v2009 = vrot.slane %v2008, 4
      %v2011 = vshll.u32 %v1819, 16
      %v2013 = vrot.slane %v2011, 5
      %v2014 = vsel %vm226, %v2009, %v2013
      %v2016 = vshrl.u32 %v1820, 16
      %v2018 = vrot.slane %v2016, 4
      %v2019 = vshll.u32 %v1820, 16
      %v2021 = vrot.slane %v2019, 5
      %v2022 = vor.u32 %v2018, %v2021
      %v2023 = vrot.slane %v2022, 4
      %v2025 = vshll.u32 %v1821, 16
      %v2027 = vrot.slane %v2025, 5
      %v2028 = vsel %vm226, %v2023, %v2027
      %v2029 = vshrl.u32 %v1821, 16
      %v2031 = vrot.slane %v2029, 4
      %v2032 = vor.u32 %v2031, %v2027
      %v2033 = vrot.slane %v2032, 4
      %v2035 = vshll.u32 %v1822, 16
      %v2037 = vrot.slane %v2035, 5
      %v2038 = vsel %vm226, %v2033, %v2037
      %v2040 = vshrl.u32 %v1823, 16
      %v2042 = vrot.slane %v2040, 4
      %v2043 = vshll.u32 %v1823, 16
      %v2045 = vrot.slane %v2043, 5
      %v2046 = vor.u32 %v2042, %v2045
      %v2047 = vrot.slane %v2046, 4
      %v2049 = vshll.u32 %v1824, 16
      %v2051 = vrot.slane %v2049, 5
      %v2052 = vsel %vm226, %v2047, %v2051
      %v2053 = vshrl.u32 %v1824, 16
      %v2055 = vrot.slane %v2053, 4
      %v2056 = vor.u32 %v2055, %v2051
      %v2057 = vrot.slane %v2056, 4
      %v2059 = vshll.u32 %v1825, 16
      %v2061 = vrot.slane %v2059, 5
      %v2062 = vsel %vm226, %v2057, %v2061
      %v2064 = vshrl.u32 %v1826, 16
      %v2066 = vrot.slane %v2064, 4
      %v2067 = vshll.u32 %v1826, 16
      %v2069 = vrot.slane %v2067, 5
      %v2070 = vor.u32 %v2066, %v2069
      %v2071 = vrot.slane %v2070, 4
      %v2073 = vshll.u32 %v1827, 16
      %v2075 = vrot.slane %v2073, 5
      %v2076 = vsel %vm226, %v2071, %v2075
      %v2077 = vshrl.u32 %v1827, 16
      %v2079 = vrot.slane %v2077, 4
      %v2080 = vor.u32 %v2079, %v2075
      %v2081 = vrot.slane %v2080, 4
      %v2083 = vshll.u32 %v1828, 16
      %v2085 = vrot.slane %v2083, 5
      %v2086 = vsel %vm226, %v2081, %v2085
      %v2088 = vshrl.u32 %v1829, 16
      %v2090 = vrot.slane %v2088, 4
      %v2091 = vshll.u32 %v1829, 16
      %v2093 = vrot.slane %v2091, 5
      %v2094 = vor.u32 %v2090, %v2093
      %v2095 = vrot.slane %v2094, 4
      %v2097 = vshll.u32 %v1830, 16
      %v2099 = vrot.slane %v2097, 5
      %v2100 = vsel %vm226, %v2095, %v2099
      %v2101 = vshrl.u32 %v1830, 16
      %v2103 = vrot.slane %v2101, 4
      %v2104 = vor.u32 %v2103, %v2099
      %v2105 = vrot.slane %v2104, 4
      %v2107 = vshll.u32 %v1831, 16
      %v2109 = vrot.slane %v2107, 5
      %v2110 = vsel %vm226, %v2105, %v2109
      %v2112 = vshrl.u32 %v1832, 16
      %v2114 = vrot.slane %v2112, 4
      %v2115 = vshll.u32 %v1832, 16
      %v2117 = vrot.slane %v2115, 5
      %v2118 = vor.u32 %v2114, %v2117
      %v2119 = vrot.slane %v2118, 4
      %v2121 = vshll.u32 %v1833, 16
      %v2123 = vrot.slane %v2121, 5
      %v2124 = vsel %vm226, %v2119, %v2123
      %v2125 = vshrl.u32 %v1833, 16
      %v2127 = vrot.slane %v2125, 4
      %v2128 = vor.u32 %v2127, %v2123
      %v2129 = vrot.slane %v2128, 4
      %v2131 = vshll.u32 %v1834, 16
      %v2133 = vrot.slane %v2131, 5
      %v2134 = vsel %vm226, %v2129, %v2133
      %v2136 = vshrl.u32 %v1835, 16
      %v2138 = vrot.slane %v2136, 4
      %v2139 = vshll.u32 %v1835, 16
      %v2141 = vrot.slane %v2139, 5
      %v2142 = vor.u32 %v2138, %v2141
      %v2143 = vrot.slane %v2142, 4
      %v2145 = vshll.u32 %v1836, 16
      %v2147 = vrot.slane %v2145, 5
      %v2148 = vsel %vm226, %v2143, %v2147
      %v2149 = vshrl.u32 %v1836, 16
      %v2151 = vrot.slane %v2149, 4
      %v2152 = vor.u32 %v2151, %v2147
      %v2153 = vrot.slane %v2152, 4
      %v2155 = vshll.u32 %v1837, 16
      %v2157 = vrot.slane %v2155, 5
      %v2158 = vsel %vm226, %v2153, %v2157
      %v2160 = vshrl.u32 %v1838, 16
      %v2162 = vrot.slane %v2160, 4
      %v2163 = vshll.u32 %v1838, 16
      %v2165 = vrot.slane %v2163, 5
      %v2166 = vor.u32 %v2162, %v2165
      %v2167 = vrot.slane %v2166, 4
      %v2169 = vshll.u32 %v1839, 16
      %v2171 = vrot.slane %v2169, 5
      %v2172 = vsel %vm226, %v2167, %v2171
      %v2173 = vshrl.u32 %v1839, 16
      %v2175 = vrot.slane %v2173, 4
      %v2176 = vor.u32 %v2175, %v2171
      %v2177 = vrot.slane %v2176, 4
      %v2179 = vshll.u32 %v1840, 16
      %v2181 = vrot.slane %v2179, 5
      %v2182 = vsel %vm226, %v2177, %v2181
      %v2184 = vshrl.u32 %v1841, 16
      %v2186 = vrot.slane %v2184, 4
      %v2187 = vshll.u32 %v1841, 16
      %v2189 = vrot.slane %v2187, 5
      %v2190 = vor.u32 %v2186, %v2189
      %v2191 = vrot.slane %v2190, 4
      %v2193 = vshll.u32 %v1842, 16
      %v2195 = vrot.slane %v2193, 5
      %v2196 = vsel %vm226, %v2191, %v2195
      %v2197 = vshrl.u32 %v1842, 16
      %v2199 = vrot.slane %v2197, 4
      %v2200 = vor.u32 %v2199, %v2195
      %v2201 = vrot.slane %v2200, 4
      %v2203 = vshll.u32 %v1843, 16
      %v2205 = vrot.slane %v2203, 5
      %v2206 = vsel %vm226, %v2201, %v2205
      %v2208 = vshrl.u32 %v1844, 16
      %v2210 = vrot.slane %v2208, 4
      %v2211 = vshll.u32 %v1844, 16
      %v2213 = vrot.slane %v2211, 5
      %v2214 = vor.u32 %v2210, %v2213
      %v2215 = vrot.slane %v2214, 4
      %v2217 = vshll.u32 %v1845, 16
      %v2219 = vrot.slane %v2217, 5
      %v2220 = vsel %vm226, %v2215, %v2219
      %v2221 = vshrl.u32 %v1845, 16
      %v2223 = vrot.slane %v2221, 4
      %v2224 = vor.u32 %v2223, %v2219
      %v2225 = vrot.slane %v2224, 4
      %v2227 = vshll.u32 %v1846, 16
      %v2229 = vrot.slane %v2227, 5
      %v2230 = vsel %vm226, %v2225, %v2229
      %s2231 = scalar_lea.vmem %s1, 128
      %v2232 = vld [vmem:[%s2231] sm:$0xf]
      %v2233 = vld [vmem:[%s2231 + $0x4] sm:$0xf]
      %v2234 = vld [vmem:[%s2231 + $0x8] sm:$0xf]
      %v2235 = vld [vmem:[%s2231 + $0xc] sm:$0xf]
      %v2236 = vld [vmem:[%s2231 + $0x10] sm:$0xf]
      %v2237 = vld [vmem:[%s2231 + $0x14] sm:$0xf]
      %v2238 = vld [vmem:[%s2231 + $0x18] sm:$0xf]
      %v2239 = vld [vmem:[%s2231 + $0x1c] sm:$0xf]
      %v2240 = vunpack.c.l.b16 %v1860
      %v2241 = vunpack.c.l.b16 %v1870
      %v2242 = vunpack.c.l.b16 %v1884
      %v2243 = vunpack.c.l.b16 %v1894
      %v2244 = vunpack.c.l.b16 %v1908
      %v2245 = vunpack.c.l.b16 %v1918
      %v2246 = vunpack.c.l.b16 %v1932
      %v2247 = vunpack.c.l.b16 %v1942
      %v2248 = vunpack.c.l.b16 %v1956
      %v2249 = vunpack.c.l.b16 %v1966
      %v2250 = vunpack.c.l.b16 %v1980
      %v2251 = vunpack.c.l.b16 %v1990
      %v2252 = vunpack.c.l.b16 %v2004
      %v2253 = vunpack.c.l.b16 %v2014
      %v2254 = vunpack.c.l.b16 %v2028
      %v2255 = vunpack.c.l.b16 %v2038
      %v2256 = vunpack.c.l.b16 %v2052
      %v2257 = vunpack.c.l.b16 %v2062
      %v2258 = vunpack.c.l.b16 %v2076
      %v2259 = vunpack.c.l.b16 %v2086
      %v2260 = vunpack.c.l.b16 %v2100
      %v2261 = vunpack.c.l.b16 %v2110
      %v2262 = vunpack.c.l.b16 %v2124
      %v2263 = vunpack.c.l.b16 %v2134
      %v2264 = vunpack.c.l.b16 %v2148
      %v2265 = vunpack.c.l.b16 %v2158
      %v2266 = vunpack.c.l.b16 %v2172
      %v2267 = vunpack.c.l.b16 %v2182
      %v2268 = vunpack.c.l.b16 %v2196
      %v2269 = vunpack.c.l.b16 %v2206
      %v2270 = vunpack.c.l.b16 %v2220
      %v2271 = vunpack.c.l.b16 %v2230
      %v2272 = vpack.c.b16 %v2241, %v2240
      %v2273 = vpack.c.b16 %v2243, %v2242
      %v2274 = vpack.c.b16 %v2245, %v2244
      %v2275 = vpack.c.b16 %v2247, %v2246
      %v2276 = vpack.c.b16 %v2249, %v2248
      %v2277 = vpack.c.b16 %v2251, %v2250
      %v2278 = vpack.c.b16 %v2253, %v2252
      %v2279 = vpack.c.b16 %v2255, %v2254
      %v2280 = vpack.c.b16 %v2257, %v2256
      %v2281 = vpack.c.b16 %v2259, %v2258
      %v2282 = vpack.c.b16 %v2261, %v2260
      %v2283 = vpack.c.b16 %v2263, %v2262
      %v2284 = vpack.c.b16 %v2265, %v2264
      %v2285 = vpack.c.b16 %v2267, %v2266
      %v2286 = vpack.c.b16 %v2269, %v2268
      %v2287 = vpack.c.b16 %v2271, %v2270
      %v2296 = vunpack.c.l.b16 %v2232
      %v2297 = vunpack.c.l.b16 %v2233
      %v2298 = vunpack.c.l.b16 %v2234
      %v2299 = vunpack.c.l.b16 %v2235
      %v2300 = vunpack.c.l.b16 %v2236
      %v2301 = vunpack.c.l.b16 %v2237
      %v2302 = vunpack.c.l.b16 %v2238
      %v2303 = vunpack.c.l.b16 %v2239
      %v2304 = vpack.c.b16 %v2297, %v2296
      %v2305 = vpack.c.b16 %v2299, %v2298
      %v2306 = vpack.c.b16 %v2301, %v2300
      %v2307 = vpack.c.b16 %v2303, %v2302
      %v2313 = vsel %vm692, %v2272, 0
      %v2316 = vsel %vm692, %v2273, 0
      %v2319 = vsel %vm692, %v2274, 0
      %v2322 = vsel %vm692, %v2275, 0
      %v2325 = vsel %vm692, %v2276, 0
      %v2328 = vsel %vm692, %v2277, 0
      %v2331 = vsel %vm692, %v2278, 0
      %v2334 = vsel %vm692, %v2279, 0
      %v2337 = vsel %vm692, %v2280, 0
      %v2340 = vsel %vm692, %v2281, 0
      %v2343 = vsel %vm692, %v2282, 0
      %v2346 = vsel %vm692, %v2283, 0
      %v2349 = vsel %vm692, %v2284, 0
      %v2352 = vsel %vm692, %v2285, 0
      %v2355 = vsel %vm692, %v2286, 0
      %v2358 = vsel %vm692, %v2287, 0
      %2360 = vmatpush.bf16.msra.mxu0 0
      %2361 = vmatpush.bf16.msra.mxu0 0
      %2362 = vmatpush.bf16.msra.mxu0 0
      %2363 = vmatpush.bf16.msra.mxu0 0
      %2364 = vmatpush.bf16.msra.mxu0 %v2307
      %2365 = vmatpush.bf16.msra.mxu0 %v2306
      %2366 = vmatpush.bf16.msra.mxu0 %v2305
      %2367 = vmatpush.bf16.msra.mxu0 %v2304
      %2368 = vmatmul.bf16.gmra.mxu0 %v2313
      %v2369 = vpop.f32.mrf.mxu0
      %v2370 = vadd.f32 0.0, %v2369
      %v2371 = vpop.f32.mrf.mxu0
      %v2372 = vadd.f32 0.0, %v2371
      %2373 = vmatmul.bf16.gmra.mxu0 %v2316
      %v2374 = vpop.f32.mrf.mxu0
      %v2375 = vadd.f32 0.0, %v2374
      %v2376 = vpop.f32.mrf.mxu0
      %v2377 = vadd.f32 0.0, %v2376
      %2378 = vmatmul.bf16.gmra.mxu0 %v2319
      %v2379 = vpop.f32.mrf.mxu0
      %v2380 = vadd.f32 0.0, %v2379
      %v2381 = vpop.f32.mrf.mxu0
      %v2382 = vadd.f32 0.0, %v2381
      %2383 = vmatmul.bf16.gmra.mxu0 %v2322
      %v2384 = vpop.f32.mrf.mxu0
      %v2385 = vadd.f32 0.0, %v2384
      %v2386 = vpop.f32.mrf.mxu0
      %v2387 = vadd.f32 0.0, %v2386
      %2388 = vmatmul.bf16.gmra.mxu0 %v2325
      %v2389 = vpop.f32.mrf.mxu0
      %v2390 = vadd.f32 0.0, %v2389
      %v2391 = vpop.f32.mrf.mxu0
      %v2392 = vadd.f32 0.0, %v2391
      %2393 = vmatmul.bf16.gmra.mxu0 %v2328
      %v2394 = vpop.f32.mrf.mxu0
      %v2395 = vadd.f32 0.0, %v2394
      %v2396 = vpop.f32.mrf.mxu0
      %v2397 = vadd.f32 0.0, %v2396
      %2398 = vmatmul.bf16.gmra.mxu0 %v2331
      %v2399 = vpop.f32.mrf.mxu0
      %v2400 = vadd.f32 0.0, %v2399
      %v2401 = vpop.f32.mrf.mxu0
      %v2402 = vadd.f32 0.0, %v2401
      %2403 = vmatmul.bf16.gmra.mxu0 %v2334
      %v2404 = vpop.f32.mrf.mxu0
      %v2405 = vadd.f32 0.0, %v2404
      %v2406 = vpop.f32.mrf.mxu0
      %v2407 = vadd.f32 0.0, %v2406
      %2408 = vmatmul.bf16.gmra.mxu0 %v2337
      %v2409 = vpop.f32.mrf.mxu0
      %v2410 = vadd.f32 0.0, %v2409
      %v2411 = vpop.f32.mrf.mxu0
      %v2412 = vadd.f32 0.0, %v2411
      %2413 = vmatmul.bf16.gmra.mxu0 %v2340
      %v2414 = vpop.f32.mrf.mxu0
      %v2415 = vadd.f32 0.0, %v2414
      %v2416 = vpop.f32.mrf.mxu0
      %v2417 = vadd.f32 0.0, %v2416
      %2418 = vmatmul.bf16.gmra.mxu0 %v2343
      %v2419 = vpop.f32.mrf.mxu0
      %v2420 = vadd.f32 0.0, %v2419
      %v2421 = vpop.f32.mrf.mxu0
      %v2422 = vadd.f32 0.0, %v2421
      %2423 = vmatmul.bf16.gmra.mxu0 %v2346
      %v2424 = vpop.f32.mrf.mxu0
      %v2425 = vadd.f32 0.0, %v2424
      %v2426 = vpop.f32.mrf.mxu0
      %v2427 = vadd.f32 0.0, %v2426
      %2428 = vmatmul.bf16.gmra.mxu0 %v2349
      %v2429 = vpop.f32.mrf.mxu0
      %v2430 = vadd.f32 0.0, %v2429
      %v2431 = vpop.f32.mrf.mxu0
      %v2432 = vadd.f32 0.0, %v2431
      %2433 = vmatmul.bf16.gmra.mxu0 %v2352
      %v2434 = vpop.f32.mrf.mxu0
      %v2435 = vadd.f32 0.0, %v2434
      %v2436 = vpop.f32.mrf.mxu0
      %v2437 = vadd.f32 0.0, %v2436
      %2438 = vmatmul.bf16.gmra.mxu0 %v2355
      %v2439 = vpop.f32.mrf.mxu0
      %v2440 = vadd.f32 0.0, %v2439
      %v2441 = vpop.f32.mrf.mxu0
      %v2442 = vadd.f32 0.0, %v2441
      %2443 = vmatmul.bf16.gmra.mxu0 %v2358
      %v2444 = vpop.f32.mrf.mxu0
      %v2445 = vadd.f32 0.0, %v2444
      %v2446 = vpop.f32.mrf.mxu0
      %v2447 = vadd.f32 0.0, %v2446
      %2448 = vdwg.mxu0
      %v2449 = vadd.f32 %v1767, %v2370
      %v2450 = vadd.f32 %v1768, %v2372
      %v2451 = vadd.f32 %v1769, %v2375
      %v2452 = vadd.f32 %v1770, %v2377
      %v2453 = vadd.f32 %v1771, %v2380
      %v2454 = vadd.f32 %v1772, %v2382
      %v2455 = vadd.f32 %v1773, %v2385
      %v2456 = vadd.f32 %v1774, %v2387
      %v2457 = vadd.f32 %v1775, %v2390
      %v2458 = vadd.f32 %v1776, %v2392
      %v2459 = vadd.f32 %v1777, %v2395
      %v2460 = vadd.f32 %v1778, %v2397
      %v2461 = vadd.f32 %v1779, %v2400
      %v2462 = vadd.f32 %v1780, %v2402
      %v2463 = vadd.f32 %v1781, %v2405
      %v2464 = vadd.f32 %v1782, %v2407
      %v2465 = vadd.f32 %v1783, %v2410
      %v2466 = vadd.f32 %v1784, %v2412
      %v2467 = vadd.f32 %v1785, %v2415
      %v2468 = vadd.f32 %v1786, %v2417
      %v2469 = vadd.f32 %v1787, %v2420
      %v2470 = vadd.f32 %v1788, %v2422
      %v2471 = vadd.f32 %v1789, %v2425
      %v2472 = vadd.f32 %v1790, %v2427
      %v2473 = vadd.f32 %v1791, %v2430
      %v2474 = vadd.f32 %v1792, %v2432
      %v2475 = vadd.f32 %v1793, %v2435
      %v2476 = vadd.f32 %v1794, %v2437
      %v2477 = vadd.f32 %v1795, %v2440
      %v2478 = vadd.f32 %v1796, %v2442
      %v2479 = vadd.f32 %v1797, %v2445
      %v2480 = vadd.f32 %v1798, %v2447
      %v2481 = vld [vmem:[%s1484] sm:$0xe]
      %v2482 = vld [vmem:[%s1484 + $0xc] sm:$0xe]
      %v2483 = vld [vmem:[%s1484 + $0x18] sm:$0xe]
      %v2484 = vld [vmem:[%s1484 + $0x24] sm:$0xe]
      %v2485 = vld [vmem:[%s1484 + $0x30] sm:$0xe]
      %v2486 = vld [vmem:[%s1484 + $0x3c] sm:$0xe]
      %v2487 = vld [vmem:[%s1484 + $0x48] sm:$0xe]
      %v2488 = vld [vmem:[%s1484 + $0x54] sm:$0xe]
      %v2489 = vld [vmem:[%s1484 + $0x60] sm:$0xe]
      %v2490 = vld [vmem:[%s1484 + $0x6c] sm:$0xe]
      %v2491 = vld [vmem:[%s1484 + $0x78] sm:$0xe]
      %v2492 = vld [vmem:[%s1484 + $0x84] sm:$0xe]
      %v2493 = vld [vmem:[%s1484 + $0x90] sm:$0xe]
      %v2494 = vld [vmem:[%s1484 + $0x9c] sm:$0xe]
      %v2495 = vld [vmem:[%s1484 + $0xa8] sm:$0xe]
      %v2496 = vld [vmem:[%s1484 + $0xb4] sm:$0xe]
      %v2545 = vrot.slane %v2481, 5
      %v2546 = vrot.slane %v2545, 4
      %v2547 = vrot.slane %v1800, 5
      %v2548 = vsel %vm1121, %v2546, %v2547
      %v2549 = vrot.slane %v2547, 4
      %v2550 = vrot.slane %v1801, 5
      %v2551 = vsel %vm1121, %v2549, %v2550
      %v2552 = vrot.slane %v2482, 5
      %v2553 = vrot.slane %v2552, 4
      %v2554 = vrot.slane %v1803, 5
      %v2555 = vsel %vm1121, %v2553, %v2554
      %v2556 = vrot.slane %v2554, 4
      %v2557 = vrot.slane %v1804, 5
      %v2558 = vsel %vm1121, %v2556, %v2557
      %v2559 = vrot.slane %v2483, 5
      %v2560 = vrot.slane %v2559, 4
      %v2561 = vrot.slane %v1806, 5
      %v2562 = vsel %vm1121, %v2560, %v2561
      %v2563 = vrot.slane %v2561, 4
      %v2564 = vrot.slane %v1807, 5
      %v2565 = vsel %vm1121, %v2563, %v2564
      %v2566 = vrot.slane %v2484, 5
      %v2567 = vrot.slane %v2566, 4
      %v2568 = vrot.slane %v1809, 5
      %v2569 = vsel %vm1121, %v2567, %v2568
      %v2570 = vrot.slane %v2568, 4
      %v2571 = vrot.slane %v1810, 5
      %v2572 = vsel %vm1121, %v2570, %v2571
      %v2573 = vrot.slane %v2485, 5
      %v2574 = vrot.slane %v2573, 4
      %v2575 = vrot.slane %v1812, 5
      %v2576 = vsel %vm1121, %v2574, %v2575
      %v2577 = vrot.slane %v2575, 4
      %v2578 = vrot.slane %v1813, 5
      %v2579 = vsel %vm1121, %v2577, %v2578
      %v2580 = vrot.slane %v2486, 5
      %v2581 = vrot.slane %v2580, 4
      %v2582 = vrot.slane %v1815, 5
      %v2583 = vsel %vm1121, %v2581, %v2582
      %v2584 = vrot.slane %v2582, 4
      %v2585 = vrot.slane %v1816, 5
      %v2586 = vsel %vm1121, %v2584, %v2585
      %v2587 = vrot.slane %v2487, 5
      %v2588 = vrot.slane %v2587, 4
      %v2589 = vrot.slane %v1818, 5
      %v2590 = vsel %vm1121, %v2588, %v2589
      %v2591 = vrot.slane %v2589, 4
      %v2592 = vrot.slane %v1819, 5
      %v2593 = vsel %vm1121, %v2591, %v2592
      %v2594 = vrot.slane %v2488, 5
      %v2595 = vrot.slane %v2594, 4
      %v2596 = vrot.slane %v1821, 5
      %v2597 = vsel %vm1121, %v2595, %v2596
      %v2598 = vrot.slane %v2596, 4
      %v2599 = vrot.slane %v1822, 5
      %v2600 = vsel %vm1121, %v2598, %v2599
      %v2601 = vrot.slane %v2489, 5
      %v2602 = vrot.slane %v2601, 4
      %v2603 = vrot.slane %v1824, 5
      %v2604 = vsel %vm1121, %v2602, %v2603
      %v2605 = vrot.slane %v2603, 4
      %v2606 = vrot.slane %v1825, 5
      %v2607 = vsel %vm1121, %v2605, %v2606
      %v2608 = vrot.slane %v2490, 5
      %v2609 = vrot.slane %v2608, 4
      %v2610 = vrot.slane %v1827, 5
      %v2611 = vsel %vm1121, %v2609, %v2610
      %v2612 = vrot.slane %v2610, 4
      %v2613 = vrot.slane %v1828, 5
      %v2614 = vsel %vm1121, %v2612, %v2613
      %v2615 = vrot.slane %v2491, 5
      %v2616 = vrot.slane %v2615, 4
      %v2617 = vrot.slane %v1830, 5
      %v2618 = vsel %vm1121, %v2616, %v2617
      %v2619 = vrot.slane %v2617, 4
      %v2620 = vrot.slane %v1831, 5
      %v2621 = vsel %vm1121, %v2619, %v2620
      %v2622 = vrot.slane %v2492, 5
      %v2623 = vrot.slane %v2622, 4
      %v2624 = vrot.slane %v1833, 5
      %v2625 = vsel %vm1121, %v2623, %v2624
      %v2626 = vrot.slane %v2624, 4
      %v2627 = vrot.slane %v1834, 5
      %v2628 = vsel %vm1121, %v2626, %v2627
      %v2629 = vrot.slane %v2493, 5
      %v2630 = vrot.slane %v2629, 4
      %v2631 = vrot.slane %v1836, 5
      %v2632 = vsel %vm1121, %v2630, %v2631
      %v2633 = vrot.slane %v2631, 4
      %v2634 = vrot.slane %v1837, 5
      %v2635 = vsel %vm1121, %v2633, %v2634
      %v2636 = vrot.slane %v2494, 5
      %v2637 = vrot.slane %v2636, 4
      %v2638 = vrot.slane %v1839, 5
      %v2639 = vsel %vm1121, %v2637, %v2638
      %v2640 = vrot.slane %v2638, 4
      %v2641 = vrot.slane %v1840, 5
      %v2642 = vsel %vm1121, %v2640, %v2641
      %v2643 = vrot.slane %v2495, 5
      %v2644 = vrot.slane %v2643, 4
      %v2645 = vrot.slane %v1842, 5
      %v2646 = vsel %vm1121, %v2644, %v2645
      %v2647 = vrot.slane %v2645, 4
      %v2648 = vrot.slane %v1843, 5
      %v2649 = vsel %vm1121, %v2647, %v2648
      %v2650 = vrot.slane %v2496, 5
      %v2651 = vrot.slane %v2650, 4
      %v2652 = vrot.slane %v1845, 5
      %v2653 = vsel %vm1121, %v2651, %v2652
      %v2654 = vrot.slane %v2652, 4
      %v2655 = vrot.slane %v1846, 5
      %v2656 = vsel %vm1121, %v2654, %v2655
      %s2657 = scalar_lea.vmem %s1, 160
      %v2658 = vld [vmem:[%s2657] sm:$0xf]
      %v2659 = vld [vmem:[%s2657 + $0x4] sm:$0xf]
      %v2660 = vld [vmem:[%s2657 + $0x8] sm:$0xf]
      %v2661 = vld [vmem:[%s2657 + $0xc] sm:$0xf]
      %v2662 = vld [vmem:[%s2657 + $0x10] sm:$0xf]
      %v2663 = vld [vmem:[%s2657 + $0x14] sm:$0xf]
      %v2664 = vld [vmem:[%s2657 + $0x18] sm:$0xf]
      %v2665 = vld [vmem:[%s2657 + $0x1c] sm:$0xf]
      %v2666 = vunpack.c.l.b16 %v2548
      %v2667 = vunpack.c.l.b16 %v2551
      %v2668 = vunpack.c.l.b16 %v2555
      %v2669 = vunpack.c.l.b16 %v2558
      %v2670 = vunpack.c.l.b16 %v2562
      %v2671 = vunpack.c.l.b16 %v2565
      %v2672 = vunpack.c.l.b16 %v2569
      %v2673 = vunpack.c.l.b16 %v2572
      %v2674 = vunpack.c.l.b16 %v2576
      %v2675 = vunpack.c.l.b16 %v2579
      %v2676 = vunpack.c.l.b16 %v2583
      %v2677 = vunpack.c.l.b16 %v2586
      %v2678 = vunpack.c.l.b16 %v2590
      %v2679 = vunpack.c.l.b16 %v2593
      %v2680 = vunpack.c.l.b16 %v2597
      %v2681 = vunpack.c.l.b16 %v2600
      %v2682 = vunpack.c.l.b16 %v2604
      %v2683 = vunpack.c.l.b16 %v2607
      %v2684 = vunpack.c.l.b16 %v2611
      %v2685 = vunpack.c.l.b16 %v2614
      %v2686 = vunpack.c.l.b16 %v2618
      %v2687 = vunpack.c.l.b16 %v2621
      %v2688 = vunpack.c.l.b16 %v2625
      %v2689 = vunpack.c.l.b16 %v2628
      %v2690 = vunpack.c.l.b16 %v2632
      %v2691 = vunpack.c.l.b16 %v2635
      %v2692 = vunpack.c.l.b16 %v2639
      %v2693 = vunpack.c.l.b16 %v2642
      %v2694 = vunpack.c.l.b16 %v2646
      %v2695 = vunpack.c.l.b16 %v2649
      %v2696 = vunpack.c.l.b16 %v2653
      %v2697 = vunpack.c.l.b16 %v2656
      %v2698 = vpack.c.b16 %v2667, %v2666
      %v2699 = vpack.c.b16 %v2669, %v2668
      %v2700 = vpack.c.b16 %v2671, %v2670
      %v2701 = vpack.c.b16 %v2673, %v2672
      %v2702 = vpack.c.b16 %v2675, %v2674
      %v2703 = vpack.c.b16 %v2677, %v2676
      %v2704 = vpack.c.b16 %v2679, %v2678
      %v2705 = vpack.c.b16 %v2681, %v2680
      %v2706 = vpack.c.b16 %v2683, %v2682
      %v2707 = vpack.c.b16 %v2685, %v2684
      %v2708 = vpack.c.b16 %v2687, %v2686
      %v2709 = vpack.c.b16 %v2689, %v2688
      %v2710 = vpack.c.b16 %v2691, %v2690
      %v2711 = vpack.c.b16 %v2693, %v2692
      %v2712 = vpack.c.b16 %v2695, %v2694
      %v2713 = vpack.c.b16 %v2697, %v2696
      %v2722 = vunpack.c.l.b16 %v2658
      %v2723 = vunpack.c.l.b16 %v2659
      %v2724 = vunpack.c.l.b16 %v2660
      %v2725 = vunpack.c.l.b16 %v2661
      %v2726 = vunpack.c.l.b16 %v2662
      %v2727 = vunpack.c.l.b16 %v2663
      %v2728 = vunpack.c.l.b16 %v2664
      %v2729 = vunpack.c.l.b16 %v2665
      %v2730 = vpack.c.b16 %v2723, %v2722
      %v2731 = vpack.c.b16 %v2725, %v2724
      %v2732 = vpack.c.b16 %v2727, %v2726
      %v2733 = vpack.c.b16 %v2729, %v2728
      %v2739 = vsel %vm692, %v2698, 0
      %v2742 = vsel %vm692, %v2699, 0
      %v2745 = vsel %vm692, %v2700, 0
      %v2748 = vsel %vm692, %v2701, 0
      %v2751 = vsel %vm692, %v2702, 0
      %v2754 = vsel %vm692, %v2703, 0
      %v2757 = vsel %vm692, %v2704, 0
      %v2760 = vsel %vm692, %v2705, 0
      %v2763 = vsel %vm692, %v2706, 0
      %v2766 = vsel %vm692, %v2707, 0
      %v2769 = vsel %vm692, %v2708, 0
      %v2772 = vsel %vm692, %v2709, 0
      %v2775 = vsel %vm692, %v2710, 0
      %v2778 = vsel %vm692, %v2711, 0
      %v2781 = vsel %vm692, %v2712, 0
      %v2784 = vsel %vm692, %v2713, 0
      %2786 = vmatpush.bf16.msra.mxu0 0
      %2787 = vmatpush.bf16.msra.mxu0 0
      %2788 = vmatpush.bf16.msra.mxu0 0
      %2789 = vmatpush.bf16.msra.mxu0 0
      %2790 = vmatpush.bf16.msra.mxu0 %v2733
      %2791 = vmatpush.bf16.msra.mxu0 %v2732
      %2792 = vmatpush.bf16.msra.mxu0 %v2731
      %2793 = vmatpush.bf16.msra.mxu0 %v2730
      %2794 = vmatmul.bf16.gmra.mxu0 %v2739
      %v2795 = vpop.f32.mrf.mxu0
      %v2796 = vadd.f32 0.0, %v2795
      %v2797 = vpop.f32.mrf.mxu0
      %v2798 = vadd.f32 0.0, %v2797
      %2799 = vmatmul.bf16.gmra.mxu0 %v2742
      %v2800 = vpop.f32.mrf.mxu0
      %v2801 = vadd.f32 0.0, %v2800
      %v2802 = vpop.f32.mrf.mxu0
      %v2803 = vadd.f32 0.0, %v2802
      %2804 = vmatmul.bf16.gmra.mxu0 %v2745
      %v2805 = vpop.f32.mrf.mxu0
      %v2806 = vadd.f32 0.0, %v2805
      %v2807 = vpop.f32.mrf.mxu0
      %v2808 = vadd.f32 0.0, %v2807
      %2809 = vmatmul.bf16.gmra.mxu0 %v2748
      %v2810 = vpop.f32.mrf.mxu0
      %v2811 = vadd.f32 0.0, %v2810
      %v2812 = vpop.f32.mrf.mxu0
      %v2813 = vadd.f32 0.0, %v2812
      %2814 = vmatmul.bf16.gmra.mxu0 %v2751
      %v2815 = vpop.f32.mrf.mxu0
      %v2816 = vadd.f32 0.0, %v2815
      %v2817 = vpop.f32.mrf.mxu0
      %v2818 = vadd.f32 0.0, %v2817
      %2819 = vmatmul.bf16.gmra.mxu0 %v2754
      %v2820 = vpop.f32.mrf.mxu0
      %v2821 = vadd.f32 0.0, %v2820
      %v2822 = vpop.f32.mrf.mxu0
      %v2823 = vadd.f32 0.0, %v2822
      %2824 = vmatmul.bf16.gmra.mxu0 %v2757
      %v2825 = vpop.f32.mrf.mxu0
      %v2826 = vadd.f32 0.0, %v2825
      %v2827 = vpop.f32.mrf.mxu0
      %v2828 = vadd.f32 0.0, %v2827
      %2829 = vmatmul.bf16.gmra.mxu0 %v2760
      %v2830 = vpop.f32.mrf.mxu0
      %v2831 = vadd.f32 0.0, %v2830
      %v2832 = vpop.f32.mrf.mxu0
      %v2833 = vadd.f32 0.0, %v2832
      %2834 = vmatmul.bf16.gmra.mxu0 %v2763
      %v2835 = vpop.f32.mrf.mxu0
      %v2836 = vadd.f32 0.0, %v2835
      %v2837 = vpop.f32.mrf.mxu0
      %v2838 = vadd.f32 0.0, %v2837
      %2839 = vmatmul.bf16.gmra.mxu0 %v2766
      %v2840 = vpop.f32.mrf.mxu0
      %v2841 = vadd.f32 0.0, %v2840
      %v2842 = vpop.f32.mrf.mxu0
      %v2843 = vadd.f32 0.0, %v2842
      %2844 = vmatmul.bf16.gmra.mxu0 %v2769
      %v2845 = vpop.f32.mrf.mxu0
      %v2846 = vadd.f32 0.0, %v2845
      %v2847 = vpop.f32.mrf.mxu0
      %v2848 = vadd.f32 0.0, %v2847
      %2849 = vmatmul.bf16.gmra.mxu0 %v2772
      %v2850 = vpop.f32.mrf.mxu0
      %v2851 = vadd.f32 0.0, %v2850
      %v2852 = vpop.f32.mrf.mxu0
      %v2853 = vadd.f32 0.0, %v2852
      %2854 = vmatmul.bf16.gmra.mxu0 %v2775
      %v2855 = vpop.f32.mrf.mxu0
      %v2856 = vadd.f32 0.0, %v2855
      %v2857 = vpop.f32.mrf.mxu0
      %v2858 = vadd.f32 0.0, %v2857
      %2859 = vmatmul.bf16.gmra.mxu0 %v2778
      %v2860 = vpop.f32.mrf.mxu0
      %v2861 = vadd.f32 0.0, %v2860
      %v2862 = vpop.f32.mrf.mxu0
      %v2863 = vadd.f32 0.0, %v2862
      %2864 = vmatmul.bf16.gmra.mxu0 %v2781
      %v2865 = vpop.f32.mrf.mxu0
      %v2866 = vadd.f32 0.0, %v2865
      %v2867 = vpop.f32.mrf.mxu0
      %v2868 = vadd.f32 0.0, %v2867
      %2869 = vmatmul.bf16.gmra.mxu0 %v2784
      %v2870 = vpop.f32.mrf.mxu0
      %v2871 = vadd.f32 0.0, %v2870
      %v2872 = vpop.f32.mrf.mxu0
      %v2873 = vadd.f32 0.0, %v2872
      %2874 = vdwg.mxu0
      %v2875 = vadd.f32 %v2449, %v2796
      %v2876 = vadd.f32 %v2450, %v2798
      %v2877 = vadd.f32 %v2451, %v2801
      %v2878 = vadd.f32 %v2452, %v2803
      %v2879 = vadd.f32 %v2453, %v2806
      %v2880 = vadd.f32 %v2454, %v2808
      %v2881 = vadd.f32 %v2455, %v2811
      %v2882 = vadd.f32 %v2456, %v2813
      %v2883 = vadd.f32 %v2457, %v2816
      %v2884 = vadd.f32 %v2458, %v2818
      %v2885 = vadd.f32 %v2459, %v2821
      %v2886 = vadd.f32 %v2460, %v2823
      %v2887 = vadd.f32 %v2461, %v2826
      %v2888 = vadd.f32 %v2462, %v2828
      %v2889 = vadd.f32 %v2463, %v2831
      %v2890 = vadd.f32 %v2464, %v2833
      %v2891 = vadd.f32 %v2465, %v2836
      %v2892 = vadd.f32 %v2466, %v2838
      %v2893 = vadd.f32 %v2467, %v2841
      %v2894 = vadd.f32 %v2468, %v2843
      %v2895 = vadd.f32 %v2469, %v2846
      %v2896 = vadd.f32 %v2470, %v2848
      %v2897 = vadd.f32 %v2471, %v2851
      %v2898 = vadd.f32 %v2472, %v2853
      %v2899 = vadd.f32 %v2473, %v2856
      %v2900 = vadd.f32 %v2474, %v2858
      %v2901 = vadd.f32 %v2475, %v2861
      %v2902 = vadd.f32 %v2476, %v2863
      %v2903 = vadd.f32 %v2477, %v2866
      %v2904 = vadd.f32 %v2478, %v2868
      %v2905 = vadd.f32 %v2479, %v2871
      %v2906 = vadd.f32 %v2480, %v2873
      %s2907 = scalar_lea.vmem %s163, 24
      %v2908 = vld [vmem:[%s2907] sm:$0xf]
      %v2909 = vld [vmem:[%s2907 + $0x4] sm:$0xf]
      %v2910 = vld [vmem:[%s2907 + $0xc] sm:$0xf]
      %v2911 = vld [vmem:[%s2907 + $0x10] sm:$0xf]
      %v2912 = vld [vmem:[%s2907 + $0x18] sm:$0xf]
      %v2913 = vld [vmem:[%s2907 + $0x1c] sm:$0xf]
      %v2914 = vld [vmem:[%s2907 + $0x24] sm:$0xf]
      %v2915 = vld [vmem:[%s2907 + $0x28] sm:$0xf]
      %v2916 = vld [vmem:[%s2907 + $0x30] sm:$0xf]
      %v2917 = vld [vmem:[%s2907 + $0x34] sm:$0xf]
      %v2918 = vld [vmem:[%s2907 + $0x3c] sm:$0xf]
      %v2919 = vld [vmem:[%s2907 + $0x40] sm:$0xf]
      %v2920 = vld [vmem:[%s2907 + $0x48] sm:$0xf]
      %v2921 = vld [vmem:[%s2907 + $0x4c] sm:$0xf]
      %v2922 = vld [vmem:[%s2907 + $0x54] sm:$0xf]
      %v2923 = vld [vmem:[%s2907 + $0x58] sm:$0xf]
      %v2924 = vld [vmem:[%s2907 + $0x60] sm:$0xf]
      %v2925 = vld [vmem:[%s2907 + $0x64] sm:$0xf]
      %v2926 = vld [vmem:[%s2907 + $0x6c] sm:$0xf]
      %v2927 = vld [vmem:[%s2907 + $0x70] sm:$0xf]
      %v2928 = vld [vmem:[%s2907 + $0x78] sm:$0xf]
      %v2929 = vld [vmem:[%s2907 + $0x7c] sm:$0xf]
      %v2930 = vld [vmem:[%s2907 + $0x84] sm:$0xf]
      %v2931 = vld [vmem:[%s2907 + $0x88] sm:$0xf]
      %v2932 = vld [vmem:[%s2907 + $0x90] sm:$0xf]
      %v2933 = vld [vmem:[%s2907 + $0x94] sm:$0xf]
      %v2934 = vld [vmem:[%s2907 + $0x9c] sm:$0xf]
      %v2935 = vld [vmem:[%s2907 + $0xa0] sm:$0xf]
      %v2936 = vld [vmem:[%s2907 + $0xa8] sm:$0xf]
      %v2937 = vld [vmem:[%s2907 + $0xac] sm:$0xf]
      %v2938 = vld [vmem:[%s2907 + $0xb4] sm:$0xf]
      %v2939 = vld [vmem:[%s2907 + $0xb8] sm:$0xf]
      %s2940 = scalar_lea.vmem %s1, 192
      %v2941 = vld [vmem:[%s2940] sm:$0xf]
      %v2942 = vld [vmem:[%s2940 + $0x4] sm:$0xf]
      %v2943 = vld [vmem:[%s2940 + $0x8] sm:$0xf]
      %v2944 = vld [vmem:[%s2940 + $0xc] sm:$0xf]
      %v2945 = vld [vmem:[%s2940 + $0x10] sm:$0xf]
      %v2946 = vld [vmem:[%s2940 + $0x14] sm:$0xf]
      %v2947 = vld [vmem:[%s2940 + $0x18] sm:$0xf]
      %v2948 = vld [vmem:[%s2940 + $0x1c] sm:$0xf]
      %v2981 = vunpack.c.l.b16 %v2908
      %v2982 = vunpack.c.l.b16 %v2909
      %v2983 = vunpack.c.l.b16 %v2910
      %v2984 = vunpack.c.l.b16 %v2911
      %v2985 = vunpack.c.l.b16 %v2912
      %v2986 = vunpack.c.l.b16 %v2913
      %v2987 = vunpack.c.l.b16 %v2914
      %v2988 = vunpack.c.l.b16 %v2915
      %v2989 = vunpack.c.l.b16 %v2916
      %v2990 = vunpack.c.l.b16 %v2917
      %v2991 = vunpack.c.l.b16 %v2918
      %v2992 = vunpack.c.l.b16 %v2919
      %v2993 = vunpack.c.l.b16 %v2920
      %v2994 = vunpack.c.l.b16 %v2921
      %v2995 = vunpack.c.l.b16 %v2922
      %v2996 = vunpack.c.l.b16 %v2923
      %v2997 = vunpack.c.l.b16 %v2924
      %v2998 = vunpack.c.l.b16 %v2925
      %v2999 = vunpack.c.l.b16 %v2926
      %v3000 = vunpack.c.l.b16 %v2927
      %v3001 = vunpack.c.l.b16 %v2928
      %v3002 = vunpack.c.l.b16 %v2929
      %v3003 = vunpack.c.l.b16 %v2930
      %v3004 = vunpack.c.l.b16 %v2931
      %v3005 = vunpack.c.l.b16 %v2932
      %v3006 = vunpack.c.l.b16 %v2933
      %v3007 = vunpack.c.l.b16 %v2934
      %v3008 = vunpack.c.l.b16 %v2935
      %v3009 = vunpack.c.l.b16 %v2936
      %v3010 = vunpack.c.l.b16 %v2937
      %v3011 = vunpack.c.l.b16 %v2938
      %v3012 = vunpack.c.l.b16 %v2939
      %v3013 = vpack.c.b16 %v2982, %v2981
      %v3014 = vpack.c.b16 %v2984, %v2983
      %v3015 = vpack.c.b16 %v2986, %v2985
      %v3016 = vpack.c.b16 %v2988, %v2987
      %v3017 = vpack.c.b16 %v2990, %v2989
      %v3018 = vpack.c.b16 %v2992, %v2991
      %v3019 = vpack.c.b16 %v2994, %v2993
      %v3020 = vpack.c.b16 %v2996, %v2995
      %v3021 = vpack.c.b16 %v2998, %v2997
      %v3022 = vpack.c.b16 %v3000, %v2999
      %v3023 = vpack.c.b16 %v3002, %v3001
      %v3024 = vpack.c.b16 %v3004, %v3003
      %v3025 = vpack.c.b16 %v3006, %v3005
      %v3026 = vpack.c.b16 %v3008, %v3007
      %v3027 = vpack.c.b16 %v3010, %v3009
      %v3028 = vpack.c.b16 %v3012, %v3011
      %v3037 = vunpack.c.l.b16 %v2941
      %v3038 = vunpack.c.l.b16 %v2942
      %v3039 = vunpack.c.l.b16 %v2943
      %v3040 = vunpack.c.l.b16 %v2944
      %v3041 = vunpack.c.l.b16 %v2945
      %v3042 = vunpack.c.l.b16 %v2946
      %v3043 = vunpack.c.l.b16 %v2947
      %v3044 = vunpack.c.l.b16 %v2948
      %v3045 = vpack.c.b16 %v3038, %v3037
      %v3046 = vpack.c.b16 %v3040, %v3039
      %v3047 = vpack.c.b16 %v3042, %v3041
      %v3048 = vpack.c.b16 %v3044, %v3043
      %v3054 = vsel %vm692, %v3013, 0
      %v3057 = vsel %vm692, %v3014, 0
      %v3060 = vsel %vm692, %v3015, 0
      %v3063 = vsel %vm692, %v3016, 0
      %v3066 = vsel %vm692, %v3017, 0
      %v3069 = vsel %vm692, %v3018, 0
      %v3072 = vsel %vm692, %v3019, 0
      %v3075 = vsel %vm692, %v3020, 0
      %v3078 = vsel %vm692, %v3021, 0
      %v3081 = vsel %vm692, %v3022, 0
      %v3084 = vsel %vm692, %v3023, 0
      %v3087 = vsel %vm692, %v3024, 0
      %v3090 = vsel %vm692, %v3025, 0
      %v3093 = vsel %vm692, %v3026, 0
      %v3096 = vsel %vm692, %v3027, 0
      %v3099 = vsel %vm692, %v3028, 0
      %3101 = vmatpush.bf16.msra.mxu0 0
      %3102 = vmatpush.bf16.msra.mxu0 0
      %3103 = vmatpush.bf16.msra.mxu0 0
      %3104 = vmatpush.bf16.msra.mxu0 0
      %3105 = vmatpush.bf16.msra.mxu0 %v3048
      %3106 = vmatpush.bf16.msra.mxu0 %v3047
      %3107 = vmatpush.bf16.msra.mxu0 %v3046
      %3108 = vmatpush.bf16.msra.mxu0 %v3045
      %3109 = vmatmul.bf16.gmra.mxu0 %v3054
      %v3110 = vpop.f32.mrf.mxu0
      %v3111 = vadd.f32 0.0, %v3110
      %v3112 = vpop.f32.mrf.mxu0
      %v3113 = vadd.f32 0.0, %v3112
      %3114 = vmatmul.bf16.gmra.mxu0 %v3057
      %v3115 = vpop.f32.mrf.mxu0
      %v3116 = vadd.f32 0.0, %v3115
      %v3117 = vpop.f32.mrf.mxu0
      %v3118 = vadd.f32 0.0, %v3117
      %3119 = vmatmul.bf16.gmra.mxu0 %v3060
      %v3120 = vpop.f32.mrf.mxu0
      %v3121 = vadd.f32 0.0, %v3120
      %v3122 = vpop.f32.mrf.mxu0
      %v3123 = vadd.f32 0.0, %v3122
      %3124 = vmatmul.bf16.gmra.mxu0 %v3063
      %v3125 = vpop.f32.mrf.mxu0
      %v3126 = vadd.f32 0.0, %v3125
      %v3127 = vpop.f32.mrf.mxu0
      %v3128 = vadd.f32 0.0, %v3127
      %3129 = vmatmul.bf16.gmra.mxu0 %v3066
      %v3130 = vpop.f32.mrf.mxu0
      %v3131 = vadd.f32 0.0, %v3130
      %v3132 = vpop.f32.mrf.mxu0
      %v3133 = vadd.f32 0.0, %v3132
      %3134 = vmatmul.bf16.gmra.mxu0 %v3069
      %v3135 = vpop.f32.mrf.mxu0
      %v3136 = vadd.f32 0.0, %v3135
      %v3137 = vpop.f32.mrf.mxu0
      %v3138 = vadd.f32 0.0, %v3137
      %3139 = vmatmul.bf16.gmra.mxu0 %v3072
      %v3140 = vpop.f32.mrf.mxu0
      %v3141 = vadd.f32 0.0, %v3140
      %v3142 = vpop.f32.mrf.mxu0
      %v3143 = vadd.f32 0.0, %v3142
      %3144 = vmatmul.bf16.gmra.mxu0 %v3075
      %v3145 = vpop.f32.mrf.mxu0
      %v3146 = vadd.f32 0.0, %v3145
      %v3147 = vpop.f32.mrf.mxu0
      %v3148 = vadd.f32 0.0, %v3147
      %3149 = vmatmul.bf16.gmra.mxu0 %v3078
      %v3150 = vpop.f32.mrf.mxu0
      %v3151 = vadd.f32 0.0, %v3150
      %v3152 = vpop.f32.mrf.mxu0
      %v3153 = vadd.f32 0.0, %v3152
      %3154 = vmatmul.bf16.gmra.mxu0 %v3081
      %v3155 = vpop.f32.mrf.mxu0
      %v3156 = vadd.f32 0.0, %v3155
      %v3157 = vpop.f32.mrf.mxu0
      %v3158 = vadd.f32 0.0, %v3157
      %3159 = vmatmul.bf16.gmra.mxu0 %v3084
      %v3160 = vpop.f32.mrf.mxu0
      %v3161 = vadd.f32 0.0, %v3160
      %v3162 = vpop.f32.mrf.mxu0
      %v3163 = vadd.f32 0.0, %v3162
      %3164 = vmatmul.bf16.gmra.mxu0 %v3087
      %v3165 = vpop.f32.mrf.mxu0
      %v3166 = vadd.f32 0.0, %v3165
      %v3167 = vpop.f32.mrf.mxu0
      %v3168 = vadd.f32 0.0, %v3167
      %3169 = vmatmul.bf16.gmra.mxu0 %v3090
      %v3170 = vpop.f32.mrf.mxu0
      %v3171 = vadd.f32 0.0, %v3170
      %v3172 = vpop.f32.mrf.mxu0
      %v3173 = vadd.f32 0.0, %v3172
      %3174 = vmatmul.bf16.gmra.mxu0 %v3093
      %v3175 = vpop.f32.mrf.mxu0
      %v3176 = vadd.f32 0.0, %v3175
      %v3177 = vpop.f32.mrf.mxu0
      %v3178 = vadd.f32 0.0, %v3177
      %3179 = vmatmul.bf16.gmra.mxu0 %v3096
      %v3180 = vpop.f32.mrf.mxu0
      %v3181 = vadd.f32 0.0, %v3180
      %v3182 = vpop.f32.mrf.mxu0
      %v3183 = vadd.f32 0.0, %v3182
      %3184 = vmatmul.bf16.gmra.mxu0 %v3099
      %v3185 = vpop.f32.mrf.mxu0
      %v3186 = vadd.f32 0.0, %v3185
      %v3187 = vpop.f32.mrf.mxu0
      %v3188 = vadd.f32 0.0, %v3187
      %3189 = vdwg.mxu0
      %v3190 = vadd.f32 %v2875, %v3111
      %v3191 = vadd.f32 %v2876, %v3113
      %v3192 = vadd.f32 %v2877, %v3116
      %v3193 = vadd.f32 %v2878, %v3118
      %v3194 = vadd.f32 %v2879, %v3121
      %v3195 = vadd.f32 %v2880, %v3123
      %v3196 = vadd.f32 %v2881, %v3126
      %v3197 = vadd.f32 %v2882, %v3128
      %v3198 = vadd.f32 %v2883, %v3131
      %v3199 = vadd.f32 %v2884, %v3133
      %v3200 = vadd.f32 %v2885, %v3136
      %v3201 = vadd.f32 %v2886, %v3138
      %v3202 = vadd.f32 %v2887, %v3141
      %v3203 = vadd.f32 %v2888, %v3143
      %v3204 = vadd.f32 %v2889, %v3146
      %v3205 = vadd.f32 %v2890, %v3148
      %v3206 = vadd.f32 %v2891, %v3151
      %v3207 = vadd.f32 %v2892, %v3153
      %v3208 = vadd.f32 %v2893, %v3156
      %v3209 = vadd.f32 %v2894, %v3158
      %v3210 = vadd.f32 %v2895, %v3161
      %v3211 = vadd.f32 %v2896, %v3163
      %v3212 = vadd.f32 %v2897, %v3166
      %v3213 = vadd.f32 %v2898, %v3168
      %v3214 = vadd.f32 %v2899, %v3171
      %v3215 = vadd.f32 %v2900, %v3173
      %v3216 = vadd.f32 %v2901, %v3176
      %v3217 = vadd.f32 %v2902, %v3178
      %v3218 = vadd.f32 %v2903, %v3181
      %v3219 = vadd.f32 %v2904, %v3183
      %v3220 = vadd.f32 %v2905, %v3186
      %v3221 = vadd.f32 %v2906, %v3188
      %v3222 = vld [vmem:[%s2907] sm:$0xf]
      %v3223 = vld [vmem:[%s2907 + $0x4] sm:$0xf]
      %v3224 = vld [vmem:[%s2907 + $0x8] sm:$0x1]
      %v3225 = vld [vmem:[%s2907 + $0xc] sm:$0xf]
      %v3226 = vld [vmem:[%s2907 + $0x10] sm:$0xf]
      %v3227 = vld [vmem:[%s2907 + $0x14] sm:$0x1]
      %v3228 = vld [vmem:[%s2907 + $0x18] sm:$0xf]
      %v3229 = vld [vmem:[%s2907 + $0x1c] sm:$0xf]
      %v3230 = vld [vmem:[%s2907 + $0x20] sm:$0x1]
      %v3231 = vld [vmem:[%s2907 + $0x24] sm:$0xf]
      %v3232 = vld [vmem:[%s2907 + $0x28] sm:$0xf]
      %v3233 = vld [vmem:[%s2907 + $0x2c] sm:$0x1]
      %v3234 = vld [vmem:[%s2907 + $0x30] sm:$0xf]
      %v3235 = vld [vmem:[%s2907 + $0x34] sm:$0xf]
      %v3236 = vld [vmem:[%s2907 + $0x38] sm:$0x1]
      %v3237 = vld [vmem:[%s2907 + $0x3c] sm:$0xf]
      %v3238 = vld [vmem:[%s2907 + $0x40] sm:$0xf]
      %v3239 = vld [vmem:[%s2907 + $0x44] sm:$0x1]
      %v3240 = vld [vmem:[%s2907 + $0x48] sm:$0xf]
      %v3241 = vld [vmem:[%s2907 + $0x4c] sm:$0xf]
      %v3242 = vld [vmem:[%s2907 + $0x50] sm:$0x1]
      %v3243 = vld [vmem:[%s2907 + $0x54] sm:$0xf]
      %v3244 = vld [vmem:[%s2907 + $0x58] sm:$0xf]
      %v3245 = vld [vmem:[%s2907 + $0x5c] sm:$0x1]
      %v3246 = vld [vmem:[%s2907 + $0x60] sm:$0xf]
      %v3247 = vld [vmem:[%s2907 + $0x64] sm:$0xf]
      %v3248 = vld [vmem:[%s2907 + $0x68] sm:$0x1]
      %v3249 = vld [vmem:[%s2907 + $0x6c] sm:$0xf]
      %v3250 = vld [vmem:[%s2907 + $0x70] sm:$0xf]
      %v3251 = vld [vmem:[%s2907 + $0x74] sm:$0x1]
      %v3252 = vld [vmem:[%s2907 + $0x78] sm:$0xf]
      %v3253 = vld [vmem:[%s2907 + $0x7c] sm:$0xf]
      %v3254 = vld [vmem:[%s2907 + $0x80] sm:$0x1]
      %v3255 = vld [vmem:[%s2907 + $0x84] sm:$0xf]
      %v3256 = vld [vmem:[%s2907 + $0x88] sm:$0xf]
      %v3257 = vld [vmem:[%s2907 + $0x8c] sm:$0x1]
      %v3258 = vld [vmem:[%s2907 + $0x90] sm:$0xf]
      %v3259 = vld [vmem:[%s2907 + $0x94] sm:$0xf]
      %v3260 = vld [vmem:[%s2907 + $0x98] sm:$0x1]
      %v3261 = vld [vmem:[%s2907 + $0x9c] sm:$0xf]
      %v3262 = vld [vmem:[%s2907 + $0xa0] sm:$0xf]
      %v3263 = vld [vmem:[%s2907 + $0xa4] sm:$0x1]
      %v3264 = vld [vmem:[%s2907 + $0xa8] sm:$0xf]
      %v3265 = vld [vmem:[%s2907 + $0xac] sm:$0xf]
      %v3266 = vld [vmem:[%s2907 + $0xb0] sm:$0x1]
      %v3267 = vld [vmem:[%s2907 + $0xb4] sm:$0xf]
      %v3268 = vld [vmem:[%s2907 + $0xb8] sm:$0xf]
      %v3269 = vld [vmem:[%s2907 + $0xbc] sm:$0x1]
      %v3271 = vshrl.u32 %v3222, 16
      %v3273 = vrot.slane %v3271, 4
      %v3274 = vshll.u32 %v3222, 16
      %v3276 = vrot.slane %v3274, 5
      %v3277 = vor.u32 %v3273, %v3276
      %v3278 = vrot.slane %v3277, 4
      %v3280 = vshll.u32 %v3223, 16
      %v3282 = vrot.slane %v3280, 5
      %v3283 = vsel %vm226, %v3278, %v3282
      %v3284 = vshrl.u32 %v3223, 16
      %v3286 = vrot.slane %v3284, 4
      %v3287 = vor.u32 %v3286, %v3282
      %v3288 = vrot.slane %v3287, 4
      %v3290 = vshll.u32 %v3224, 16
      %v3292 = vrot.slane %v3290, 5
      %v3293 = vsel %vm226, %v3288, %v3292
      %v3295 = vshrl.u32 %v3225, 16
      %v3297 = vrot.slane %v3295, 4
      %v3298 = vshll.u32 %v3225, 16
      %v3300 = vrot.slane %v3298, 5
      %v3301 = vor.u32 %v3297, %v3300
      %v3302 = vrot.slane %v3301, 4
      %v3304 = vshll.u32 %v3226, 16
      %v3306 = vrot.slane %v3304, 5
      %v3307 = vsel %vm226, %v3302, %v3306
      %v3308 = vshrl.u32 %v3226, 16
      %v3310 = vrot.slane %v3308, 4
      %v3311 = vor.u32 %v3310, %v3306
      %v3312 = vrot.slane %v3311, 4
      %v3314 = vshll.u32 %v3227, 16
      %v3316 = vrot.slane %v3314, 5
      %v3317 = vsel %vm226, %v3312, %v3316
      %v3319 = vshrl.u32 %v3228, 16
      %v3321 = vrot.slane %v3319, 4
      %v3322 = vshll.u32 %v3228, 16
      %v3324 = vrot.slane %v3322, 5
      %v3325 = vor.u32 %v3321, %v3324
      %v3326 = vrot.slane %v3325, 4
      %v3328 = vshll.u32 %v3229, 16
      %v3330 = vrot.slane %v3328, 5
      %v3331 = vsel %vm226, %v3326, %v3330
      %v3332 = vshrl.u32 %v3229, 16
      %v3334 = vrot.slane %v3332, 4
      %v3335 = vor.u32 %v3334, %v3330
      %v3336 = vrot.slane %v3335, 4
      %v3338 = vshll.u32 %v3230, 16
      %v3340 = vrot.slane %v3338, 5
      %v3341 = vsel %vm226, %v3336, %v3340
      %v3343 = vshrl.u32 %v3231, 16
      %v3345 = vrot.slane %v3343, 4
      %v3346 = vshll.u32 %v3231, 16
      %v3348 = vrot.slane %v3346, 5
      %v3349 = vor.u32 %v3345, %v3348
      %v3350 = vrot.slane %v3349, 4
      %v3352 = vshll.u32 %v3232, 16
      %v3354 = vrot.slane %v3352, 5
      %v3355 = vsel %vm226, %v3350, %v3354
      %v3356 = vshrl.u32 %v3232, 16
      %v3358 = vrot.slane %v3356, 4
      %v3359 = vor.u32 %v3358, %v3354
      %v3360 = vrot.slane %v3359, 4
      %v3362 = vshll.u32 %v3233, 16
      %v3364 = vrot.slane %v3362, 5
      %v3365 = vsel %vm226, %v3360, %v3364
      %v3367 = vshrl.u32 %v3234, 16
      %v3369 = vrot.slane %v3367, 4
      %v3370 = vshll.u32 %v3234, 16
      %v3372 = vrot.slane %v3370, 5
      %v3373 = vor.u32 %v3369, %v3372
      %v3374 = vrot.slane %v3373, 4
      %v3376 = vshll.u32 %v3235, 16
      %v3378 = vrot.slane %v3376, 5
      %v3379 = vsel %vm226, %v3374, %v3378
      %v3380 = vshrl.u32 %v3235, 16
      %v3382 = vrot.slane %v3380, 4
      %v3383 = vor.u32 %v3382, %v3378
      %v3384 = vrot.slane %v3383, 4
      %v3386 = vshll.u32 %v3236, 16
      %v3388 = vrot.slane %v3386, 5
      %v3389 = vsel %vm226, %v3384, %v3388
      %v3391 = vshrl.u32 %v3237, 16
      %v3393 = vrot.slane %v3391, 4
      %v3394 = vshll.u32 %v3237, 16
      %v3396 = vrot.slane %v3394, 5
      %v3397 = vor.u32 %v3393, %v3396
      %v3398 = vrot.slane %v3397, 4
      %v3400 = vshll.u32 %v3238, 16
      %v3402 = vrot.slane %v3400, 5
      %v3403 = vsel %vm226, %v3398, %v3402
      %v3404 = vshrl.u32 %v3238, 16
      %v3406 = vrot.slane %v3404, 4
      %v3407 = vor.u32 %v3406, %v3402
      %v3408 = vrot.slane %v3407, 4
      %v3410 = vshll.u32 %v3239, 16
      %v3412 = vrot.slane %v3410, 5
      %v3413 = vsel %vm226, %v3408, %v3412
      %v3415 = vshrl.u32 %v3240, 16
      %v3417 = vrot.slane %v3415, 4
      %v3418 = vshll.u32 %v3240, 16
      %v3420 = vrot.slane %v3418, 5
      %v3421 = vor.u32 %v3417, %v3420
      %v3422 = vrot.slane %v3421, 4
      %v3424 = vshll.u32 %v3241, 16
      %v3426 = vrot.slane %v3424, 5
      %v3427 = vsel %vm226, %v3422, %v3426
      %v3428 = vshrl.u32 %v3241, 16
      %v3430 = vrot.slane %v3428, 4
      %v3431 = vor.u32 %v3430, %v3426
      %v3432 = vrot.slane %v3431, 4
      %v3434 = vshll.u32 %v3242, 16
      %v3436 = vrot.slane %v3434, 5
      %v3437 = vsel %vm226, %v3432, %v3436
      %v3439 = vshrl.u32 %v3243, 16
      %v3441 = vrot.slane %v3439, 4
      %v3442 = vshll.u32 %v3243, 16
      %v3444 = vrot.slane %v3442, 5
      %v3445 = vor.u32 %v3441, %v3444
      %v3446 = vrot.slane %v3445, 4
      %v3448 = vshll.u32 %v3244, 16
      %v3450 = vrot.slane %v3448, 5
      %v3451 = vsel %vm226, %v3446, %v3450
      %v3452 = vshrl.u32 %v3244, 16
      %v3454 = vrot.slane %v3452, 4
      %v3455 = vor.u32 %v3454, %v3450
      %v3456 = vrot.slane %v3455, 4
      %v3458 = vshll.u32 %v3245, 16
      %v3460 = vrot.slane %v3458, 5
      %v3461 = vsel %vm226, %v3456, %v3460
      %v3463 = vshrl.u32 %v3246, 16
      %v3465 = vrot.slane %v3463, 4
      %v3466 = vshll.u32 %v3246, 16
      %v3468 = vrot.slane %v3466, 5
      %v3469 = vor.u32 %v3465, %v3468
      %v3470 = vrot.slane %v3469, 4
      %v3472 = vshll.u32 %v3247, 16
      %v3474 = vrot.slane %v3472, 5
      %v3475 = vsel %vm226, %v3470, %v3474
      %v3476 = vshrl.u32 %v3247, 16
      %v3478 = vrot.slane %v3476, 4
      %v3479 = vor.u32 %v3478, %v3474
      %v3480 = vrot.slane %v3479, 4
      %v3482 = vshll.u32 %v3248, 16
      %v3484 = vrot.slane %v3482, 5
      %v3485 = vsel %vm226, %v3480, %v3484
      %v3487 = vshrl.u32 %v3249, 16
      %v3489 = vrot.slane %v3487, 4
      %v3490 = vshll.u32 %v3249, 16
      %v3492 = vrot.slane %v3490, 5
      %v3493 = vor.u32 %v3489, %v3492
      %v3494 = vrot.slane %v3493, 4
      %v3496 = vshll.u32 %v3250, 16
      %v3498 = vrot.slane %v3496, 5
      %v3499 = vsel %vm226, %v3494, %v3498
      %v3500 = vshrl.u32 %v3250, 16
      %v3502 = vrot.slane %v3500, 4
      %v3503 = vor.u32 %v3502, %v3498
      %v3504 = vrot.slane %v3503, 4
      %v3506 = vshll.u32 %v3251, 16
      %v3508 = vrot.slane %v3506, 5
      %v3509 = vsel %vm226, %v3504, %v3508
      %v3511 = vshrl.u32 %v3252, 16
      %v3513 = vrot.slane %v3511, 4
      %v3514 = vshll.u32 %v3252, 16
      %v3516 = vrot.slane %v3514, 5
      %v3517 = vor.u32 %v3513, %v3516
      %v3518 = vrot.slane %v3517, 4
      %v3520 = vshll.u32 %v3253, 16
      %v3522 = vrot.slane %v3520, 5
      %v3523 = vsel %vm226, %v3518, %v3522
      %v3524 = vshrl.u32 %v3253, 16
      %v3526 = vrot.slane %v3524, 4
      %v3527 = vor.u32 %v3526, %v3522
      %v3528 = vrot.slane %v3527, 4
      %v3530 = vshll.u32 %v3254, 16
      %v3532 = vrot.slane %v3530, 5
      %v3533 = vsel %vm226, %v3528, %v3532
      %v3535 = vshrl.u32 %v3255, 16
      %v3537 = vrot.slane %v3535, 4
      %v3538 = vshll.u32 %v3255, 16
      %v3540 = vrot.slane %v3538, 5
      %v3541 = vor.u32 %v3537, %v3540
      %v3542 = vrot.slane %v3541, 4
      %v3544 = vshll.u32 %v3256, 16
      %v3546 = vrot.slane %v3544, 5
      %v3547 = vsel %vm226, %v3542, %v3546
      %v3548 = vshrl.u32 %v3256, 16
      %v3550 = vrot.slane %v3548, 4
      %v3551 = vor.u32 %v3550, %v3546
      %v3552 = vrot.slane %v3551, 4
      %v3554 = vshll.u32 %v3257, 16
      %v3556 = vrot.slane %v3554, 5
      %v3557 = vsel %vm226, %v3552, %v3556
      %v3559 = vshrl.u32 %v3258, 16
      %v3561 = vrot.slane %v3559, 4
      %v3562 = vshll.u32 %v3258, 16
      %v3564 = vrot.slane %v3562, 5
      %v3565 = vor.u32 %v3561, %v3564
      %v3566 = vrot.slane %v3565, 4
      %v3568 = vshll.u32 %v3259, 16
      %v3570 = vrot.slane %v3568, 5
      %v3571 = vsel %vm226, %v3566, %v3570
      %v3572 = vshrl.u32 %v3259, 16
      %v3574 = vrot.slane %v3572, 4
      %v3575 = vor.u32 %v3574, %v3570
      %v3576 = vrot.slane %v3575, 4
      %v3578 = vshll.u32 %v3260, 16
      %v3580 = vrot.slane %v3578, 5
      %v3581 = vsel %vm226, %v3576, %v3580
      %v3583 = vshrl.u32 %v3261, 16
      %v3585 = vrot.slane %v3583, 4
      %v3586 = vshll.u32 %v3261, 16
      %v3588 = vrot.slane %v3586, 5
      %v3589 = vor.u32 %v3585, %v3588
      %v3590 = vrot.slane %v3589, 4
      %v3592 = vshll.u32 %v3262, 16
      %v3594 = vrot.slane %v3592, 5
      %v3595 = vsel %vm226, %v3590, %v3594
      %v3596 = vshrl.u32 %v3262, 16
      %v3598 = vrot.slane %v3596, 4
      %v3599 = vor.u32 %v3598, %v3594
      %v3600 = vrot.slane %v3599, 4
      %v3602 = vshll.u32 %v3263, 16
      %v3604 = vrot.slane %v3602, 5
      %v3605 = vsel %vm226, %v3600, %v3604
      %v3607 = vshrl.u32 %v3264, 16
      %v3609 = vrot.slane %v3607, 4
      %v3610 = vshll.u32 %v3264, 16
      %v3612 = vrot.slane %v3610, 5
      %v3613 = vor.u32 %v3609, %v3612
      %v3614 = vrot.slane %v3613, 4
      %v3616 = vshll.u32 %v3265, 16
      %v3618 = vrot.slane %v3616, 5
      %v3619 = vsel %vm226, %v3614, %v3618
      %v3620 = vshrl.u32 %v3265, 16
      %v3622 = vrot.slane %v3620, 4
      %v3623 = vor.u32 %v3622, %v3618
      %v3624 = vrot.slane %v3623, 4
      %v3626 = vshll.u32 %v3266, 16
      %v3628 = vrot.slane %v3626, 5
      %v3629 = vsel %vm226, %v3624, %v3628
      %v3631 = vshrl.u32 %v3267, 16
      %v3633 = vrot.slane %v3631, 4
      %v3634 = vshll.u32 %v3267, 16
      %v3636 = vrot.slane %v3634, 5
      %v3637 = vor.u32 %v3633, %v3636
      %v3638 = vrot.slane %v3637, 4
      %v3640 = vshll.u32 %v3268, 16
      %v3642 = vrot.slane %v3640, 5
      %v3643 = vsel %vm226, %v3638, %v3642
      %v3644 = vshrl.u32 %v3268, 16
      %v3646 = vrot.slane %v3644, 4
      %v3647 = vor.u32 %v3646, %v3642
      %v3648 = vrot.slane %v3647, 4
      %v3650 = vshll.u32 %v3269, 16
      %v3652 = vrot.slane %v3650, 5
      %v3653 = vsel %vm226, %v3648, %v3652
      %s3654 = scalar_lea.vmem %s1, 224
      %v3655 = vld [vmem:[%s3654] sm:$0xf]
      %v3656 = vld [vmem:[%s3654 + $0x4] sm:$0xf]
      %v3657 = vld [vmem:[%s3654 + $0x8] sm:$0xf]
      %v3658 = vld [vmem:[%s3654 + $0xc] sm:$0xf]
      %v3659 = vld [vmem:[%s3654 + $0x10] sm:$0xf]
      %v3660 = vld [vmem:[%s3654 + $0x14] sm:$0xf]
      %v3661 = vld [vmem:[%s3654 + $0x18] sm:$0xf]
      %v3662 = vld [vmem:[%s3654 + $0x1c] sm:$0xf]
      %v3663 = vunpack.c.l.b16 %v3283
      %v3664 = vunpack.c.l.b16 %v3293
      %v3665 = vunpack.c.l.b16 %v3307
      %v3666 = vunpack.c.l.b16 %v3317
      %v3667 = vunpack.c.l.b16 %v3331
      %v3668 = vunpack.c.l.b16 %v3341
      %v3669 = vunpack.c.l.b16 %v3355
      %v3670 = vunpack.c.l.b16 %v3365
      %v3671 = vunpack.c.l.b16 %v3379
      %v3672 = vunpack.c.l.b16 %v3389
      %v3673 = vunpack.c.l.b16 %v3403
      %v3674 = vunpack.c.l.b16 %v3413
      %v3675 = vunpack.c.l.b16 %v3427
      %v3676 = vunpack.c.l.b16 %v3437
      %v3677 = vunpack.c.l.b16 %v3451
      %v3678 = vunpack.c.l.b16 %v3461
      %v3679 = vunpack.c.l.b16 %v3475
      %v3680 = vunpack.c.l.b16 %v3485
      %v3681 = vunpack.c.l.b16 %v3499
      %v3682 = vunpack.c.l.b16 %v3509
      %v3683 = vunpack.c.l.b16 %v3523
      %v3684 = vunpack.c.l.b16 %v3533
      %v3685 = vunpack.c.l.b16 %v3547
      %v3686 = vunpack.c.l.b16 %v3557
      %v3687 = vunpack.c.l.b16 %v3571
      %v3688 = vunpack.c.l.b16 %v3581
      %v3689 = vunpack.c.l.b16 %v3595
      %v3690 = vunpack.c.l.b16 %v3605
      %v3691 = vunpack.c.l.b16 %v3619
      %v3692 = vunpack.c.l.b16 %v3629
      %v3693 = vunpack.c.l.b16 %v3643
      %v3694 = vunpack.c.l.b16 %v3653
      %v3695 = vpack.c.b16 %v3664, %v3663
      %v3696 = vpack.c.b16 %v3666, %v3665
      %v3697 = vpack.c.b16 %v3668, %v3667
      %v3698 = vpack.c.b16 %v3670, %v3669
      %v3699 = vpack.c.b16 %v3672, %v3671
      %v3700 = vpack.c.b16 %v3674, %v3673
      %v3701 = vpack.c.b16 %v3676, %v3675
      %v3702 = vpack.c.b16 %v3678, %v3677
      %v3703 = vpack.c.b16 %v3680, %v3679
      %v3704 = vpack.c.b16 %v3682, %v3681
      %v3705 = vpack.c.b16 %v3684, %v3683
      %v3706 = vpack.c.b16 %v3686, %v3685
      %v3707 = vpack.c.b16 %v3688, %v3687
      %v3708 = vpack.c.b16 %v3690, %v3689
      %v3709 = vpack.c.b16 %v3692, %v3691
      %v3710 = vpack.c.b16 %v3694, %v3693
      %v3719 = vunpack.c.l.b16 %v3655
      %v3720 = vunpack.c.l.b16 %v3656
      %v3721 = vunpack.c.l.b16 %v3657
      %v3722 = vunpack.c.l.b16 %v3658
      %v3723 = vunpack.c.l.b16 %v3659
      %v3724 = vunpack.c.l.b16 %v3660
      %v3725 = vunpack.c.l.b16 %v3661
      %v3726 = vunpack.c.l.b16 %v3662
      %v3727 = vpack.c.b16 %v3720, %v3719
      %v3728 = vpack.c.b16 %v3722, %v3721
      %v3729 = vpack.c.b16 %v3724, %v3723
      %v3730 = vpack.c.b16 %v3726, %v3725
      %v3736 = vsel %vm692, %v3695, 0
      %v3739 = vsel %vm692, %v3696, 0
      %v3742 = vsel %vm692, %v3697, 0
      %v3745 = vsel %vm692, %v3698, 0
      %v3748 = vsel %vm692, %v3699, 0
      %v3751 = vsel %vm692, %v3700, 0
      %v3754 = vsel %vm692, %v3701, 0
      %v3757 = vsel %vm692, %v3702, 0
      %v3760 = vsel %vm692, %v3703, 0
      %v3763 = vsel %vm692, %v3704, 0
      %v3766 = vsel %vm692, %v3705, 0
      %v3769 = vsel %vm692, %v3706, 0
      %v3772 = vsel %vm692, %v3707, 0
      %v3775 = vsel %vm692, %v3708, 0
      %v3778 = vsel %vm692, %v3709, 0
      %v3781 = vsel %vm692, %v3710, 0
      %3783 = vmatpush.bf16.msra.mxu0 0
      %3784 = vmatpush.bf16.msra.mxu0 0
      %3785 = vmatpush.bf16.msra.mxu0 0
      %3786 = vmatpush.bf16.msra.mxu0 0
      %3787 = vmatpush.bf16.msra.mxu0 %v3730
      %3788 = vmatpush.bf16.msra.mxu0 %v3729
      %3789 = vmatpush.bf16.msra.mxu0 %v3728
      %3790 = vmatpush.bf16.msra.mxu0 %v3727
      %3791 = vmatmul.bf16.gmra.mxu0 %v3736
      %v3792 = vpop.f32.mrf.mxu0
      %v3793 = vadd.f32 0.0, %v3792
      %v3794 = vpop.f32.mrf.mxu0
      %v3795 = vadd.f32 0.0, %v3794
      %3796 = vmatmul.bf16.gmra.mxu0 %v3739
      %v3797 = vpop.f32.mrf.mxu0
      %v3798 = vadd.f32 0.0, %v3797
      %v3799 = vpop.f32.mrf.mxu0
      %v3800 = vadd.f32 0.0, %v3799
      %3801 = vmatmul.bf16.gmra.mxu0 %v3742
      %v3802 = vpop.f32.mrf.mxu0
      %v3803 = vadd.f32 0.0, %v3802
      %v3804 = vpop.f32.mrf.mxu0
      %v3805 = vadd.f32 0.0, %v3804
      %3806 = vmatmul.bf16.gmra.mxu0 %v3745
      %v3807 = vpop.f32.mrf.mxu0
      %v3808 = vadd.f32 0.0, %v3807
      %v3809 = vpop.f32.mrf.mxu0
      %v3810 = vadd.f32 0.0, %v3809
      %3811 = vmatmul.bf16.gmra.mxu0 %v3748
      %v3812 = vpop.f32.mrf.mxu0
      %v3813 = vadd.f32 0.0, %v3812
      %v3814 = vpop.f32.mrf.mxu0
      %v3815 = vadd.f32 0.0, %v3814
      %3816 = vmatmul.bf16.gmra.mxu0 %v3751
      %v3817 = vpop.f32.mrf.mxu0
      %v3818 = vadd.f32 0.0, %v3817
      %v3819 = vpop.f32.mrf.mxu0
      %v3820 = vadd.f32 0.0, %v3819
      %3821 = vmatmul.bf16.gmra.mxu0 %v3754
      %v3822 = vpop.f32.mrf.mxu0
      %v3823 = vadd.f32 0.0, %v3822
      %v3824 = vpop.f32.mrf.mxu0
      %v3825 = vadd.f32 0.0, %v3824
      %3826 = vmatmul.bf16.gmra.mxu0 %v3757
      %v3827 = vpop.f32.mrf.mxu0
      %v3828 = vadd.f32 0.0, %v3827
      %v3829 = vpop.f32.mrf.mxu0
      %v3830 = vadd.f32 0.0, %v3829
      %3831 = vmatmul.bf16.gmra.mxu0 %v3760
      %v3832 = vpop.f32.mrf.mxu0
      %v3833 = vadd.f32 0.0, %v3832
      %v3834 = vpop.f32.mrf.mxu0
      %v3835 = vadd.f32 0.0, %v3834
      %3836 = vmatmul.bf16.gmra.mxu0 %v3763
      %v3837 = vpop.f32.mrf.mxu0
      %v3838 = vadd.f32 0.0, %v3837
      %v3839 = vpop.f32.mrf.mxu0
      %v3840 = vadd.f32 0.0, %v3839
      %3841 = vmatmul.bf16.gmra.mxu0 %v3766
      %v3842 = vpop.f32.mrf.mxu0
      %v3843 = vadd.f32 0.0, %v3842
      %v3844 = vpop.f32.mrf.mxu0
      %v3845 = vadd.f32 0.0, %v3844
      %3846 = vmatmul.bf16.gmra.mxu0 %v3769
      %v3847 = vpop.f32.mrf.mxu0
      %v3848 = vadd.f32 0.0, %v3847
      %v3849 = vpop.f32.mrf.mxu0
      %v3850 = vadd.f32 0.0, %v3849
      %3851 = vmatmul.bf16.gmra.mxu0 %v3772
      %v3852 = vpop.f32.mrf.mxu0
      %v3853 = vadd.f32 0.0, %v3852
      %v3854 = vpop.f32.mrf.mxu0
      %v3855 = vadd.f32 0.0, %v3854
      %3856 = vmatmul.bf16.gmra.mxu0 %v3775
      %v3857 = vpop.f32.mrf.mxu0
      %v3858 = vadd.f32 0.0, %v3857
      %v3859 = vpop.f32.mrf.mxu0
      %v3860 = vadd.f32 0.0, %v3859
      %3861 = vmatmul.bf16.gmra.mxu0 %v3778
      %v3862 = vpop.f32.mrf.mxu0
      %v3863 = vadd.f32 0.0, %v3862
      %v3864 = vpop.f32.mrf.mxu0
      %v3865 = vadd.f32 0.0, %v3864
      %3866 = vmatmul.bf16.gmra.mxu0 %v3781
      %v3867 = vpop.f32.mrf.mxu0
      %v3868 = vadd.f32 0.0, %v3867
      %v3869 = vpop.f32.mrf.mxu0
      %v3870 = vadd.f32 0.0, %v3869
      %3871 = vdwg.mxu0
      %v3872 = vadd.f32 %v3190, %v3793
      %v3873 = vadd.f32 %v3191, %v3795
      %v3874 = vadd.f32 %v3192, %v3798
      %v3875 = vadd.f32 %v3193, %v3800
      %v3876 = vadd.f32 %v3194, %v3803
      %v3877 = vadd.f32 %v3195, %v3805
      %v3878 = vadd.f32 %v3196, %v3808
      %v3879 = vadd.f32 %v3197, %v3810
      %v3880 = vadd.f32 %v3198, %v3813
      %v3881 = vadd.f32 %v3199, %v3815
      %v3882 = vadd.f32 %v3200, %v3818
      %v3883 = vadd.f32 %v3201, %v3820
      %v3884 = vadd.f32 %v3202, %v3823
      %v3885 = vadd.f32 %v3203, %v3825
      %v3886 = vadd.f32 %v3204, %v3828
      %v3887 = vadd.f32 %v3205, %v3830
      %v3888 = vadd.f32 %v3206, %v3833
      %v3889 = vadd.f32 %v3207, %v3835
      %v3890 = vadd.f32 %v3208, %v3838
      %v3891 = vadd.f32 %v3209, %v3840
      %v3892 = vadd.f32 %v3210, %v3843
      %v3893 = vadd.f32 %v3211, %v3845
      %v3894 = vadd.f32 %v3212, %v3848
      %v3895 = vadd.f32 %v3213, %v3850
      %v3896 = vadd.f32 %v3214, %v3853
      %v3897 = vadd.f32 %v3215, %v3855
      %v3898 = vadd.f32 %v3216, %v3858
      %v3899 = vadd.f32 %v3217, %v3860
      %v3900 = vadd.f32 %v3218, %v3863
      %v3901 = vadd.f32 %v3219, %v3865
      %v3902 = vadd.f32 %v3220, %v3868
      %v3903 = vadd.f32 %v3221, %v3870
      %v3904 = vld [vmem:[%s2907] sm:$0xe]
      %v3905 = vld [vmem:[%s2907 + $0xc] sm:$0xe]
      %v3906 = vld [vmem:[%s2907 + $0x18] sm:$0xe]
      %v3907 = vld [vmem:[%s2907 + $0x24] sm:$0xe]
      %v3908 = vld [vmem:[%s2907 + $0x30] sm:$0xe]
      %v3909 = vld [vmem:[%s2907 + $0x3c] sm:$0xe]
      %v3910 = vld [vmem:[%s2907 + $0x48] sm:$0xe]
      %v3911 = vld [vmem:[%s2907 + $0x54] sm:$0xe]
      %v3912 = vld [vmem:[%s2907 + $0x60] sm:$0xe]
      %v3913 = vld [vmem:[%s2907 + $0x6c] sm:$0xe]
      %v3914 = vld [vmem:[%s2907 + $0x78] sm:$0xe]
      %v3915 = vld [vmem:[%s2907 + $0x84] sm:$0xe]
      %v3916 = vld [vmem:[%s2907 + $0x90] sm:$0xe]
      %v3917 = vld [vmem:[%s2907 + $0x9c] sm:$0xe]
      %v3918 = vld [vmem:[%s2907 + $0xa8] sm:$0xe]
      %v3919 = vld [vmem:[%s2907 + $0xb4] sm:$0xe]
      %v3968 = vrot.slane %v3904, 5
      %v3969 = vrot.slane %v3968, 4
      %v3970 = vrot.slane %v3223, 5
      %v3971 = vsel %vm1121, %v3969, %v3970
      %v3972 = vrot.slane %v3970, 4
      %v3973 = vrot.slane %v3224, 5
      %v3974 = vsel %vm1121, %v3972, %v3973
      %v3975 = vrot.slane %v3905, 5
      %v3976 = vrot.slane %v3975, 4
      %v3977 = vrot.slane %v3226, 5
      %v3978 = vsel %vm1121, %v3976, %v3977
      %v3979 = vrot.slane %v3977, 4
      %v3980 = vrot.slane %v3227, 5
      %v3981 = vsel %vm1121, %v3979, %v3980
      %v3982 = vrot.slane %v3906, 5
      %v3983 = vrot.slane %v3982, 4
      %v3984 = vrot.slane %v3229, 5
      %v3985 = vsel %vm1121, %v3983, %v3984
      %v3986 = vrot.slane %v3984, 4
      %v3987 = vrot.slane %v3230, 5
      %v3988 = vsel %vm1121, %v3986, %v3987
      %v3989 = vrot.slane %v3907, 5
      %v3990 = vrot.slane %v3989, 4
      %v3991 = vrot.slane %v3232, 5
      %v3992 = vsel %vm1121, %v3990, %v3991
      %v3993 = vrot.slane %v3991, 4
      %v3994 = vrot.slane %v3233, 5
      %v3995 = vsel %vm1121, %v3993, %v3994
      %v3996 = vrot.slane %v3908, 5
      %v3997 = vrot.slane %v3996, 4
      %v3998 = vrot.slane %v3235, 5
      %v3999 = vsel %vm1121, %v3997, %v3998
      %v4000 = vrot.slane %v3998, 4
      %v4001 = vrot.slane %v3236, 5
      %v4002 = vsel %vm1121, %v4000, %v4001
      %v4003 = vrot.slane %v3909, 5
      %v4004 = vrot.slane %v4003, 4
      %v4005 = vrot.slane %v3238, 5
      %v4006 = vsel %vm1121, %v4004, %v4005
      %v4007 = vrot.slane %v4005, 4
      %v4008 = vrot.slane %v3239, 5
      %v4009 = vsel %vm1121, %v4007, %v4008
      %v4010 = vrot.slane %v3910, 5
      %v4011 = vrot.slane %v4010, 4
      %v4012 = vrot.slane %v3241, 5
      %v4013 = vsel %vm1121, %v4011, %v4012
      %v4014 = vrot.slane %v4012, 4
      %v4015 = vrot.slane %v3242, 5
      %v4016 = vsel %vm1121, %v4014, %v4015
      %v4017 = vrot.slane %v3911, 5
      %v4018 = vrot.slane %v4017, 4
      %v4019 = vrot.slane %v3244, 5
      %v4020 = vsel %vm1121, %v4018, %v4019
      %v4021 = vrot.slane %v4019, 4
      %v4022 = vrot.slane %v3245, 5
      %v4023 = vsel %vm1121, %v4021, %v4022
      %v4024 = vrot.slane %v3912, 5
      %v4025 = vrot.slane %v4024, 4
      %v4026 = vrot.slane %v3247, 5
      %v4027 = vsel %vm1121, %v4025, %v4026
      %v4028 = vrot.slane %v4026, 4
      %v4029 = vrot.slane %v3248, 5
      %v4030 = vsel %vm1121, %v4028, %v4029
      %v4031 = vrot.slane %v3913, 5
      %v4032 = vrot.slane %v4031, 4
      %v4033 = vrot.slane %v3250, 5
      %v4034 = vsel %vm1121, %v4032, %v4033
      %v4035 = vrot.slane %v4033, 4
      %v4036 = vrot.slane %v3251, 5
      %v4037 = vsel %vm1121, %v4035, %v4036
      %v4038 = vrot.slane %v3914, 5
      %v4039 = vrot.slane %v4038, 4
      %v4040 = vrot.slane %v3253, 5
      %v4041 = vsel %vm1121, %v4039, %v4040
      %v4042 = vrot.slane %v4040, 4
      %v4043 = vrot.slane %v3254, 5
      %v4044 = vsel %vm1121, %v4042, %v4043
      %v4045 = vrot.slane %v3915, 5
      %v4046 = vrot.slane %v4045, 4
      %v4047 = vrot.slane %v3256, 5
      %v4048 = vsel %vm1121, %v4046, %v4047
      %v4049 = vrot.slane %v4047, 4
      %v4050 = vrot.slane %v3257, 5
      %v4051 = vsel %vm1121, %v4049, %v4050
      %v4052 = vrot.slane %v3916, 5
      %v4053 = vrot.slane %v4052, 4
      %v4054 = vrot.slane %v3259, 5
      %v4055 = vsel %vm1121, %v4053, %v4054
      %v4056 = vrot.slane %v4054, 4
      %v4057 = vrot.slane %v3260, 5
      %v4058 = vsel %vm1121, %v4056, %v4057
      %v4059 = vrot.slane %v3917, 5
      %v4060 = vrot.slane %v4059, 4
      %v4061 = vrot.slane %v3262, 5
      %v4062 = vsel %vm1121, %v4060, %v4061
      %v4063 = vrot.slane %v4061, 4
      %v4064 = vrot.slane %v3263, 5
      %v4065 = vsel %vm1121, %v4063, %v4064
      %v4066 = vrot.slane %v3918, 5
      %v4067 = vrot.slane %v4066, 4
      %v4068 = vrot.slane %v3265, 5
      %v4069 = vsel %vm1121, %v4067, %v4068
      %v4070 = vrot.slane %v4068, 4
      %v4071 = vrot.slane %v3266, 5
      %v4072 = vsel %vm1121, %v4070, %v4071
      %v4073 = vrot.slane %v3919, 5
      %v4074 = vrot.slane %v4073, 4
      %v4075 = vrot.slane %v3268, 5
      %v4076 = vsel %vm1121, %v4074, %v4075
      %v4077 = vrot.slane %v4075, 4
      %v4078 = vrot.slane %v3269, 5
      %v4079 = vsel %vm1121, %v4077, %v4078
      %s4080 = scalar_lea.vmem %s1, 256
      %v4081 = vld [vmem:[%s4080] sm:$0xf]
      %v4082 = vld [vmem:[%s4080 + $0x4] sm:$0xf]
      %v4083 = vld [vmem:[%s4080 + $0x8] sm:$0xf]
      %v4084 = vld [vmem:[%s4080 + $0xc] sm:$0xf]
      %v4085 = vld [vmem:[%s4080 + $0x10] sm:$0xf]
      %v4086 = vld [vmem:[%s4080 + $0x14] sm:$0xf]
      %v4087 = vld [vmem:[%s4080 + $0x18] sm:$0xf]
      %v4088 = vld [vmem:[%s4080 + $0x1c] sm:$0xf]
      %v4089 = vunpack.c.l.b16 %v3971
      %v4090 = vunpack.c.l.b16 %v3974
      %v4091 = vunpack.c.l.b16 %v3978
      %v4092 = vunpack.c.l.b16 %v3981
      %v4093 = vunpack.c.l.b16 %v3985
      %v4094 = vunpack.c.l.b16 %v3988
      %v4095 = vunpack.c.l.b16 %v3992
      %v4096 = vunpack.c.l.b16 %v3995
      %v4097 = vunpack.c.l.b16 %v3999
      %v4098 = vunpack.c.l.b16 %v4002
      %v4099 = vunpack.c.l.b16 %v4006
      %v4100 = vunpack.c.l.b16 %v4009
      %v4101 = vunpack.c.l.b16 %v4013
      %v4102 = vunpack.c.l.b16 %v4016
      %v4103 = vunpack.c.l.b16 %v4020
      %v4104 = vunpack.c.l.b16 %v4023
      %v4105 = vunpack.c.l.b16 %v4027
      %v4106 = vunpack.c.l.b16 %v4030
      %v4107 = vunpack.c.l.b16 %v4034
      %v4108 = vunpack.c.l.b16 %v4037
      %v4109 = vunpack.c.l.b16 %v4041
      %v4110 = vunpack.c.l.b16 %v4044
      %v4111 = vunpack.c.l.b16 %v4048
      %v4112 = vunpack.c.l.b16 %v4051
      %v4113 = vunpack.c.l.b16 %v4055
      %v4114 = vunpack.c.l.b16 %v4058
      %v4115 = vunpack.c.l.b16 %v4062
      %v4116 = vunpack.c.l.b16 %v4065
      %v4117 = vunpack.c.l.b16 %v4069
      %v4118 = vunpack.c.l.b16 %v4072
      %v4119 = vunpack.c.l.b16 %v4076
      %v4120 = vunpack.c.l.b16 %v4079
      %v4121 = vpack.c.b16 %v4090, %v4089
      %v4122 = vpack.c.b16 %v4092, %v4091
      %v4123 = vpack.c.b16 %v4094, %v4093
      %v4124 = vpack.c.b16 %v4096, %v4095
      %v4125 = vpack.c.b16 %v4098, %v4097
      %v4126 = vpack.c.b16 %v4100, %v4099
      %v4127 = vpack.c.b16 %v4102, %v4101
      %v4128 = vpack.c.b16 %v4104, %v4103
      %v4129 = vpack.c.b16 %v4106, %v4105
      %v4130 = vpack.c.b16 %v4108, %v4107
      %v4131 = vpack.c.b16 %v4110, %v4109
      %v4132 = vpack.c.b16 %v4112, %v4111
      %v4133 = vpack.c.b16 %v4114, %v4113
      %v4134 = vpack.c.b16 %v4116, %v4115
      %v4135 = vpack.c.b16 %v4118, %v4117
      %v4136 = vpack.c.b16 %v4120, %v4119
      %v4145 = vunpack.c.l.b16 %v4081
      %v4146 = vunpack.c.l.b16 %v4082
      %v4147 = vunpack.c.l.b16 %v4083
      %v4148 = vunpack.c.l.b16 %v4084
      %v4149 = vunpack.c.l.b16 %v4085
      %v4150 = vunpack.c.l.b16 %v4086
      %v4151 = vunpack.c.l.b16 %v4087
      %v4152 = vunpack.c.l.b16 %v4088
      %v4153 = vpack.c.b16 %v4146, %v4145
      %v4154 = vpack.c.b16 %v4148, %v4147
      %v4155 = vpack.c.b16 %v4150, %v4149
      %v4156 = vpack.c.b16 %v4152, %v4151
      %v4162 = vsel %vm692, %v4121, 0
      %v4165 = vsel %vm692, %v4122, 0
      %v4168 = vsel %vm692, %v4123, 0
      %v4171 = vsel %vm692, %v4124, 0
      %v4174 = vsel %vm692, %v4125, 0
      %v4177 = vsel %vm692, %v4126, 0
      %v4180 = vsel %vm692, %v4127, 0
      %v4183 = vsel %vm692, %v4128, 0
      %v4186 = vsel %vm692, %v4129, 0
      %v4189 = vsel %vm692, %v4130, 0
      %v4192 = vsel %vm692, %v4131, 0
      %v4195 = vsel %vm692, %v4132, 0
      %v4198 = vsel %vm692, %v4133, 0
      %v4201 = vsel %vm692, %v4134, 0
      %v4204 = vsel %vm692, %v4135, 0
      %v4207 = vsel %vm692, %v4136, 0
      %4209 = vmatpush.bf16.msra.mxu0 0
      %4210 = vmatpush.bf16.msra.mxu0 0
      %4211 = vmatpush.bf16.msra.mxu0 0
      %4212 = vmatpush.bf16.msra.mxu0 0
      %4213 = vmatpush.bf16.msra.mxu0 %v4156
      %4214 = vmatpush.bf16.msra.mxu0 %v4155
      %4215 = vmatpush.bf16.msra.mxu0 %v4154
      %4216 = vmatpush.bf16.msra.mxu0 %v4153
      %4217 = vmatmul.bf16.gmra.mxu0 %v4162
      %v4218 = vpop.f32.mrf.mxu0
      %v4219 = vadd.f32 0.0, %v4218
      %v4220 = vpop.f32.mrf.mxu0
      %v4221 = vadd.f32 0.0, %v4220
      %4222 = vmatmul.bf16.gmra.mxu0 %v4165
      %v4223 = vpop.f32.mrf.mxu0
      %v4224 = vadd.f32 0.0, %v4223
      %v4225 = vpop.f32.mrf.mxu0
      %v4226 = vadd.f32 0.0, %v4225
      %4227 = vmatmul.bf16.gmra.mxu0 %v4168
      %v4228 = vpop.f32.mrf.mxu0
      %v4229 = vadd.f32 0.0, %v4228
      %v4230 = vpop.f32.mrf.mxu0
      %v4231 = vadd.f32 0.0, %v4230
      %4232 = vmatmul.bf16.gmra.mxu0 %v4171
      %v4233 = vpop.f32.mrf.mxu0
      %v4234 = vadd.f32 0.0, %v4233
      %v4235 = vpop.f32.mrf.mxu0
      %v4236 = vadd.f32 0.0, %v4235
      %4237 = vmatmul.bf16.gmra.mxu0 %v4174
      %v4238 = vpop.f32.mrf.mxu0
      %v4239 = vadd.f32 0.0, %v4238
      %v4240 = vpop.f32.mrf.mxu0
      %v4241 = vadd.f32 0.0, %v4240
      %4242 = vmatmul.bf16.gmra.mxu0 %v4177
      %v4243 = vpop.f32.mrf.mxu0
      %v4244 = vadd.f32 0.0, %v4243
      %v4245 = vpop.f32.mrf.mxu0
      %v4246 = vadd.f32 0.0, %v4245
      %4247 = vmatmul.bf16.gmra.mxu0 %v4180
      %v4248 = vpop.f32.mrf.mxu0
      %v4249 = vadd.f32 0.0, %v4248
      %v4250 = vpop.f32.mrf.mxu0
      %v4251 = vadd.f32 0.0, %v4250
      %4252 = vmatmul.bf16.gmra.mxu0 %v4183
      %v4253 = vpop.f32.mrf.mxu0
      %v4254 = vadd.f32 0.0, %v4253
      %v4255 = vpop.f32.mrf.mxu0
      %v4256 = vadd.f32 0.0, %v4255
      %4257 = vmatmul.bf16.gmra.mxu0 %v4186
      %v4258 = vpop.f32.mrf.mxu0
      %v4259 = vadd.f32 0.0, %v4258
      %v4260 = vpop.f32.mrf.mxu0
      %v4261 = vadd.f32 0.0, %v4260
      %4262 = vmatmul.bf16.gmra.mxu0 %v4189
      %v4263 = vpop.f32.mrf.mxu0
      %v4264 = vadd.f32 0.0, %v4263
      %v4265 = vpop.f32.mrf.mxu0
      %v4266 = vadd.f32 0.0, %v4265
      %4267 = vmatmul.bf16.gmra.mxu0 %v4192
      %v4268 = vpop.f32.mrf.mxu0
      %v4269 = vadd.f32 0.0, %v4268
      %v4270 = vpop.f32.mrf.mxu0
      %v4271 = vadd.f32 0.0, %v4270
      %4272 = vmatmul.bf16.gmra.mxu0 %v4195
      %v4273 = vpop.f32.mrf.mxu0
      %v4274 = vadd.f32 0.0, %v4273
      %v4275 = vpop.f32.mrf.mxu0
      %v4276 = vadd.f32 0.0, %v4275
      %4277 = vmatmul.bf16.gmra.mxu0 %v4198
      %v4278 = vpop.f32.mrf.mxu0
      %v4279 = vadd.f32 0.0, %v4278
      %v4280 = vpop.f32.mrf.mxu0
      %v4281 = vadd.f32 0.0, %v4280
      %4282 = vmatmul.bf16.gmra.mxu0 %v4201
      %v4283 = vpop.f32.mrf.mxu0
      %v4284 = vadd.f32 0.0, %v4283
      %v4285 = vpop.f32.mrf.mxu0
      %v4286 = vadd.f32 0.0, %v4285
      %4287 = vmatmul.bf16.gmra.mxu0 %v4204
      %v4288 = vpop.f32.mrf.mxu0
      %v4289 = vadd.f32 0.0, %v4288
      %v4290 = vpop.f32.mrf.mxu0
      %v4291 = vadd.f32 0.0, %v4290
      %4292 = vmatmul.bf16.gmra.mxu0 %v4207
      %v4293 = vpop.f32.mrf.mxu0
      %v4294 = vadd.f32 0.0, %v4293
      %v4295 = vpop.f32.mrf.mxu0
      %v4296 = vadd.f32 0.0, %v4295
      %4297 = vdwg.mxu0
      %v4298 = vadd.f32 %v3872, %v4219
      %v4299 = vadd.f32 %v3873, %v4221
      %v4300 = vadd.f32 %v3874, %v4224
      %v4301 = vadd.f32 %v3875, %v4226
      %v4302 = vadd.f32 %v3876, %v4229
      %v4303 = vadd.f32 %v3877, %v4231
      %v4304 = vadd.f32 %v3878, %v4234
      %v4305 = vadd.f32 %v3879, %v4236
      %v4306 = vadd.f32 %v3880, %v4239
      %v4307 = vadd.f32 %v3881, %v4241
      %v4308 = vadd.f32 %v3882, %v4244
      %v4309 = vadd.f32 %v3883, %v4246
      %v4310 = vadd.f32 %v3884, %v4249
      %v4311 = vadd.f32 %v3885, %v4251
      %v4312 = vadd.f32 %v3886, %v4254
      %v4313 = vadd.f32 %v3887, %v4256
      %v4314 = vadd.f32 %v3888, %v4259
      %v4315 = vadd.f32 %v3889, %v4261
      %v4316 = vadd.f32 %v3890, %v4264
      %v4317 = vadd.f32 %v3891, %v4266
      %v4318 = vadd.f32 %v3892, %v4269
      %v4319 = vadd.f32 %v3893, %v4271
      %v4320 = vadd.f32 %v3894, %v4274
      %v4321 = vadd.f32 %v3895, %v4276
      %v4322 = vadd.f32 %v3896, %v4279
      %v4323 = vadd.f32 %v3897, %v4281
      %v4324 = vadd.f32 %v3898, %v4284
      %v4325 = vadd.f32 %v3899, %v4286
      %v4326 = vadd.f32 %v3900, %v4289
      %v4327 = vadd.f32 %v3901, %v4291
      %v4328 = vadd.f32 %v3902, %v4294
      %v4329 = vadd.f32 %v3903, %v4296
      %v4330 = vld [vmem:[%s2] sm:$0x1]
      %v4332 = vperm.slane %v4330, 0
      %v4334 = vadd.f32 %v4298, %v4332
      %v4335 = vadd.f32 %v4299, %v4332
      %v4336 = vadd.f32 %v4300, %v4332
      %v4337 = vadd.f32 %v4301, %v4332
      %v4338 = vadd.f32 %v4302, %v4332
      %v4339 = vadd.f32 %v4303, %v4332
      %v4340 = vadd.f32 %v4304, %v4332
      %v4341 = vadd.f32 %v4305, %v4332
      %v4342 = vadd.f32 %v4306, %v4332
      %v4343 = vadd.f32 %v4307, %v4332
      %v4344 = vadd.f32 %v4308, %v4332
      %v4345 = vadd.f32 %v4309, %v4332
      %v4346 = vadd.f32 %v4310, %v4332
      %v4347 = vadd.f32 %v4311, %v4332
      %v4348 = vadd.f32 %v4312, %v4332
      %v4349 = vadd.f32 %v4313, %v4332
      %v4350 = vadd.f32 %v4314, %v4332
      %v4351 = vadd.f32 %v4315, %v4332
      %v4352 = vadd.f32 %v4316, %v4332
      %v4353 = vadd.f32 %v4317, %v4332
      %v4354 = vadd.f32 %v4318, %v4332
      %v4355 = vadd.f32 %v4319, %v4332
      %v4356 = vadd.f32 %v4320, %v4332
      %v4357 = vadd.f32 %v4321, %v4332
      %v4358 = vadd.f32 %v4322, %v4332
      %v4359 = vadd.f32 %v4323, %v4332
      %v4360 = vadd.f32 %v4324, %v4332
      %v4361 = vadd.f32 %v4325, %v4332
      %v4362 = vadd.f32 %v4326, %v4332
      %v4363 = vadd.f32 %v4327, %v4332
      %v4364 = vadd.f32 %v4328, %v4332
      %v4365 = vadd.f32 %v4329, %v4332
      %v4366 = vmax.f32 %v4334, 0.0
      %v4367 = vmax.f32 %v4335, 0.0
      %v4368 = vmax.f32 %v4336, 0.0
      %v4369 = vmax.f32 %v4337, 0.0
      %v4370 = vmax.f32 %v4338, 0.0
      %v4371 = vmax.f32 %v4339, 0.0
      %v4372 = vmax.f32 %v4340, 0.0
      %v4373 = vmax.f32 %v4341, 0.0
      %v4374 = vmax.f32 %v4342, 0.0
      %v4375 = vmax.f32 %v4343, 0.0
      %v4376 = vmax.f32 %v4344, 0.0
      %v4377 = vmax.f32 %v4345, 0.0
      %v4378 = vmax.f32 %v4346, 0.0
      %v4379 = vmax.f32 %v4347, 0.0
      %v4380 = vmax.f32 %v4348, 0.0
      %v4381 = vmax.f32 %v4349, 0.0
      %v4382 = vmax.f32 %v4350, 0.0
      %v4383 = vmax.f32 %v4351, 0.0
      %v4384 = vmax.f32 %v4352, 0.0
      %v4385 = vmax.f32 %v4353, 0.0
      %v4386 = vmax.f32 %v4354, 0.0
      %v4387 = vmax.f32 %v4355, 0.0
      %v4388 = vmax.f32 %v4356, 0.0
      %v4389 = vmax.f32 %v4357, 0.0
      %v4390 = vmax.f32 %v4358, 0.0
      %v4391 = vmax.f32 %v4359, 0.0
      %v4392 = vmax.f32 %v4360, 0.0
      %v4393 = vmax.f32 %v4361, 0.0
      %v4394 = vmax.f32 %v4362, 0.0
      %v4395 = vmax.f32 %v4363, 0.0
      %v4396 = vmax.f32 %v4364, 0.0
      %v4397 = vmax.f32 %v4365, 0.0
      %v4398 = vsel %vm692, %v4366, 0.0
      %v4399 = vsel %vm692, %v4367, 0.0
      %v4400 = vadd.f32 %v4398, %v4399
      %v4401 = vsel %vm692, %v4368, 0.0
      %v4402 = vadd.f32 %v4400, %v4401
      %v4403 = vsel %vm692, %v4369, 0.0
      %v4404 = vadd.f32 %v4402, %v4403
      %v4405 = vsel %vm692, %v4370, 0.0
      %v4406 = vadd.f32 %v4404, %v4405
      %v4407 = vsel %vm692, %v4371, 0.0
      %v4408 = vadd.f32 %v4406, %v4407
      %v4409 = vsel %vm692, %v4372, 0.0
      %v4410 = vadd.f32 %v4408, %v4409
      %v4411 = vsel %vm692, %v4373, 0.0
      %v4412 = vadd.f32 %v4410, %v4411
      %v4413 = vsel %vm692, %v4374, 0.0
      %v4414 = vadd.f32 %v4412, %v4413
      %v4415 = vsel %vm692, %v4375, 0.0
      %v4416 = vadd.f32 %v4414, %v4415
      %v4417 = vsel %vm692, %v4376, 0.0
      %v4418 = vadd.f32 %v4416, %v4417
      %v4419 = vsel %vm692, %v4377, 0.0
      %v4420 = vadd.f32 %v4418, %v4419
      %v4421 = vsel %vm692, %v4378, 0.0
      %v4422 = vadd.f32 %v4420, %v4421
      %v4423 = vsel %vm692, %v4379, 0.0
      %v4424 = vadd.f32 %v4422, %v4423
      %v4425 = vsel %vm692, %v4380, 0.0
      %v4426 = vadd.f32 %v4424, %v4425
      %v4427 = vsel %vm692, %v4381, 0.0
      %v4428 = vadd.f32 %v4426, %v4427
      %v4429 = vsel %vm692, %v4382, 0.0
      %v4430 = vadd.f32 %v4428, %v4429
      %v4431 = vsel %vm692, %v4383, 0.0
      %v4432 = vadd.f32 %v4430, %v4431
      %v4433 = vsel %vm692, %v4384, 0.0
      %v4434 = vadd.f32 %v4432, %v4433
      %v4435 = vsel %vm692, %v4385, 0.0
      %v4436 = vadd.f32 %v4434, %v4435
      %v4437 = vsel %vm692, %v4386, 0.0
      %v4438 = vadd.f32 %v4436, %v4437
      %v4439 = vsel %vm692, %v4387, 0.0
      %v4440 = vadd.f32 %v4438, %v4439
      %v4441 = vsel %vm692, %v4388, 0.0
      %v4442 = vadd.f32 %v4440, %v4441
      %v4443 = vsel %vm692, %v4389, 0.0
      %v4444 = vadd.f32 %v4442, %v4443
      %v4445 = vsel %vm692, %v4390, 0.0
      %v4446 = vadd.f32 %v4444, %v4445
      %v4447 = vsel %vm692, %v4391, 0.0
      %v4448 = vadd.f32 %v4446, %v4447
      %v4449 = vsel %vm692, %v4392, 0.0
      %v4450 = vadd.f32 %v4448, %v4449
      %v4451 = vsel %vm692, %v4393, 0.0
      %v4452 = vadd.f32 %v4450, %v4451
      %v4453 = vsel %vm692, %v4394, 0.0
      %v4454 = vadd.f32 %v4452, %v4453
      %v4455 = vsel %vm692, %v4395, 0.0
      %v4456 = vadd.f32 %v4454, %v4455
      %v4457 = vsel %vm692, %v4396, 0.0
      %v4458 = vadd.f32 %v4456, %v4457
      %v4459 = vsel %vm692, %v4397, 0.0
      %v4460 = vadd.f32 %v4458, %v4459
      %v4461 = vrot.slane %v4460, 4
      %v4462 = vadd.f32 %v4460, %v4461
      %v4463 = vrot.slane %v4462, 2
      %v4464 = vadd.f32 %v4462, %v4463
      %v4465 = vrot.slane %v4464, 1
      %v4466 = vadd.f32 %v4464, %v4465
      %v4467 = vrcp.pop 256.0
      %v4468 = vmul.f32 256.0, %v4467
      %v4469 = vsub.f32 1.0, %v4468
      %v4470 = vmul.f32 %v4467, %v4469
      %v4471 = vadd.f32 %v4467, %v4470
      %vm4472 = vweird.f32 %v4467
      %v4473 = vsel %vm4472, %v4467, %v4471
      %v4474 = vmul.f32 %v4466, %v4473
      %vm4475 = vcmask 516096
      %4476 = vst.msk [vmem:[%s166] sm:$0x1] %vm4475, %v4474
      %p4477 = scmp.lt.s32.totalorder %s14, 1
      %s4478 = scalar_select %p4477, %s14, 1
      %s4479 = scalar_lea.vmem %s3, %s4478
      // Predicated region
      $region33: #{rcab_forward.7} parent=31 // pred_check
        %p4480 = pneg %p100
      $region34: #{rcab_forward.7} parent=31 // pred_check_branch
        %4482 = sbr.rel (%p4480) target = $region36
      $region35: #{rcab_forward.7} parent=31 // pred_region
        _
      $region36: #{rcab_forward.7} parent=31 // pred_fallthru
        _
    $region32: #{rcab_forward.7} parent=5 // pred_fallthru
      _
    %p4483 = scmp.le.s32.totalorder 2, %s9
    // Predicated region
    $region37: #{rcab_forward.7} parent=5 // pred_check
      %p4484 = pneg %p4483
    $region38: #{rcab_forward.7} parent=5 // pred_check_branch
      %4486 = sbr.rel (%p4484) target = $region40
    $region39: #{rcab_forward.7} parent=5 // pred_region
      %s4487 = ssub.s32 %s9, 2
      // Predicated region
      $region41: #{rcab_forward.7} parent=39 // pred_check
        %p4488 = pneg %p106
      $region42: #{rcab_forward.7} parent=39 // pred_check_branch
        %4490 = sbr.rel (%p4488) target = $region44
      $region43: #{rcab_forward.7} parent=39 // pred_region
        %p4491 = scmp.lt.s32.totalorder %s15, 1
        %s4492 = scalar_select %p4491, %s15, 1
        %s4493 = scalar_lea.vmem %s3, %s4492
      $region44: #{rcab_forward.7} parent=39 // pred_fallthru
        _
    $region40: #{rcab_forward.7} parent=5 // pred_fallthru
      _
  $region6: #{rcab_forward.7} parent=0 // loop_footer
    %s13 = sadd.s32 1, %s9
  $region7: #{rcab_forward.7} parent=0 // loop_footer_branch
    %8 = sbr.rel target = $region3
  $region8: #{rcab_forward.7} parent=0 // loop_exit
    _

</llo_original>
